<compile_context>
chip_gen: v6e
topology: v6e:2x2x1
jax: 0.10.0
libtpu: 0.0.40
codegen_flags: <defaults>
</compile_context>

<pallas_src>
import functools
import math

import jax
import jax.numpy as jnp
from jax.experimental import pallas as pl
from jax.experimental.pallas import tpu as pltpu


# ---------------------------------------------------------------------------
# Helpers
# ---------------------------------------------------------------------------

def _round_up(x, m):
    return ((x + m - 1) // m) * m


def _pick_hw_tile(hw, max_tile=2048):
    """Largest spatial tile that is either the full extent or a mult-of-8 divisor."""
    if hw <= max_tile:
        return hw
    start = max_tile - (max_tile % 8)
    for t in range(start, 7, -8):
        if hw % t == 0:
            return t
    return hw  # fallback: whole extent (still correct)


# ---------------------------------------------------------------------------
# Pallas kernels
# ---------------------------------------------------------------------------

def _mm_bias_act_kernel(x_ref, w_ref, b_ref, o_ref, acc_ref, *, act_in, act_out):
    """K-tiled matmul: bf16 tiles -> f32 accumulator, fused input act + bias/tanh out."""
    k = pl.program_id(2)

    @pl.when(k == 0)
    def _():
        acc_ref[...] = jnp.zeros_like(acc_ref)

    x = x_ref[...]                              # bf16 (tm, tk)
    if act_in == "leaky":                       # LeakyReLU(0.2) on the conv input
        x = jnp.where(x >= 0, x, 0.2 * x)
    elif act_in == "relu":                      # ReLU on the conv input
        x = jnp.maximum(x, 0)

    acc_ref[...] += jnp.dot(x, w_ref[...], preferred_element_type=jnp.float32)

    @pl.when(k == pl.num_programs(2) - 1)
    def _():
        y = acc_ref[...] + b_ref[...]           # f32 bias epilogue
        if act_out == "tanh":
            y = jnp.tanh(y)
        o_ref[...] = y


def matmul_bias_act(x, w, b, act_in=None, act_out=None, tm=256, tn=256, tk=512):
    """x: (M, K), w: (K, N), b: (N,) -> (M, N) f32.

    Pads to tile multiples, runs bf16 on the MXU (zero padding is exact under
    leaky/relu since act(0) == 0), accumulates in f32.
    """
    M, K = x.shape
    K2, N = w.shape
    assert K == K2

    tm_e = min(tm, _round_up(M, 16))            # bf16 sublane packing -> mult of 16
    tk_e = min(tk, _round_up(K, 128))
    tn_e = min(tn, _round_up(N, 128))
    Mp = _round_up(M, tm_e)
    Kp = _round_up(K, tk_e)
    Np = _round_up(N, tn_e)

    xp = jnp.pad(x, ((0, Mp - M), (0, Kp - K)))
    if xp.dtype != jnp.bfloat16:
        xp = xp.astype(jnp.bfloat16)
    wp = jnp.pad(w, ((0, Kp - K), (0, Np - N)))
    if wp.dtype != jnp.bfloat16:
        wp = wp.astype(jnp.bfloat16)
    bp = jnp.pad(b.reshape(1, N).astype(jnp.float32), ((0, 0), (0, Np - N)))

    n_k = Kp // tk_e
    kernel = functools.partial(_mm_bias_act_kernel, act_in=act_in, act_out=act_out)
    cost = pl.CostEstimate(
        flops=int(2 * Mp * Kp * Np),
        transcendentals=int(Mp * Np if act_out == "tanh" else 0),
        bytes_accessed=int(Mp * Kp * 2 + Kp * Np * 2 + Mp * Np * 4),
    )

    out = pl.pallas_call(
        kernel,
        out_shape=jax.ShapeDtypeStruct((Mp, Np), jnp.float32),
        grid=(Mp // tm_e, Np // tn_e, n_k),
        in_specs=[
            pl.BlockSpec((tm_e, tk_e), lambda i, j, k: (i, k)),
            pl.BlockSpec((tk_e, tn_e), lambda i, j, k: (k, j)),
            pl.BlockSpec((1, tn_e), lambda i, j, k: (0, j)),
        ],
        out_specs=pl.BlockSpec((tm_e, tn_e), lambda i, j, k: (i, j)),
        scratch_shapes=[pltpu.VMEM((tm_e, tn_e), jnp.float32)],
        compiler_params=pltpu.CompilerParams(
            dimension_semantics=("parallel", "parallel", "arbitrary"),
            vmem_limit_bytes=32 * 1024 * 1024,
        ),
        cost_estimate=cost,
    )(xp, wp, bp)
    return out[:M, :N]


def _in_stats_kernel(x_ref, s_ref, *, hw, eps):
    """Accumulate per-(n, c) sum/sumsq across H*W tiles; finalize mean/rstd."""
    j = pl.program_id(1)

    @pl.when(j == 0)
    def _():
        s_ref[...] = jnp.zeros_like(s_ref)

    x = x_ref[...]                                        # (1, hw_t, C) f32
    s_ref[:, 0:1, :] += jnp.sum(x, axis=1, keepdims=True)
    s_ref[:, 1:2, :] += jnp.sum(x * x, axis=1, keepdims=True)

    @pl.when(j == pl.num_programs(1) - 1)
    def _():
        mean = s_ref[:, 0:1, :] / hw
        var = s_ref[:, 1:2, :] / hw - mean * mean          # biased, like PyTorch
        s_ref[:, 0:1, :] = mean
        s_ref[:, 1:2, :] = jax.lax.rsqrt(jnp.maximum(var, 0.0) + eps)


def _in_apply_kernel(x_ref, s_ref, o_ref):
    x = x_ref[...]
    o_ref[...] = (x - s_ref[:, 0:1, :]) * s_ref[:, 1:2, :]


def instance_norm_nhwc(x, eps=1e-5):
    """InstanceNorm2d (affine=False) over NHWC, tiled along the spatial axis."""
    N, H, W, C = x.shape
    HW = H * W
    xr = x.reshape(N, HW, C)
    hw_t = _pick_hw_tile(HW)
    T = HW // hw_t

    stats = pl.pallas_call(
        functools.partial(_in_stats_kernel, hw=float(HW), eps=eps),
        out_shape=jax.ShapeDtypeStruct((N, 2, C), jnp.float32),
        grid=(N, T),
        in_specs=[pl.BlockSpec((1, hw_t, C), lambda n, j: (n, j, 0))],
        out_specs=pl.BlockSpec((1, 2, C), lambda n, j: (n, 0, 0)),
        compiler_params=pltpu.CompilerParams(
            dimension_semantics=("parallel", "arbitrary")),
    )(xr)

    out = pl.pallas_call(
        _in_apply_kernel,
        out_shape=jax.ShapeDtypeStruct((N, HW, C), jnp.float32),
        grid=(N, T),
        in_specs=[pl.BlockSpec((1, hw_t, C), lambda n, j: (n, j, 0)),
                  pl.BlockSpec((1, 2, C), lambda n, j: (n, 0, 0))],
        out_specs=pl.BlockSpec((1, hw_t, C), lambda n, j: (n, j, 0)),
        compiler_params=pltpu.CompilerParams(
            dimension_semantics=("parallel", "parallel")),
    )(xr, stats)
    return out.reshape(N, H, W, C)


# ---------------------------------------------------------------------------
# JAX glue: im2col (down path) and sub-pixel phases (up path)
# ---------------------------------------------------------------------------

def _im2col(x, k, stride, pad):
    """NHWC -> (N*Ho*Wo, k*k*C) patches, ordering (kh, kw, c) with c fastest."""
    N, H, W, C = x.shape
    xp = jnp.pad(x, ((0, 0), (pad, pad), (pad, pad), (0, 0)))
    Ho = (H + 2 * pad - k) // stride + 1
    Wo = (W + 2 * pad - k) // stride + 1
    cols = []
    for dy in range(k):
        for dx in range(k):
            cols.append(xp[:, dy:dy + stride * Ho:stride, dx:dx + stride * Wo:stride, :])
    p = jnp.concatenate(cols, axis=-1)
    return p.reshape(N * Ho * Wo, k * k * C), Ho, Wo


def conv_down(x, w, b, act_in):
    """Conv2d(k=4, s=2, p=1). x: NHWC, w: (Cout, Cin, 4, 4) (PyTorch layout)."""
    N = x.shape[0]
    cout = w.shape[0]
    # bf16 patches: halves im2col HBM traffic; activation + matmul run bf16 -> f32 acc.
    patches, Ho, Wo = _im2col(x.astype(jnp.bfloat16), k=4, stride=2, pad=1)
    w_mat = jnp.transpose(w, (2, 3, 1, 0)).reshape(-1, cout)   # (16*Cin, Cout)
    out = matmul_bias_act(patches, w_mat, b, act_in=act_in, act_out=None)
    return out.reshape(N, Ho, Wo, cout)


def conv_up(x, w_t, b, act_in, act_out):
    """ConvTranspose2d(k=4, s=2, p=1) via 4-phase sub-pixel decomposition.

    y[:, 2m+a, 2n+bb, :] = sum_{dy,dx in {0,1}} w_t[:, :, 3-(2dy+a), 3-(2dx+bb)]^T
                           . x_pad[:, m+a+dy, n+bb+dx, :]
    Each phase is a 2x2 conv over the un-stuffed input (no structural-zero MACs).
    """
    N, H, W, C = x.shape
    cout = w_t.shape[1]
    xp = jnp.pad(x.astype(jnp.bfloat16), ((0, 0), (1, 1), (1, 1), (0, 0)))
    rows = []
    for a in (0, 1):
        row = []
        for bb in (0, 1):
            cols, wcols = [], []
            for dy in (0, 1):
                for dx in (0, 1):
                    cols.append(xp[:, a + dy:a + dy + H, bb + dx:bb + dx + W, :])
                    wcols.append(w_t[:, :, 3 - (2 * dy + a), 3 - (2 * dx + bb)])
            patches = jnp.concatenate(cols, axis=-1).reshape(N * H * W, 4 * C)
            w_mat = jnp.concatenate(wcols, axis=0)             # (4*Cin, Cout)
            o = matmul_bias_act(patches, w_mat, b, act_in=act_in, act_out=act_out)
            row.append(o.reshape(N, H, W, cout))
        rows.append(jnp.stack(row, axis=3))                    # (N, H, W, 2, Cout)
    y = jnp.stack(rows, axis=2)                                # (N, H, 2, W, 2, Cout)
    return y.reshape(N, 2 * H, 2 * W, cout)


# ---------------------------------------------------------------------------
# Parameter init (deterministic, PyTorch default-style uniform bounds)
# ---------------------------------------------------------------------------

def _init_conv(key, cout, cin, k=4):
    kw, kb = jax.random.split(key)
    bound = 1.0 / math.sqrt(cin * k * k)
    w = jax.random.uniform(kw, (cout, cin, k, k), jnp.float32, -bound, bound)
    b = jax.random.uniform(kb, (cout,), jnp.float32, -bound, bound)
    return w, b


def _init_convT(key, cin, cout, k=4):
    kw, kb = jax.random.split(key)
    bound = 1.0 / math.sqrt(cout * k * k)
    w = jax.random.uniform(kw, (cin, cout, k, k), jnp.float32, -bound, bound)
    b = jax.random.uniform(kb, (cout,), jnp.float32, -bound, bound)
    return w, b


def init_unet_block(key, out_dim, inner_dim, in_dim=None, sub=None,
                    outermost=False, innermost=False):
    if in_dim is None:
        in_dim = out_dim
    k1, k2 = jax.random.split(key)
    dw, db = _init_conv(k1, inner_dim, in_dim)
    if innermost:
        uw, ub = _init_convT(k2, inner_dim, out_dim)
    else:
        uw, ub = _init_convT(k2, inner_dim * 2, out_dim)
    kind = "outermost" if outermost else ("innermost" if innermost else "middle")
    return dict(kind=kind, down_w=dw, down_b=db, up_w=uw, up_b=ub, sub=sub)


def init_generator(key, in_dim, out_dim, num_downs, nf):
    keys = jax.random.split(key, num_downs + 1)
    ki = iter(keys)
    blk = init_unet_block(next(ki), nf * 8, nf * 8, innermost=True)
    for _ in range(num_downs - 5):
        blk = init_unet_block(next(ki), nf * 8, nf * 8, sub=blk)
    blk = init_unet_block(next(ki), nf * 4, nf * 8, sub=blk)
    blk = init_unet_block(next(ki), nf * 2, nf * 4, sub=blk)
    blk = init_unet_block(next(ki), nf, nf * 2, sub=blk)
    blk = init_unet_block(next(ki), out_dim, nf, in_dim=in_dim, sub=blk, outermost=True)
    return blk


# ---------------------------------------------------------------------------
# Forward (mirrors UnetBlock.forward / nn.Sequential ordering exactly)
# ---------------------------------------------------------------------------

def unet_forward(p, x):
    kind = p["kind"]
    if kind == "outermost":
        # down = [downconv]; up = [uprelu, upconv, tanh]
        h = conv_down(x, p["down_w"], p["down_b"], act_in=None)
        h = unet_forward(p["sub"], h)
        return conv_up(h, p["up_w"], p["up_b"], act_in="relu", act_out="tanh")
    if kind == "innermost":
        # down = [leakyrelu, downconv]; up = [relu, upconv, instancenorm]; skip-cat
        h = conv_down(x, p["down_w"], p["down_b"], act_in="leaky")
        h = conv_up(h, p["up_w"], p["up_b"], act_in="relu", act_out=None)
        h = instance_norm_nhwc(h)
        return jnp.concatenate([x, h], axis=-1)
    # middle: down = [leakyrelu, downconv, instancenorm]; submodule;
    #         up = [relu, upconv, instancenorm]; skip-cat
    h = conv_down(x, p["down_w"], p["down_b"], act_in="leaky")
    h = instance_norm_nhwc(h)
    h = unet_forward(p["sub"], h)
    h = conv_up(h, p["up_w"], p["up_b"], act_in="relu", act_out=None)
    h = instance_norm_nhwc(h)
    return jnp.concatenate([x, h], axis=-1)


def generator_forward(params, x_nchw):
    x = jnp.transpose(x_nchw, (0, 2, 3, 1))   # NCHW -> NHWC
    y = unet_forward(params, x)
    return jnp.transpose(y, (0, 3, 1, 2))     # NHWC -> NCHW


# ---------------------------------------------------------------------------
# Main
# ---------------------------------------------------------------------------

if __name__ == "__main__":
    key = jax.random.PRNGKey(0)
    pkey, xkey = jax.random.split(key)

    in_dim, out_dim, num_downs, nf = 3, 3, 5, 4   # small synthetic config
    N, H, W = 2, 32, 32                           # H, W divisible by 2**num_downs

    params = init_generator(pkey, in_dim, out_dim, num_downs, nf)
    x = jax.random.normal(xkey, (N, in_dim, H, W), jnp.float32)   # NCHW like PyTorch

    fwd = jax.jit(lambda inp: generator_forward(params, inp))
    y = jax.block_until_ready(fwd(x))

    assert y.shape == (N, out_dim, H, W), y.shape
    assert bool(jnp.all(jnp.isfinite(y)))
    assert bool(jnp.all(jnp.abs(y) <= 1.0 + 1e-6))   # final Tanh range check
    print("KERNEL_OK")
</pallas_src>

<mosaic_0001>
module attributes {stable_mosaic.version = 11 : i64} {
  func.func @_mm_bias_act_kernel(%arg0: i32, %arg1: i32, %arg2: i32, %arg3: memref<256x128xbf16, #tpu.memory_space<vmem>>, %arg4: memref<128x128xbf16, #tpu.memory_space<vmem>>, %arg5: memref<1x128xf32, #tpu.memory_space<vmem>>, %arg6: memref<256x128xf32, #tpu.memory_space<vmem>>, %arg7: memref<256x128xf32, #tpu.memory_space<vmem>>) attributes {dimension_semantics = [#tpu.dimension_semantics<parallel>, #tpu.dimension_semantics<parallel>, #tpu.dimension_semantics<arbitrary>], iteration_bounds = array<i64: 2, 1, 1>, scalar_prefetch = 0 : i64, scratch_operands = 1 : i64, tpu.core_type = #tpu.core_type<tc>, window_params = [{transform_indices = @transform_0, window_bounds = array<i64: 256, 128>}, {transform_indices = @transform_1, window_bounds = array<i64: 128, 128>}, {transform_indices = @transform_2, window_bounds = array<i64: 1, 128>}, {transform_indices = @transform_3, window_bounds = array<i64: 256, 128>}]} {
    %c0_i32 = arith.constant 0 : i32
    %0 = arith.cmpi eq, %arg2, %c0_i32 : i32
    %1 = arith.extui %0 : i1 to i32
    %c0_i32_0 = arith.constant 0 : i32
    %2 = arith.cmpi ne, %1, %c0_i32_0 : i32
    scf.if %2 {
      %cst_10 = arith.constant 0.000000e+00 : f32
      %12 = vector.broadcast %cst_10 : f32 to vector<256x128xf32>
      %c0_11 = arith.constant 0 : index
      %c0_12 = arith.constant 0 : index
      %13 = vector.load %arg7[%c0_11, %c0_12] : memref<256x128xf32, #tpu.memory_space<vmem>>, vector<256x128xf32>
      tpu.vector_store %arg7[%c0_11, %c0_12], %12 {strides = array<i32>} : memref<256x128xf32, #tpu.memory_space<vmem>>, vector<256x128xf32>,
    } else {
    }
    %c0 = arith.constant 0 : index
    %c0_1 = arith.constant 0 : index
    %3 = vector.load %arg3[%c0, %c0_1] : memref<256x128xbf16, #tpu.memory_space<vmem>>, vector<256x128xbf16>
    %c0_2 = arith.constant 0 : index
    %c0_3 = arith.constant 0 : index
    %4 = vector.load %arg7[%c0_2, %c0_3] : memref<256x128xf32, #tpu.memory_space<vmem>>, vector<256x128xf32>
    %c0_4 = arith.constant 0 : index
    %c0_5 = arith.constant 0 : index
    %5 = vector.load %arg4[%c0_4, %c0_5] : memref<128x128xbf16, #tpu.memory_space<vmem>>, vector<128x128xbf16>
    %cst = arith.constant dense<0.000000e+00> : vector<256x128xf32>
    %6 = tpu.matmul %3, %5, %cst {dimension_numbers = #tpu.dot_dimension_numbers<[1], [0], [0], [1], [0, 0, 1, 1], [], []>} : vector<256x128xbf16>, vector<128x128xbf16>, vector<256x128xf32> -> vector<256x128xf32>
    %7 = arith.addf %4, %6 : vector<256x128xf32>
    %c0_6 = arith.constant 0 : index
    %c0_7 = arith.constant 0 : index
    %8 = vector.load %arg7[%c0_6, %c0_7] : memref<256x128xf32, #tpu.memory_space<vmem>>, vector<256x128xf32>
    tpu.vector_store %arg7[%c0_6, %c0_7], %7 {strides = array<i32>} : memref<256x128xf32, #tpu.memory_space<vmem>>, vector<256x128xf32>,
    %c0_i32_8 = arith.constant 0 : i32
    %9 = arith.cmpi eq, %arg2, %c0_i32_8 : i32
    %10 = arith.extui %9 : i1 to i32
    %c0_i32_9 = arith.constant 0 : i32
    %11 = arith.cmpi ne, %10, %c0_i32_9 : i32
    scf.if %11 {
      %c0_10 = arith.constant 0 : index
      %c0_11 = arith.constant 0 : index
      %12 = vector.load %arg7[%c0_10, %c0_11] : memref<256x128xf32, #tpu.memory_space<vmem>>, vector<256x128xf32>
      %c0_12 = arith.constant 0 : index
      %c0_13 = arith.constant 0 : index
      %13 = vector.load %arg5[%c0_12, %c0_13] : memref<1x128xf32, #tpu.memory_space<vmem>>, vector<1x128xf32>
      %14 = vector.broadcast %13 : vector<1x128xf32> to vector<256x128xf32>
      %15 = arith.addf %12, %14 : vector<256x128xf32>
      %c0_14 = arith.constant 0 : index
      %c0_15 = arith.constant 0 : index
      %16 = vector.load %arg6[%c0_14, %c0_15] : memref<256x128xf32, #tpu.memory_space<vmem>>, vector<256x128xf32>
      tpu.vector_store %arg6[%c0_14, %c0_15], %15 {strides = array<i32>} : memref<256x128xf32, #tpu.memory_space<vmem>>, vector<256x128xf32>,
    } else {
    }
    return
  }
  func.func @transform_0(%arg0: i32, %arg1: i32, %arg2: i32) -> (i32, i32) {
    %c0_i32 = arith.constant 0 : i32
    return %arg0, %arg2 : i32, i32
  }
  func.func @transform_1(%arg0: i32, %arg1: i32, %arg2: i32) -> (i32, i32) {
    %c0_i32 = arith.constant 0 : i32
    return %arg2, %arg1 : i32, i32
  }
  func.func @transform_2(%arg0: i32, %arg1: i32, %arg2: i32) -> (i32, i32) {
    %c0_i32 = arith.constant 0 : i32
    %c0_i32_0 = arith.constant 0 : i32
    return %c0_i32, %arg1 : i32, i32
  }
  func.func @transform_3(%arg0: i32, %arg1: i32, %arg2: i32) -> (i32, i32) {
    %c0_i32 = arith.constant 0 : i32
    return %arg0, %arg1 : i32, i32
  }
}

module attributes {stable_mosaic.version = 11 : i64} {
  func.func @_mm_bias_act_kernel(%arg0: i32, %arg1: i32, %arg2: i32, %arg3: memref<128x128xbf16, #tpu.memory_space<vmem>>, %arg4: memref<128x128xbf16, #tpu.memory_space<vmem>>, %arg5: memref<1x128xf32, #tpu.memory_space<vmem>>, %arg6: memref<128x128xf32, #tpu.memory_space<vmem>>, %arg7: memref<128x128xf32, #tpu.memory_space<vmem>>) attributes {dimension_semantics = [#tpu.dimension_semantics<parallel>, #tpu.dimension_semantics<parallel>, #tpu.dimension_semantics<arbitrary>], iteration_bounds = array<i64: 1, 1, 1>, scalar_prefetch = 0 : i64, scratch_operands = 1 : i64, tpu.core_type = #tpu.core_type<tc>, window_params = [{transform_indices = @transform_0, window_bounds = array<i64: 128, 128>}, {transform_indices = @transform_1, window_bounds = array<i64: 128, 128>}, {transform_indices = @transform_2, window_bounds = array<i64: 1, 128>}, {transform_indices = @transform_3, window_bounds = array<i64: 128, 128>}]} {
    %c0_i32 = arith.constant 0 : i32
    %0 = arith.cmpi eq, %arg2, %c0_i32 : i32
    %1 = arith.extui %0 : i1 to i32
    %c0_i32_0 = arith.constant 0 : i32
    %2 = arith.cmpi ne, %1, %c0_i32_0 : i32
    scf.if %2 {
      %cst_12 = arith.constant 0.000000e+00 : f32
      %17 = vector.broadcast %cst_12 : f32 to vector<128x128xf32>
      %c0_13 = arith.constant 0 : index
      %c0_14 = arith.constant 0 : index
      %18 = vector.load %arg7[%c0_13, %c0_14] : memref<128x128xf32, #tpu.memory_space<vmem>>, vector<128x128xf32>
      tpu.vector_store %arg7[%c0_13, %c0_14], %17 {strides = array<i32>} : memref<128x128xf32, #tpu.memory_space<vmem>>, vector<128x128xf32>,
    } else {
    }
    %c0 = arith.constant 0 : index
    %c0_1 = arith.constant 0 : index
    %3 = vector.load %arg3[%c0, %c0_1] : memref<128x128xbf16, #tpu.memory_space<vmem>>, vector<128x128xbf16>
    %cst = arith.constant 0.000000e+00 : bf16
    %4 = vector.broadcast %cst : bf16 to vector<128x128xbf16>
    %5 = arith.cmpf oge, %3, %4 : vector<128x128xbf16>
    %cst_2 = arith.constant 2.001950e-01 : bf16
    %6 = vector.broadcast %cst_2 : bf16 to vector<128x128xbf16>
    %7 = arith.mulf %6, %3 : vector<128x128xbf16>
    %8 = arith.select %5, %3, %7 : vector<128x128xi1>, vector<128x128xbf16>
    %c0_3 = arith.constant 0 : index
    %c0_4 = arith.constant 0 : index
    %9 = vector.load %arg7[%c0_3, %c0_4] : memref<128x128xf32, #tpu.memory_space<vmem>>, vector<128x128xf32>
    %c0_5 = arith.constant 0 : index
    %c0_6 = arith.constant 0 : index
    %10 = vector.load %arg4[%c0_5, %c0_6] : memref<128x128xbf16, #tpu.memory_space<vmem>>, vector<128x128xbf16>
    %cst_7 = arith.constant dense<0.000000e+00> : vector<128x128xf32>
    %11 = tpu.matmul %8, %10, %cst_7 {dimension_numbers = #tpu.dot_dimension_numbers<[1], [0], [0], [1], [0, 0, 1, 1], [], []>} : vector<128x128xbf16>, vector<128x128xbf16>, vector<128x128xf32> -> vector<128x128xf32>
    %12 = arith.addf %9, %11 : vector<128x128xf32>
    %c0_8 = arith.constant 0 : index
    %c0_9 = arith.constant 0 : index
    %13 = vector.load %arg7[%c0_8, %c0_9] : memref<128x128xf32, #tpu.memory_space<vmem>>, vector<128x128xf32>
    tpu.vector_store %arg7[%c0_8, %c0_9], %12 {strides = array<i32>} : memref<128x128xf32, #tpu.memory_space<vmem>>, vector<128x128xf32>,
    %c0_i32_10 = arith.constant 0 : i32
    %14 = arith.cmpi eq, %arg2, %c0_i32_10 : i32
    %15 = arith.extui %14 : i1 to i32
    %c0_i32_11 = arith.constant 0 : i32
    %16 = arith.cmpi ne, %15, %c0_i32_11 : i32
    scf.if %16 {
      %c0_12 = arith.constant 0 : index
      %c0_13 = arith.constant 0 : index
      %17 = vector.load %arg7[%c0_12, %c0_13] : memref<128x128xf32, #tpu.memory_space<vmem>>, vector<128x128xf32>
      %c0_14 = arith.constant 0 : index
      %c0_15 = arith.constant 0 : index
      %18 = vector.load %arg5[%c0_14, %c0_15] : memref<1x128xf32, #tpu.memory_space<vmem>>, vector<1x128xf32>
      %19 = vector.broadcast %18 : vector<1x128xf32> to vector<128x128xf32>
      %20 = arith.addf %17, %19 : vector<128x128xf32>
      %c0_16 = arith.constant 0 : index
      %c0_17 = arith.constant 0 : index
      %21 = vector.load %arg6[%c0_16, %c0_17] : memref<128x128xf32, #tpu.memory_space<vmem>>, vector<128x128xf32>
      tpu.vector_store %arg6[%c0_16, %c0_17], %20 {strides = array<i32>} : memref<128x128xf32, #tpu.memory_space<vmem>>, vector<128x128xf32>,
    } else {
    }
    return
  }
  func.func @transform_0(%arg0: i32, %arg1: i32, %arg2: i32) -> (i32, i32) {
    %c0_i32 = arith.constant 0 : i32
    return %arg0, %arg2 : i32, i32
  }
  func.func @transform_1(%arg0: i32, %arg1: i32, %arg2: i32) -> (i32, i32) {
    %c0_i32 = arith.constant 0 : i32
    return %arg2, %arg1 : i32, i32
  }
  func.func @transform_2(%arg0: i32, %arg1: i32, %arg2: i32) -> (i32, i32) {
    %c0_i32 = arith.constant 0 : i32
    %c0_i32_0 = arith.constant 0 : i32
    return %c0_i32, %arg1 : i32, i32
  }
  func.func @transform_3(%arg0: i32, %arg1: i32, %arg2: i32) -> (i32, i32) {
    %c0_i32 = arith.constant 0 : i32
    return %arg0, %arg1 : i32, i32
  }
}

module attributes {stable_mosaic.version = 11 : i64} {
  func.func @_in_stats_kernel(%arg0: i32, %arg1: i32, %arg2: memref<1x64x8xf32, #tpu.memory_space<vmem>>, %arg3: memref<1x2x8xf32, #tpu.memory_space<vmem>>) attributes {dimension_semantics = [#tpu.dimension_semantics<parallel>, #tpu.dimension_semantics<arbitrary>], iteration_bounds = array<i64: 2, 1>, scalar_prefetch = 0 : i64, scratch_operands = 0 : i64, tpu.core_type = #tpu.core_type<tc>, window_params = [{transform_indices = @transform_0, window_bounds = array<i64: 1, 64, 8>}, {transform_indices = @transform_1, window_bounds = array<i64: 1, 2, 8>}]} {
    %c0_i32 = arith.constant 0 : i32
    %0 = arith.cmpi eq, %arg1, %c0_i32 : i32
    %1 = arith.extui %0 : i1 to i32
    %c0_i32_0 = arith.constant 0 : i32
    %2 = arith.cmpi ne, %1, %c0_i32_0 : i32
    scf.if %2 {
      %cst_17 = arith.constant 0.000000e+00 : f32
      %18 = vector.broadcast %cst_17 : f32 to vector<1x2x8xf32>
      %c0_18 = arith.constant 0 : index
      %c0_19 = arith.constant 0 : index
      %c0_20 = arith.constant 0 : index
      %19 = vector.load %arg3[%c0_18, %c0_19, %c0_20] : memref<1x2x8xf32, #tpu.memory_space<vmem>>, vector<1x2x8xf32>
      tpu.vector_store %arg3[%c0_18, %c0_19, %c0_20], %18 {strides = array<i32>} : memref<1x2x8xf32, #tpu.memory_space<vmem>>, vector<1x2x8xf32>,
    } else {
    }
    %c0 = arith.constant 0 : index
    %c0_1 = arith.constant 0 : index
    %c0_2 = arith.constant 0 : index
    %3 = vector.load %arg2[%c0, %c0_1, %c0_2] : memref<1x64x8xf32, #tpu.memory_space<vmem>>, vector<1x64x8xf32>
    %c0_3 = arith.constant 0 : index
    %c0_4 = arith.constant 0 : index
    %c0_5 = arith.constant 0 : index
    %4 = vector.load %arg3[%c0_3, %c0_4, %c0_5] : memref<1x2x8xf32, #tpu.memory_space<vmem>>, vector<1x1x8xf32>
    %cst = arith.constant dense<0.000000e+00> : vector<1x8xf32>
    %5 = vector.multi_reduction <add>, %3, %cst [1] : vector<1x64x8xf32> to vector<1x8xf32>
    %6 = vector.shape_cast %5 : vector<1x8xf32> to vector<1x1x8xf32>
    %7 = arith.addf %4, %6 : vector<1x1x8xf32>
    %c0_6 = arith.constant 0 : index
    %c0_7 = arith.constant 0 : index
    %c0_8 = arith.constant 0 : index
    %8 = vector.load %arg3[%c0_6, %c0_7, %c0_8] : memref<1x2x8xf32, #tpu.memory_space<vmem>>, vector<1x1x8xf32>
    tpu.vector_store %arg3[%c0_6, %c0_7, %c0_8], %7 {strides = array<i32>} : memref<1x2x8xf32, #tpu.memory_space<vmem>>, vector<1x1x8xf32>,
    %c0_9 = arith.constant 0 : index
    %c1 = arith.constant 1 : index
    %c0_10 = arith.constant 0 : index
    %9 = vector.load %arg3[%c0_9, %c1, %c0_10] : memref<1x2x8xf32, #tpu.memory_space<vmem>>, vector<1x1x8xf32>
    %10 = arith.mulf %3, %3 : vector<1x64x8xf32>
    %cst_11 = arith.constant dense<0.000000e+00> : vector<1x8xf32>
    %11 = vector.multi_reduction <add>, %10, %cst_11 [1] : vector<1x64x8xf32> to vector<1x8xf32>
    %12 = vector.shape_cast %11 : vector<1x8xf32> to vector<1x1x8xf32>
    %13 = arith.addf %9, %12 : vector<1x1x8xf32>
    %c0_12 = arith.constant 0 : index
    %c1_13 = arith.constant 1 : index
    %c0_14 = arith.constant 0 : index
    %14 = vector.load %arg3[%c0_12, %c1_13, %c0_14] : memref<1x2x8xf32, #tpu.memory_space<vmem>>, vector<1x1x8xf32>
    tpu.vector_store %arg3[%c0_12, %c1_13, %c0_14], %13 {strides = array<i32>} : memref<1x2x8xf32, #tpu.memory_space<vmem>>, vector<1x1x8xf32>,
    %c0_i32_15 = arith.constant 0 : i32
    %15 = arith.cmpi eq, %arg1, %c0_i32_15 : i32
    %16 = arith.extui %15 : i1 to i32
    %c0_i32_16 = arith.constant 0 : i32
    %17 = arith.cmpi ne, %16, %c0_i32_16 : i32
    scf.if %17 {
      %c0_17 = arith.constant 0 : index
      %c0_18 = arith.constant 0 : index
      %c0_19 = arith.constant 0 : index
      %18 = vector.load %arg3[%c0_17, %c0_18, %c0_19] : memref<1x2x8xf32, #tpu.memory_space<vmem>>, vector<1x1x8xf32>
      %cst_20 = arith.constant 6.400000e+01 : f32
      %19 = vector.broadcast %cst_20 : f32 to vector<1x1x8xf32>
      %20 = arith.divf %18, %19 : vector<1x1x8xf32>
      %c0_21 = arith.constant 0 : index
      %c1_22 = arith.constant 1 : index
      %c0_23 = arith.constant 0 : index
      %21 = vector.load %arg3[%c0_21, %c1_22, %c0_23] : memref<1x2x8xf32, #tpu.memory_space<vmem>>, vector<1x1x8xf32>
      %cst_24 = arith.constant 6.400000e+01 : f32
      %22 = vector.broadcast %cst_24 : f32 to vector<1x1x8xf32>
      %23 = arith.divf %21, %22 : vector<1x1x8xf32>
      %24 = arith.mulf %20, %20 : vector<1x1x8xf32>
      %25 = arith.subf %23, %24 : vector<1x1x8xf32>
      %c0_25 = arith.constant 0 : index
      %c0_26 = arith.constant 0 : index
      %c0_27 = arith.constant 0 : index
      %26 = vector.load %arg3[%c0_25, %c0_26, %c0_27] : memref<1x2x8xf32, #tpu.memory_space<vmem>>, vector<1x1x8xf32>
      tpu.vector_store %arg3[%c0_25, %c0_26, %c0_27], %20 {strides = array<i32>} : memref<1x2x8xf32, #tpu.memory_space<vmem>>, vector<1x1x8xf32>,
      %cst_28 = arith.constant 0.000000e+00 : f32
      %27 = vector.broadcast %cst_28 : f32 to vector<1x1x8xf32>
      %28 = arith.maximumf %25, %27 : vector<1x1x8xf32>
      %cst_29 = arith.constant 9.99999974E-6 : f32
      %29 = vector.broadcast %cst_29 : f32 to vector<1x1x8xf32>
      %30 = arith.addf %28, %29 : vector<1x1x8xf32>
      %31 = math.rsqrt %30 : vector<1x1x8xf32>
      %c0_30 = arith.constant 0 : index
      %c1_31 = arith.constant 1 : index
      %c0_32 = arith.constant 0 : index
      %32 = vector.load %arg3[%c0_30, %c1_31, %c0_32] : memref<1x2x8xf32, #tpu.memory_space<vmem>>, vector<1x1x8xf32>
      tpu.vector_store %arg3[%c0_30, %c1_31, %c0_32], %31 {strides = array<i32>} : memref<1x2x8xf32, #tpu.memory_space<vmem>>, vector<1x1x8xf32>,
    } else {
    }
    return
  }
  func.func @transform_0(%arg0: i32, %arg1: i32) -> (i32, i32, i32) {
    %c0_i32 = arith.constant 0 : i32
    %c0_i32_0 = arith.constant 0 : i32
    return %arg0, %arg1, %c0_i32 : i32, i32, i32
  }
  func.func @transform_1(%arg0: i32, %arg1: i32) -> (i32, i32, i32) {
    %c0_i32 = arith.constant 0 : i32
    %c0_i32_0 = arith.constant 0 : i32
    %c0_i32_1 = arith.constant 0 : i32
    return %arg0, %c0_i32, %c0_i32_0 : i32, i32, i32
  }
}

module attributes {stable_mosaic.version = 11 : i64} {
  func.func @_in_apply_kernel(%arg0: i32, %arg1: i32, %arg2: memref<1x64x8xf32, #tpu.memory_space<vmem>>, %arg3: memref<1x2x8xf32, #tpu.memory_space<vmem>>, %arg4: memref<1x64x8xf32, #tpu.memory_space<vmem>>) attributes {dimension_semantics = [#tpu.dimension_semantics<parallel>, #tpu.dimension_semantics<parallel>], iteration_bounds = array<i64: 2, 1>, scalar_prefetch = 0 : i64, scratch_operands = 0 : i64, tpu.core_type = #tpu.core_type<tc>, window_params = [{transform_indices = @transform_0, window_bounds = array<i64: 1, 64, 8>}, {transform_indices = @transform_1, window_bounds = array<i64: 1, 2, 8>}, {transform_indices = @transform_2, window_bounds = array<i64: 1, 64, 8>}]} {
    %c0 = arith.constant 0 : index
    %c0_0 = arith.constant 0 : index
    %c0_1 = arith.constant 0 : index
    %0 = vector.load %arg2[%c0, %c0_0, %c0_1] : memref<1x64x8xf32, #tpu.memory_space<vmem>>, vector<1x64x8xf32>
    %c0_2 = arith.constant 0 : index
    %c0_3 = arith.constant 0 : index
    %c0_4 = arith.constant 0 : index
    %1 = vector.load %arg3[%c0_2, %c0_3, %c0_4] : memref<1x2x8xf32, #tpu.memory_space<vmem>>, vector<1x1x8xf32>
    %2 = vector.broadcast %1 : vector<1x1x8xf32> to vector<1x64x8xf32>
    %3 = arith.subf %0, %2 : vector<1x64x8xf32>
    %c0_5 = arith.constant 0 : index
    %c1 = arith.constant 1 : index
    %c0_6 = arith.constant 0 : index
    %4 = vector.load %arg3[%c0_5, %c1, %c0_6] : memref<1x2x8xf32, #tpu.memory_space<vmem>>, vector<1x1x8xf32>
    %5 = vector.broadcast %4 : vector<1x1x8xf32> to vector<1x64x8xf32>
    %6 = arith.mulf %3, %5 : vector<1x64x8xf32>
    %c0_7 = arith.constant 0 : index
    %c0_8 = arith.constant 0 : index
    %c0_9 = arith.constant 0 : index
    %7 = vector.load %arg4[%c0_7, %c0_8, %c0_9] : memref<1x64x8xf32, #tpu.memory_space<vmem>>, vector<1x64x8xf32>
    tpu.vector_store %arg4[%c0_7, %c0_8, %c0_9], %6 {strides = array<i32>} : memref<1x64x8xf32, #tpu.memory_space<vmem>>, vector<1x64x8xf32>,
    return
  }
  func.func @transform_0(%arg0: i32, %arg1: i32) -> (i32, i32, i32) {
    %c0_i32 = arith.constant 0 : i32
    %c0_i32_0 = arith.constant 0 : i32
    return %arg0, %arg1, %c0_i32 : i32, i32, i32
  }
  func.func @transform_1(%arg0: i32, %arg1: i32) -> (i32, i32, i32) {
    %c0_i32 = arith.constant 0 : i32
    %c0_i32_0 = arith.constant 0 : i32
    %c0_i32_1 = arith.constant 0 : i32
    return %arg0, %c0_i32, %c0_i32_0 : i32, i32, i32
  }
  func.func @transform_2(%arg0: i32, %arg1: i32) -> (i32, i32, i32) {
    %c0_i32 = arith.constant 0 : i32
    %c0_i32_0 = arith.constant 0 : i32
    return %arg0, %arg1, %c0_i32 : i32, i32, i32
  }
}

module attributes {stable_mosaic.version = 11 : i64} {
  func.func @_mm_bias_act_kernel(%arg0: i32, %arg1: i32, %arg2: i32, %arg3: memref<32x128xbf16, #tpu.memory_space<vmem>>, %arg4: memref<128x128xbf16, #tpu.memory_space<vmem>>, %arg5: memref<1x128xf32, #tpu.memory_space<vmem>>, %arg6: memref<32x128xf32, #tpu.memory_space<vmem>>, %arg7: memref<32x128xf32, #tpu.memory_space<vmem>>) attributes {dimension_semantics = [#tpu.dimension_semantics<parallel>, #tpu.dimension_semantics<parallel>, #tpu.dimension_semantics<arbitrary>], iteration_bounds = array<i64: 1, 1, 1>, scalar_prefetch = 0 : i64, scratch_operands = 1 : i64, tpu.core_type = #tpu.core_type<tc>, window_params = [{transform_indices = @transform_0, window_bounds = array<i64: 32, 128>}, {transform_indices = @transform_1, window_bounds = array<i64: 128, 128>}, {transform_indices = @transform_2, window_bounds = array<i64: 1, 128>}, {transform_indices = @transform_3, window_bounds = array<i64: 32, 128>}]} {
    %c0_i32 = arith.constant 0 : i32
    %0 = arith.cmpi eq, %arg2, %c0_i32 : i32
    %1 = arith.extui %0 : i1 to i32
    %c0_i32_0 = arith.constant 0 : i32
    %2 = arith.cmpi ne, %1, %c0_i32_0 : i32
    scf.if %2 {
      %cst_12 = arith.constant 0.000000e+00 : f32
      %17 = vector.broadcast %cst_12 : f32 to vector<32x128xf32>
      %c0_13 = arith.constant 0 : index
      %c0_14 = arith.constant 0 : index
      %18 = vector.load %arg7[%c0_13, %c0_14] : memref<32x128xf32, #tpu.memory_space<vmem>>, vector<32x128xf32>
      tpu.vector_store %arg7[%c0_13, %c0_14], %17 {strides = array<i32>} : memref<32x128xf32, #tpu.memory_space<vmem>>, vector<32x128xf32>,
    } else {
    }
    %c0 = arith.constant 0 : index
    %c0_1 = arith.constant 0 : index
    %3 = vector.load %arg3[%c0, %c0_1] : memref<32x128xbf16, #tpu.memory_space<vmem>>, vector<32x128xbf16>
    %cst = arith.constant 0.000000e+00 : bf16
    %4 = vector.broadcast %cst : bf16 to vector<32x128xbf16>
    %5 = arith.cmpf oge, %3, %4 : vector<32x128xbf16>
    %cst_2 = arith.constant 2.001950e-01 : bf16
    %6 = vector.broadcast %cst_2 : bf16 to vector<32x128xbf16>
    %7 = arith.mulf %6, %3 : vector<32x128xbf16>
    %8 = arith.select %5, %3, %7 : vector<32x128xi1>, vector<32x128xbf16>
    %c0_3 = arith.constant 0 : index
    %c0_4 = arith.constant 0 : index
    %9 = vector.load %arg7[%c0_3, %c0_4] : memref<32x128xf32, #tpu.memory_space<vmem>>, vector<32x128xf32>
    %c0_5 = arith.constant 0 : index
    %c0_6 = arith.constant 0 : index
    %10 = vector.load %arg4[%c0_5, %c0_6] : memref<128x128xbf16, #tpu.memory_space<vmem>>, vector<128x128xbf16>
    %cst_7 = arith.constant dense<0.000000e+00> : vector<32x128xf32>
    %11 = tpu.matmul %8, %10, %cst_7 {dimension_numbers = #tpu.dot_dimension_numbers<[1], [0], [0], [1], [0, 0, 1, 1], [], []>} : vector<32x128xbf16>, vector<128x128xbf16>, vector<32x128xf32> -> vector<32x128xf32>
    %12 = arith.addf %9, %11 : vector<32x128xf32>
    %c0_8 = arith.constant 0 : index
    %c0_9 = arith.constant 0 : index
    %13 = vector.load %arg7[%c0_8, %c0_9] : memref<32x128xf32, #tpu.memory_space<vmem>>, vector<32x128xf32>
    tpu.vector_store %arg7[%c0_8, %c0_9], %12 {strides = array<i32>} : memref<32x128xf32, #tpu.memory_space<vmem>>, vector<32x128xf32>,
    %c0_i32_10 = arith.constant 0 : i32
    %14 = arith.cmpi eq, %arg2, %c0_i32_10 : i32
    %15 = arith.extui %14 : i1 to i32
    %c0_i32_11 = arith.constant 0 : i32
    %16 = arith.cmpi ne, %15, %c0_i32_11 : i32
    scf.if %16 {
      %c0_12 = arith.constant 0 : index
      %c0_13 = arith.constant 0 : index
      %17 = vector.load %arg7[%c0_12, %c0_13] : memref<32x128xf32, #tpu.memory_space<vmem>>, vector<32x128xf32>
      %c0_14 = arith.constant 0 : index
      %c0_15 = arith.constant 0 : index
      %18 = vector.load %arg5[%c0_14, %c0_15] : memref<1x128xf32, #tpu.memory_space<vmem>>, vector<1x128xf32>
      %19 = vector.broadcast %18 : vector<1x128xf32> to vector<32x128xf32>
      %20 = arith.addf %17, %19 : vector<32x128xf32>
      %c0_16 = arith.constant 0 : index
      %c0_17 = arith.constant 0 : index
      %21 = vector.load %arg6[%c0_16, %c0_17] : memref<32x128xf32, #tpu.memory_space<vmem>>, vector<32x128xf32>
      tpu.vector_store %arg6[%c0_16, %c0_17], %20 {strides = array<i32>} : memref<32x128xf32, #tpu.memory_space<vmem>>, vector<32x128xf32>,
    } else {
    }
    return
  }
  func.func @transform_0(%arg0: i32, %arg1: i32, %arg2: i32) -> (i32, i32) {
    %c0_i32 = arith.constant 0 : i32
    return %arg0, %arg2 : i32, i32
  }
  func.func @transform_1(%arg0: i32, %arg1: i32, %arg2: i32) -> (i32, i32) {
    %c0_i32 = arith.constant 0 : i32
    return %arg2, %arg1 : i32, i32
  }
  func.func @transform_2(%arg0: i32, %arg1: i32, %arg2: i32) -> (i32, i32) {
    %c0_i32 = arith.constant 0 : i32
    %c0_i32_0 = arith.constant 0 : i32
    return %c0_i32, %arg1 : i32, i32
  }
  func.func @transform_3(%arg0: i32, %arg1: i32, %arg2: i32) -> (i32, i32) {
    %c0_i32 = arith.constant 0 : i32
    return %arg0, %arg1 : i32, i32
  }
}

module attributes {stable_mosaic.version = 11 : i64} {
  func.func @_in_stats_kernel(%arg0: i32, %arg1: i32, %arg2: memref<1x16x16xf32, #tpu.memory_space<vmem>>, %arg3: memref<1x2x16xf32, #tpu.memory_space<vmem>>) attributes {dimension_semantics = [#tpu.dimension_semantics<parallel>, #tpu.dimension_semantics<arbitrary>], iteration_bounds = array<i64: 2, 1>, scalar_prefetch = 0 : i64, scratch_operands = 0 : i64, tpu.core_type = #tpu.core_type<tc>, window_params = [{transform_indices = @transform_0, window_bounds = array<i64: 1, 16, 16>}, {transform_indices = @transform_1, window_bounds = array<i64: 1, 2, 16>}]} {
    %c0_i32 = arith.constant 0 : i32
    %0 = arith.cmpi eq, %arg1, %c0_i32 : i32
    %1 = arith.extui %0 : i1 to i32
    %c0_i32_0 = arith.constant 0 : i32
    %2 = arith.cmpi ne, %1, %c0_i32_0 : i32
    scf.if %2 {
      %cst_17 = arith.constant 0.000000e+00 : f32
      %18 = vector.broadcast %cst_17 : f32 to vector<1x2x16xf32>
      %c0_18 = arith.constant 0 : index
      %c0_19 = arith.constant 0 : index
      %c0_20 = arith.constant 0 : index
      %19 = vector.load %arg3[%c0_18, %c0_19, %c0_20] : memref<1x2x16xf32, #tpu.memory_space<vmem>>, vector<1x2x16xf32>
      tpu.vector_store %arg3[%c0_18, %c0_19, %c0_20], %18 {strides = array<i32>} : memref<1x2x16xf32, #tpu.memory_space<vmem>>, vector<1x2x16xf32>,
    } else {
    }
    %c0 = arith.constant 0 : index
    %c0_1 = arith.constant 0 : index
    %c0_2 = arith.constant 0 : index
    %3 = vector.load %arg2[%c0, %c0_1, %c0_2] : memref<1x16x16xf32, #tpu.memory_space<vmem>>, vector<1x16x16xf32>
    %c0_3 = arith.constant 0 : index
    %c0_4 = arith.constant 0 : index
    %c0_5 = arith.constant 0 : index
    %4 = vector.load %arg3[%c0_3, %c0_4, %c0_5] : memref<1x2x16xf32, #tpu.memory_space<vmem>>, vector<1x1x16xf32>
    %cst = arith.constant dense<0.000000e+00> : vector<1x16xf32>
    %5 = vector.multi_reduction <add>, %3, %cst [1] : vector<1x16x16xf32> to vector<1x16xf32>
    %6 = vector.shape_cast %5 : vector<1x16xf32> to vector<1x1x16xf32>
    %7 = arith.addf %4, %6 : vector<1x1x16xf32>
    %c0_6 = arith.constant 0 : index
    %c0_7 = arith.constant 0 : index
    %c0_8 = arith.constant 0 : index
    %8 = vector.load %arg3[%c0_6, %c0_7, %c0_8] : memref<1x2x16xf32, #tpu.memory_space<vmem>>, vector<1x1x16xf32>
    tpu.vector_store %arg3[%c0_6, %c0_7, %c0_8], %7 {strides = array<i32>} : memref<1x2x16xf32, #tpu.memory_space<vmem>>, vector<1x1x16xf32>,
    %c0_9 = arith.constant 0 : index
    %c1 = arith.constant 1 : index
    %c0_10 = arith.constant 0 : index
    %9 = vector.load %arg3[%c0_9, %c1, %c0_10] : memref<1x2x16xf32, #tpu.memory_space<vmem>>, vector<1x1x16xf32>
    %10 = arith.mulf %3, %3 : vector<1x16x16xf32>
    %cst_11 = arith.constant dense<0.000000e+00> : vector<1x16xf32>
    %11 = vector.multi_reduction <add>, %10, %cst_11 [1] : vector<1x16x16xf32> to vector<1x16xf32>
    %12 = vector.shape_cast %11 : vector<1x16xf32> to vector<1x1x16xf32>
    %13 = arith.addf %9, %12 : vector<1x1x16xf32>
    %c0_12 = arith.constant 0 : index
    %c1_13 = arith.constant 1 : index
    %c0_14 = arith.constant 0 : index
    %14 = vector.load %arg3[%c0_12, %c1_13, %c0_14] : memref<1x2x16xf32, #tpu.memory_space<vmem>>, vector<1x1x16xf32>
    tpu.vector_store %arg3[%c0_12, %c1_13, %c0_14], %13 {strides = array<i32>} : memref<1x2x16xf32, #tpu.memory_space<vmem>>, vector<1x1x16xf32>,
    %c0_i32_15 = arith.constant 0 : i32
    %15 = arith.cmpi eq, %arg1, %c0_i32_15 : i32
    %16 = arith.extui %15 : i1 to i32
    %c0_i32_16 = arith.constant 0 : i32
    %17 = arith.cmpi ne, %16, %c0_i32_16 : i32
    scf.if %17 {
      %c0_17 = arith.constant 0 : index
      %c0_18 = arith.constant 0 : index
      %c0_19 = arith.constant 0 : index
      %18 = vector.load %arg3[%c0_17, %c0_18, %c0_19] : memref<1x2x16xf32, #tpu.memory_space<vmem>>, vector<1x1x16xf32>
      %cst_20 = arith.constant 1.600000e+01 : f32
      %19 = vector.broadcast %cst_20 : f32 to vector<1x1x16xf32>
      %20 = arith.divf %18, %19 : vector<1x1x16xf32>
      %c0_21 = arith.constant 0 : index
      %c1_22 = arith.constant 1 : index
      %c0_23 = arith.constant 0 : index
      %21 = vector.load %arg3[%c0_21, %c1_22, %c0_23] : memref<1x2x16xf32, #tpu.memory_space<vmem>>, vector<1x1x16xf32>
      %cst_24 = arith.constant 1.600000e+01 : f32
      %22 = vector.broadcast %cst_24 : f32 to vector<1x1x16xf32>
      %23 = arith.divf %21, %22 : vector<1x1x16xf32>
      %24 = arith.mulf %20, %20 : vector<1x1x16xf32>
      %25 = arith.subf %23, %24 : vector<1x1x16xf32>
      %c0_25 = arith.constant 0 : index
      %c0_26 = arith.constant 0 : index
      %c0_27 = arith.constant 0 : index
      %26 = vector.load %arg3[%c0_25, %c0_26, %c0_27] : memref<1x2x16xf32, #tpu.memory_space<vmem>>, vector<1x1x16xf32>
      tpu.vector_store %arg3[%c0_25, %c0_26, %c0_27], %20 {strides = array<i32>} : memref<1x2x16xf32, #tpu.memory_space<vmem>>, vector<1x1x16xf32>,
      %cst_28 = arith.constant 0.000000e+00 : f32
      %27 = vector.broadcast %cst_28 : f32 to vector<1x1x16xf32>
      %28 = arith.maximumf %25, %27 : vector<1x1x16xf32>
      %cst_29 = arith.constant 9.99999974E-6 : f32
      %29 = vector.broadcast %cst_29 : f32 to vector<1x1x16xf32>
      %30 = arith.addf %28, %29 : vector<1x1x16xf32>
      %31 = math.rsqrt %30 : vector<1x1x16xf32>
      %c0_30 = arith.constant 0 : index
      %c1_31 = arith.constant 1 : index
      %c0_32 = arith.constant 0 : index
      %32 = vector.load %arg3[%c0_30, %c1_31, %c0_32] : memref<1x2x16xf32, #tpu.memory_space<vmem>>, vector<1x1x16xf32>
      tpu.vector_store %arg3[%c0_30, %c1_31, %c0_32], %31 {strides = array<i32>} : memref<1x2x16xf32, #tpu.memory_space<vmem>>, vector<1x1x16xf32>,
    } else {
    }
    return
  }
  func.func @transform_0(%arg0: i32, %arg1: i32) -> (i32, i32, i32) {
    %c0_i32 = arith.constant 0 : i32
    %c0_i32_0 = arith.constant 0 : i32
    return %arg0, %arg1, %c0_i32 : i32, i32, i32
  }
  func.func @transform_1(%arg0: i32, %arg1: i32) -> (i32, i32, i32) {
    %c0_i32 = arith.constant 0 : i32
    %c0_i32_0 = arith.constant 0 : i32
    %c0_i32_1 = arith.constant 0 : i32
    return %arg0, %c0_i32, %c0_i32_0 : i32, i32, i32
  }
}

module attributes {stable_mosaic.version = 11 : i64} {
  func.func @_in_apply_kernel(%arg0: i32, %arg1: i32, %arg2: memref<1x16x16xf32, #tpu.memory_space<vmem>>, %arg3: memref<1x2x16xf32, #tpu.memory_space<vmem>>, %arg4: memref<1x16x16xf32, #tpu.memory_space<vmem>>) attributes {dimension_semantics = [#tpu.dimension_semantics<parallel>, #tpu.dimension_semantics<parallel>], iteration_bounds = array<i64: 2, 1>, scalar_prefetch = 0 : i64, scratch_operands = 0 : i64, tpu.core_type = #tpu.core_type<tc>, window_params = [{transform_indices = @transform_0, window_bounds = array<i64: 1, 16, 16>}, {transform_indices = @transform_1, window_bounds = array<i64: 1, 2, 16>}, {transform_indices = @transform_2, window_bounds = array<i64: 1, 16, 16>}]} {
    %c0 = arith.constant 0 : index
    %c0_0 = arith.constant 0 : index
    %c0_1 = arith.constant 0 : index
    %0 = vector.load %arg2[%c0, %c0_0, %c0_1] : memref<1x16x16xf32, #tpu.memory_space<vmem>>, vector<1x16x16xf32>
    %c0_2 = arith.constant 0 : index
    %c0_3 = arith.constant 0 : index
    %c0_4 = arith.constant 0 : index
    %1 = vector.load %arg3[%c0_2, %c0_3, %c0_4] : memref<1x2x16xf32, #tpu.memory_space<vmem>>, vector<1x1x16xf32>
    %2 = vector.broadcast %1 : vector<1x1x16xf32> to vector<1x16x16xf32>
    %3 = arith.subf %0, %2 : vector<1x16x16xf32>
    %c0_5 = arith.constant 0 : index
    %c1 = arith.constant 1 : index
    %c0_6 = arith.constant 0 : index
    %4 = vector.load %arg3[%c0_5, %c1, %c0_6] : memref<1x2x16xf32, #tpu.memory_space<vmem>>, vector<1x1x16xf32>
    %5 = vector.broadcast %4 : vector<1x1x16xf32> to vector<1x16x16xf32>
    %6 = arith.mulf %3, %5 : vector<1x16x16xf32>
    %c0_7 = arith.constant 0 : index
    %c0_8 = arith.constant 0 : index
    %c0_9 = arith.constant 0 : index
    %7 = vector.load %arg4[%c0_7, %c0_8, %c0_9] : memref<1x16x16xf32, #tpu.memory_space<vmem>>, vector<1x16x16xf32>
    tpu.vector_store %arg4[%c0_7, %c0_8, %c0_9], %6 {strides = array<i32>} : memref<1x16x16xf32, #tpu.memory_space<vmem>>, vector<1x16x16xf32>,
    return
  }
  func.func @transform_0(%arg0: i32, %arg1: i32) -> (i32, i32, i32) {
    %c0_i32 = arith.constant 0 : i32
    %c0_i32_0 = arith.constant 0 : i32
    return %arg0, %arg1, %c0_i32 : i32, i32, i32
  }
  func.func @transform_1(%arg0: i32, %arg1: i32) -> (i32, i32, i32) {
    %c0_i32 = arith.constant 0 : i32
    %c0_i32_0 = arith.constant 0 : i32
    %c0_i32_1 = arith.constant 0 : i32
    return %arg0, %c0_i32, %c0_i32_0 : i32, i32, i32
  }
  func.func @transform_2(%arg0: i32, %arg1: i32) -> (i32, i32, i32) {
    %c0_i32 = arith.constant 0 : i32
    %c0_i32_0 = arith.constant 0 : i32
    return %arg0, %arg1, %c0_i32 : i32, i32, i32
  }
}

module attributes {stable_mosaic.version = 11 : i64} {
  func.func @_mm_bias_act_kernel(%arg0: i32, %arg1: i32, %arg2: i32, %arg3: memref<16x256xbf16, #tpu.memory_space<vmem>>, %arg4: memref<256x128xbf16, #tpu.memory_space<vmem>>, %arg5: memref<1x128xf32, #tpu.memory_space<vmem>>, %arg6: memref<16x128xf32, #tpu.memory_space<vmem>>, %arg7: memref<16x128xf32, #tpu.memory_space<vmem>>) attributes {dimension_semantics = [#tpu.dimension_semantics<parallel>, #tpu.dimension_semantics<parallel>, #tpu.dimension_semantics<arbitrary>], iteration_bounds = array<i64: 1, 1, 1>, scalar_prefetch = 0 : i64, scratch_operands = 1 : i64, tpu.core_type = #tpu.core_type<tc>, window_params = [{transform_indices = @transform_0, window_bounds = array<i64: 16, 256>}, {transform_indices = @transform_1, window_bounds = array<i64: 256, 128>}, {transform_indices = @transform_2, window_bounds = array<i64: 1, 128>}, {transform_indices = @transform_3, window_bounds = array<i64: 16, 128>}]} {
    %c0_i32 = arith.constant 0 : i32
    %0 = arith.cmpi eq, %arg2, %c0_i32 : i32
    %1 = arith.extui %0 : i1 to i32
    %c0_i32_0 = arith.constant 0 : i32
    %2 = arith.cmpi ne, %1, %c0_i32_0 : i32
    scf.if %2 {
      %cst_12 = arith.constant 0.000000e+00 : f32
      %17 = vector.broadcast %cst_12 : f32 to vector<16x128xf32>
      %c0_13 = arith.constant 0 : index
      %c0_14 = arith.constant 0 : index
      %18 = vector.load %arg7[%c0_13, %c0_14] : memref<16x128xf32, #tpu.memory_space<vmem>>, vector<16x128xf32>
      tpu.vector_store %arg7[%c0_13, %c0_14], %17 {strides = array<i32>} : memref<16x128xf32, #tpu.memory_space<vmem>>, vector<16x128xf32>,
    } else {
    }
    %c0 = arith.constant 0 : index
    %c0_1 = arith.constant 0 : index
    %3 = vector.load %arg3[%c0, %c0_1] : memref<16x256xbf16, #tpu.memory_space<vmem>>, vector<16x256xbf16>
    %cst = arith.constant 0.000000e+00 : bf16
    %4 = vector.broadcast %cst : bf16 to vector<16x256xbf16>
    %5 = arith.cmpf oge, %3, %4 : vector<16x256xbf16>
    %cst_2 = arith.constant 2.001950e-01 : bf16
    %6 = vector.broadcast %cst_2 : bf16 to vector<16x256xbf16>
    %7 = arith.mulf %6, %3 : vector<16x256xbf16>
    %8 = arith.select %5, %3, %7 : vector<16x256xi1>, vector<16x256xbf16>
    %c0_3 = arith.constant 0 : index
    %c0_4 = arith.constant 0 : index
    %9 = vector.load %arg7[%c0_3, %c0_4] : memref<16x128xf32, #tpu.memory_space<vmem>>, vector<16x128xf32>
    %c0_5 = arith.constant 0 : index
    %c0_6 = arith.constant 0 : index
    %10 = vector.load %arg4[%c0_5, %c0_6] : memref<256x128xbf16, #tpu.memory_space<vmem>>, vector<256x128xbf16>
    %cst_7 = arith.constant dense<0.000000e+00> : vector<16x128xf32>
    %11 = tpu.matmul %8, %10, %cst_7 {dimension_numbers = #tpu.dot_dimension_numbers<[1], [0], [0], [1], [0, 0, 1, 1], [], []>} : vector<16x256xbf16>, vector<256x128xbf16>, vector<16x128xf32> -> vector<16x128xf32>
    %12 = arith.addf %9, %11 : vector<16x128xf32>
    %c0_8 = arith.constant 0 : index
    %c0_9 = arith.constant 0 : index
    %13 = vector.load %arg7[%c0_8, %c0_9] : memref<16x128xf32, #tpu.memory_space<vmem>>, vector<16x128xf32>
    tpu.vector_store %arg7[%c0_8, %c0_9], %12 {strides = array<i32>} : memref<16x128xf32, #tpu.memory_space<vmem>>, vector<16x128xf32>,
    %c0_i32_10 = arith.constant 0 : i32
    %14 = arith.cmpi eq, %arg2, %c0_i32_10 : i32
    %15 = arith.extui %14 : i1 to i32
    %c0_i32_11 = arith.constant 0 : i32
    %16 = arith.cmpi ne, %15, %c0_i32_11 : i32
    scf.if %16 {
      %c0_12 = arith.constant 0 : index
      %c0_13 = arith.constant 0 : index
      %17 = vector.load %arg7[%c0_12, %c0_13] : memref<16x128xf32, #tpu.memory_space<vmem>>, vector<16x128xf32>
      %c0_14 = arith.constant 0 : index
      %c0_15 = arith.constant 0 : index
      %18 = vector.load %arg5[%c0_14, %c0_15] : memref<1x128xf32, #tpu.memory_space<vmem>>, vector<1x128xf32>
      %19 = vector.broadcast %18 : vector<1x128xf32> to vector<16x128xf32>
      %20 = arith.addf %17, %19 : vector<16x128xf32>
      %c0_16 = arith.constant 0 : index
      %c0_17 = arith.constant 0 : index
      %21 = vector.load %arg6[%c0_16, %c0_17] : memref<16x128xf32, #tpu.memory_space<vmem>>, vector<16x128xf32>
      tpu.vector_store %arg6[%c0_16, %c0_17], %20 {strides = array<i32>} : memref<16x128xf32, #tpu.memory_space<vmem>>, vector<16x128xf32>,
    } else {
    }
    return
  }
  func.func @transform_0(%arg0: i32, %arg1: i32, %arg2: i32) -> (i32, i32) {
    %c0_i32 = arith.constant 0 : i32
    return %arg0, %arg2 : i32, i32
  }
  func.func @transform_1(%arg0: i32, %arg1: i32, %arg2: i32) -> (i32, i32) {
    %c0_i32 = arith.constant 0 : i32
    return %arg2, %arg1 : i32, i32
  }
  func.func @transform_2(%arg0: i32, %arg1: i32, %arg2: i32) -> (i32, i32) {
    %c0_i32 = arith.constant 0 : i32
    %c0_i32_0 = arith.constant 0 : i32
    return %c0_i32, %arg1 : i32, i32
  }
  func.func @transform_3(%arg0: i32, %arg1: i32, %arg2: i32) -> (i32, i32) {
    %c0_i32 = arith.constant 0 : i32
    return %arg0, %arg1 : i32, i32
  }
}

module attributes {stable_mosaic.version = 11 : i64} {
  func.func @_in_stats_kernel(%arg0: i32, %arg1: i32, %arg2: memref<1x4x32xf32, #tpu.memory_space<vmem>>, %arg3: memref<1x2x32xf32, #tpu.memory_space<vmem>>) attributes {dimension_semantics = [#tpu.dimension_semantics<parallel>, #tpu.dimension_semantics<arbitrary>], iteration_bounds = array<i64: 2, 1>, scalar_prefetch = 0 : i64, scratch_operands = 0 : i64, tpu.core_type = #tpu.core_type<tc>, window_params = [{transform_indices = @transform_0, window_bounds = array<i64: 1, 4, 32>}, {transform_indices = @transform_1, window_bounds = array<i64: 1, 2, 32>}]} {
    %c0_i32 = arith.constant 0 : i32
    %0 = arith.cmpi eq, %arg1, %c0_i32 : i32
    %1 = arith.extui %0 : i1 to i32
    %c0_i32_0 = arith.constant 0 : i32
    %2 = arith.cmpi ne, %1, %c0_i32_0 : i32
    scf.if %2 {
      %cst_17 = arith.constant 0.000000e+00 : f32
      %18 = vector.broadcast %cst_17 : f32 to vector<1x2x32xf32>
      %c0_18 = arith.constant 0 : index
      %c0_19 = arith.constant 0 : index
      %c0_20 = arith.constant 0 : index
      %19 = vector.load %arg3[%c0_18, %c0_19, %c0_20] : memref<1x2x32xf32, #tpu.memory_space<vmem>>, vector<1x2x32xf32>
      tpu.vector_store %arg3[%c0_18, %c0_19, %c0_20], %18 {strides = array<i32>} : memref<1x2x32xf32, #tpu.memory_space<vmem>>, vector<1x2x32xf32>,
    } else {
    }
    %c0 = arith.constant 0 : index
    %c0_1 = arith.constant 0 : index
    %c0_2 = arith.constant 0 : index
    %3 = vector.load %arg2[%c0, %c0_1, %c0_2] : memref<1x4x32xf32, #tpu.memory_space<vmem>>, vector<1x4x32xf32>
    %c0_3 = arith.constant 0 : index
    %c0_4 = arith.constant 0 : index
    %c0_5 = arith.constant 0 : index
    %4 = vector.load %arg3[%c0_3, %c0_4, %c0_5] : memref<1x2x32xf32, #tpu.memory_space<vmem>>, vector<1x1x32xf32>
    %cst = arith.constant dense<0.000000e+00> : vector<1x32xf32>
    %5 = vector.multi_reduction <add>, %3, %cst [1] : vector<1x4x32xf32> to vector<1x32xf32>
    %6 = vector.shape_cast %5 : vector<1x32xf32> to vector<1x1x32xf32>
    %7 = arith.addf %4, %6 : vector<1x1x32xf32>
    %c0_6 = arith.constant 0 : index
    %c0_7 = arith.constant 0 : index
    %c0_8 = arith.constant 0 : index
    %8 = vector.load %arg3[%c0_6, %c0_7, %c0_8] : memref<1x2x32xf32, #tpu.memory_space<vmem>>, vector<1x1x32xf32>
    tpu.vector_store %arg3[%c0_6, %c0_7, %c0_8], %7 {strides = array<i32>} : memref<1x2x32xf32, #tpu.memory_space<vmem>>, vector<1x1x32xf32>,
    %c0_9 = arith.constant 0 : index
    %c1 = arith.constant 1 : index
    %c0_10 = arith.constant 0 : index
    %9 = vector.load %arg3[%c0_9, %c1, %c0_10] : memref<1x2x32xf32, #tpu.memory_space<vmem>>, vector<1x1x32xf32>
    %10 = arith.mulf %3, %3 : vector<1x4x32xf32>
    %cst_11 = arith.constant dense<0.000000e+00> : vector<1x32xf32>
    %11 = vector.multi_reduction <add>, %10, %cst_11 [1] : vector<1x4x32xf32> to vector<1x32xf32>
    %12 = vector.shape_cast %11 : vector<1x32xf32> to vector<1x1x32xf32>
    %13 = arith.addf %9, %12 : vector<1x1x32xf32>
    %c0_12 = arith.constant 0 : index
    %c1_13 = arith.constant 1 : index
    %c0_14 = arith.constant 0 : index
    %14 = vector.load %arg3[%c0_12, %c1_13, %c0_14] : memref<1x2x32xf32, #tpu.memory_space<vmem>>, vector<1x1x32xf32>
    tpu.vector_store %arg3[%c0_12, %c1_13, %c0_14], %13 {strides = array<i32>} : memref<1x2x32xf32, #tpu.memory_space<vmem>>, vector<1x1x32xf32>,
    %c0_i32_15 = arith.constant 0 : i32
    %15 = arith.cmpi eq, %arg1, %c0_i32_15 : i32
    %16 = arith.extui %15 : i1 to i32
    %c0_i32_16 = arith.constant 0 : i32
    %17 = arith.cmpi ne, %16, %c0_i32_16 : i32
    scf.if %17 {
      %c0_17 = arith.constant 0 : index
      %c0_18 = arith.constant 0 : index
      %c0_19 = arith.constant 0 : index
      %18 = vector.load %arg3[%c0_17, %c0_18, %c0_19] : memref<1x2x32xf32, #tpu.memory_space<vmem>>, vector<1x1x32xf32>
      %cst_20 = arith.constant 4.000000e+00 : f32
      %19 = vector.broadcast %cst_20 : f32 to vector<1x1x32xf32>
      %20 = arith.divf %18, %19 : vector<1x1x32xf32>
      %c0_21 = arith.constant 0 : index
      %c1_22 = arith.constant 1 : index
      %c0_23 = arith.constant 0 : index
      %21 = vector.load %arg3[%c0_21, %c1_22, %c0_23] : memref<1x2x32xf32, #tpu.memory_space<vmem>>, vector<1x1x32xf32>
      %cst_24 = arith.constant 4.000000e+00 : f32
      %22 = vector.broadcast %cst_24 : f32 to vector<1x1x32xf32>
      %23 = arith.divf %21, %22 : vector<1x1x32xf32>
      %24 = arith.mulf %20, %20 : vector<1x1x32xf32>
      %25 = arith.subf %23, %24 : vector<1x1x32xf32>
      %c0_25 = arith.constant 0 : index
      %c0_26 = arith.constant 0 : index
      %c0_27 = arith.constant 0 : index
      %26 = vector.load %arg3[%c0_25, %c0_26, %c0_27] : memref<1x2x32xf32, #tpu.memory_space<vmem>>, vector<1x1x32xf32>
      tpu.vector_store %arg3[%c0_25, %c0_26, %c0_27], %20 {strides = array<i32>} : memref<1x2x32xf32, #tpu.memory_space<vmem>>, vector<1x1x32xf32>,
      %cst_28 = arith.constant 0.000000e+00 : f32
      %27 = vector.broadcast %cst_28 : f32 to vector<1x1x32xf32>
      %28 = arith.maximumf %25, %27 : vector<1x1x32xf32>
      %cst_29 = arith.constant 9.99999974E-6 : f32
      %29 = vector.broadcast %cst_29 : f32 to vector<1x1x32xf32>
      %30 = arith.addf %28, %29 : vector<1x1x32xf32>
      %31 = math.rsqrt %30 : vector<1x1x32xf32>
      %c0_30 = arith.constant 0 : index
      %c1_31 = arith.constant 1 : index
      %c0_32 = arith.constant 0 : index
      %32 = vector.load %arg3[%c0_30, %c1_31, %c0_32] : memref<1x2x32xf32, #tpu.memory_space<vmem>>, vector<1x1x32xf32>
      tpu.vector_store %arg3[%c0_30, %c1_31, %c0_32], %31 {strides = array<i32>} : memref<1x2x32xf32, #tpu.memory_space<vmem>>, vector<1x1x32xf32>,
    } else {
    }
    return
  }
  func.func @transform_0(%arg0: i32, %arg1: i32) -> (i32, i32, i32) {
    %c0_i32 = arith.constant 0 : i32
    %c0_i32_0 = arith.constant 0 : i32
    return %arg0, %arg1, %c0_i32 : i32, i32, i32
  }
  func.func @transform_1(%arg0: i32, %arg1: i32) -> (i32, i32, i32) {
    %c0_i32 = arith.constant 0 : i32
    %c0_i32_0 = arith.constant 0 : i32
    %c0_i32_1 = arith.constant 0 : i32
    return %arg0, %c0_i32, %c0_i32_0 : i32, i32, i32
  }
}

module attributes {stable_mosaic.version = 11 : i64} {
  func.func @_in_apply_kernel(%arg0: i32, %arg1: i32, %arg2: memref<1x4x32xf32, #tpu.memory_space<vmem>>, %arg3: memref<1x2x32xf32, #tpu.memory_space<vmem>>, %arg4: memref<1x4x32xf32, #tpu.memory_space<vmem>>) attributes {dimension_semantics = [#tpu.dimension_semantics<parallel>, #tpu.dimension_semantics<parallel>], iteration_bounds = array<i64: 2, 1>, scalar_prefetch = 0 : i64, scratch_operands = 0 : i64, tpu.core_type = #tpu.core_type<tc>, window_params = [{transform_indices = @transform_0, window_bounds = array<i64: 1, 4, 32>}, {transform_indices = @transform_1, window_bounds = array<i64: 1, 2, 32>}, {transform_indices = @transform_2, window_bounds = array<i64: 1, 4, 32>}]} {
    %c0 = arith.constant 0 : index
    %c0_0 = arith.constant 0 : index
    %c0_1 = arith.constant 0 : index
    %0 = vector.load %arg2[%c0, %c0_0, %c0_1] : memref<1x4x32xf32, #tpu.memory_space<vmem>>, vector<1x4x32xf32>
    %c0_2 = arith.constant 0 : index
    %c0_3 = arith.constant 0 : index
    %c0_4 = arith.constant 0 : index
    %1 = vector.load %arg3[%c0_2, %c0_3, %c0_4] : memref<1x2x32xf32, #tpu.memory_space<vmem>>, vector<1x1x32xf32>
    %2 = vector.broadcast %1 : vector<1x1x32xf32> to vector<1x4x32xf32>
    %3 = arith.subf %0, %2 : vector<1x4x32xf32>
    %c0_5 = arith.constant 0 : index
    %c1 = arith.constant 1 : index
    %c0_6 = arith.constant 0 : index
    %4 = vector.load %arg3[%c0_5, %c1, %c0_6] : memref<1x2x32xf32, #tpu.memory_space<vmem>>, vector<1x1x32xf32>
    %5 = vector.broadcast %4 : vector<1x1x32xf32> to vector<1x4x32xf32>
    %6 = arith.mulf %3, %5 : vector<1x4x32xf32>
    %c0_7 = arith.constant 0 : index
    %c0_8 = arith.constant 0 : index
    %c0_9 = arith.constant 0 : index
    %7 = vector.load %arg4[%c0_7, %c0_8, %c0_9] : memref<1x4x32xf32, #tpu.memory_space<vmem>>, vector<1x4x32xf32>
    tpu.vector_store %arg4[%c0_7, %c0_8, %c0_9], %6 {strides = array<i32>} : memref<1x4x32xf32, #tpu.memory_space<vmem>>, vector<1x4x32xf32>,
    return
  }
  func.func @transform_0(%arg0: i32, %arg1: i32) -> (i32, i32, i32) {
    %c0_i32 = arith.constant 0 : i32
    %c0_i32_0 = arith.constant 0 : i32
    return %arg0, %arg1, %c0_i32 : i32, i32, i32
  }
  func.func @transform_1(%arg0: i32, %arg1: i32) -> (i32, i32, i32) {
    %c0_i32 = arith.constant 0 : i32
    %c0_i32_0 = arith.constant 0 : i32
    %c0_i32_1 = arith.constant 0 : i32
    return %arg0, %c0_i32, %c0_i32_0 : i32, i32, i32
  }
  func.func @transform_2(%arg0: i32, %arg1: i32) -> (i32, i32, i32) {
    %c0_i32 = arith.constant 0 : i32
    %c0_i32_0 = arith.constant 0 : i32
    return %arg0, %arg1, %c0_i32 : i32, i32, i32
  }
}

module attributes {stable_mosaic.version = 11 : i64} {
  func.func @_mm_bias_act_kernel(%arg0: i32, %arg1: i32, %arg2: i32, %arg3: memref<16x512xbf16, #tpu.memory_space<vmem>>, %arg4: memref<512x128xbf16, #tpu.memory_space<vmem>>, %arg5: memref<1x128xf32, #tpu.memory_space<vmem>>, %arg6: memref<16x128xf32, #tpu.memory_space<vmem>>, %arg7: memref<16x128xf32, #tpu.memory_space<vmem>>) attributes {dimension_semantics = [#tpu.dimension_semantics<parallel>, #tpu.dimension_semantics<parallel>, #tpu.dimension_semantics<arbitrary>], iteration_bounds = array<i64: 1, 1, 1>, scalar_prefetch = 0 : i64, scratch_operands = 1 : i64, tpu.core_type = #tpu.core_type<tc>, window_params = [{transform_indices = @transform_0, window_bounds = array<i64: 16, 512>}, {transform_indices = @transform_1, window_bounds = array<i64: 512, 128>}, {transform_indices = @transform_2, window_bounds = array<i64: 1, 128>}, {transform_indices = @transform_3, window_bounds = array<i64: 16, 128>}]} {
    %c0_i32 = arith.constant 0 : i32
    %0 = arith.cmpi eq, %arg2, %c0_i32 : i32
    %1 = arith.extui %0 : i1 to i32
    %c0_i32_0 = arith.constant 0 : i32
    %2 = arith.cmpi ne, %1, %c0_i32_0 : i32
    scf.if %2 {
      %cst_12 = arith.constant 0.000000e+00 : f32
      %17 = vector.broadcast %cst_12 : f32 to vector<16x128xf32>
      %c0_13 = arith.constant 0 : index
      %c0_14 = arith.constant 0 : index
      %18 = vector.load %arg7[%c0_13, %c0_14] : memref<16x128xf32, #tpu.memory_space<vmem>>, vector<16x128xf32>
      tpu.vector_store %arg7[%c0_13, %c0_14], %17 {strides = array<i32>} : memref<16x128xf32, #tpu.memory_space<vmem>>, vector<16x128xf32>,
    } else {
    }
    %c0 = arith.constant 0 : index
    %c0_1 = arith.constant 0 : index
    %3 = vector.load %arg3[%c0, %c0_1] : memref<16x512xbf16, #tpu.memory_space<vmem>>, vector<16x512xbf16>
    %cst = arith.constant 0.000000e+00 : bf16
    %4 = vector.broadcast %cst : bf16 to vector<16x512xbf16>
    %5 = arith.cmpf oge, %3, %4 : vector<16x512xbf16>
    %cst_2 = arith.constant 2.001950e-01 : bf16
    %6 = vector.broadcast %cst_2 : bf16 to vector<16x512xbf16>
    %7 = arith.mulf %6, %3 : vector<16x512xbf16>
    %8 = arith.select %5, %3, %7 : vector<16x512xi1>, vector<16x512xbf16>
    %c0_3 = arith.constant 0 : index
    %c0_4 = arith.constant 0 : index
    %9 = vector.load %arg7[%c0_3, %c0_4] : memref<16x128xf32, #tpu.memory_space<vmem>>, vector<16x128xf32>
    %c0_5 = arith.constant 0 : index
    %c0_6 = arith.constant 0 : index
    %10 = vector.load %arg4[%c0_5, %c0_6] : memref<512x128xbf16, #tpu.memory_space<vmem>>, vector<512x128xbf16>
    %cst_7 = arith.constant dense<0.000000e+00> : vector<16x128xf32>
    %11 = tpu.matmul %8, %10, %cst_7 {dimension_numbers = #tpu.dot_dimension_numbers<[1], [0], [0], [1], [0, 0, 1, 1], [], []>} : vector<16x512xbf16>, vector<512x128xbf16>, vector<16x128xf32> -> vector<16x128xf32>
    %12 = arith.addf %9, %11 : vector<16x128xf32>
    %c0_8 = arith.constant 0 : index
    %c0_9 = arith.constant 0 : index
    %13 = vector.load %arg7[%c0_8, %c0_9] : memref<16x128xf32, #tpu.memory_space<vmem>>, vector<16x128xf32>
    tpu.vector_store %arg7[%c0_8, %c0_9], %12 {strides = array<i32>} : memref<16x128xf32, #tpu.memory_space<vmem>>, vector<16x128xf32>,
    %c0_i32_10 = arith.constant 0 : i32
    %14 = arith.cmpi eq, %arg2, %c0_i32_10 : i32
    %15 = arith.extui %14 : i1 to i32
    %c0_i32_11 = arith.constant 0 : i32
    %16 = arith.cmpi ne, %15, %c0_i32_11 : i32
    scf.if %16 {
      %c0_12 = arith.constant 0 : index
      %c0_13 = arith.constant 0 : index
      %17 = vector.load %arg7[%c0_12, %c0_13] : memref<16x128xf32, #tpu.memory_space<vmem>>, vector<16x128xf32>
      %c0_14 = arith.constant 0 : index
      %c0_15 = arith.constant 0 : index
      %18 = vector.load %arg5[%c0_14, %c0_15] : memref<1x128xf32, #tpu.memory_space<vmem>>, vector<1x128xf32>
      %19 = vector.broadcast %18 : vector<1x128xf32> to vector<16x128xf32>
      %20 = arith.addf %17, %19 : vector<16x128xf32>
      %c0_16 = arith.constant 0 : index
      %c0_17 = arith.constant 0 : index
      %21 = vector.load %arg6[%c0_16, %c0_17] : memref<16x128xf32, #tpu.memory_space<vmem>>, vector<16x128xf32>
      tpu.vector_store %arg6[%c0_16, %c0_17], %20 {strides = array<i32>} : memref<16x128xf32, #tpu.memory_space<vmem>>, vector<16x128xf32>,
    } else {
    }
    return
  }
  func.func @transform_0(%arg0: i32, %arg1: i32, %arg2: i32) -> (i32, i32) {
    %c0_i32 = arith.constant 0 : i32
    return %arg0, %arg2 : i32, i32
  }
  func.func @transform_1(%arg0: i32, %arg1: i32, %arg2: i32) -> (i32, i32) {
    %c0_i32 = arith.constant 0 : i32
    return %arg2, %arg1 : i32, i32
  }
  func.func @transform_2(%arg0: i32, %arg1: i32, %arg2: i32) -> (i32, i32) {
    %c0_i32 = arith.constant 0 : i32
    %c0_i32_0 = arith.constant 0 : i32
    return %c0_i32, %arg1 : i32, i32
  }
  func.func @transform_3(%arg0: i32, %arg1: i32, %arg2: i32) -> (i32, i32) {
    %c0_i32 = arith.constant 0 : i32
    return %arg0, %arg1 : i32, i32
  }
}

module attributes {stable_mosaic.version = 11 : i64} {
  func.func @_mm_bias_act_kernel(%arg0: i32, %arg1: i32, %arg2: i32, %arg3: memref<16x128xbf16, #tpu.memory_space<vmem>>, %arg4: memref<128x128xbf16, #tpu.memory_space<vmem>>, %arg5: memref<1x128xf32, #tpu.memory_space<vmem>>, %arg6: memref<16x128xf32, #tpu.memory_space<vmem>>, %arg7: memref<16x128xf32, #tpu.memory_space<vmem>>) attributes {dimension_semantics = [#tpu.dimension_semantics<parallel>, #tpu.dimension_semantics<parallel>, #tpu.dimension_semantics<arbitrary>], iteration_bounds = array<i64: 1, 1, 1>, scalar_prefetch = 0 : i64, scratch_operands = 1 : i64, tpu.core_type = #tpu.core_type<tc>, window_params = [{transform_indices = @transform_0, window_bounds = array<i64: 16, 128>}, {transform_indices = @transform_1, window_bounds = array<i64: 128, 128>}, {transform_indices = @transform_2, window_bounds = array<i64: 1, 128>}, {transform_indices = @transform_3, window_bounds = array<i64: 16, 128>}]} {
    %c0_i32 = arith.constant 0 : i32
    %0 = arith.cmpi eq, %arg2, %c0_i32 : i32
    %1 = arith.extui %0 : i1 to i32
    %c0_i32_0 = arith.constant 0 : i32
    %2 = arith.cmpi ne, %1, %c0_i32_0 : i32
    scf.if %2 {
      %cst_11 = arith.constant 0.000000e+00 : f32
      %14 = vector.broadcast %cst_11 : f32 to vector<16x128xf32>
      %c0_12 = arith.constant 0 : index
      %c0_13 = arith.constant 0 : index
      %15 = vector.load %arg7[%c0_12, %c0_13] : memref<16x128xf32, #tpu.memory_space<vmem>>, vector<16x128xf32>
      tpu.vector_store %arg7[%c0_12, %c0_13], %14 {strides = array<i32>} : memref<16x128xf32, #tpu.memory_space<vmem>>, vector<16x128xf32>,
    } else {
    }
    %c0 = arith.constant 0 : index
    %c0_1 = arith.constant 0 : index
    %3 = vector.load %arg3[%c0, %c0_1] : memref<16x128xbf16, #tpu.memory_space<vmem>>, vector<16x128xbf16>
    %cst = arith.constant 0.000000e+00 : bf16
    %4 = vector.broadcast %cst : bf16 to vector<16x128xbf16>
    %5 = arith.maximumf %3, %4 : vector<16x128xbf16>
    %c0_2 = arith.constant 0 : index
    %c0_3 = arith.constant 0 : index
    %6 = vector.load %arg7[%c0_2, %c0_3] : memref<16x128xf32, #tpu.memory_space<vmem>>, vector<16x128xf32>
    %c0_4 = arith.constant 0 : index
    %c0_5 = arith.constant 0 : index
    %7 = vector.load %arg4[%c0_4, %c0_5] : memref<128x128xbf16, #tpu.memory_space<vmem>>, vector<128x128xbf16>
    %cst_6 = arith.constant dense<0.000000e+00> : vector<16x128xf32>
    %8 = tpu.matmul %5, %7, %cst_6 {dimension_numbers = #tpu.dot_dimension_numbers<[1], [0], [0], [1], [0, 0, 1, 1], [], []>} : vector<16x128xbf16>, vector<128x128xbf16>, vector<16x128xf32> -> vector<16x128xf32>
    %9 = arith.addf %6, %8 : vector<16x128xf32>
    %c0_7 = arith.constant 0 : index
    %c0_8 = arith.constant 0 : index
    %10 = vector.load %arg7[%c0_7, %c0_8] : memref<16x128xf32, #tpu.memory_space<vmem>>, vector<16x128xf32>
    tpu.vector_store %arg7[%c0_7, %c0_8], %9 {strides = array<i32>} : memref<16x128xf32, #tpu.memory_space<vmem>>, vector<16x128xf32>,
    %c0_i32_9 = arith.constant 0 : i32
    %11 = arith.cmpi eq, %arg2, %c0_i32_9 : i32
    %12 = arith.extui %11 : i1 to i32
    %c0_i32_10 = arith.constant 0 : i32
    %13 = arith.cmpi ne, %12, %c0_i32_10 : i32
    scf.if %13 {
      %c0_11 = arith.constant 0 : index
      %c0_12 = arith.constant 0 : index
      %14 = vector.load %arg7[%c0_11, %c0_12] : memref<16x128xf32, #tpu.memory_space<vmem>>, vector<16x128xf32>
      %c0_13 = arith.constant 0 : index
      %c0_14 = arith.constant 0 : index
      %15 = vector.load %arg5[%c0_13, %c0_14] : memref<1x128xf32, #tpu.memory_space<vmem>>, vector<1x128xf32>
      %16 = vector.broadcast %15 : vector<1x128xf32> to vector<16x128xf32>
      %17 = arith.addf %14, %16 : vector<16x128xf32>
      %c0_15 = arith.constant 0 : index
      %c0_16 = arith.constant 0 : index
      %18 = vector.load %arg6[%c0_15, %c0_16] : memref<16x128xf32, #tpu.memory_space<vmem>>, vector<16x128xf32>
      tpu.vector_store %arg6[%c0_15, %c0_16], %17 {strides = array<i32>} : memref<16x128xf32, #tpu.memory_space<vmem>>, vector<16x128xf32>,
    } else {
    }
    return
  }
  func.func @transform_0(%arg0: i32, %arg1: i32, %arg2: i32) -> (i32, i32) {
    %c0_i32 = arith.constant 0 : i32
    return %arg0, %arg2 : i32, i32
  }
  func.func @transform_1(%arg0: i32, %arg1: i32, %arg2: i32) -> (i32, i32) {
    %c0_i32 = arith.constant 0 : i32
    return %arg2, %arg1 : i32, i32
  }
  func.func @transform_2(%arg0: i32, %arg1: i32, %arg2: i32) -> (i32, i32) {
    %c0_i32 = arith.constant 0 : i32
    %c0_i32_0 = arith.constant 0 : i32
    return %c0_i32, %arg1 : i32, i32
  }
  func.func @transform_3(%arg0: i32, %arg1: i32, %arg2: i32) -> (i32, i32) {
    %c0_i32 = arith.constant 0 : i32
    return %arg0, %arg1 : i32, i32
  }
}

module attributes {stable_mosaic.version = 11 : i64} {
  func.func @_mm_bias_act_kernel(%arg0: i32, %arg1: i32, %arg2: i32, %arg3: memref<16x256xbf16, #tpu.memory_space<vmem>>, %arg4: memref<256x128xbf16, #tpu.memory_space<vmem>>, %arg5: memref<1x128xf32, #tpu.memory_space<vmem>>, %arg6: memref<16x128xf32, #tpu.memory_space<vmem>>, %arg7: memref<16x128xf32, #tpu.memory_space<vmem>>) attributes {dimension_semantics = [#tpu.dimension_semantics<parallel>, #tpu.dimension_semantics<parallel>, #tpu.dimension_semantics<arbitrary>], iteration_bounds = array<i64: 1, 1, 1>, scalar_prefetch = 0 : i64, scratch_operands = 1 : i64, tpu.core_type = #tpu.core_type<tc>, window_params = [{transform_indices = @transform_0, window_bounds = array<i64: 16, 256>}, {transform_indices = @transform_1, window_bounds = array<i64: 256, 128>}, {transform_indices = @transform_2, window_bounds = array<i64: 1, 128>}, {transform_indices = @transform_3, window_bounds = array<i64: 16, 128>}]} {
    %c0_i32 = arith.constant 0 : i32
    %0 = arith.cmpi eq, %arg2, %c0_i32 : i32
    %1 = arith.extui %0 : i1 to i32
    %c0_i32_0 = arith.constant 0 : i32
    %2 = arith.cmpi ne, %1, %c0_i32_0 : i32
    scf.if %2 {
      %cst_11 = arith.constant 0.000000e+00 : f32
      %14 = vector.broadcast %cst_11 : f32 to vector<16x128xf32>
      %c0_12 = arith.constant 0 : index
      %c0_13 = arith.constant 0 : index
      %15 = vector.load %arg7[%c0_12, %c0_13] : memref<16x128xf32, #tpu.memory_space<vmem>>, vector<16x128xf32>
      tpu.vector_store %arg7[%c0_12, %c0_13], %14 {strides = array<i32>} : memref<16x128xf32, #tpu.memory_space<vmem>>, vector<16x128xf32>,
    } else {
    }
    %c0 = arith.constant 0 : index
    %c0_1 = arith.constant 0 : index
    %3 = vector.load %arg3[%c0, %c0_1] : memref<16x256xbf16, #tpu.memory_space<vmem>>, vector<16x256xbf16>
    %cst = arith.constant 0.000000e+00 : bf16
    %4 = vector.broadcast %cst : bf16 to vector<16x256xbf16>
    %5 = arith.maximumf %3, %4 : vector<16x256xbf16>
    %c0_2 = arith.constant 0 : index
    %c0_3 = arith.constant 0 : index
    %6 = vector.load %arg7[%c0_2, %c0_3] : memref<16x128xf32, #tpu.memory_space<vmem>>, vector<16x128xf32>
    %c0_4 = arith.constant 0 : index
    %c0_5 = arith.constant 0 : index
    %7 = vector.load %arg4[%c0_4, %c0_5] : memref<256x128xbf16, #tpu.memory_space<vmem>>, vector<256x128xbf16>
    %cst_6 = arith.constant dense<0.000000e+00> : vector<16x128xf32>
    %8 = tpu.matmul %5, %7, %cst_6 {dimension_numbers = #tpu.dot_dimension_numbers<[1], [0], [0], [1], [0, 0, 1, 1], [], []>} : vector<16x256xbf16>, vector<256x128xbf16>, vector<16x128xf32> -> vector<16x128xf32>
    %9 = arith.addf %6, %8 : vector<16x128xf32>
    %c0_7 = arith.constant 0 : index
    %c0_8 = arith.constant 0 : index
    %10 = vector.load %arg7[%c0_7, %c0_8] : memref<16x128xf32, #tpu.memory_space<vmem>>, vector<16x128xf32>
    tpu.vector_store %arg7[%c0_7, %c0_8], %9 {strides = array<i32>} : memref<16x128xf32, #tpu.memory_space<vmem>>, vector<16x128xf32>,
    %c0_i32_9 = arith.constant 0 : i32
    %11 = arith.cmpi eq, %arg2, %c0_i32_9 : i32
    %12 = arith.extui %11 : i1 to i32
    %c0_i32_10 = arith.constant 0 : i32
    %13 = arith.cmpi ne, %12, %c0_i32_10 : i32
    scf.if %13 {
      %c0_11 = arith.constant 0 : index
      %c0_12 = arith.constant 0 : index
      %14 = vector.load %arg7[%c0_11, %c0_12] : memref<16x128xf32, #tpu.memory_space<vmem>>, vector<16x128xf32>
      %c0_13 = arith.constant 0 : index
      %c0_14 = arith.constant 0 : index
      %15 = vector.load %arg5[%c0_13, %c0_14] : memref<1x128xf32, #tpu.memory_space<vmem>>, vector<1x128xf32>
      %16 = vector.broadcast %15 : vector<1x128xf32> to vector<16x128xf32>
      %17 = arith.addf %14, %16 : vector<16x128xf32>
      %c0_15 = arith.constant 0 : index
      %c0_16 = arith.constant 0 : index
      %18 = vector.load %arg6[%c0_15, %c0_16] : memref<16x128xf32, #tpu.memory_space<vmem>>, vector<16x128xf32>
      tpu.vector_store %arg6[%c0_15, %c0_16], %17 {strides = array<i32>} : memref<16x128xf32, #tpu.memory_space<vmem>>, vector<16x128xf32>,
    } else {
    }
    return
  }
  func.func @transform_0(%arg0: i32, %arg1: i32, %arg2: i32) -> (i32, i32) {
    %c0_i32 = arith.constant 0 : i32
    return %arg0, %arg2 : i32, i32
  }
  func.func @transform_1(%arg0: i32, %arg1: i32, %arg2: i32) -> (i32, i32) {
    %c0_i32 = arith.constant 0 : i32
    return %arg2, %arg1 : i32, i32
  }
  func.func @transform_2(%arg0: i32, %arg1: i32, %arg2: i32) -> (i32, i32) {
    %c0_i32 = arith.constant 0 : i32
    %c0_i32_0 = arith.constant 0 : i32
    return %c0_i32, %arg1 : i32, i32
  }
  func.func @transform_3(%arg0: i32, %arg1: i32, %arg2: i32) -> (i32, i32) {
    %c0_i32 = arith.constant 0 : i32
    return %arg0, %arg1 : i32, i32
  }
}

module attributes {stable_mosaic.version = 11 : i64} {
  func.func @_mm_bias_act_kernel(%arg0: i32, %arg1: i32, %arg2: i32, %arg3: memref<32x128xbf16, #tpu.memory_space<vmem>>, %arg4: memref<128x128xbf16, #tpu.memory_space<vmem>>, %arg5: memref<1x128xf32, #tpu.memory_space<vmem>>, %arg6: memref<32x128xf32, #tpu.memory_space<vmem>>, %arg7: memref<32x128xf32, #tpu.memory_space<vmem>>) attributes {dimension_semantics = [#tpu.dimension_semantics<parallel>, #tpu.dimension_semantics<parallel>, #tpu.dimension_semantics<arbitrary>], iteration_bounds = array<i64: 1, 1, 1>, scalar_prefetch = 0 : i64, scratch_operands = 1 : i64, tpu.core_type = #tpu.core_type<tc>, window_params = [{transform_indices = @transform_0, window_bounds = array<i64: 32, 128>}, {transform_indices = @transform_1, window_bounds = array<i64: 128, 128>}, {transform_indices = @transform_2, window_bounds = array<i64: 1, 128>}, {transform_indices = @transform_3, window_bounds = array<i64: 32, 128>}]} {
    %c0_i32 = arith.constant 0 : i32
    %0 = arith.cmpi eq, %arg2, %c0_i32 : i32
    %1 = arith.extui %0 : i1 to i32
    %c0_i32_0 = arith.constant 0 : i32
    %2 = arith.cmpi ne, %1, %c0_i32_0 : i32
    scf.if %2 {
      %cst_11 = arith.constant 0.000000e+00 : f32
      %14 = vector.broadcast %cst_11 : f32 to vector<32x128xf32>
      %c0_12 = arith.constant 0 : index
      %c0_13 = arith.constant 0 : index
      %15 = vector.load %arg7[%c0_12, %c0_13] : memref<32x128xf32, #tpu.memory_space<vmem>>, vector<32x128xf32>
      tpu.vector_store %arg7[%c0_12, %c0_13], %14 {strides = array<i32>} : memref<32x128xf32, #tpu.memory_space<vmem>>, vector<32x128xf32>,
    } else {
    }
    %c0 = arith.constant 0 : index
    %c0_1 = arith.constant 0 : index
    %3 = vector.load %arg3[%c0, %c0_1] : memref<32x128xbf16, #tpu.memory_space<vmem>>, vector<32x128xbf16>
    %cst = arith.constant 0.000000e+00 : bf16
    %4 = vector.broadcast %cst : bf16 to vector<32x128xbf16>
    %5 = arith.maximumf %3, %4 : vector<32x128xbf16>
    %c0_2 = arith.constant 0 : index
    %c0_3 = arith.constant 0 : index
    %6 = vector.load %arg7[%c0_2, %c0_3] : memref<32x128xf32, #tpu.memory_space<vmem>>, vector<32x128xf32>
    %c0_4 = arith.constant 0 : index
    %c0_5 = arith.constant 0 : index
    %7 = vector.load %arg4[%c0_4, %c0_5] : memref<128x128xbf16, #tpu.memory_space<vmem>>, vector<128x128xbf16>
    %cst_6 = arith.constant dense<0.000000e+00> : vector<32x128xf32>
    %8 = tpu.matmul %5, %7, %cst_6 {dimension_numbers = #tpu.dot_dimension_numbers<[1], [0], [0], [1], [0, 0, 1, 1], [], []>} : vector<32x128xbf16>, vector<128x128xbf16>, vector<32x128xf32> -> vector<32x128xf32>
    %9 = arith.addf %6, %8 : vector<32x128xf32>
    %c0_7 = arith.constant 0 : index
    %c0_8 = arith.constant 0 : index
    %10 = vector.load %arg7[%c0_7, %c0_8] : memref<32x128xf32, #tpu.memory_space<vmem>>, vector<32x128xf32>
    tpu.vector_store %arg7[%c0_7, %c0_8], %9 {strides = array<i32>} : memref<32x128xf32, #tpu.memory_space<vmem>>, vector<32x128xf32>,
    %c0_i32_9 = arith.constant 0 : i32
    %11 = arith.cmpi eq, %arg2, %c0_i32_9 : i32
    %12 = arith.extui %11 : i1 to i32
    %c0_i32_10 = arith.constant 0 : i32
    %13 = arith.cmpi ne, %12, %c0_i32_10 : i32
    scf.if %13 {
      %c0_11 = arith.constant 0 : index
      %c0_12 = arith.constant 0 : index
      %14 = vector.load %arg7[%c0_11, %c0_12] : memref<32x128xf32, #tpu.memory_space<vmem>>, vector<32x128xf32>
      %c0_13 = arith.constant 0 : index
      %c0_14 = arith.constant 0 : index
      %15 = vector.load %arg5[%c0_13, %c0_14] : memref<1x128xf32, #tpu.memory_space<vmem>>, vector<1x128xf32>
      %16 = vector.broadcast %15 : vector<1x128xf32> to vector<32x128xf32>
      %17 = arith.addf %14, %16 : vector<32x128xf32>
      %c0_15 = arith.constant 0 : index
      %c0_16 = arith.constant 0 : index
      %18 = vector.load %arg6[%c0_15, %c0_16] : memref<32x128xf32, #tpu.memory_space<vmem>>, vector<32x128xf32>
      tpu.vector_store %arg6[%c0_15, %c0_16], %17 {strides = array<i32>} : memref<32x128xf32, #tpu.memory_space<vmem>>, vector<32x128xf32>,
    } else {
    }
    return
  }
  func.func @transform_0(%arg0: i32, %arg1: i32, %arg2: i32) -> (i32, i32) {
    %c0_i32 = arith.constant 0 : i32
    return %arg0, %arg2 : i32, i32
  }
  func.func @transform_1(%arg0: i32, %arg1: i32, %arg2: i32) -> (i32, i32) {
    %c0_i32 = arith.constant 0 : i32
    return %arg2, %arg1 : i32, i32
  }
  func.func @transform_2(%arg0: i32, %arg1: i32, %arg2: i32) -> (i32, i32) {
    %c0_i32 = arith.constant 0 : i32
    %c0_i32_0 = arith.constant 0 : i32
    return %c0_i32, %arg1 : i32, i32
  }
  func.func @transform_3(%arg0: i32, %arg1: i32, %arg2: i32) -> (i32, i32) {
    %c0_i32 = arith.constant 0 : i32
    return %arg0, %arg1 : i32, i32
  }
}

module attributes {stable_mosaic.version = 11 : i64} {
  func.func @_mm_bias_act_kernel(%arg0: i32, %arg1: i32, %arg2: i32, %arg3: memref<128x128xbf16, #tpu.memory_space<vmem>>, %arg4: memref<128x128xbf16, #tpu.memory_space<vmem>>, %arg5: memref<1x128xf32, #tpu.memory_space<vmem>>, %arg6: memref<128x128xf32, #tpu.memory_space<vmem>>, %arg7: memref<128x128xf32, #tpu.memory_space<vmem>>) attributes {dimension_semantics = [#tpu.dimension_semantics<parallel>, #tpu.dimension_semantics<parallel>, #tpu.dimension_semantics<arbitrary>], iteration_bounds = array<i64: 1, 1, 1>, scalar_prefetch = 0 : i64, scratch_operands = 1 : i64, tpu.core_type = #tpu.core_type<tc>, window_params = [{transform_indices = @transform_0, window_bounds = array<i64: 128, 128>}, {transform_indices = @transform_1, window_bounds = array<i64: 128, 128>}, {transform_indices = @transform_2, window_bounds = array<i64: 1, 128>}, {transform_indices = @transform_3, window_bounds = array<i64: 128, 128>}]} {
    %c0_i32 = arith.constant 0 : i32
    %0 = arith.cmpi eq, %arg2, %c0_i32 : i32
    %1 = arith.extui %0 : i1 to i32
    %c0_i32_0 = arith.constant 0 : i32
    %2 = arith.cmpi ne, %1, %c0_i32_0 : i32
    scf.if %2 {
      %cst_11 = arith.constant 0.000000e+00 : f32
      %14 = vector.broadcast %cst_11 : f32 to vector<128x128xf32>
      %c0_12 = arith.constant 0 : index
      %c0_13 = arith.constant 0 : index
      %15 = vector.load %arg7[%c0_12, %c0_13] : memref<128x128xf32, #tpu.memory_space<vmem>>, vector<128x128xf32>
      tpu.vector_store %arg7[%c0_12, %c0_13], %14 {strides = array<i32>} : memref<128x128xf32, #tpu.memory_space<vmem>>, vector<128x128xf32>,
    } else {
    }
    %c0 = arith.constant 0 : index
    %c0_1 = arith.constant 0 : index
    %3 = vector.load %arg3[%c0, %c0_1] : memref<128x128xbf16, #tpu.memory_space<vmem>>, vector<128x128xbf16>
    %cst = arith.constant 0.000000e+00 : bf16
    %4 = vector.broadcast %cst : bf16 to vector<128x128xbf16>
    %5 = arith.maximumf %3, %4 : vector<128x128xbf16>
    %c0_2 = arith.constant 0 : index
    %c0_3 = arith.constant 0 : index
    %6 = vector.load %arg7[%c0_2, %c0_3] : memref<128x128xf32, #tpu.memory_space<vmem>>, vector<128x128xf32>
    %c0_4 = arith.constant 0 : index
    %c0_5 = arith.constant 0 : index
    %7 = vector.load %arg4[%c0_4, %c0_5] : memref<128x128xbf16, #tpu.memory_space<vmem>>, vector<128x128xbf16>
    %cst_6 = arith.constant dense<0.000000e+00> : vector<128x128xf32>
    %8 = tpu.matmul %5, %7, %cst_6 {dimension_numbers = #tpu.dot_dimension_numbers<[1], [0], [0], [1], [0, 0, 1, 1], [], []>} : vector<128x128xbf16>, vector<128x128xbf16>, vector<128x128xf32> -> vector<128x128xf32>
    %9 = arith.addf %6, %8 : vector<128x128xf32>
    %c0_7 = arith.constant 0 : index
    %c0_8 = arith.constant 0 : index
    %10 = vector.load %arg7[%c0_7, %c0_8] : memref<128x128xf32, #tpu.memory_space<vmem>>, vector<128x128xf32>
    tpu.vector_store %arg7[%c0_7, %c0_8], %9 {strides = array<i32>} : memref<128x128xf32, #tpu.memory_space<vmem>>, vector<128x128xf32>,
    %c0_i32_9 = arith.constant 0 : i32
    %11 = arith.cmpi eq, %arg2, %c0_i32_9 : i32
    %12 = arith.extui %11 : i1 to i32
    %c0_i32_10 = arith.constant 0 : i32
    %13 = arith.cmpi ne, %12, %c0_i32_10 : i32
    scf.if %13 {
      %c0_11 = arith.constant 0 : index
      %c0_12 = arith.constant 0 : index
      %14 = vector.load %arg7[%c0_11, %c0_12] : memref<128x128xf32, #tpu.memory_space<vmem>>, vector<128x128xf32>
      %c0_13 = arith.constant 0 : index
      %c0_14 = arith.constant 0 : index
      %15 = vector.load %arg5[%c0_13, %c0_14] : memref<1x128xf32, #tpu.memory_space<vmem>>, vector<1x128xf32>
      %16 = vector.broadcast %15 : vector<1x128xf32> to vector<128x128xf32>
      %17 = arith.addf %14, %16 : vector<128x128xf32>
      %c0_15 = arith.constant 0 : index
      %c0_16 = arith.constant 0 : index
      %18 = vector.load %arg6[%c0_15, %c0_16] : memref<128x128xf32, #tpu.memory_space<vmem>>, vector<128x128xf32>
      tpu.vector_store %arg6[%c0_15, %c0_16], %17 {strides = array<i32>} : memref<128x128xf32, #tpu.memory_space<vmem>>, vector<128x128xf32>,
    } else {
    }
    return
  }
  func.func @transform_0(%arg0: i32, %arg1: i32, %arg2: i32) -> (i32, i32) {
    %c0_i32 = arith.constant 0 : i32
    return %arg0, %arg2 : i32, i32
  }
  func.func @transform_1(%arg0: i32, %arg1: i32, %arg2: i32) -> (i32, i32) {
    %c0_i32 = arith.constant 0 : i32
    return %arg2, %arg1 : i32, i32
  }
  func.func @transform_2(%arg0: i32, %arg1: i32, %arg2: i32) -> (i32, i32) {
    %c0_i32 = arith.constant 0 : i32
    %c0_i32_0 = arith.constant 0 : i32
    return %c0_i32, %arg1 : i32, i32
  }
  func.func @transform_3(%arg0: i32, %arg1: i32, %arg2: i32) -> (i32, i32) {
    %c0_i32 = arith.constant 0 : i32
    return %arg0, %arg1 : i32, i32
  }
}

module attributes {stable_mosaic.version = 11 : i64} {
  func.func @_in_stats_kernel(%arg0: i32, %arg1: i32, %arg2: memref<1x256x4xf32, #tpu.memory_space<vmem>>, %arg3: memref<1x2x4xf32, #tpu.memory_space<vmem>>) attributes {dimension_semantics = [#tpu.dimension_semantics<parallel>, #tpu.dimension_semantics<arbitrary>], iteration_bounds = array<i64: 2, 1>, scalar_prefetch = 0 : i64, scratch_operands = 0 : i64, tpu.core_type = #tpu.core_type<tc>, window_params = [{transform_indices = @transform_0, window_bounds = array<i64: 1, 256, 4>}, {transform_indices = @transform_1, window_bounds = array<i64: 1, 2, 4>}]} {
    %c0_i32 = arith.constant 0 : i32
    %0 = arith.cmpi eq, %arg1, %c0_i32 : i32
    %1 = arith.extui %0 : i1 to i32
    %c0_i32_0 = arith.constant 0 : i32
    %2 = arith.cmpi ne, %1, %c0_i32_0 : i32
    scf.if %2 {
      %cst_17 = arith.constant 0.000000e+00 : f32
      %18 = vector.broadcast %cst_17 : f32 to vector<1x2x4xf32>
      %c0_18 = arith.constant 0 : index
      %c0_19 = arith.constant 0 : index
      %c0_20 = arith.constant 0 : index
      %19 = vector.load %arg3[%c0_18, %c0_19, %c0_20] : memref<1x2x4xf32, #tpu.memory_space<vmem>>, vector<1x2x4xf32>
      tpu.vector_store %arg3[%c0_18, %c0_19, %c0_20], %18 {strides = array<i32>} : memref<1x2x4xf32, #tpu.memory_space<vmem>>, vector<1x2x4xf32>,
    } else {
    }
    %c0 = arith.constant 0 : index
    %c0_1 = arith.constant 0 : index
    %c0_2 = arith.constant 0 : index
    %3 = vector.load %arg2[%c0, %c0_1, %c0_2] : memref<1x256x4xf32, #tpu.memory_space<vmem>>, vector<1x256x4xf32>
    %c0_3 = arith.constant 0 : index
    %c0_4 = arith.constant 0 : index
    %c0_5 = arith.constant 0 : index
    %4 = vector.load %arg3[%c0_3, %c0_4, %c0_5] : memref<1x2x4xf32, #tpu.memory_space<vmem>>, vector<1x1x4xf32>
    %cst = arith.constant dense<0.000000e+00> : vector<1x4xf32>
    %5 = vector.multi_reduction <add>, %3, %cst [1] : vector<1x256x4xf32> to vector<1x4xf32>
    %6 = vector.shape_cast %5 : vector<1x4xf32> to vector<1x1x4xf32>
    %7 = arith.addf %4, %6 : vector<1x1x4xf32>
    %c0_6 = arith.constant 0 : index
    %c0_7 = arith.constant 0 : index
    %c0_8 = arith.constant 0 : index
    %8 = vector.load %arg3[%c0_6, %c0_7, %c0_8] : memref<1x2x4xf32, #tpu.memory_space<vmem>>, vector<1x1x4xf32>
    tpu.vector_store %arg3[%c0_6, %c0_7, %c0_8], %7 {strides = array<i32>} : memref<1x2x4xf32, #tpu.memory_space<vmem>>, vector<1x1x4xf32>,
    %c0_9 = arith.constant 0 : index
    %c1 = arith.constant 1 : index
    %c0_10 = arith.constant 0 : index
    %9 = vector.load %arg3[%c0_9, %c1, %c0_10] : memref<1x2x4xf32, #tpu.memory_space<vmem>>, vector<1x1x4xf32>
    %10 = arith.mulf %3, %3 : vector<1x256x4xf32>
    %cst_11 = arith.constant dense<0.000000e+00> : vector<1x4xf32>
    %11 = vector.multi_reduction <add>, %10, %cst_11 [1] : vector<1x256x4xf32> to vector<1x4xf32>
    %12 = vector.shape_cast %11 : vector<1x4xf32> to vector<1x1x4xf32>
    %13 = arith.addf %9, %12 : vector<1x1x4xf32>
    %c0_12 = arith.constant 0 : index
    %c1_13 = arith.constant 1 : index
    %c0_14 = arith.constant 0 : index
    %14 = vector.load %arg3[%c0_12, %c1_13, %c0_14] : memref<1x2x4xf32, #tpu.memory_space<vmem>>, vector<1x1x4xf32>
    tpu.vector_store %arg3[%c0_12, %c1_13, %c0_14], %13 {strides = array<i32>} : memref<1x2x4xf32, #tpu.memory_space<vmem>>, vector<1x1x4xf32>,
    %c0_i32_15 = arith.constant 0 : i32
    %15 = arith.cmpi eq, %arg1, %c0_i32_15 : i32
    %16 = arith.extui %15 : i1 to i32
    %c0_i32_16 = arith.constant 0 : i32
    %17 = arith.cmpi ne, %16, %c0_i32_16 : i32
    scf.if %17 {
      %c0_17 = arith.constant 0 : index
      %c0_18 = arith.constant 0 : index
      %c0_19 = arith.constant 0 : index
      %18 = vector.load %arg3[%c0_17, %c0_18, %c0_19] : memref<1x2x4xf32, #tpu.memory_space<vmem>>, vector<1x1x4xf32>
      %cst_20 = arith.constant 2.560000e+02 : f32
      %19 = vector.broadcast %cst_20 : f32 to vector<1x1x4xf32>
      %20 = arith.divf %18, %19 : vector<1x1x4xf32>
      %c0_21 = arith.constant 0 : index
      %c1_22 = arith.constant 1 : index
      %c0_23 = arith.constant 0 : index
      %21 = vector.load %arg3[%c0_21, %c1_22, %c0_23] : memref<1x2x4xf32, #tpu.memory_space<vmem>>, vector<1x1x4xf32>
      %cst_24 = arith.constant 2.560000e+02 : f32
      %22 = vector.broadcast %cst_24 : f32 to vector<1x1x4xf32>
      %23 = arith.divf %21, %22 : vector<1x1x4xf32>
      %24 = arith.mulf %20, %20 : vector<1x1x4xf32>
      %25 = arith.subf %23, %24 : vector<1x1x4xf32>
      %c0_25 = arith.constant 0 : index
      %c0_26 = arith.constant 0 : index
      %c0_27 = arith.constant 0 : index
      %26 = vector.load %arg3[%c0_25, %c0_26, %c0_27] : memref<1x2x4xf32, #tpu.memory_space<vmem>>, vector<1x1x4xf32>
      tpu.vector_store %arg3[%c0_25, %c0_26, %c0_27], %20 {strides = array<i32>} : memref<1x2x4xf32, #tpu.memory_space<vmem>>, vector<1x1x4xf32>,
      %cst_28 = arith.constant 0.000000e+00 : f32
      %27 = vector.broadcast %cst_28 : f32 to vector<1x1x4xf32>
      %28 = arith.maximumf %25, %27 : vector<1x1x4xf32>
      %cst_29 = arith.constant 9.99999974E-6 : f32
      %29 = vector.broadcast %cst_29 : f32 to vector<1x1x4xf32>
      %30 = arith.addf %28, %29 : vector<1x1x4xf32>
      %31 = math.rsqrt %30 : vector<1x1x4xf32>
      %c0_30 = arith.constant 0 : index
      %c1_31 = arith.constant 1 : index
      %c0_32 = arith.constant 0 : index
      %32 = vector.load %arg3[%c0_30, %c1_31, %c0_32] : memref<1x2x4xf32, #tpu.memory_space<vmem>>, vector<1x1x4xf32>
      tpu.vector_store %arg3[%c0_30, %c1_31, %c0_32], %31 {strides = array<i32>} : memref<1x2x4xf32, #tpu.memory_space<vmem>>, vector<1x1x4xf32>,
    } else {
    }
    return
  }
  func.func @transform_0(%arg0: i32, %arg1: i32) -> (i32, i32, i32) {
    %c0_i32 = arith.constant 0 : i32
    %c0_i32_0 = arith.constant 0 : i32
    return %arg0, %arg1, %c0_i32 : i32, i32, i32
  }
  func.func @transform_1(%arg0: i32, %arg1: i32) -> (i32, i32, i32) {
    %c0_i32 = arith.constant 0 : i32
    %c0_i32_0 = arith.constant 0 : i32
    %c0_i32_1 = arith.constant 0 : i32
    return %arg0, %c0_i32, %c0_i32_0 : i32, i32, i32
  }
}

module attributes {stable_mosaic.version = 11 : i64} {
  func.func @_in_apply_kernel(%arg0: i32, %arg1: i32, %arg2: memref<1x256x4xf32, #tpu.memory_space<vmem>>, %arg3: memref<1x2x4xf32, #tpu.memory_space<vmem>>, %arg4: memref<1x256x4xf32, #tpu.memory_space<vmem>>) attributes {dimension_semantics = [#tpu.dimension_semantics<parallel>, #tpu.dimension_semantics<parallel>], iteration_bounds = array<i64: 2, 1>, scalar_prefetch = 0 : i64, scratch_operands = 0 : i64, tpu.core_type = #tpu.core_type<tc>, window_params = [{transform_indices = @transform_0, window_bounds = array<i64: 1, 256, 4>}, {transform_indices = @transform_1, window_bounds = array<i64: 1, 2, 4>}, {transform_indices = @transform_2, window_bounds = array<i64: 1, 256, 4>}]} {
    %c0 = arith.constant 0 : index
    %c0_0 = arith.constant 0 : index
    %c0_1 = arith.constant 0 : index
    %0 = vector.load %arg2[%c0, %c0_0, %c0_1] : memref<1x256x4xf32, #tpu.memory_space<vmem>>, vector<1x256x4xf32>
    %c0_2 = arith.constant 0 : index
    %c0_3 = arith.constant 0 : index
    %c0_4 = arith.constant 0 : index
    %1 = vector.load %arg3[%c0_2, %c0_3, %c0_4] : memref<1x2x4xf32, #tpu.memory_space<vmem>>, vector<1x1x4xf32>
    %2 = vector.broadcast %1 : vector<1x1x4xf32> to vector<1x256x4xf32>
    %3 = arith.subf %0, %2 : vector<1x256x4xf32>
    %c0_5 = arith.constant 0 : index
    %c1 = arith.constant 1 : index
    %c0_6 = arith.constant 0 : index
    %4 = vector.load %arg3[%c0_5, %c1, %c0_6] : memref<1x2x4xf32, #tpu.memory_space<vmem>>, vector<1x1x4xf32>
    %5 = vector.broadcast %4 : vector<1x1x4xf32> to vector<1x256x4xf32>
    %6 = arith.mulf %3, %5 : vector<1x256x4xf32>
    %c0_7 = arith.constant 0 : index
    %c0_8 = arith.constant 0 : index
    %c0_9 = arith.constant 0 : index
    %7 = vector.load %arg4[%c0_7, %c0_8, %c0_9] : memref<1x256x4xf32, #tpu.memory_space<vmem>>, vector<1x256x4xf32>
    tpu.vector_store %arg4[%c0_7, %c0_8, %c0_9], %6 {strides = array<i32>} : memref<1x256x4xf32, #tpu.memory_space<vmem>>, vector<1x256x4xf32>,
    return
  }
  func.func @transform_0(%arg0: i32, %arg1: i32) -> (i32, i32, i32) {
    %c0_i32 = arith.constant 0 : i32
    %c0_i32_0 = arith.constant 0 : i32
    return %arg0, %arg1, %c0_i32 : i32, i32, i32
  }
  func.func @transform_1(%arg0: i32, %arg1: i32) -> (i32, i32, i32) {
    %c0_i32 = arith.constant 0 : i32
    %c0_i32_0 = arith.constant 0 : i32
    %c0_i32_1 = arith.constant 0 : i32
    return %arg0, %c0_i32, %c0_i32_0 : i32, i32, i32
  }
  func.func @transform_2(%arg0: i32, %arg1: i32) -> (i32, i32, i32) {
    %c0_i32 = arith.constant 0 : i32
    %c0_i32_0 = arith.constant 0 : i32
    return %arg0, %arg1, %c0_i32 : i32, i32, i32
  }
}

module attributes {stable_mosaic.version = 11 : i64} {
  func.func @_mm_bias_act_kernel(%arg0: i32, %arg1: i32, %arg2: i32, %arg3: memref<256x128xbf16, #tpu.memory_space<vmem>>, %arg4: memref<128x128xbf16, #tpu.memory_space<vmem>>, %arg5: memref<1x128xf32, #tpu.memory_space<vmem>>, %arg6: memref<256x128xf32, #tpu.memory_space<vmem>>, %arg7: memref<256x128xf32, #tpu.memory_space<vmem>>) attributes {dimension_semantics = [#tpu.dimension_semantics<parallel>, #tpu.dimension_semantics<parallel>, #tpu.dimension_semantics<arbitrary>], iteration_bounds = array<i64: 2, 1, 1>, scalar_prefetch = 0 : i64, scratch_operands = 1 : i64, tpu.core_type = #tpu.core_type<tc>, window_params = [{transform_indices = @transform_0, window_bounds = array<i64: 256, 128>}, {transform_indices = @transform_1, window_bounds = array<i64: 128, 128>}, {transform_indices = @transform_2, window_bounds = array<i64: 1, 128>}, {transform_indices = @transform_3, window_bounds = array<i64: 256, 128>}]} {
    %c0_i32 = arith.constant 0 : i32
    %0 = arith.cmpi eq, %arg2, %c0_i32 : i32
    %1 = arith.extui %0 : i1 to i32
    %c0_i32_0 = arith.constant 0 : i32
    %2 = arith.cmpi ne, %1, %c0_i32_0 : i32
    scf.if %2 {
      %cst_11 = arith.constant 0.000000e+00 : f32
      %14 = vector.broadcast %cst_11 : f32 to vector<256x128xf32>
      %c0_12 = arith.constant 0 : index
      %c0_13 = arith.constant 0 : index
      %15 = vector.load %arg7[%c0_12, %c0_13] : memref<256x128xf32, #tpu.memory_space<vmem>>, vector<256x128xf32>
      tpu.vector_store %arg7[%c0_12, %c0_13], %14 {strides = array<i32>} : memref<256x128xf32, #tpu.memory_space<vmem>>, vector<256x128xf32>,
    } else {
    }
    %c0 = arith.constant 0 : index
    %c0_1 = arith.constant 0 : index
    %3 = vector.load %arg3[%c0, %c0_1] : memref<256x128xbf16, #tpu.memory_space<vmem>>, vector<256x128xbf16>
    %cst = arith.constant 0.000000e+00 : bf16
    %4 = vector.broadcast %cst : bf16 to vector<256x128xbf16>
    %5 = arith.maximumf %3, %4 : vector<256x128xbf16>
    %c0_2 = arith.constant 0 : index
    %c0_3 = arith.constant 0 : index
    %6 = vector.load %arg7[%c0_2, %c0_3] : memref<256x128xf32, #tpu.memory_space<vmem>>, vector<256x128xf32>
    %c0_4 = arith.constant 0 : index
    %c0_5 = arith.constant 0 : index
    %7 = vector.load %arg4[%c0_4, %c0_5] : memref<128x128xbf16, #tpu.memory_space<vmem>>, vector<128x128xbf16>
    %cst_6 = arith.constant dense<0.000000e+00> : vector<256x128xf32>
    %8 = tpu.matmul %5, %7, %cst_6 {dimension_numbers = #tpu.dot_dimension_numbers<[1], [0], [0], [1], [0, 0, 1, 1], [], []>} : vector<256x128xbf16>, vector<128x128xbf16>, vector<256x128xf32> -> vector<256x128xf32>
    %9 = arith.addf %6, %8 : vector<256x128xf32>
    %c0_7 = arith.constant 0 : index
    %c0_8 = arith.constant 0 : index
    %10 = vector.load %arg7[%c0_7, %c0_8] : memref<256x128xf32, #tpu.memory_space<vmem>>, vector<256x128xf32>
    tpu.vector_store %arg7[%c0_7, %c0_8], %9 {strides = array<i32>} : memref<256x128xf32, #tpu.memory_space<vmem>>, vector<256x128xf32>,
    %c0_i32_9 = arith.constant 0 : i32
    %11 = arith.cmpi eq, %arg2, %c0_i32_9 : i32
    %12 = arith.extui %11 : i1 to i32
    %c0_i32_10 = arith.constant 0 : i32
    %13 = arith.cmpi ne, %12, %c0_i32_10 : i32
    scf.if %13 {
      %c0_11 = arith.constant 0 : index
      %c0_12 = arith.constant 0 : index
      %14 = vector.load %arg7[%c0_11, %c0_12] : memref<256x128xf32, #tpu.memory_space<vmem>>, vector<256x128xf32>
      %c0_13 = arith.constant 0 : index
      %c0_14 = arith.constant 0 : index
      %15 = vector.load %arg5[%c0_13, %c0_14] : memref<1x128xf32, #tpu.memory_space<vmem>>, vector<1x128xf32>
      %16 = vector.broadcast %15 : vector<1x128xf32> to vector<256x128xf32>
      %17 = arith.addf %14, %16 : vector<256x128xf32>
      %18 = math.tanh %17 : vector<256x128xf32>
      %c0_15 = arith.constant 0 : index
      %c0_16 = arith.constant 0 : index
      %19 = vector.load %arg6[%c0_15, %c0_16] : memref<256x128xf32, #tpu.memory_space<vmem>>, vector<256x128xf32>
      tpu.vector_store %arg6[%c0_15, %c0_16], %18 {strides = array<i32>} : memref<256x128xf32, #tpu.memory_space<vmem>>, vector<256x128xf32>,
    } else {
    }
    return
  }
  func.func @transform_0(%arg0: i32, %arg1: i32, %arg2: i32) -> (i32, i32) {
    %c0_i32 = arith.constant 0 : i32
    return %arg0, %arg2 : i32, i32
  }
  func.func @transform_1(%arg0: i32, %arg1: i32, %arg2: i32) -> (i32, i32) {
    %c0_i32 = arith.constant 0 : i32
    return %arg2, %arg1 : i32, i32
  }
  func.func @transform_2(%arg0: i32, %arg1: i32, %arg2: i32) -> (i32, i32) {
    %c0_i32 = arith.constant 0 : i32
    %c0_i32_0 = arith.constant 0 : i32
    return %c0_i32, %arg1 : i32, i32
  }
  func.func @transform_3(%arg0: i32, %arg1: i32, %arg2: i32) -> (i32, i32) {
    %c0_i32 = arith.constant 0 : i32
    return %arg0, %arg1 : i32, i32
  }
}

</mosaic_0001>

<llo_original>
// kernel: _lambda_.39
$region0: #{_lambda_.39}
  #allocation0 [shape = 'u32[]', space=smem, size = 0x4, offset = 0x4, fixed_abs, tag = 'smem constant byte address 0x4 - core index']
  #allocation1 [shape = 'u32[144,128]{1,0:T(1,128)}', space=vmem, size = 0x12000, scoped, tag = 'internal scratch']
  #allocation2 [shape = 'f32[256,128]{1,0:T(8,128)}', space=vmem, size = 0x20000, scoped, tag = 'scratch operand']
  %s0 = inlined_call_operand.vmem [shape: bf16[512,128], index: 0, kind: input, shape index: {}]
  %s1 = inlined_call_operand.vmem [shape: bf16[128,128], index: 1, kind: input, shape index: {}]
  %s2 = inlined_call_operand.vmem [shape: f32[1,128], index: 2, kind: input, shape index: {}]
  %s3 = inlined_call_operand.vmem [shape: f32[512,128], index: 3, kind: output, shape index: {}]
  %s4 = sld [smem:[#allocation0]]
  $region53: #{_lambda_.39} parent=0
    _
  %s6 = ssub.s32 1, %s4
  %s7 = scalar_select 0, %s6, %s4
  loop: start=0, step=1, limit=4
  $region2: #{_lambda_.39} parent=0 // loop_pre_header
    _
  $region3: #{_lambda_.39} parent=0 // loop_header
    %s9 = sphi 0, %s13
    %p10 = scmp.ge.s32.totalorder %s9, 4
    %s16 = sphi 0, %s35
    %s17 = sphi 0, %s31
    %s18 = sphi 0, %s27
    %s19 = sphi 0, %s16
    %s20 = sphi 0, %s17
    %s21 = sphi 0, %s18
    %s22 = sphi 0, %s19
    %s23 = sphi 0, %s20
    %s24 = sphi 0, %s21
    %s40 = sphi 0, %s42
    %s43 = sphi 0, %s40
    %s44 = sphi 0, %s43
    %s60 = sphi 0, %s44
    %s68 = sphi 0, %s70
    %s71 = sphi 0, %s68
    %s72 = sphi 0, %s71
    %s88 = sphi 0, %s72
    %s94 = sphi 0, %s96
    %s97 = sphi 0, %s94
    %s98 = sphi 0, %s97
    %s114 = sphi 0, %s98
    %s122 = sphi 0, %s124
    %s125 = sphi 0, %s122
    %s126 = sphi 0, %s125
    %s142 = sphi 0, %s126
  $region4: #{_lambda_.39} parent=0 // loop_header_branch
    %12 = sbr.rel (%p10) target = $region8
  $region5: #{_lambda_.39} parent=0 // loop_body
    %s14 = ssub.s32 %s9, 1
    %s15 = ssub.s32 %s9, 2
    %s25 = sadd.s32 1, %s18
    %p26 = scmp.ge.s32.totalorder %s25, 1
    %s27 = scalar_select %p26, 0, %s25
    %s28 = sadd.s32 1, %s17
    %s29 = scalar_select %p26, %s28, %s17
    %p30 = scmp.ge.s32.totalorder %s29, 1
    %s31 = scalar_select %p30, 0, %s29
    %s32 = sadd.s32 1, %s16
    %s33 = scalar_select %p30, %s32, %s16
    %p34 = scmp.ge.s32.totalorder %s33, 2
    %s35 = scalar_select %p34, 0, %s33
    %s36 = ssub.s32 %s16, %s35
    %s37 = ssub.s32 %s18, %s27
    %s38 = sor.u32 %s36, %s37
    %p39 = scmp.eq.s32.totalorder %s38, 0
    %s41 = sadd.s32 %s40, 1
    %s42 = scalar_select %p39, %s40, %s41
    %p45 = pneg %p39
    %p46 = scmp.eq.s32.totalorder %s9, 1
    %p47 = por %p45, %p46
    %p48 = scmp.ne.s32.totalorder %s40, %s43
    %p49 = scmp.eq.s32.totalorder %s9, 0
    %p50 = por %p48, %p49
    %p51 = scmp.ne.s32.totalorder %s40, %s43
    %p52 = scmp.eq.s32.totalorder %s14, 1
    %p53 = por %p51, %p52
    %p54 = scmp.ne.s32.totalorder %s43, %s44
    %p55 = scmp.eq.s32.totalorder %s14, 0
    %p56 = por %p54, %p55
    %p57 = scmp.ne.s32.totalorder %s43, %s44
    %p58 = scmp.eq.s32.totalorder %s15, 1
    %p59 = por %p57, %p58
    %p61 = scmp.ne.s32.totalorder %s44, %s60
    %p62 = scmp.eq.s32.totalorder %s15, 0
    %p63 = por %p61, %p62
    %s64 = ssub.s32 %s18, %s27
    %s65 = ssub.s32 %s17, %s31
    %s66 = sor.u32 %s64, %s65
    %p67 = scmp.eq.s32.totalorder %s66, 0
    %s69 = sadd.s32 %s68, 1
    %s70 = scalar_select %p67, %s68, %s69
    %p73 = pneg %p67
    %p74 = scmp.eq.s32.totalorder %s9, 1
    %p75 = por %p73, %p74
    %p76 = scmp.ne.s32.totalorder %s68, %s71
    %p77 = scmp.eq.s32.totalorder %s9, 0
    %p78 = por %p76, %p77
    %p79 = scmp.ne.s32.totalorder %s68, %s71
    %p80 = scmp.eq.s32.totalorder %s14, 1
    %p81 = por %p79, %p80
    %p82 = scmp.ne.s32.totalorder %s71, %s72
    %p83 = scmp.eq.s32.totalorder %s14, 0
    %p84 = por %p82, %p83
    %p85 = scmp.ne.s32.totalorder %s71, %s72
    %p86 = scmp.eq.s32.totalorder %s15, 1
    %p87 = por %p85, %p86
    %p89 = scmp.ne.s32.totalorder %s72, %s88
    %p90 = scmp.eq.s32.totalorder %s15, 0
    %p91 = por %p89, %p90
    %s92 = ssub.s32 %s17, %s31
    %p93 = scmp.eq.s32.totalorder %s92, 0
    %s95 = sadd.s32 %s94, 1
    %s96 = scalar_select %p93, %s94, %s95
    %p99 = pneg %p93
    %p100 = scmp.eq.s32.totalorder %s9, 1
    %p101 = por %p99, %p100
    %p102 = scmp.ne.s32.totalorder %s94, %s97
    %p103 = scmp.eq.s32.totalorder %s9, 0
    %p104 = por %p102, %p103
    %p105 = scmp.ne.s32.totalorder %s94, %s97
    %p106 = scmp.eq.s32.totalorder %s14, 1
    %p107 = por %p105, %p106
    %p108 = scmp.ne.s32.totalorder %s97, %s98
    %p109 = scmp.eq.s32.totalorder %s14, 0
    %p110 = por %p108, %p109
    %p111 = scmp.ne.s32.totalorder %s97, %s98
    %p112 = scmp.eq.s32.totalorder %s15, 1
    %p113 = por %p111, %p112
    %p115 = scmp.ne.s32.totalorder %s98, %s114
    %p116 = scmp.eq.s32.totalorder %s15, 0
    %p117 = por %p115, %p116
    %s118 = ssub.s32 %s16, %s35
    %s119 = ssub.s32 %s17, %s31
    %s120 = sor.u32 %s118, %s119
    %p121 = scmp.eq.s32.totalorder %s120, 0
    %s123 = sadd.s32 %s122, 1
    %s124 = scalar_select %p121, %s122, %s123
    %p127 = pneg %p121
    %p128 = scmp.eq.s32.totalorder %s9, 1
    %p129 = por %p127, %p128
    %p130 = scmp.ne.s32.totalorder %s122, %s125
    %p131 = scmp.eq.s32.totalorder %s9, 0
    %p132 = por %p130, %p131
    %p133 = scmp.ne.s32.totalorder %s122, %s125
    %p134 = scmp.eq.s32.totalorder %s14, 1
    %p135 = por %p133, %p134
    %p136 = scmp.ne.s32.totalorder %s125, %s126
    %p137 = scmp.eq.s32.totalorder %s14, 0
    %p138 = por %p136, %p137
    %p139 = scmp.ne.s32.totalorder %s125, %s126
    %p140 = scmp.eq.s32.totalorder %s15, 1
    %p141 = por %p139, %p140
    %p143 = scmp.ne.s32.totalorder %s126, %s142
    %p144 = scmp.eq.s32.totalorder %s15, 0
    %p145 = por %p143, %p144
    %p146 = scmp.le.s32.totalorder 1, %s9
    %p147 = scmp.lt.s32.totalorder %s9, 3
    %p148 = pnand %p146, %p147
    %p149 = pneg %p148
    // Predicated region
    $region9: #{_lambda_.39} parent=5 // pred_check
      _
    $region10: #{_lambda_.39} parent=5 // pred_check_branch
      %151 = sbr.rel (%p148) target = $region12
    $region11: #{_lambda_.39} parent=5 // pred_region
      %s152 = ssub.s32 %s9, 1
      // Predicated region
      $region13: #{_lambda_.39} parent=11 // pred_check
        %p153 = pneg %p84
      $region14: #{_lambda_.39} parent=11 // pred_check_branch
        %155 = sbr.rel (%p153) target = $region16
      $region15: #{_lambda_.39} parent=11 // pred_region
        %s156 = smul.u32 16, %s21
        %p157 = scmp.lt.s32.totalorder %s156, 15
        %s158 = scalar_select %p157, %s156, 15
        %p159 = scmp.lt.s32.totalorder %s20, 0
        %s160 = scalar_select %p159, %s20, 0
        %s161 = sadd.s32 %s160, %s158
        %s162 = smul.addr %s161, 4
        %s163 = scalar_lea.vmem %s1, %s162
        %s164 = smul.u32 16, %s21
      $region16: #{_lambda_.39} parent=11 // pred_fallthru
        _
      // Predicated region
      $region17: #{_lambda_.39} parent=11 // pred_check
        %p165 = pneg %p110
      $region18: #{_lambda_.39} parent=11 // pred_check_branch
        %167 = sbr.rel (%p165) target = $region20
      $region19: #{_lambda_.39} parent=11 // pred_region
        %p168 = scmp.lt.s32.totalorder %s20, 0
        %s169 = scalar_select %p168, %s20, 0
        %s170 = scalar_lea.vmem %s2, %s169
      $region20: #{_lambda_.39} parent=11 // pred_fallthru
        _
    $region12: #{_lambda_.39} parent=5 // pred_fallthru
      _
    %p171 = scmp.lt.s32.totalorder %s9, 2
    // Predicated region
    $region21: #{_lambda_.39} parent=5 // pred_check
      %p172 = pneg %p171
    $region22: #{_lambda_.39} parent=5 // pred_check_branch
      %174 = sbr.rel (%p172) target = $region24
    $region23: #{_lambda_.39} parent=5 // pred_region
      // Predicated region
      $region25: #{_lambda_.39} parent=23 // pred_check
        %p175 = pneg %p50
      $region26: #{_lambda_.39} parent=23 // pred_check_branch
        %177 = sbr.rel (%p175) target = $region28
      $region27: #{_lambda_.39} parent=23 // pred_region
        %s178 = smul.u32 32, %s16
        %p179 = scmp.lt.s32.totalorder %s178, 63
        %s180 = scalar_select %p179, %s178, 63
        %p181 = scmp.lt.s32.totalorder %s18, 0
        %s182 = scalar_select %p181, %s18, 0
        %s183 = sadd.s32 %s182, %s180
        %s184 = smul.addr %s183, 4
        %s185 = scalar_lea.vmem %s0, %s184
        %s186 = smul.u32 32, %s16
      $region28: #{_lambda_.39} parent=23 // pred_fallthru
        _
    $region24: #{_lambda_.39} parent=5 // pred_fallthru
      _
    %p187 = scmp.le.s32.totalorder 1, %s9
    %p188 = scmp.lt.s32.totalorder %s9, 3
    %p189 = pnand %p187, %p188
    %p190 = pneg %p189
    // Predicated region
    $region29: #{_lambda_.39} parent=5 // pred_check
      _
    $region30: #{_lambda_.39} parent=5 // pred_check_branch
      %192 = sbr.rel (%p189) target = $region32
    $region31: #{_lambda_.39} parent=5 // pred_region
      %s193 = ssub.s32 %s9, 1
      %s194 = smul.u32 32, %s19
      %p195 = scmp.lt.s32.totalorder %s194, 63
      %s196 = scalar_select %p195, %s194, 63
      %p197 = scmp.lt.s32.totalorder %s21, 0
      %s198 = scalar_select %p197, %s21, 0
      %s199 = sadd.s32 %s198, %s196
      %s200 = smul.addr %s199, 4
      %s201 = scalar_lea.vmem %s0, %s200
      %p202 = pneg %p56
      %p203 = pneg %p53
      %s204 = smul.u32 16, %s21
      %p205 = scmp.lt.s32.totalorder %s204, 15
      %s206 = scalar_select %p205, %s204, 15
      %p207 = scmp.lt.s32.totalorder %s20, 0
      %s208 = scalar_select %p207, %s20, 0
      %s209 = sadd.s32 %s208, %s206
      %s210 = smul.addr %s209, 4
      %s211 = scalar_lea.vmem %s1, %s210
      %p212 = pneg %p84
      %p213 = pneg %p81
      %p214 = scmp.lt.s32.totalorder %s20, 0
      %s215 = scalar_select %p214, %s20, 0
      %s216 = scalar_lea.vmem %s2, %s215
      %p217 = pneg %p110
      %p218 = pneg %p107
      %p219 = pneg %p138
      %p220 = pneg %p135
      %s221 = smul.u32 32, %s19
      %p222 = scmp.lt.s32.totalorder %s221, 63
      %s223 = scalar_select %p222, %s221, 63
      %p224 = scmp.lt.s32.totalorder %s20, 0
      %s225 = scalar_select %p224, %s20, 0
      %s226 = sadd.s32 %s225, %s223
      %s227 = smul.addr %s226, 8
      %s228 = scalar_lea.vmem %s3, %s227
      %s229 = smul.u32 32, %s19
      %p230 = scmp.lt.s32.totalorder %s229, 63
      %s231 = scalar_select %p230, %s229, 63
      %p232 = scmp.lt.s32.totalorder %s21, 0
      %s233 = scalar_select %p232, %s21, 0
      %s234 = sadd.s32 %s233, %s231
      %s235 = smul.addr %s234, 4
      %s236 = scalar_lea.vmem %s0, %s235
      %s237 = smul.u32 32, %s19
      %s238 = smul.u32 16, %s21
      %p239 = scmp.lt.s32.totalorder %s238, 15
      %s240 = scalar_select %p239, %s238, 15
      %p241 = scmp.lt.s32.totalorder %s20, 0
      %s242 = scalar_select %p241, %s20, 0
      %s243 = sadd.s32 %s242, %s240
      %s244 = smul.addr %s243, 4
      %s245 = scalar_lea.vmem %s1, %s244
      %s246 = smul.u32 16, %s21
      %p247 = scmp.lt.s32.totalorder %s20, 0
      %s248 = scalar_select %p247, %s20, 0
      %s249 = scalar_lea.vmem %s2, %s248
      %s250 = smul.u32 32, %s19
      %p251 = scmp.lt.s32.totalorder %s250, 63
      %s252 = scalar_select %p251, %s250, 63
      %p253 = scmp.lt.s32.totalorder %s20, 0
      %s254 = scalar_select %p253, %s20, 0
      %s255 = sadd.s32 %s254, %s252
      %s256 = smul.addr %s255, 8
      %s257 = scalar_lea.vmem %s3, %s256
      %s258 = smul.u32 32, %s19
      %p260 = scmp.eq.s32.totalorder %s21, 0
      // Predicated region
      $region33: #{_lambda_.39} parent=31 // pred_check
        %p261 = pneg %p260
      $region34: #{_lambda_.39} parent=31 // pred_check_branch
        %263 = sbr.rel (%p261) target = $region36
      $region35: #{_lambda_.39} parent=31 // pred_region
        %264 = vst [vmem:[#allocation2] sm:$0xff] 0.0
        %265 = vst [vmem:[#allocation2 + $0x8] sm:$0xff] 0.0
        %266 = vst [vmem:[#allocation2 + $0x10] sm:$0xff] 0.0
        %267 = vst [vmem:[#allocation2 + $0x18] sm:$0xff] 0.0
        %268 = vst [vmem:[#allocation2 + $0x20] sm:$0xff] 0.0
        %269 = vst [vmem:[#allocation2 + $0x28] sm:$0xff] 0.0
        %270 = vst [vmem:[#allocation2 + $0x30] sm:$0xff] 0.0
        %271 = vst [vmem:[#allocation2 + $0x38] sm:$0xff] 0.0
        %272 = vst [vmem:[#allocation2 + $0x40] sm:$0xff] 0.0
        %273 = vst [vmem:[#allocation2 + $0x48] sm:$0xff] 0.0
        %274 = vst [vmem:[#allocation2 + $0x50] sm:$0xff] 0.0
        %275 = vst [vmem:[#allocation2 + $0x58] sm:$0xff] 0.0
        %276 = vst [vmem:[#allocation2 + $0x60] sm:$0xff] 0.0
        %277 = vst [vmem:[#allocation2 + $0x68] sm:$0xff] 0.0
        %278 = vst [vmem:[#allocation2 + $0x70] sm:$0xff] 0.0
        %279 = vst [vmem:[#allocation2 + $0x78] sm:$0xff] 0.0
        %280 = vst [vmem:[#allocation2 + $0x80] sm:$0xff] 0.0
        %281 = vst [vmem:[#allocation2 + $0x88] sm:$0xff] 0.0
        %282 = vst [vmem:[#allocation2 + $0x90] sm:$0xff] 0.0
        %283 = vst [vmem:[#allocation2 + $0x98] sm:$0xff] 0.0
        %284 = vst [vmem:[#allocation2 + $0xa0] sm:$0xff] 0.0
        %285 = vst [vmem:[#allocation2 + $0xa8] sm:$0xff] 0.0
        %286 = vst [vmem:[#allocation2 + $0xb0] sm:$0xff] 0.0
        %287 = vst [vmem:[#allocation2 + $0xb8] sm:$0xff] 0.0
        %288 = vst [vmem:[#allocation2 + $0xc0] sm:$0xff] 0.0
        %289 = vst [vmem:[#allocation2 + $0xc8] sm:$0xff] 0.0
        %290 = vst [vmem:[#allocation2 + $0xd0] sm:$0xff] 0.0
        %291 = vst [vmem:[#allocation2 + $0xd8] sm:$0xff] 0.0
        %292 = vst [vmem:[#allocation2 + $0xe0] sm:$0xff] 0.0
        %293 = vst [vmem:[#allocation2 + $0xe8] sm:$0xff] 0.0
        %294 = vst [vmem:[#allocation2 + $0xf0] sm:$0xff] 0.0
        %295 = vst [vmem:[#allocation2 + $0xf8] sm:$0xff] 0.0
      $region36: #{_lambda_.39} parent=31 // pred_fallthru
        _
      %v296 = vld [vmem:[%s236] sm:$0xf]
      %v297 = vld [vmem:[%s236 + $0x4] sm:$0xf]
      %v298 = vld [vmem:[%s236 + $0x8] sm:$0xf]
      %v299 = vld [vmem:[%s236 + $0xc] sm:$0xf]
      %v300 = vld [vmem:[%s236 + $0x10] sm:$0xf]
      %v301 = vld [vmem:[%s236 + $0x14] sm:$0xf]
      %v302 = vld [vmem:[%s236 + $0x18] sm:$0xf]
      %v303 = vld [vmem:[%s236 + $0x1c] sm:$0xf]
      %v304 = vld [vmem:[%s236 + $0x20] sm:$0xf]
      %v305 = vld [vmem:[%s236 + $0x24] sm:$0xf]
      %v306 = vld [vmem:[%s236 + $0x28] sm:$0xf]
      %v307 = vld [vmem:[%s236 + $0x2c] sm:$0xf]
      %v308 = vld [vmem:[%s236 + $0x30] sm:$0xf]
      %v309 = vld [vmem:[%s236 + $0x34] sm:$0xf]
      %v310 = vld [vmem:[%s236 + $0x38] sm:$0xf]
      %v311 = vld [vmem:[%s236 + $0x3c] sm:$0xf]
      %v312 = vld [vmem:[%s236 + $0x40] sm:$0xf]
      %v313 = vld [vmem:[%s236 + $0x44] sm:$0xf]
      %v314 = vld [vmem:[%s236 + $0x48] sm:$0xf]
      %v315 = vld [vmem:[%s236 + $0x4c] sm:$0xf]
      %v316 = vld [vmem:[%s236 + $0x50] sm:$0xf]
      %v317 = vld [vmem:[%s236 + $0x54] sm:$0xf]
      %v318 = vld [vmem:[%s236 + $0x58] sm:$0xf]
      %v319 = vld [vmem:[%s236 + $0x5c] sm:$0xf]
      %v320 = vld [vmem:[%s236 + $0x60] sm:$0xf]
      %v321 = vld [vmem:[%s236 + $0x64] sm:$0xf]
      %v322 = vld [vmem:[%s236 + $0x68] sm:$0xf]
      %v323 = vld [vmem:[%s236 + $0x6c] sm:$0xf]
      %v324 = vld [vmem:[%s236 + $0x70] sm:$0xf]
      %v325 = vld [vmem:[%s236 + $0x74] sm:$0xf]
      %v326 = vld [vmem:[%s236 + $0x78] sm:$0xf]
      %v327 = vld [vmem:[%s236 + $0x7c] sm:$0xf]
      %v328 = vld [vmem:[#allocation2] sm:$0xff]
      %v329 = vld [vmem:[#allocation2 + $0x8] sm:$0xff]
      %v330 = vld [vmem:[#allocation2 + $0x10] sm:$0xff]
      %v331 = vld [vmem:[#allocation2 + $0x18] sm:$0xff]
      %v332 = vld [vmem:[#allocation2 + $0x20] sm:$0xff]
      %v333 = vld [vmem:[#allocation2 + $0x28] sm:$0xff]
      %v334 = vld [vmem:[#allocation2 + $0x30] sm:$0xff]
      %v335 = vld [vmem:[#allocation2 + $0x38] sm:$0xff]
      %v336 = vld [vmem:[#allocation2 + $0x40] sm:$0xff]
      %v337 = vld [vmem:[#allocation2 + $0x48] sm:$0xff]
      %v338 = vld [vmem:[#allocation2 + $0x50] sm:$0xff]
      %v339 = vld [vmem:[#allocation2 + $0x58] sm:$0xff]
      %v340 = vld [vmem:[#allocation2 + $0x60] sm:$0xff]
      %v341 = vld [vmem:[#allocation2 + $0x68] sm:$0xff]
      %v342 = vld [vmem:[#allocation2 + $0x70] sm:$0xff]
      %v343 = vld [vmem:[#allocation2 + $0x78] sm:$0xff]
      %v344 = vld [vmem:[#allocation2 + $0x80] sm:$0xff]
      %v345 = vld [vmem:[#allocation2 + $0x88] sm:$0xff]
      %v346 = vld [vmem:[#allocation2 + $0x90] sm:$0xff]
      %v347 = vld [vmem:[#allocation2 + $0x98] sm:$0xff]
      %v348 = vld [vmem:[#allocation2 + $0xa0] sm:$0xff]
      %v349 = vld [vmem:[#allocation2 + $0xa8] sm:$0xff]
      %v350 = vld [vmem:[#allocation2 + $0xb0] sm:$0xff]
      %v351 = vld [vmem:[#allocation2 + $0xb8] sm:$0xff]
      %v352 = vld [vmem:[#allocation2 + $0xc0] sm:$0xff]
      %v353 = vld [vmem:[#allocation2 + $0xc8] sm:$0xff]
      %v354 = vld [vmem:[#allocation2 + $0xd0] sm:$0xff]
      %v355 = vld [vmem:[#allocation2 + $0xd8] sm:$0xff]
      %v356 = vld [vmem:[#allocation2 + $0xe0] sm:$0xff]
      %v357 = vld [vmem:[#allocation2 + $0xe8] sm:$0xff]
      %v358 = vld [vmem:[#allocation2 + $0xf0] sm:$0xff]
      %v359 = vld [vmem:[#allocation2 + $0xf8] sm:$0xff]
      %v360 = vld [vmem:[%s245] sm:$0xf]
      %v361 = vld [vmem:[%s245 + $0x4] sm:$0xf]
      %v362 = vld [vmem:[%s245 + $0x8] sm:$0xf]
      %v363 = vld [vmem:[%s245 + $0xc] sm:$0xf]
      %v364 = vld [vmem:[%s245 + $0x10] sm:$0xf]
      %v365 = vld [vmem:[%s245 + $0x14] sm:$0xf]
      %v366 = vld [vmem:[%s245 + $0x18] sm:$0xf]
      %v367 = vld [vmem:[%s245 + $0x1c] sm:$0xf]
      %v368 = vld [vmem:[%s245 + $0x20] sm:$0xf]
      %v369 = vld [vmem:[%s245 + $0x24] sm:$0xf]
      %v370 = vld [vmem:[%s245 + $0x28] sm:$0xf]
      %v371 = vld [vmem:[%s245 + $0x2c] sm:$0xf]
      %v372 = vld [vmem:[%s245 + $0x30] sm:$0xf]
      %v373 = vld [vmem:[%s245 + $0x34] sm:$0xf]
      %v374 = vld [vmem:[%s245 + $0x38] sm:$0xf]
      %v375 = vld [vmem:[%s245 + $0x3c] sm:$0xf]
      %v408 = vunpack.c.l.b16 %v296
      %v409 = vunpack.c.l.b16 %v297
      %v410 = vunpack.c.l.b16 %v298
      %v411 = vunpack.c.l.b16 %v299
      %v412 = vunpack.c.l.b16 %v300
      %v413 = vunpack.c.l.b16 %v301
      %v414 = vunpack.c.l.b16 %v302
      %v415 = vunpack.c.l.b16 %v303
      %v416 = vunpack.c.l.b16 %v304
      %v417 = vunpack.c.l.b16 %v305
      %v418 = vunpack.c.l.b16 %v306
      %v419 = vunpack.c.l.b16 %v307
      %v420 = vunpack.c.l.b16 %v308
      %v421 = vunpack.c.l.b16 %v309
      %v422 = vunpack.c.l.b16 %v310
      %v423 = vunpack.c.l.b16 %v311
      %v424 = vunpack.c.l.b16 %v312
      %v425 = vunpack.c.l.b16 %v313
      %v426 = vunpack.c.l.b16 %v314
      %v427 = vunpack.c.l.b16 %v315
      %v428 = vunpack.c.l.b16 %v316
      %v429 = vunpack.c.l.b16 %v317
      %v430 = vunpack.c.l.b16 %v318
      %v431 = vunpack.c.l.b16 %v319
      %v432 = vunpack.c.l.b16 %v320
      %v433 = vunpack.c.l.b16 %v321
      %v434 = vunpack.c.l.b16 %v322
      %v435 = vunpack.c.l.b16 %v323
      %v436 = vunpack.c.l.b16 %v324
      %v437 = vunpack.c.l.b16 %v325
      %v438 = vunpack.c.l.b16 %v326
      %v439 = vunpack.c.l.b16 %v327
      %v440 = vpack.c.b16 %v409, %v408
      %v441 = vpack.c.b16 %v411, %v410
      %v442 = vpack.c.b16 %v413, %v412
      %v443 = vpack.c.b16 %v415, %v414
      %v444 = vpack.c.b16 %v417, %v416
      %v445 = vpack.c.b16 %v419, %v418
      %v446 = vpack.c.b16 %v421, %v420
      %v447 = vpack.c.b16 %v423, %v422
      %v448 = vpack.c.b16 %v425, %v424
      %v449 = vpack.c.b16 %v427, %v426
      %v450 = vpack.c.b16 %v429, %v428
      %v451 = vpack.c.b16 %v431, %v430
      %v452 = vpack.c.b16 %v433, %v432
      %v453 = vpack.c.b16 %v435, %v434
      %v454 = vpack.c.b16 %v437, %v436
      %v455 = vpack.c.b16 %v439, %v438
      %v488 = vunpack.c.l.b16 %v360
      %v489 = vunpack.c.l.b16 %v361
      %v490 = vunpack.c.l.b16 %v362
      %v491 = vunpack.c.l.b16 %v363
      %v492 = vunpack.c.l.b16 %v364
      %v493 = vunpack.c.l.b16 %v365
      %v494 = vunpack.c.l.b16 %v366
      %v495 = vunpack.c.l.b16 %v367
      %v496 = vunpack.c.l.b16 %v368
      %v497 = vunpack.c.l.b16 %v369
      %v498 = vunpack.c.l.b16 %v370
      %v499 = vunpack.c.l.b16 %v371
      %v500 = vunpack.c.l.b16 %v372
      %v501 = vunpack.c.l.b16 %v373
      %v502 = vunpack.c.l.b16 %v374
      %v503 = vunpack.c.l.b16 %v375
      %v504 = vpack.c.b16 %v489, %v488
      %v505 = vpack.c.b16 %v491, %v490
      %v506 = vpack.c.b16 %v493, %v492
      %v507 = vpack.c.b16 %v495, %v494
      %v508 = vpack.c.b16 %v497, %v496
      %v509 = vpack.c.b16 %v499, %v498
      %v510 = vpack.c.b16 %v501, %v500
      %v511 = vpack.c.b16 %v503, %v502
      %520 = vmatprep.subr.bf16.mxu0 0
      %521 = vmatpush1.bf16.msra.mxu0 %v511
      %522 = vmatprep.subr.bf16.mxu0 0
      %523 = vmatpush1.bf16.msra.mxu0 %v510
      %524 = vmatprep.subr.bf16.mxu0 0
      %525 = vmatpush1.bf16.msra.mxu0 %v509
      %526 = vmatprep.subr.bf16.mxu0 0
      %527 = vmatpush1.bf16.msra.mxu0 %v508
      %528 = vmatprep.subr.bf16.mxu0 0
      %529 = vmatpush1.bf16.msra.mxu0 %v507
      %530 = vmatprep.subr.bf16.mxu0 0
      %531 = vmatpush1.bf16.msra.mxu0 %v506
      %532 = vmatprep.subr.bf16.mxu0 0
      %533 = vmatpush1.bf16.msra.mxu0 %v505
      %534 = vmatprep.subr.bf16.mxu0 0
      %535 = vmatpush1.bf16.msra.mxu0 %v504
      %536 = vmatprep.subr.bf16.mxu0 0
      %537 = vmatpush2.bf16.msra.mxu0 0
      %538 = vmatprep.subr.bf16.mxu0 0
      %539 = vmatpush2.bf16.msra.mxu0 0
      %540 = vmatprep.subr.bf16.mxu0 0
      %541 = vmatpush2.bf16.msra.mxu0 0
      %542 = vmatprep.subr.bf16.mxu0 0
      %543 = vmatpush2.bf16.msra.mxu0 0
      %544 = vmatprep.subr.bf16.mxu0 0
      %545 = vmatpush2.bf16.msra.mxu0 0
      %546 = vmatprep.subr.bf16.mxu0 0
      %547 = vmatpush2.bf16.msra.mxu0 0
      %548 = vmatprep.subr.bf16.mxu0 0
      %549 = vmatpush2.bf16.msra.mxu0 0
      %550 = vmatprep.subr.bf16.mxu0 0
      %551 = vmatpush2.bf16.msra.mxu0 0
      %552 = vmatprep.mubr.bf16.mxu0 0
      %553 = vmatmul.mubr.bf16.gmra.mxu0 %v440
      %v554 = vpop.f32.mrf.mxu0
      %v555 = vadd.f32 0.0, %v554
      %v556 = vpop.f32.mrf.mxu0
      %v557 = vpop.f32.mrf.mxu0
      %v558 = vadd.f32 0.0, %v557
      %v559 = vpop.f32.mrf.mxu0
      %560 = vmatprep.mubr.bf16.mxu0 0
      %561 = vmatmul.mubr.bf16.gmra.mxu0 %v441
      %v562 = vpop.f32.mrf.mxu0
      %v563 = vadd.f32 0.0, %v562
      %v564 = vpop.f32.mrf.mxu0
      %v565 = vpop.f32.mrf.mxu0
      %v566 = vadd.f32 0.0, %v565
      %v567 = vpop.f32.mrf.mxu0
      %568 = vmatprep.mubr.bf16.mxu0 0
      %569 = vmatmul.mubr.bf16.gmra.mxu0 %v442
      %v570 = vpop.f32.mrf.mxu0
      %v571 = vadd.f32 0.0, %v570
      %v572 = vpop.f32.mrf.mxu0
      %v573 = vpop.f32.mrf.mxu0
      %v574 = vadd.f32 0.0, %v573
      %v575 = vpop.f32.mrf.mxu0
      %576 = vmatprep.mubr.bf16.mxu0 0
      %577 = vmatmul.mubr.bf16.gmra.mxu0 %v443
      %v578 = vpop.f32.mrf.mxu0
      %v579 = vadd.f32 0.0, %v578
      %v580 = vpop.f32.mrf.mxu0
      %v581 = vpop.f32.mrf.mxu0
      %v582 = vadd.f32 0.0, %v581
      %v583 = vpop.f32.mrf.mxu0
      %584 = vmatprep.mubr.bf16.mxu0 0
      %585 = vmatmul.mubr.bf16.gmra.mxu0 %v444
      %v586 = vpop.f32.mrf.mxu0
      %v587 = vadd.f32 0.0, %v586
      %v588 = vpop.f32.mrf.mxu0
      %v589 = vpop.f32.mrf.mxu0
      %v590 = vadd.f32 0.0, %v589
      %v591 = vpop.f32.mrf.mxu0
      %592 = vmatprep.mubr.bf16.mxu0 0
      %593 = vmatmul.mubr.bf16.gmra.mxu0 %v445
      %v594 = vpop.f32.mrf.mxu0
      %v595 = vadd.f32 0.0, %v594
      %v596 = vpop.f32.mrf.mxu0
      %v597 = vpop.f32.mrf.mxu0
      %v598 = vadd.f32 0.0, %v597
      %v599 = vpop.f32.mrf.mxu0
      %600 = vmatprep.mubr.bf16.mxu0 0
      %601 = vmatmul.mubr.bf16.gmra.mxu0 %v446
      %v602 = vpop.f32.mrf.mxu0
      %v603 = vadd.f32 0.0, %v602
      %v604 = vpop.f32.mrf.mxu0
      %v605 = vpop.f32.mrf.mxu0
      %v606 = vadd.f32 0.0, %v605
      %v607 = vpop.f32.mrf.mxu0
      %608 = vmatprep.mubr.bf16.mxu0 0
      %609 = vmatmul.mubr.bf16.gmra.mxu0 %v447
      %v610 = vpop.f32.mrf.mxu0
      %v611 = vadd.f32 0.0, %v610
      %v612 = vpop.f32.mrf.mxu0
      %v613 = vpop.f32.mrf.mxu0
      %v614 = vadd.f32 0.0, %v613
      %v615 = vpop.f32.mrf.mxu0
      %616 = vmatprep.mubr.bf16.mxu0 0
      %617 = vmatmul.mubr.bf16.gmra.mxu0 %v448
      %v618 = vpop.f32.mrf.mxu0
      %v619 = vadd.f32 0.0, %v618
      %v620 = vpop.f32.mrf.mxu0
      %v621 = vpop.f32.mrf.mxu0
      %v622 = vadd.f32 0.0, %v621
      %v623 = vpop.f32.mrf.mxu0
      %624 = vmatprep.mubr.bf16.mxu0 0
      %625 = vmatmul.mubr.bf16.gmra.mxu0 %v449
      %v626 = vpop.f32.mrf.mxu0
      %v627 = vadd.f32 0.0, %v626
      %v628 = vpop.f32.mrf.mxu0
      %v629 = vpop.f32.mrf.mxu0
      %v630 = vadd.f32 0.0, %v629
      %v631 = vpop.f32.mrf.mxu0
      %632 = vmatprep.mubr.bf16.mxu0 0
      %633 = vmatmul.mubr.bf16.gmra.mxu0 %v450
      %v634 = vpop.f32.mrf.mxu0
      %v635 = vadd.f32 0.0, %v634
      %v636 = vpop.f32.mrf.mxu0
      %v637 = vpop.f32.mrf.mxu0
      %v638 = vadd.f32 0.0, %v637
      %v639 = vpop.f32.mrf.mxu0
      %640 = vmatprep.mubr.bf16.mxu0 0
      %641 = vmatmul.mubr.bf16.gmra.mxu0 %v451
      %v642 = vpop.f32.mrf.mxu0
      %v643 = vadd.f32 0.0, %v642
      %v644 = vpop.f32.mrf.mxu0
      %v645 = vpop.f32.mrf.mxu0
      %v646 = vadd.f32 0.0, %v645
      %v647 = vpop.f32.mrf.mxu0
      %648 = vmatprep.mubr.bf16.mxu0 0
      %649 = vmatmul.mubr.bf16.gmra.mxu0 %v452
      %v650 = vpop.f32.mrf.mxu0
      %v651 = vadd.f32 0.0, %v650
      %v652 = vpop.f32.mrf.mxu0
      %v653 = vpop.f32.mrf.mxu0
      %v654 = vadd.f32 0.0, %v653
      %v655 = vpop.f32.mrf.mxu0
      %656 = vmatprep.mubr.bf16.mxu0 0
      %657 = vmatmul.mubr.bf16.gmra.mxu0 %v453
      %v658 = vpop.f32.mrf.mxu0
      %v659 = vadd.f32 0.0, %v658
      %v660 = vpop.f32.mrf.mxu0
      %v661 = vpop.f32.mrf.mxu0
      %v662 = vadd.f32 0.0, %v661
      %v663 = vpop.f32.mrf.mxu0
      %664 = vmatprep.mubr.bf16.mxu0 0
      %665 = vmatmul.mubr.bf16.gmra.mxu0 %v454
      %v666 = vpop.f32.mrf.mxu0
      %v667 = vadd.f32 0.0, %v666
      %v668 = vpop.f32.mrf.mxu0
      %v669 = vpop.f32.mrf.mxu0
      %v670 = vadd.f32 0.0, %v669
      %v671 = vpop.f32.mrf.mxu0
      %672 = vmatprep.mubr.bf16.mxu0 0
      %673 = vmatmul.mubr.bf16.gmra.mxu0 %v455
      %v674 = vpop.f32.mrf.mxu0
      %v675 = vadd.f32 0.0, %v674
      %v676 = vpop.f32.mrf.mxu0
      %v677 = vpop.f32.mrf.mxu0
      %v678 = vadd.f32 0.0, %v677
      %v679 = vpop.f32.mrf.mxu0
      %680 = vdwg.mxu0
      %v681 = vadd.f32 %v328, %v555
      %v682 = vadd.f32 %v329, %v558
      %v683 = vadd.f32 %v330, %v563
      %v684 = vadd.f32 %v331, %v566
      %v685 = vadd.f32 %v332, %v571
      %v686 = vadd.f32 %v333, %v574
      %v687 = vadd.f32 %v334, %v579
      %v688 = vadd.f32 %v335, %v582
      %v689 = vadd.f32 %v336, %v587
      %v690 = vadd.f32 %v337, %v590
      %v691 = vadd.f32 %v338, %v595
      %v692 = vadd.f32 %v339, %v598
      %v693 = vadd.f32 %v340, %v603
      %v694 = vadd.f32 %v341, %v606
      %v695 = vadd.f32 %v342, %v611
      %v696 = vadd.f32 %v343, %v614
      %v697 = vadd.f32 %v344, %v619
      %v698 = vadd.f32 %v345, %v622
      %v699 = vadd.f32 %v346, %v627
      %v700 = vadd.f32 %v347, %v630
      %v701 = vadd.f32 %v348, %v635
      %v702 = vadd.f32 %v349, %v638
      %v703 = vadd.f32 %v350, %v643
      %v704 = vadd.f32 %v351, %v646
      %v705 = vadd.f32 %v352, %v651
      %v706 = vadd.f32 %v353, %v654
      %v707 = vadd.f32 %v354, %v659
      %v708 = vadd.f32 %v355, %v662
      %v709 = vadd.f32 %v356, %v667
      %v710 = vadd.f32 %v357, %v670
      %v711 = vadd.f32 %v358, %v675
      %v712 = vadd.f32 %v359, %v678
      %713 = vst [vmem:[#allocation2] sm:$0xff] %v681
      %714 = vst [vmem:[#allocation2 + $0x8] sm:$0xff] %v682
      %715 = vst [vmem:[#allocation2 + $0x10] sm:$0xff] %v683
      %716 = vst [vmem:[#allocation2 + $0x18] sm:$0xff] %v684
      %717 = vst [vmem:[#allocation2 + $0x20] sm:$0xff] %v685
      %718 = vst [vmem:[#allocation2 + $0x28] sm:$0xff] %v686
      %719 = vst [vmem:[#allocation2 + $0x30] sm:$0xff] %v687
      %720 = vst [vmem:[#allocation2 + $0x38] sm:$0xff] %v688
      %721 = vst [vmem:[#allocation2 + $0x40] sm:$0xff] %v689
      %722 = vst [vmem:[#allocation2 + $0x48] sm:$0xff] %v690
      %723 = vst [vmem:[#allocation2 + $0x50] sm:$0xff] %v691
      %724 = vst [vmem:[#allocation2 + $0x58] sm:$0xff] %v692
      %725 = vst [vmem:[#allocation2 + $0x60] sm:$0xff] %v693
      %726 = vst [vmem:[#allocation2 + $0x68] sm:$0xff] %v694
      %727 = vst [vmem:[#allocation2 + $0x70] sm:$0xff] %v695
      %728 = vst [vmem:[#allocation2 + $0x78] sm:$0xff] %v696
      %729 = vst [vmem:[#allocation2 + $0x80] sm:$0xff] %v697
      %730 = vst [vmem:[#allocation2 + $0x88] sm:$0xff] %v698
      %731 = vst [vmem:[#allocation2 + $0x90] sm:$0xff] %v699
      %732 = vst [vmem:[#allocation2 + $0x98] sm:$0xff] %v700
      %733 = vst [vmem:[#allocation2 + $0xa0] sm:$0xff] %v701
      %734 = vst [vmem:[#allocation2 + $0xa8] sm:$0xff] %v702
      %735 = vst [vmem:[#allocation2 + $0xb0] sm:$0xff] %v703
      %736 = vst [vmem:[#allocation2 + $0xb8] sm:$0xff] %v704
      %737 = vst [vmem:[#allocation2 + $0xc0] sm:$0xff] %v705
      %738 = vst [vmem:[#allocation2 + $0xc8] sm:$0xff] %v706
      %739 = vst [vmem:[#allocation2 + $0xd0] sm:$0xff] %v707
      %740 = vst [vmem:[#allocation2 + $0xd8] sm:$0xff] %v708
      %741 = vst [vmem:[#allocation2 + $0xe0] sm:$0xff] %v709
      %742 = vst [vmem:[#allocation2 + $0xe8] sm:$0xff] %v710
      %743 = vst [vmem:[#allocation2 + $0xf0] sm:$0xff] %v711
      %744 = vst [vmem:[#allocation2 + $0xf8] sm:$0xff] %v712
      // Predicated region
      $region37: #{_lambda_.39} parent=31 // pred_check
        %p745 = pneg %p260
      $region38: #{_lambda_.39} parent=31 // pred_check_branch
        %747 = sbr.rel (%p745) target = $region40
      $region39: #{_lambda_.39} parent=31 // pred_region
        %v748 = vld [vmem:[#allocation2] sm:$0xff]
        %v749 = vld [vmem:[#allocation2 + $0x8] sm:$0xff]
        %v750 = vld [vmem:[#allocation2 + $0x10] sm:$0xff]
        %v751 = vld [vmem:[#allocation2 + $0x18] sm:$0xff]
        %v752 = vld [vmem:[#allocation2 + $0x20] sm:$0xff]
        %v753 = vld [vmem:[#allocation2 + $0x28] sm:$0xff]
        %v754 = vld [vmem:[#allocation2 + $0x30] sm:$0xff]
        %v755 = vld [vmem:[#allocation2 + $0x38] sm:$0xff]
        %v756 = vld [vmem:[#allocation2 + $0x40] sm:$0xff]
        %v757 = vld [vmem:[#allocation2 + $0x48] sm:$0xff]
        %v758 = vld [vmem:[#allocation2 + $0x50] sm:$0xff]
        %v759 = vld [vmem:[#allocation2 + $0x58] sm:$0xff]
        %v760 = vld [vmem:[#allocation2 + $0x60] sm:$0xff]
        %v761 = vld [vmem:[#allocation2 + $0x68] sm:$0xff]
        %v762 = vld [vmem:[#allocation2 + $0x70] sm:$0xff]
        %v763 = vld [vmem:[#allocation2 + $0x78] sm:$0xff]
        %v764 = vld [vmem:[#allocation2 + $0x80] sm:$0xff]
        %v765 = vld [vmem:[#allocation2 + $0x88] sm:$0xff]
        %v766 = vld [vmem:[#allocation2 + $0x90] sm:$0xff]
        %v767 = vld [vmem:[#allocation2 + $0x98] sm:$0xff]
        %v768 = vld [vmem:[#allocation2 + $0xa0] sm:$0xff]
        %v769 = vld [vmem:[#allocation2 + $0xa8] sm:$0xff]
        %v770 = vld [vmem:[#allocation2 + $0xb0] sm:$0xff]
        %v771 = vld [vmem:[#allocation2 + $0xb8] sm:$0xff]
        %v772 = vld [vmem:[#allocation2 + $0xc0] sm:$0xff]
        %v773 = vld [vmem:[#allocation2 + $0xc8] sm:$0xff]
        %v774 = vld [vmem:[#allocation2 + $0xd0] sm:$0xff]
        %v775 = vld [vmem:[#allocation2 + $0xd8] sm:$0xff]
        %v776 = vld [vmem:[#allocation2 + $0xe0] sm:$0xff]
        %v777 = vld [vmem:[#allocation2 + $0xe8] sm:$0xff]
        %v778 = vld [vmem:[#allocation2 + $0xf0] sm:$0xff]
        %v779 = vld [vmem:[#allocation2 + $0xf8] sm:$0xff]
        %v780 = vld [vmem:[%s249] sm:$0x1]
        %v782 = vlaneseq
        %v783 = vshrl.u32 %v782, 7
        %v784 = vsub.s32 0, %v783
        %v785 = vrot.slane %v780, %v784
        %v787 = vadd.f32 %v748, %v785
        %v788 = vadd.f32 %v749, %v785
        %v789 = vadd.f32 %v750, %v785
        %v790 = vadd.f32 %v751, %v785
        %v791 = vadd.f32 %v752, %v785
        %v792 = vadd.f32 %v753, %v785
        %v793 = vadd.f32 %v754, %v785
        %v794 = vadd.f32 %v755, %v785
        %v795 = vadd.f32 %v756, %v785
        %v796 = vadd.f32 %v757, %v785
        %v797 = vadd.f32 %v758, %v785
        %v798 = vadd.f32 %v759, %v785
        %v799 = vadd.f32 %v760, %v785
        %v800 = vadd.f32 %v761, %v785
        %v801 = vadd.f32 %v762, %v785
        %v802 = vadd.f32 %v763, %v785
        %v803 = vadd.f32 %v764, %v785
        %v804 = vadd.f32 %v765, %v785
        %v805 = vadd.f32 %v766, %v785
        %v806 = vadd.f32 %v767, %v785
        %v807 = vadd.f32 %v768, %v785
        %v808 = vadd.f32 %v769, %v785
        %v809 = vadd.f32 %v770, %v785
        %v810 = vadd.f32 %v771, %v785
        %v811 = vadd.f32 %v772, %v785
        %v812 = vadd.f32 %v773, %v785
        %v813 = vadd.f32 %v774, %v785
        %v814 = vadd.f32 %v775, %v785
        %v815 = vadd.f32 %v776, %v785
        %v816 = vadd.f32 %v777, %v785
        %v817 = vadd.f32 %v778, %v785
        %v818 = vadd.f32 %v779, %v785
        %819 = vst [vmem:[%s257] sm:$0xff] %v787
        %820 = vst [vmem:[%s257 + $0x8] sm:$0xff] %v788
        %821 = vst [vmem:[%s257 + $0x10] sm:$0xff] %v789
        %822 = vst [vmem:[%s257 + $0x18] sm:$0xff] %v790
        %823 = vst [vmem:[%s257 + $0x20] sm:$0xff] %v791
        %824 = vst [vmem:[%s257 + $0x28] sm:$0xff] %v792
        %825 = vst [vmem:[%s257 + $0x30] sm:$0xff] %v793
        %826 = vst [vmem:[%s257 + $0x38] sm:$0xff] %v794
        %827 = vst [vmem:[%s257 + $0x40] sm:$0xff] %v795
        %828 = vst [vmem:[%s257 + $0x48] sm:$0xff] %v796
        %829 = vst [vmem:[%s257 + $0x50] sm:$0xff] %v797
        %830 = vst [vmem:[%s257 + $0x58] sm:$0xff] %v798
        %831 = vst [vmem:[%s257 + $0x60] sm:$0xff] %v799
        %832 = vst [vmem:[%s257 + $0x68] sm:$0xff] %v800
        %833 = vst [vmem:[%s257 + $0x70] sm:$0xff] %v801
        %834 = vst [vmem:[%s257 + $0x78] sm:$0xff] %v802
        %835 = vst [vmem:[%s257 + $0x80] sm:$0xff] %v803
        %836 = vst [vmem:[%s257 + $0x88] sm:$0xff] %v804
        %837 = vst [vmem:[%s257 + $0x90] sm:$0xff] %v805
        %838 = vst [vmem:[%s257 + $0x98] sm:$0xff] %v806
        %839 = vst [vmem:[%s257 + $0xa0] sm:$0xff] %v807
        %840 = vst [vmem:[%s257 + $0xa8] sm:$0xff] %v808
        %841 = vst [vmem:[%s257 + $0xb0] sm:$0xff] %v809
        %842 = vst [vmem:[%s257 + $0xb8] sm:$0xff] %v810
        %843 = vst [vmem:[%s257 + $0xc0] sm:$0xff] %v811
        %844 = vst [vmem:[%s257 + $0xc8] sm:$0xff] %v812
        %845 = vst [vmem:[%s257 + $0xd0] sm:$0xff] %v813
        %846 = vst [vmem:[%s257 + $0xd8] sm:$0xff] %v814
        %847 = vst [vmem:[%s257 + $0xe0] sm:$0xff] %v815
        %848 = vst [vmem:[%s257 + $0xe8] sm:$0xff] %v816
        %849 = vst [vmem:[%s257 + $0xf0] sm:$0xff] %v817
        %850 = vst [vmem:[%s257 + $0xf8] sm:$0xff] %v818
      $region40: #{_lambda_.39} parent=31 // pred_fallthru
        _
      %s851 = smul.u32 32, %s19
      %p852 = scmp.lt.s32.totalorder %s851, 63
      %s853 = scalar_select %p852, %s851, 63
      %p854 = scmp.lt.s32.totalorder %s20, 0
      %s855 = scalar_select %p854, %s20, 0
      %s856 = sadd.s32 %s855, %s853
      %s857 = smul.addr %s856, 8
      %s858 = scalar_lea.vmem %s3, %s857
      // Predicated region
      $region41: #{_lambda_.39} parent=31 // pred_check
        %p859 = pneg %p135
      $region42: #{_lambda_.39} parent=31 // pred_check_branch
        %861 = sbr.rel (%p859) target = $region44
      $region43: #{_lambda_.39} parent=31 // pred_region
        %s862 = smul.u32 32, %s19
      $region44: #{_lambda_.39} parent=31 // pred_fallthru
        _
    $region32: #{_lambda_.39} parent=5 // pred_fallthru
      _
    %p863 = scmp.le.s32.totalorder 2, %s9
    // Predicated region
    $region45: #{_lambda_.39} parent=5 // pred_check
      %p864 = pneg %p863
    $region46: #{_lambda_.39} parent=5 // pred_check_branch
      %866 = sbr.rel (%p864) target = $region48
    $region47: #{_lambda_.39} parent=5 // pred_region
      %s867 = ssub.s32 %s9, 2
      // Predicated region
      $region49: #{_lambda_.39} parent=47 // pred_check
        %p868 = pneg %p141
      $region50: #{_lambda_.39} parent=47 // pred_check_branch
        %870 = sbr.rel (%p868) target = $region52
      $region51: #{_lambda_.39} parent=47 // pred_region
        %s871 = smul.u32 32, %s22
        %p872 = scmp.lt.s32.totalorder %s871, 63
        %s873 = scalar_select %p872, %s871, 63
        %p874 = scmp.lt.s32.totalorder %s23, 0
        %s875 = scalar_select %p874, %s23, 0
        %s876 = sadd.s32 %s875, %s873
        %s877 = smul.addr %s876, 8
        %s878 = scalar_lea.vmem %s3, %s877
      $region52: #{_lambda_.39} parent=47 // pred_fallthru
        _
    $region48: #{_lambda_.39} parent=5 // pred_fallthru
      _
  $region6: #{_lambda_.39} parent=0 // loop_footer
    %s13 = sadd.s32 1, %s9
  $region7: #{_lambda_.39} parent=0 // loop_footer_branch
    %8 = sbr.rel target = $region3
  $region8: #{_lambda_.39} parent=0 // loop_exit
    _

// kernel: _lambda_.41
$region0: #{_lambda_.41}
  #allocation0 [shape = 'u32[]', space=smem, size = 0x4, offset = 0x4, fixed_abs, tag = 'smem constant byte address 0x4 - core index']
  #allocation1 [shape = 'u32[144,128]{1,0:T(1,128)}', space=vmem, size = 0x12000, scoped, tag = 'internal scratch']
  %s0 = inlined_call_operand.vmem [shape: f32[2,64,8], index: 0, kind: input, shape index: {}]
  %s1 = inlined_call_operand.vmem [shape: f32[2,2,8], index: 1, kind: output, shape index: {}]
  %s2 = sld [smem:[#allocation0]]
  $region45: #{_lambda_.41} parent=0
    _
  %s4 = ssub.s32 1, %s2
  %s5 = scalar_select 0, %s4, %s2
  loop: start=0, step=1, limit=4
  $region2: #{_lambda_.41} parent=0 // loop_pre_header
    _
  $region3: #{_lambda_.41} parent=0 // loop_header
    %s7 = sphi 0, %s11
    %p8 = scmp.ge.s32.totalorder %s7, 4
    %s14 = sphi 0, %s26
    %s15 = sphi 0, %s22
    %s16 = sphi 0, %s14
    %s17 = sphi 0, %s15
    %s18 = sphi 0, %s16
    %s19 = sphi 0, %s17
    %s31 = sphi 0, %s33
    %s34 = sphi 0, %s31
    %s35 = sphi 0, %s34
    %s51 = sphi 0, %s35
    %s57 = sphi 0, %s59
    %s60 = sphi 0, %s57
    %s61 = sphi 0, %s60
    %s77 = sphi 0, %s61
  $region4: #{_lambda_.41} parent=0 // loop_header_branch
    %10 = sbr.rel (%p8) target = $region8
  $region5: #{_lambda_.41} parent=0 // loop_body
    %s12 = ssub.s32 %s7, 1
    %s13 = ssub.s32 %s7, 2
    %s20 = sadd.s32 1, %s15
    %p21 = scmp.ge.s32.totalorder %s20, 1
    %s22 = scalar_select %p21, 0, %s20
    %s23 = sadd.s32 1, %s14
    %s24 = scalar_select %p21, %s23, %s14
    %p25 = scmp.ge.s32.totalorder %s24, 2
    %s26 = scalar_select %p25, 0, %s24
    %s27 = ssub.s32 %s14, %s26
    %s28 = ssub.s32 %s15, %s22
    %s29 = sor.u32 %s27, %s28
    %p30 = scmp.eq.s32.totalorder %s29, 0
    %s32 = sadd.s32 %s31, 1
    %s33 = scalar_select %p30, %s31, %s32
    %p36 = pneg %p30
    %p37 = scmp.eq.s32.totalorder %s7, 1
    %p38 = por %p36, %p37
    %p39 = scmp.ne.s32.totalorder %s31, %s34
    %p40 = scmp.eq.s32.totalorder %s7, 0
    %p41 = por %p39, %p40
    %p42 = scmp.ne.s32.totalorder %s31, %s34
    %p43 = scmp.eq.s32.totalorder %s12, 1
    %p44 = por %p42, %p43
    %p45 = scmp.ne.s32.totalorder %s34, %s35
    %p46 = scmp.eq.s32.totalorder %s12, 0
    %p47 = por %p45, %p46
    %p48 = scmp.ne.s32.totalorder %s34, %s35
    %p49 = scmp.eq.s32.totalorder %s13, 1
    %p50 = por %p48, %p49
    %p52 = scmp.ne.s32.totalorder %s35, %s51
    %p53 = scmp.eq.s32.totalorder %s13, 0
    %p54 = por %p52, %p53
    %s55 = ssub.s32 %s14, %s26
    %p56 = scmp.eq.s32.totalorder %s55, 0
    %s58 = sadd.s32 %s57, 1
    %s59 = scalar_select %p56, %s57, %s58
    %p62 = pneg %p56
    %p63 = scmp.eq.s32.totalorder %s7, 1
    %p64 = por %p62, %p63
    %p65 = scmp.ne.s32.totalorder %s57, %s60
    %p66 = scmp.eq.s32.totalorder %s7, 0
    %p67 = por %p65, %p66
    %p68 = scmp.ne.s32.totalorder %s57, %s60
    %p69 = scmp.eq.s32.totalorder %s12, 1
    %p70 = por %p68, %p69
    %p71 = scmp.ne.s32.totalorder %s60, %s61
    %p72 = scmp.eq.s32.totalorder %s12, 0
    %p73 = por %p71, %p72
    %p74 = scmp.ne.s32.totalorder %s60, %s61
    %p75 = scmp.eq.s32.totalorder %s13, 1
    %p76 = por %p74, %p75
    %p78 = scmp.ne.s32.totalorder %s61, %s77
    %p79 = scmp.eq.s32.totalorder %s13, 0
    %p80 = por %p78, %p79
    %p81 = scmp.le.s32.totalorder 1, %s7
    %p82 = scmp.lt.s32.totalorder %s7, 3
    %p83 = pnand %p81, %p82
    %p84 = pneg %p83
    // Predicated region
    $region9: #{_lambda_.41} parent=5 // pred_check
      _
    $region10: #{_lambda_.41} parent=5 // pred_check_branch
      %86 = sbr.rel (%p83) target = $region12
    $region11: #{_lambda_.41} parent=5 // pred_region
      %s87 = ssub.s32 %s7, 1
    $region12: #{_lambda_.41} parent=5 // pred_fallthru
      _
    %p88 = scmp.lt.s32.totalorder %s7, 2
    // Predicated region
    $region13: #{_lambda_.41} parent=5 // pred_check
      %p89 = pneg %p88
    $region14: #{_lambda_.41} parent=5 // pred_check_branch
      %91 = sbr.rel (%p89) target = $region16
    $region15: #{_lambda_.41} parent=5 // pred_region
      // Predicated region
      $region17: #{_lambda_.41} parent=15 // pred_check
        %p92 = pneg %p41
      $region18: #{_lambda_.41} parent=15 // pred_check_branch
        %94 = sbr.rel (%p92) target = $region20
      $region19: #{_lambda_.41} parent=15 // pred_region
        %s95 = smul.u32 8, %s15
        %p96 = scmp.lt.s32.totalorder %s14, 1
        %s97 = scalar_select %p96, %s14, 1
        %p98 = scmp.lt.s32.totalorder %s95, 7
        %s99 = scalar_select %p98, %s95, 7
        %s100 = smul.addr %s97, 8
        %s101 = sadd.s32 %s99, %s100
        %s102 = smul.addr %s101, 8
        %s103 = scalar_lea.vmem %s0, %s102
        %s104 = smul.u32 8, %s15
      $region20: #{_lambda_.41} parent=15 // pred_fallthru
        _
    $region16: #{_lambda_.41} parent=5 // pred_fallthru
      _
    %p105 = scmp.le.s32.totalorder 1, %s7
    %p106 = scmp.lt.s32.totalorder %s7, 3
    %p107 = pnand %p105, %p106
    %p108 = pneg %p107
    // Predicated region
    $region21: #{_lambda_.41} parent=5 // pred_check
      _
    $region22: #{_lambda_.41} parent=5 // pred_check_branch
      %110 = sbr.rel (%p107) target = $region24
    $region23: #{_lambda_.41} parent=5 // pred_region
      %s111 = ssub.s32 %s7, 1
      %s112 = smul.u32 8, %s17
      %p113 = scmp.lt.s32.totalorder %s16, 1
      %s114 = scalar_select %p113, %s16, 1
      %p115 = scmp.lt.s32.totalorder %s112, 7
      %s116 = scalar_select %p115, %s112, 7
      %s117 = smul.addr %s114, 8
      %s118 = sadd.s32 %s116, %s117
      %s119 = smul.addr %s118, 8
      %s120 = scalar_lea.vmem %s0, %s119
      %p121 = pneg %p47
      %p122 = pneg %p44
      %p123 = pneg %p73
      %p124 = pneg %p70
      %p125 = scmp.lt.s32.totalorder %s16, 1
      %s126 = scalar_select %p125, %s16, 1
      %s127 = smul.addr %s126, 2
      %s128 = scalar_lea.vmem %s1, %s127
      %s129 = smul.u32 8, %s17
      %p130 = scmp.lt.s32.totalorder %s16, 1
      %s131 = scalar_select %p130, %s16, 1
      %p132 = scmp.lt.s32.totalorder %s129, 7
      %s133 = scalar_select %p132, %s129, 7
      %s134 = smul.addr %s131, 8
      %s135 = sadd.s32 %s133, %s134
      %s136 = smul.addr %s135, 8
      %s137 = scalar_lea.vmem %s0, %s136
      %s138 = smul.u32 8, %s17
      %p139 = scmp.lt.s32.totalorder %s16, 1
      %s140 = scalar_select %p139, %s16, 1
      %s141 = smul.addr %s140, 2
      %s142 = scalar_lea.vmem %s1, %s141
      %p143 = scmp.eq.s32.totalorder %s17, 0
      // Predicated region
      $region25: #{_lambda_.41} parent=23 // pred_check
        %p144 = pneg %p143
      $region26: #{_lambda_.41} parent=23 // pred_check_branch
        %146 = sbr.rel (%p144) target = $region28
      $region27: #{_lambda_.41} parent=23 // pred_region
        %vm147 = vcmask 58368
        %148 = vst.msk [vmem:[%s142] sm:$0x3] %vm147, 0.0
      $region28: #{_lambda_.41} parent=23 // pred_fallthru
        _
      %v149 = vld [vmem:[%s137] sm:$0xff]
      %v150 = vld [vmem:[%s137 + $0x8] sm:$0xff]
      %v151 = vld [vmem:[%s137 + $0x10] sm:$0xff]
      %v152 = vld [vmem:[%s137 + $0x18] sm:$0xff]
      %v153 = vld [vmem:[%s137 + $0x20] sm:$0xff]
      %v154 = vld [vmem:[%s137 + $0x28] sm:$0xff]
      %v155 = vld [vmem:[%s137 + $0x30] sm:$0xff]
      %v156 = vld [vmem:[%s137 + $0x38] sm:$0xff]
      %v157 = vld [vmem:[%s142] sm:$0x1]
      %vm158 = vcmask 64512
      %v159 = vsel %vm158, %v149, 0.0
      %v160 = vsel %vm158, %v150, 0.0
      %v161 = vadd.f32 %v159, %v160
      %v162 = vsel %vm158, %v151, 0.0
      %v163 = vadd.f32 %v161, %v162
      %v164 = vsel %vm158, %v152, 0.0
      %v165 = vadd.f32 %v163, %v164
      %v166 = vsel %vm158, %v153, 0.0
      %v167 = vadd.f32 %v165, %v166
      %v168 = vsel %vm158, %v154, 0.0
      %v169 = vadd.f32 %v167, %v168
      %v170 = vsel %vm158, %v155, 0.0
      %v171 = vadd.f32 %v169, %v170
      %v172 = vsel %vm158, %v156, 0.0
      %v173 = vadd.f32 %v171, %v172
      %v174 = vrot.slane %v173, 4
      %v175 = vadd.f32 %v173, %v174
      %v176 = vrot.slane %v175, 2
      %v177 = vadd.f32 %v175, %v176
      %v178 = vrot.slane %v177, 1
      %v179 = vadd.f32 %v177, %v178
      %v180 = vadd.f32 %v157, %v179
      %vm181 = vcmask 57344
      %182 = vst.msk [vmem:[%s142] sm:$0x1] %vm181, %v180
      %v183 = vld [vmem:[%s142 + $0x1] sm:$0x1]
      %v184 = vmul.f32 %v149, %v149
      %v185 = vmul.f32 %v150, %v150
      %v186 = vmul.f32 %v151, %v151
      %v187 = vmul.f32 %v152, %v152
      %v188 = vmul.f32 %v153, %v153
      %v189 = vmul.f32 %v154, %v154
      %v190 = vmul.f32 %v155, %v155
      %v191 = vmul.f32 %v156, %v156
      %v192 = vsel %vm158, %v184, 0.0
      %v193 = vsel %vm158, %v185, 0.0
      %v194 = vadd.f32 %v192, %v193
      %v195 = vsel %vm158, %v186, 0.0
      %v196 = vadd.f32 %v194, %v195
      %v197 = vsel %vm158, %v187, 0.0
      %v198 = vadd.f32 %v196, %v197
      %v199 = vsel %vm158, %v188, 0.0
      %v200 = vadd.f32 %v198, %v199
      %v201 = vsel %vm158, %v189, 0.0
      %v202 = vadd.f32 %v200, %v201
      %v203 = vsel %vm158, %v190, 0.0
      %v204 = vadd.f32 %v202, %v203
      %v205 = vsel %vm158, %v191, 0.0
      %v206 = vadd.f32 %v204, %v205
      %v207 = vrot.slane %v206, 4
      %v208 = vadd.f32 %v206, %v207
      %v209 = vrot.slane %v208, 2
      %v210 = vadd.f32 %v208, %v209
      %v211 = vrot.slane %v210, 1
      %v212 = vadd.f32 %v210, %v211
      %v213 = vadd.f32 %v183, %v212
      %214 = vst.msk [vmem:[%s142 + $0x1] sm:$0x1] %vm181, %v213
      // Predicated region
      $region29: #{_lambda_.41} parent=23 // pred_check
        %p215 = pneg %p143
      $region30: #{_lambda_.41} parent=23 // pred_check_branch
        %217 = sbr.rel (%p215) target = $region32
      $region31: #{_lambda_.41} parent=23 // pred_region
        %v218 = vld [vmem:[%s142] sm:$0x1]
        %v219 = vrcp.pop 64.0
        %v220 = vmul.f32 %v218, %v219
        %v221 = vld [vmem:[%s142 + $0x1] sm:$0x1]
        %v222 = vmul.f32 %v221, %v219
        %v223 = vmul.f32 %v220, %v220
        %v224 = vsub.f32 %v222, %v223
        %225 = vst.msk [vmem:[%s142] sm:$0x1] %vm181, %v220
        %v226 = vmax.f32 %v224, 0.0
        %v227 = vadd.f32 %v226, 1e-05
        %v228 = vrsqrt.pop %v227
        %229 = vst.msk [vmem:[%s142 + $0x1] sm:$0x1] %vm181, %v228
      $region32: #{_lambda_.41} parent=23 // pred_fallthru
        _
      %p230 = scmp.lt.s32.totalorder %s16, 1
      %s231 = scalar_select %p230, %s16, 1
      %s232 = smul.addr %s231, 2
      %s233 = scalar_lea.vmem %s1, %s232
      // Predicated region
      $region33: #{_lambda_.41} parent=23 // pred_check
        %p234 = pneg %p70
      $region34: #{_lambda_.41} parent=23 // pred_check_branch
        %236 = sbr.rel (%p234) target = $region36
      $region35: #{_lambda_.41} parent=23 // pred_region
        _
      $region36: #{_lambda_.41} parent=23 // pred_fallthru
        _
    $region24: #{_lambda_.41} parent=5 // pred_fallthru
      _
    %p237 = scmp.le.s32.totalorder 2, %s7
    // Predicated region
    $region37: #{_lambda_.41} parent=5 // pred_check
      %p238 = pneg %p237
    $region38: #{_lambda_.41} parent=5 // pred_check_branch
      %240 = sbr.rel (%p238) target = $region40
    $region39: #{_lambda_.41} parent=5 // pred_region
      %s241 = ssub.s32 %s7, 2
      // Predicated region
      $region41: #{_lambda_.41} parent=39 // pred_check
        %p242 = pneg %p76
      $region42: #{_lambda_.41} parent=39 // pred_check_branch
        %244 = sbr.rel (%p242) target = $region44
      $region43: #{_lambda_.41} parent=39 // pred_region
        %p245 = scmp.lt.s32.totalorder %s18, 1
        %s246 = scalar_select %p245, %s18, 1
        %s247 = smul.addr %s246, 2
        %s248 = scalar_lea.vmem %s1, %s247
      $region44: #{_lambda_.41} parent=39 // pred_fallthru
        _
    $region40: #{_lambda_.41} parent=5 // pred_fallthru
      _
  $region6: #{_lambda_.41} parent=0 // loop_footer
    %s11 = sadd.s32 1, %s7
  $region7: #{_lambda_.41} parent=0 // loop_footer_branch
    %6 = sbr.rel target = $region3
  $region8: #{_lambda_.41} parent=0 // loop_exit
    _

// kernel: _lambda_.40
$region0: #{_lambda_.40}
  #allocation0 [shape = 'u32[]', space=smem, size = 0x4, offset = 0x4, fixed_abs, tag = 'smem constant byte address 0x4 - core index']
  #allocation1 [shape = 'u32[144,128]{1,0:T(1,128)}', space=vmem, size = 0x12000, scoped, tag = 'internal scratch']
  #allocation2 [shape = 'f32[128,128]{1,0:T(8,128)}', space=vmem, size = 0x10000, scoped, tag = 'scratch operand']
  %s0 = inlined_call_operand.vmem [shape: bf16[128,128], index: 0, kind: input, shape index: {}]
  %s1 = inlined_call_operand.vmem [shape: bf16[128,128], index: 1, kind: input, shape index: {}]
  %s2 = inlined_call_operand.vmem [shape: f32[1,128], index: 2, kind: input, shape index: {}]
  %s3 = inlined_call_operand.vmem [shape: f32[128,128], index: 3, kind: output, shape index: {}]
  %s4 = sld [smem:[#allocation0]]
  $region30: #{_lambda_.40} parent=0
    _
  %s6 = ssub.s32 1, %s4
  %s7 = scalar_select 0, %s6, %s4
  // Predicated region
  $region2: #{_lambda_.40} parent=0 // pred_check
    _
  $region3: #{_lambda_.40} parent=0 // pred_check_branch
    %9 = sbr.rel (0) target = $region5
  $region4: #{_lambda_.40} parent=0 // pred_region
    _
  $region5: #{_lambda_.40} parent=0 // pred_fallthru
    _
  // Predicated region
  $region6: #{_lambda_.40} parent=0 // pred_check
    _
  $region7: #{_lambda_.40} parent=0 // pred_check_branch
    %11 = sbr.rel (0) target = $region9
  $region8: #{_lambda_.40} parent=0 // pred_region
    _
  $region9: #{_lambda_.40} parent=0 // pred_fallthru
    _
  // Predicated region
  $region10: #{_lambda_.40} parent=0 // pred_check
    _
  $region11: #{_lambda_.40} parent=0 // pred_check_branch
    %13 = sbr.rel (0) target = $region13
  $region12: #{_lambda_.40} parent=0 // pred_region
    _
  $region13: #{_lambda_.40} parent=0 // pred_fallthru
    _
  %p16 = scmp.eq.s32.totalorder 0, 0
  // Predicated region
  $region14: #{_lambda_.40} parent=0 // pred_check
    %p17 = pneg %p16
  $region15: #{_lambda_.40} parent=0 // pred_check_branch
    %19 = sbr.rel (%p17) target = $region17
  $region16: #{_lambda_.40} parent=0 // pred_region
    %20 = vst [vmem:[#allocation2] sm:$0xff] 0.0
    %21 = vst [vmem:[#allocation2 + $0x8] sm:$0xff] 0.0
    %22 = vst [vmem:[#allocation2 + $0x10] sm:$0xff] 0.0
    %23 = vst [vmem:[#allocation2 + $0x18] sm:$0xff] 0.0
    %24 = vst [vmem:[#allocation2 + $0x20] sm:$0xff] 0.0
    %25 = vst [vmem:[#allocation2 + $0x28] sm:$0xff] 0.0
    %26 = vst [vmem:[#allocation2 + $0x30] sm:$0xff] 0.0
    %27 = vst [vmem:[#allocation2 + $0x38] sm:$0xff] 0.0
    %28 = vst [vmem:[#allocation2 + $0x40] sm:$0xff] 0.0
    %29 = vst [vmem:[#allocation2 + $0x48] sm:$0xff] 0.0
    %30 = vst [vmem:[#allocation2 + $0x50] sm:$0xff] 0.0
    %31 = vst [vmem:[#allocation2 + $0x58] sm:$0xff] 0.0
    %32 = vst [vmem:[#allocation2 + $0x60] sm:$0xff] 0.0
    %33 = vst [vmem:[#allocation2 + $0x68] sm:$0xff] 0.0
    %34 = vst [vmem:[#allocation2 + $0x70] sm:$0xff] 0.0
    %35 = vst [vmem:[#allocation2 + $0x78] sm:$0xff] 0.0
  $region17: #{_lambda_.40} parent=0 // pred_fallthru
    _
  %v36 = vld [vmem:[%s0] sm:$0xf]
  %v37 = vld [vmem:[%s0 + $0x4] sm:$0xf]
  %v38 = vld [vmem:[%s0 + $0x8] sm:$0xf]
  %v39 = vld [vmem:[%s0 + $0xc] sm:$0xf]
  %v40 = vld [vmem:[%s0 + $0x10] sm:$0xf]
  %v41 = vld [vmem:[%s0 + $0x14] sm:$0xf]
  %v42 = vld [vmem:[%s0 + $0x18] sm:$0xf]
  %v43 = vld [vmem:[%s0 + $0x1c] sm:$0xf]
  %v44 = vld [vmem:[%s0 + $0x20] sm:$0xf]
  %v45 = vld [vmem:[%s0 + $0x24] sm:$0xf]
  %v46 = vld [vmem:[%s0 + $0x28] sm:$0xf]
  %v47 = vld [vmem:[%s0 + $0x2c] sm:$0xf]
  %v48 = vld [vmem:[%s0 + $0x30] sm:$0xf]
  %v49 = vld [vmem:[%s0 + $0x34] sm:$0xf]
  %v50 = vld [vmem:[%s0 + $0x38] sm:$0xf]
  %v51 = vld [vmem:[%s0 + $0x3c] sm:$0xf]
  %vm52 = vcmp.ge.bf16.partialorder %v36, 0
  %vm53 = vcmp.ge.bf16.partialorder %v37, 0
  %vm54 = vcmp.ge.bf16.partialorder %v38, 0
  %vm55 = vcmp.ge.bf16.partialorder %v39, 0
  %vm56 = vcmp.ge.bf16.partialorder %v40, 0
  %vm57 = vcmp.ge.bf16.partialorder %v41, 0
  %vm58 = vcmp.ge.bf16.partialorder %v42, 0
  %vm59 = vcmp.ge.bf16.partialorder %v43, 0
  %vm60 = vcmp.ge.bf16.partialorder %v44, 0
  %vm61 = vcmp.ge.bf16.partialorder %v45, 0
  %vm62 = vcmp.ge.bf16.partialorder %v46, 0
  %vm63 = vcmp.ge.bf16.partialorder %v47, 0
  %vm64 = vcmp.ge.bf16.partialorder %v48, 0
  %vm65 = vcmp.ge.bf16.partialorder %v49, 0
  %vm66 = vcmp.ge.bf16.partialorder %v50, 0
  %vm67 = vcmp.ge.bf16.partialorder %v51, 0
  %v68 = vmul.bf16 %v36, 1045249613
  %v69 = vmul.bf16 %v37, 1045249613
  %v70 = vmul.bf16 %v38, 1045249613
  %v71 = vmul.bf16 %v39, 1045249613
  %v72 = vmul.bf16 %v40, 1045249613
  %v73 = vmul.bf16 %v41, 1045249613
  %v74 = vmul.bf16 %v42, 1045249613
  %v75 = vmul.bf16 %v43, 1045249613
  %v76 = vmul.bf16 %v44, 1045249613
  %v77 = vmul.bf16 %v45, 1045249613
  %v78 = vmul.bf16 %v46, 1045249613
  %v79 = vmul.bf16 %v47, 1045249613
  %v80 = vmul.bf16 %v48, 1045249613
  %v81 = vmul.bf16 %v49, 1045249613
  %v82 = vmul.bf16 %v50, 1045249613
  %v83 = vmul.bf16 %v51, 1045249613
  %v84 = vsel %vm52, %v36, %v68
  %v85 = vsel %vm53, %v37, %v69
  %v86 = vsel %vm54, %v38, %v70
  %v87 = vsel %vm55, %v39, %v71
  %v88 = vsel %vm56, %v40, %v72
  %v89 = vsel %vm57, %v41, %v73
  %v90 = vsel %vm58, %v42, %v74
  %v91 = vsel %vm59, %v43, %v75
  %v92 = vsel %vm60, %v44, %v76
  %v93 = vsel %vm61, %v45, %v77
  %v94 = vsel %vm62, %v46, %v78
  %v95 = vsel %vm63, %v47, %v79
  %v96 = vsel %vm64, %v48, %v80
  %v97 = vsel %vm65, %v49, %v81
  %v98 = vsel %vm66, %v50, %v82
  %v99 = vsel %vm67, %v51, %v83
  %v100 = vld [vmem:[#allocation2] sm:$0xff]
  %v101 = vld [vmem:[#allocation2 + $0x8] sm:$0xff]
  %v102 = vld [vmem:[#allocation2 + $0x10] sm:$0xff]
  %v103 = vld [vmem:[#allocation2 + $0x18] sm:$0xff]
  %v104 = vld [vmem:[#allocation2 + $0x20] sm:$0xff]
  %v105 = vld [vmem:[#allocation2 + $0x28] sm:$0xff]
  %v106 = vld [vmem:[#allocation2 + $0x30] sm:$0xff]
  %v107 = vld [vmem:[#allocation2 + $0x38] sm:$0xff]
  %v108 = vld [vmem:[#allocation2 + $0x40] sm:$0xff]
  %v109 = vld [vmem:[#allocation2 + $0x48] sm:$0xff]
  %v110 = vld [vmem:[#allocation2 + $0x50] sm:$0xff]
  %v111 = vld [vmem:[#allocation2 + $0x58] sm:$0xff]
  %v112 = vld [vmem:[#allocation2 + $0x60] sm:$0xff]
  %v113 = vld [vmem:[#allocation2 + $0x68] sm:$0xff]
  %v114 = vld [vmem:[#allocation2 + $0x70] sm:$0xff]
  %v115 = vld [vmem:[#allocation2 + $0x78] sm:$0xff]
  %v116 = vld [vmem:[%s1] sm:$0xf]
  %v117 = vld [vmem:[%s1 + $0x4] sm:$0xf]
  %v118 = vld [vmem:[%s1 + $0x8] sm:$0xf]
  %v119 = vld [vmem:[%s1 + $0xc] sm:$0xf]
  %v120 = vld [vmem:[%s1 + $0x10] sm:$0xf]
  %v121 = vld [vmem:[%s1 + $0x14] sm:$0xf]
  %v122 = vld [vmem:[%s1 + $0x18] sm:$0xf]
  %v123 = vld [vmem:[%s1 + $0x1c] sm:$0xf]
  %v124 = vld [vmem:[%s1 + $0x20] sm:$0xf]
  %v125 = vld [vmem:[%s1 + $0x24] sm:$0xf]
  %v126 = vld [vmem:[%s1 + $0x28] sm:$0xf]
  %v127 = vld [vmem:[%s1 + $0x2c] sm:$0xf]
  %v128 = vld [vmem:[%s1 + $0x30] sm:$0xf]
  %v129 = vld [vmem:[%s1 + $0x34] sm:$0xf]
  %v130 = vld [vmem:[%s1 + $0x38] sm:$0xf]
  %v131 = vld [vmem:[%s1 + $0x3c] sm:$0xf]
  %v148 = vunpack.c.l.b16 %v84
  %v149 = vunpack.c.l.b16 %v85
  %v150 = vunpack.c.l.b16 %v86
  %v151 = vunpack.c.l.b16 %v87
  %v152 = vunpack.c.l.b16 %v88
  %v153 = vunpack.c.l.b16 %v89
  %v154 = vunpack.c.l.b16 %v90
  %v155 = vunpack.c.l.b16 %v91
  %v156 = vunpack.c.l.b16 %v92
  %v157 = vunpack.c.l.b16 %v93
  %v158 = vunpack.c.l.b16 %v94
  %v159 = vunpack.c.l.b16 %v95
  %v160 = vunpack.c.l.b16 %v96
  %v161 = vunpack.c.l.b16 %v97
  %v162 = vunpack.c.l.b16 %v98
  %v163 = vunpack.c.l.b16 %v99
  %v164 = vpack.c.b16 %v149, %v148
  %v165 = vpack.c.b16 %v151, %v150
  %v166 = vpack.c.b16 %v153, %v152
  %v167 = vpack.c.b16 %v155, %v154
  %v168 = vpack.c.b16 %v157, %v156
  %v169 = vpack.c.b16 %v159, %v158
  %v170 = vpack.c.b16 %v161, %v160
  %v171 = vpack.c.b16 %v163, %v162
  %v196 = vunpack.c.l.b16 %v116
  %v197 = vunpack.c.l.b16 %v117
  %v198 = vunpack.c.l.b16 %v118
  %v199 = vunpack.c.l.b16 %v119
  %v200 = vunpack.c.l.b16 %v120
  %v201 = vunpack.c.l.b16 %v121
  %v202 = vunpack.c.l.b16 %v122
  %v203 = vunpack.c.l.b16 %v123
  %v204 = vunpack.c.l.b16 %v124
  %v205 = vunpack.c.l.b16 %v125
  %v206 = vunpack.c.l.b16 %v126
  %v207 = vunpack.c.l.b16 %v127
  %v208 = vunpack.c.l.b16 %v128
  %v209 = vunpack.c.l.b16 %v129
  %v210 = vunpack.c.l.b16 %v130
  %v211 = vunpack.c.l.b16 %v131
  %v212 = vpack.c.b16 %v197, %v196
  %v213 = vpack.c.b16 %v199, %v198
  %v214 = vpack.c.b16 %v201, %v200
  %v215 = vpack.c.b16 %v203, %v202
  %v216 = vpack.c.b16 %v205, %v204
  %v217 = vpack.c.b16 %v207, %v206
  %v218 = vpack.c.b16 %v209, %v208
  %v219 = vpack.c.b16 %v211, %v210
  %228 = vmatprep.subr.bf16.mxu0 0
  %229 = vmatpush1.bf16.msra.mxu0 %v219
  %230 = vmatprep.subr.bf16.mxu0 0
  %231 = vmatpush1.bf16.msra.mxu0 %v218
  %232 = vmatprep.subr.bf16.mxu0 0
  %233 = vmatpush1.bf16.msra.mxu0 %v217
  %234 = vmatprep.subr.bf16.mxu0 0
  %235 = vmatpush1.bf16.msra.mxu0 %v216
  %236 = vmatprep.subr.bf16.mxu0 0
  %237 = vmatpush1.bf16.msra.mxu0 %v215
  %238 = vmatprep.subr.bf16.mxu0 0
  %239 = vmatpush1.bf16.msra.mxu0 %v214
  %240 = vmatprep.subr.bf16.mxu0 0
  %241 = vmatpush1.bf16.msra.mxu0 %v213
  %242 = vmatprep.subr.bf16.mxu0 0
  %243 = vmatpush1.bf16.msra.mxu0 %v212
  %244 = vmatprep.subr.bf16.mxu0 0
  %245 = vmatpush2.bf16.msra.mxu0 0
  %246 = vmatprep.subr.bf16.mxu0 0
  %247 = vmatpush2.bf16.msra.mxu0 0
  %248 = vmatprep.subr.bf16.mxu0 0
  %249 = vmatpush2.bf16.msra.mxu0 0
  %250 = vmatprep.subr.bf16.mxu0 0
  %251 = vmatpush2.bf16.msra.mxu0 0
  %252 = vmatprep.subr.bf16.mxu0 0
  %253 = vmatpush2.bf16.msra.mxu0 0
  %254 = vmatprep.subr.bf16.mxu0 0
  %255 = vmatpush2.bf16.msra.mxu0 0
  %256 = vmatprep.subr.bf16.mxu0 0
  %257 = vmatpush2.bf16.msra.mxu0 0
  %258 = vmatprep.subr.bf16.mxu0 0
  %259 = vmatpush2.bf16.msra.mxu0 0
  %260 = vmatprep.mubr.bf16.mxu0 0
  %261 = vmatmul.mubr.bf16.gmra.mxu0 %v164
  %v262 = vpop.f32.mrf.mxu0
  %v263 = vadd.f32 0.0, %v262
  %v264 = vpop.f32.mrf.mxu0
  %v265 = vpop.f32.mrf.mxu0
  %v266 = vadd.f32 0.0, %v265
  %v267 = vpop.f32.mrf.mxu0
  %268 = vmatprep.mubr.bf16.mxu0 0
  %269 = vmatmul.mubr.bf16.gmra.mxu0 %v165
  %v270 = vpop.f32.mrf.mxu0
  %v271 = vadd.f32 0.0, %v270
  %v272 = vpop.f32.mrf.mxu0
  %v273 = vpop.f32.mrf.mxu0
  %v274 = vadd.f32 0.0, %v273
  %v275 = vpop.f32.mrf.mxu0
  %276 = vmatprep.mubr.bf16.mxu0 0
  %277 = vmatmul.mubr.bf16.gmra.mxu0 %v166
  %v278 = vpop.f32.mrf.mxu0
  %v279 = vadd.f32 0.0, %v278
  %v280 = vpop.f32.mrf.mxu0
  %v281 = vpop.f32.mrf.mxu0
  %v282 = vadd.f32 0.0, %v281
  %v283 = vpop.f32.mrf.mxu0
  %284 = vmatprep.mubr.bf16.mxu0 0
  %285 = vmatmul.mubr.bf16.gmra.mxu0 %v167
  %v286 = vpop.f32.mrf.mxu0
  %v287 = vadd.f32 0.0, %v286
  %v288 = vpop.f32.mrf.mxu0
  %v289 = vpop.f32.mrf.mxu0
  %v290 = vadd.f32 0.0, %v289
  %v291 = vpop.f32.mrf.mxu0
  %292 = vmatprep.mubr.bf16.mxu0 0
  %293 = vmatmul.mubr.bf16.gmra.mxu0 %v168
  %v294 = vpop.f32.mrf.mxu0
  %v295 = vadd.f32 0.0, %v294
  %v296 = vpop.f32.mrf.mxu0
  %v297 = vpop.f32.mrf.mxu0
  %v298 = vadd.f32 0.0, %v297
  %v299 = vpop.f32.mrf.mxu0
  %300 = vmatprep.mubr.bf16.mxu0 0
  %301 = vmatmul.mubr.bf16.gmra.mxu0 %v169
  %v302 = vpop.f32.mrf.mxu0
  %v303 = vadd.f32 0.0, %v302
  %v304 = vpop.f32.mrf.mxu0
  %v305 = vpop.f32.mrf.mxu0
  %v306 = vadd.f32 0.0, %v305
  %v307 = vpop.f32.mrf.mxu0
  %308 = vmatprep.mubr.bf16.mxu0 0
  %309 = vmatmul.mubr.bf16.gmra.mxu0 %v170
  %v310 = vpop.f32.mrf.mxu0
  %v311 = vadd.f32 0.0, %v310
  %v312 = vpop.f32.mrf.mxu0
  %v313 = vpop.f32.mrf.mxu0
  %v314 = vadd.f32 0.0, %v313
  %v315 = vpop.f32.mrf.mxu0
  %316 = vmatprep.mubr.bf16.mxu0 0
  %317 = vmatmul.mubr.bf16.gmra.mxu0 %v171
  %v318 = vpop.f32.mrf.mxu0
  %v319 = vadd.f32 0.0, %v318
  %v320 = vpop.f32.mrf.mxu0
  %v321 = vpop.f32.mrf.mxu0
  %v322 = vadd.f32 0.0, %v321
  %v323 = vpop.f32.mrf.mxu0
  %324 = vdwg.mxu0
  %v325 = vadd.f32 %v100, %v263
  %v326 = vadd.f32 %v101, %v266
  %v327 = vadd.f32 %v102, %v271
  %v328 = vadd.f32 %v103, %v274
  %v329 = vadd.f32 %v104, %v279
  %v330 = vadd.f32 %v105, %v282
  %v331 = vadd.f32 %v106, %v287
  %v332 = vadd.f32 %v107, %v290
  %v333 = vadd.f32 %v108, %v295
  %v334 = vadd.f32 %v109, %v298
  %v335 = vadd.f32 %v110, %v303
  %v336 = vadd.f32 %v111, %v306
  %v337 = vadd.f32 %v112, %v311
  %v338 = vadd.f32 %v113, %v314
  %v339 = vadd.f32 %v114, %v319
  %v340 = vadd.f32 %v115, %v322
  %341 = vst [vmem:[#allocation2] sm:$0xff] %v325
  %342 = vst [vmem:[#allocation2 + $0x8] sm:$0xff] %v326
  %343 = vst [vmem:[#allocation2 + $0x10] sm:$0xff] %v327
  %344 = vst [vmem:[#allocation2 + $0x18] sm:$0xff] %v328
  %345 = vst [vmem:[#allocation2 + $0x20] sm:$0xff] %v329
  %346 = vst [vmem:[#allocation2 + $0x28] sm:$0xff] %v330
  %347 = vst [vmem:[#allocation2 + $0x30] sm:$0xff] %v331
  %348 = vst [vmem:[#allocation2 + $0x38] sm:$0xff] %v332
  %349 = vst [vmem:[#allocation2 + $0x40] sm:$0xff] %v333
  %350 = vst [vmem:[#allocation2 + $0x48] sm:$0xff] %v334
  %351 = vst [vmem:[#allocation2 + $0x50] sm:$0xff] %v335
  %352 = vst [vmem:[#allocation2 + $0x58] sm:$0xff] %v336
  %353 = vst [vmem:[#allocation2 + $0x60] sm:$0xff] %v337
  %354 = vst [vmem:[#allocation2 + $0x68] sm:$0xff] %v338
  %355 = vst [vmem:[#allocation2 + $0x70] sm:$0xff] %v339
  %356 = vst [vmem:[#allocation2 + $0x78] sm:$0xff] %v340
  // Predicated region
  $region18: #{_lambda_.40} parent=0 // pred_check
    %p357 = pneg %p16
  $region19: #{_lambda_.40} parent=0 // pred_check_branch
    %359 = sbr.rel (%p357) target = $region21
  $region20: #{_lambda_.40} parent=0 // pred_region
    %v360 = vld [vmem:[#allocation2] sm:$0xff]
    %v361 = vld [vmem:[#allocation2 + $0x8] sm:$0xff]
    %v362 = vld [vmem:[#allocation2 + $0x10] sm:$0xff]
    %v363 = vld [vmem:[#allocation2 + $0x18] sm:$0xff]
    %v364 = vld [vmem:[#allocation2 + $0x20] sm:$0xff]
    %v365 = vld [vmem:[#allocation2 + $0x28] sm:$0xff]
    %v366 = vld [vmem:[#allocation2 + $0x30] sm:$0xff]
    %v367 = vld [vmem:[#allocation2 + $0x38] sm:$0xff]
    %v368 = vld [vmem:[#allocation2 + $0x40] sm:$0xff]
    %v369 = vld [vmem:[#allocation2 + $0x48] sm:$0xff]
    %v370 = vld [vmem:[#allocation2 + $0x50] sm:$0xff]
    %v371 = vld [vmem:[#allocation2 + $0x58] sm:$0xff]
    %v372 = vld [vmem:[#allocation2 + $0x60] sm:$0xff]
    %v373 = vld [vmem:[#allocation2 + $0x68] sm:$0xff]
    %v374 = vld [vmem:[#allocation2 + $0x70] sm:$0xff]
    %v375 = vld [vmem:[#allocation2 + $0x78] sm:$0xff]
    %v376 = vld [vmem:[%s2] sm:$0x1]
    %v378 = vlaneseq
    %v379 = vshrl.u32 %v378, 7
    %v380 = vsub.s32 0, %v379
    %v381 = vrot.slane %v376, %v380
    %v383 = vadd.f32 %v360, %v381
    %v384 = vadd.f32 %v361, %v381
    %v385 = vadd.f32 %v362, %v381
    %v386 = vadd.f32 %v363, %v381
    %v387 = vadd.f32 %v364, %v381
    %v388 = vadd.f32 %v365, %v381
    %v389 = vadd.f32 %v366, %v381
    %v390 = vadd.f32 %v367, %v381
    %v391 = vadd.f32 %v368, %v381
    %v392 = vadd.f32 %v369, %v381
    %v393 = vadd.f32 %v370, %v381
    %v394 = vadd.f32 %v371, %v381
    %v395 = vadd.f32 %v372, %v381
    %v396 = vadd.f32 %v373, %v381
    %v397 = vadd.f32 %v374, %v381
    %v398 = vadd.f32 %v375, %v381
    %399 = vst [vmem:[%s3] sm:$0xff] %v383
    %400 = vst [vmem:[%s3 + $0x8] sm:$0xff] %v384
    %401 = vst [vmem:[%s3 + $0x10] sm:$0xff] %v385
    %402 = vst [vmem:[%s3 + $0x18] sm:$0xff] %v386
    %403 = vst [vmem:[%s3 + $0x20] sm:$0xff] %v387
    %404 = vst [vmem:[%s3 + $0x28] sm:$0xff] %v388
    %405 = vst [vmem:[%s3 + $0x30] sm:$0xff] %v389
    %406 = vst [vmem:[%s3 + $0x38] sm:$0xff] %v390
    %407 = vst [vmem:[%s3 + $0x40] sm:$0xff] %v391
    %408 = vst [vmem:[%s3 + $0x48] sm:$0xff] %v392
    %409 = vst [vmem:[%s3 + $0x50] sm:$0xff] %v393
    %410 = vst [vmem:[%s3 + $0x58] sm:$0xff] %v394
    %411 = vst [vmem:[%s3 + $0x60] sm:$0xff] %v395
    %412 = vst [vmem:[%s3 + $0x68] sm:$0xff] %v396
    %413 = vst [vmem:[%s3 + $0x70] sm:$0xff] %v397
    %414 = vst [vmem:[%s3 + $0x78] sm:$0xff] %v398
  $region21: #{_lambda_.40} parent=0 // pred_fallthru
    _
  // Predicated region
  $region22: #{_lambda_.40} parent=0 // pred_check
    _
  $region23: #{_lambda_.40} parent=0 // pred_check_branch
    %416 = sbr.rel (0) target = $region25
  $region24: #{_lambda_.40} parent=0 // pred_region
    _
  $region25: #{_lambda_.40} parent=0 // pred_fallthru
    _
  // Predicated region
  $region26: #{_lambda_.40} parent=0 // pred_check
    _
  $region27: #{_lambda_.40} parent=0 // pred_check_branch
    %418 = sbr.rel (0) target = $region29
  $region28: #{_lambda_.40} parent=0 // pred_region
    _
  $region29: #{_lambda_.40} parent=0 // pred_fallthru
    _

// kernel: _lambda_.42
$region0: #{_lambda_.42}
  #allocation0 [shape = 'u32[]', space=smem, size = 0x4, offset = 0x4, fixed_abs, tag = 'smem constant byte address 0x4 - core index']
  #allocation1 [shape = 'u32[144,128]{1,0:T(1,128)}', space=vmem, size = 0x12000, scoped, tag = 'internal scratch']
  %s0 = inlined_call_operand.vmem [shape: f32[2,64,8], index: 0, kind: input, shape index: {}]
  %s1 = inlined_call_operand.vmem [shape: f32[2,2,8], index: 1, kind: input, shape index: {}]
  %s2 = inlined_call_operand.vmem [shape: f32[2,64,8], index: 2, kind: output, shape index: {}]
  %s3 = sld [smem:[#allocation0]]
  $region41: #{_lambda_.42} parent=0
    _
  %s5 = ssub.s32 1, %s3
  %s6 = scalar_select 0, %s5, %s3
  loop: start=0, step=1, limit=4
  $region2: #{_lambda_.42} parent=0 // loop_pre_header
    _
  $region3: #{_lambda_.42} parent=0 // loop_header
    %s8 = sphi 0, %s12
    %p9 = scmp.ge.s32.totalorder %s8, 4
    %s15 = sphi 0, %s27
    %s16 = sphi 0, %s23
    %s17 = sphi 0, %s15
    %s18 = sphi 0, %s16
    %s19 = sphi 0, %s17
    %s20 = sphi 0, %s18
    %s32 = sphi 0, %s34
    %s35 = sphi 0, %s32
    %s36 = sphi 0, %s35
    %s52 = sphi 0, %s36
    %s58 = sphi 0, %s60
    %s61 = sphi 0, %s58
    %s62 = sphi 0, %s61
    %s78 = sphi 0, %s62
    %s86 = sphi 0, %s88
    %s89 = sphi 0, %s86
    %s90 = sphi 0, %s89
    %s106 = sphi 0, %s90
  $region4: #{_lambda_.42} parent=0 // loop_header_branch
    %11 = sbr.rel (%p9) target = $region8
  $region5: #{_lambda_.42} parent=0 // loop_body
    %s13 = ssub.s32 %s8, 1
    %s14 = ssub.s32 %s8, 2
    %s21 = sadd.s32 1, %s16
    %p22 = scmp.ge.s32.totalorder %s21, 1
    %s23 = scalar_select %p22, 0, %s21
    %s24 = sadd.s32 1, %s15
    %s25 = scalar_select %p22, %s24, %s15
    %p26 = scmp.ge.s32.totalorder %s25, 2
    %s27 = scalar_select %p26, 0, %s25
    %s28 = ssub.s32 %s15, %s27
    %s29 = ssub.s32 %s16, %s23
    %s30 = sor.u32 %s28, %s29
    %p31 = scmp.eq.s32.totalorder %s30, 0
    %s33 = sadd.s32 %s32, 1
    %s34 = scalar_select %p31, %s32, %s33
    %p37 = pneg %p31
    %p38 = scmp.eq.s32.totalorder %s8, 1
    %p39 = por %p37, %p38
    %p40 = scmp.ne.s32.totalorder %s32, %s35
    %p41 = scmp.eq.s32.totalorder %s8, 0
    %p42 = por %p40, %p41
    %p43 = scmp.ne.s32.totalorder %s32, %s35
    %p44 = scmp.eq.s32.totalorder %s13, 1
    %p45 = por %p43, %p44
    %p46 = scmp.ne.s32.totalorder %s35, %s36
    %p47 = scmp.eq.s32.totalorder %s13, 0
    %p48 = por %p46, %p47
    %p49 = scmp.ne.s32.totalorder %s35, %s36
    %p50 = scmp.eq.s32.totalorder %s14, 1
    %p51 = por %p49, %p50
    %p53 = scmp.ne.s32.totalorder %s36, %s52
    %p54 = scmp.eq.s32.totalorder %s14, 0
    %p55 = por %p53, %p54
    %s56 = ssub.s32 %s15, %s27
    %p57 = scmp.eq.s32.totalorder %s56, 0
    %s59 = sadd.s32 %s58, 1
    %s60 = scalar_select %p57, %s58, %s59
    %p63 = pneg %p57
    %p64 = scmp.eq.s32.totalorder %s8, 1
    %p65 = por %p63, %p64
    %p66 = scmp.ne.s32.totalorder %s58, %s61
    %p67 = scmp.eq.s32.totalorder %s8, 0
    %p68 = por %p66, %p67
    %p69 = scmp.ne.s32.totalorder %s58, %s61
    %p70 = scmp.eq.s32.totalorder %s13, 1
    %p71 = por %p69, %p70
    %p72 = scmp.ne.s32.totalorder %s61, %s62
    %p73 = scmp.eq.s32.totalorder %s13, 0
    %p74 = por %p72, %p73
    %p75 = scmp.ne.s32.totalorder %s61, %s62
    %p76 = scmp.eq.s32.totalorder %s14, 1
    %p77 = por %p75, %p76
    %p79 = scmp.ne.s32.totalorder %s62, %s78
    %p80 = scmp.eq.s32.totalorder %s14, 0
    %p81 = por %p79, %p80
    %s82 = ssub.s32 %s15, %s27
    %s83 = ssub.s32 %s16, %s23
    %s84 = sor.u32 %s82, %s83
    %p85 = scmp.eq.s32.totalorder %s84, 0
    %s87 = sadd.s32 %s86, 1
    %s88 = scalar_select %p85, %s86, %s87
    %p91 = pneg %p85
    %p92 = scmp.eq.s32.totalorder %s8, 1
    %p93 = por %p91, %p92
    %p94 = scmp.ne.s32.totalorder %s86, %s89
    %p95 = scmp.eq.s32.totalorder %s8, 0
    %p96 = por %p94, %p95
    %p97 = scmp.ne.s32.totalorder %s86, %s89
    %p98 = scmp.eq.s32.totalorder %s13, 1
    %p99 = por %p97, %p98
    %p100 = scmp.ne.s32.totalorder %s89, %s90
    %p101 = scmp.eq.s32.totalorder %s13, 0
    %p102 = por %p100, %p101
    %p103 = scmp.ne.s32.totalorder %s89, %s90
    %p104 = scmp.eq.s32.totalorder %s14, 1
    %p105 = por %p103, %p104
    %p107 = scmp.ne.s32.totalorder %s90, %s106
    %p108 = scmp.eq.s32.totalorder %s14, 0
    %p109 = por %p107, %p108
    %p110 = scmp.le.s32.totalorder 1, %s8
    %p111 = scmp.lt.s32.totalorder %s8, 3
    %p112 = pnand %p110, %p111
    %p113 = pneg %p112
    // Predicated region
    $region9: #{_lambda_.42} parent=5 // pred_check
      _
    $region10: #{_lambda_.42} parent=5 // pred_check_branch
      %115 = sbr.rel (%p112) target = $region12
    $region11: #{_lambda_.42} parent=5 // pred_region
      %s116 = ssub.s32 %s8, 1
    $region12: #{_lambda_.42} parent=5 // pred_fallthru
      _
    %p117 = scmp.lt.s32.totalorder %s8, 2
    // Predicated region
    $region13: #{_lambda_.42} parent=5 // pred_check
      %p118 = pneg %p117
    $region14: #{_lambda_.42} parent=5 // pred_check_branch
      %120 = sbr.rel (%p118) target = $region16
    $region15: #{_lambda_.42} parent=5 // pred_region
      // Predicated region
      $region17: #{_lambda_.42} parent=15 // pred_check
        %p121 = pneg %p42
      $region18: #{_lambda_.42} parent=15 // pred_check_branch
        %123 = sbr.rel (%p121) target = $region20
      $region19: #{_lambda_.42} parent=15 // pred_region
        %s124 = smul.u32 8, %s16
        %p125 = scmp.lt.s32.totalorder %s15, 1
        %s126 = scalar_select %p125, %s15, 1
        %p127 = scmp.lt.s32.totalorder %s124, 7
        %s128 = scalar_select %p127, %s124, 7
        %s129 = smul.addr %s126, 8
        %s130 = sadd.s32 %s128, %s129
        %s131 = smul.addr %s130, 8
        %s132 = scalar_lea.vmem %s0, %s131
        %s133 = smul.u32 8, %s16
      $region20: #{_lambda_.42} parent=15 // pred_fallthru
        _
      // Predicated region
      $region21: #{_lambda_.42} parent=15 // pred_check
        %p134 = pneg %p68
      $region22: #{_lambda_.42} parent=15 // pred_check_branch
        %136 = sbr.rel (%p134) target = $region24
      $region23: #{_lambda_.42} parent=15 // pred_region
        %p137 = scmp.lt.s32.totalorder %s15, 1
        %s138 = scalar_select %p137, %s15, 1
        %s139 = smul.addr %s138, 2
        %s140 = scalar_lea.vmem %s1, %s139
      $region24: #{_lambda_.42} parent=15 // pred_fallthru
        _
    $region16: #{_lambda_.42} parent=5 // pred_fallthru
      _
    %p141 = scmp.le.s32.totalorder 1, %s8
    %p142 = scmp.lt.s32.totalorder %s8, 3
    %p143 = pnand %p141, %p142
    %p144 = pneg %p143
    // Predicated region
    $region25: #{_lambda_.42} parent=5 // pred_check
      _
    $region26: #{_lambda_.42} parent=5 // pred_check_branch
      %146 = sbr.rel (%p143) target = $region28
    $region27: #{_lambda_.42} parent=5 // pred_region
      %s147 = ssub.s32 %s8, 1
      %s148 = smul.u32 8, %s18
      %p149 = scmp.lt.s32.totalorder %s17, 1
      %s150 = scalar_select %p149, %s17, 1
      %p151 = scmp.lt.s32.totalorder %s148, 7
      %s152 = scalar_select %p151, %s148, 7
      %s153 = smul.addr %s150, 8
      %s154 = sadd.s32 %s152, %s153
      %s155 = smul.addr %s154, 8
      %s156 = scalar_lea.vmem %s0, %s155
      %p157 = pneg %p48
      %p158 = pneg %p45
      %p159 = scmp.lt.s32.totalorder %s17, 1
      %s160 = scalar_select %p159, %s17, 1
      %s161 = smul.addr %s160, 2
      %s162 = scalar_lea.vmem %s1, %s161
      %p163 = pneg %p74
      %p164 = pneg %p71
      %p165 = pneg %p102
      %p166 = pneg %p99
      %s167 = smul.u32 8, %s18
      %p168 = scmp.lt.s32.totalorder %s17, 1
      %s169 = scalar_select %p168, %s17, 1
      %p170 = scmp.lt.s32.totalorder %s167, 7
      %s171 = scalar_select %p170, %s167, 7
      %s172 = smul.addr %s169, 8
      %s173 = sadd.s32 %s171, %s172
      %s174 = smul.addr %s173, 8
      %s175 = scalar_lea.vmem %s2, %s174
      %s176 = smul.u32 8, %s18
      %p177 = scmp.lt.s32.totalorder %s17, 1
      %s178 = scalar_select %p177, %s17, 1
      %p179 = scmp.lt.s32.totalorder %s176, 7
      %s180 = scalar_select %p179, %s176, 7
      %s181 = smul.addr %s178, 8
      %s182 = sadd.s32 %s180, %s181
      %s183 = smul.addr %s182, 8
      %s184 = scalar_lea.vmem %s0, %s183
      %s185 = smul.u32 8, %s18
      %p186 = scmp.lt.s32.totalorder %s17, 1
      %s187 = scalar_select %p186, %s17, 1
      %s188 = smul.addr %s187, 2
      %s189 = scalar_lea.vmem %s1, %s188
      %s190 = smul.u32 8, %s18
      %p191 = scmp.lt.s32.totalorder %s17, 1
      %s192 = scalar_select %p191, %s17, 1
      %p193 = scmp.lt.s32.totalorder %s190, 7
      %s194 = scalar_select %p193, %s190, 7
      %s195 = smul.addr %s192, 8
      %s196 = sadd.s32 %s194, %s195
      %s197 = smul.addr %s196, 8
      %s198 = scalar_lea.vmem %s2, %s197
      %s199 = smul.u32 8, %s18
      %v200 = vld [vmem:[%s184] sm:$0xff]
      %v201 = vld [vmem:[%s184 + $0x8] sm:$0xff]
      %v202 = vld [vmem:[%s184 + $0x10] sm:$0xff]
      %v203 = vld [vmem:[%s184 + $0x18] sm:$0xff]
      %v204 = vld [vmem:[%s184 + $0x20] sm:$0xff]
      %v205 = vld [vmem:[%s184 + $0x28] sm:$0xff]
      %v206 = vld [vmem:[%s184 + $0x30] sm:$0xff]
      %v207 = vld [vmem:[%s184 + $0x38] sm:$0xff]
      %v208 = vld [vmem:[%s189] sm:$0x1]
      %v209 = vlaneseq
      %v210 = vshrl.u32 %v209, 7
      %v211 = vsub.s32 0, %v210
      %v212 = vrot.slane %v208, %v211
      %v213 = vsub.f32 %v200, %v212
      %v214 = vsub.f32 %v201, %v212
      %v215 = vsub.f32 %v202, %v212
      %v216 = vsub.f32 %v203, %v212
      %v217 = vsub.f32 %v204, %v212
      %v218 = vsub.f32 %v205, %v212
      %v219 = vsub.f32 %v206, %v212
      %v220 = vsub.f32 %v207, %v212
      %v221 = vld [vmem:[%s189 + $0x1] sm:$0x1]
      %v222 = vlaneseq
      %v223 = vshrl.u32 %v222, 7
      %v224 = vsub.s32 0, %v223
      %v225 = vrot.slane %v221, %v224
      %v226 = vmul.f32 %v213, %v225
      %v227 = vmul.f32 %v214, %v225
      %v228 = vmul.f32 %v215, %v225
      %v229 = vmul.f32 %v216, %v225
      %v230 = vmul.f32 %v217, %v225
      %v231 = vmul.f32 %v218, %v225
      %v232 = vmul.f32 %v219, %v225
      %v233 = vmul.f32 %v220, %v225
      %vm234 = vcmask 64512
      %235 = vst.msk [vmem:[%s198] sm:$0xff] %vm234, %v226
      %236 = vst.msk [vmem:[%s198 + $0x8] sm:$0xff] %vm234, %v227
      %237 = vst.msk [vmem:[%s198 + $0x10] sm:$0xff] %vm234, %v228
      %238 = vst.msk [vmem:[%s198 + $0x18] sm:$0xff] %vm234, %v229
      %239 = vst.msk [vmem:[%s198 + $0x20] sm:$0xff] %vm234, %v230
      %240 = vst.msk [vmem:[%s198 + $0x28] sm:$0xff] %vm234, %v231
      %241 = vst.msk [vmem:[%s198 + $0x30] sm:$0xff] %vm234, %v232
      %242 = vst.msk [vmem:[%s198 + $0x38] sm:$0xff] %vm234, %v233
      %s243 = smul.u32 8, %s18
      %p244 = scmp.lt.s32.totalorder %s17, 1
      %s245 = scalar_select %p244, %s17, 1
      %p246 = scmp.lt.s32.totalorder %s243, 7
      %s247 = scalar_select %p246, %s243, 7
      %s248 = smul.addr %s245, 8
      %s249 = sadd.s32 %s247, %s248
      %s250 = smul.addr %s249, 8
      %s251 = scalar_lea.vmem %s2, %s250
      // Predicated region
      $region29: #{_lambda_.42} parent=27 // pred_check
        %p252 = pneg %p99
      $region30: #{_lambda_.42} parent=27 // pred_check_branch
        %254 = sbr.rel (%p252) target = $region32
      $region31: #{_lambda_.42} parent=27 // pred_region
        %s255 = smul.u32 8, %s18
      $region32: #{_lambda_.42} parent=27 // pred_fallthru
        _
    $region28: #{_lambda_.42} parent=5 // pred_fallthru
      _
    %p256 = scmp.le.s32.totalorder 2, %s8
    // Predicated region
    $region33: #{_lambda_.42} parent=5 // pred_check
      %p257 = pneg %p256
    $region34: #{_lambda_.42} parent=5 // pred_check_branch
      %259 = sbr.rel (%p257) target = $region36
    $region35: #{_lambda_.42} parent=5 // pred_region
      %s260 = ssub.s32 %s8, 2
      // Predicated region
      $region37: #{_lambda_.42} parent=35 // pred_check
        %p261 = pneg %p105
      $region38: #{_lambda_.42} parent=35 // pred_check_branch
        %263 = sbr.rel (%p261) target = $region40
      $region39: #{_lambda_.42} parent=35 // pred_region
        %s264 = smul.u32 8, %s20
        %p265 = scmp.lt.s32.totalorder %s19, 1
        %s266 = scalar_select %p265, %s19, 1
        %p267 = scmp.lt.s32.totalorder %s264, 7
        %s268 = scalar_select %p267, %s264, 7
        %s269 = smul.addr %s266, 8
        %s270 = sadd.s32 %s268, %s269
        %s271 = smul.addr %s270, 8
        %s272 = scalar_lea.vmem %s2, %s271
      $region40: #{_lambda_.42} parent=35 // pred_fallthru
        _
    $region36: #{_lambda_.42} parent=5 // pred_fallthru
      _
  $region6: #{_lambda_.42} parent=0 // loop_footer
    %s12 = sadd.s32 1, %s8
  $region7: #{_lambda_.42} parent=0 // loop_footer_branch
    %7 = sbr.rel target = $region3
  $region8: #{_lambda_.42} parent=0 // loop_exit
    _

// kernel: _lambda_.44
$region0: #{_lambda_.44}
  #allocation0 [shape = 'u32[]', space=smem, size = 0x4, offset = 0x4, fixed_abs, tag = 'smem constant byte address 0x4 - core index']
  #allocation1 [shape = 'u32[144,128]{1,0:T(1,128)}', space=vmem, size = 0x12000, scoped, tag = 'internal scratch']
  %s0 = inlined_call_operand.vmem [shape: f32[2,16,16], index: 0, kind: input, shape index: {}]
  %s1 = inlined_call_operand.vmem [shape: f32[2,2,16], index: 1, kind: output, shape index: {}]
  %s2 = sld [smem:[#allocation0]]
  $region45: #{_lambda_.44} parent=0
    _
  %s4 = ssub.s32 1, %s2
  %s5 = scalar_select 0, %s4, %s2
  loop: start=0, step=1, limit=4
  $region2: #{_lambda_.44} parent=0 // loop_pre_header
    _
  $region3: #{_lambda_.44} parent=0 // loop_header
    %s7 = sphi 0, %s11
    %p8 = scmp.ge.s32.totalorder %s7, 4
    %s14 = sphi 0, %s26
    %s15 = sphi 0, %s22
    %s16 = sphi 0, %s14
    %s17 = sphi 0, %s15
    %s18 = sphi 0, %s16
    %s19 = sphi 0, %s17
    %s31 = sphi 0, %s33
    %s34 = sphi 0, %s31
    %s35 = sphi 0, %s34
    %s51 = sphi 0, %s35
    %s57 = sphi 0, %s59
    %s60 = sphi 0, %s57
    %s61 = sphi 0, %s60
    %s77 = sphi 0, %s61
  $region4: #{_lambda_.44} parent=0 // loop_header_branch
    %10 = sbr.rel (%p8) target = $region8
  $region5: #{_lambda_.44} parent=0 // loop_body
    %s12 = ssub.s32 %s7, 1
    %s13 = ssub.s32 %s7, 2
    %s20 = sadd.s32 1, %s15
    %p21 = scmp.ge.s32.totalorder %s20, 1
    %s22 = scalar_select %p21, 0, %s20
    %s23 = sadd.s32 1, %s14
    %s24 = scalar_select %p21, %s23, %s14
    %p25 = scmp.ge.s32.totalorder %s24, 2
    %s26 = scalar_select %p25, 0, %s24
    %s27 = ssub.s32 %s14, %s26
    %s28 = ssub.s32 %s15, %s22
    %s29 = sor.u32 %s27, %s28
    %p30 = scmp.eq.s32.totalorder %s29, 0
    %s32 = sadd.s32 %s31, 1
    %s33 = scalar_select %p30, %s31, %s32
    %p36 = pneg %p30
    %p37 = scmp.eq.s32.totalorder %s7, 1
    %p38 = por %p36, %p37
    %p39 = scmp.ne.s32.totalorder %s31, %s34
    %p40 = scmp.eq.s32.totalorder %s7, 0
    %p41 = por %p39, %p40
    %p42 = scmp.ne.s32.totalorder %s31, %s34
    %p43 = scmp.eq.s32.totalorder %s12, 1
    %p44 = por %p42, %p43
    %p45 = scmp.ne.s32.totalorder %s34, %s35
    %p46 = scmp.eq.s32.totalorder %s12, 0
    %p47 = por %p45, %p46
    %p48 = scmp.ne.s32.totalorder %s34, %s35
    %p49 = scmp.eq.s32.totalorder %s13, 1
    %p50 = por %p48, %p49
    %p52 = scmp.ne.s32.totalorder %s35, %s51
    %p53 = scmp.eq.s32.totalorder %s13, 0
    %p54 = por %p52, %p53
    %s55 = ssub.s32 %s14, %s26
    %p56 = scmp.eq.s32.totalorder %s55, 0
    %s58 = sadd.s32 %s57, 1
    %s59 = scalar_select %p56, %s57, %s58
    %p62 = pneg %p56
    %p63 = scmp.eq.s32.totalorder %s7, 1
    %p64 = por %p62, %p63
    %p65 = scmp.ne.s32.totalorder %s57, %s60
    %p66 = scmp.eq.s32.totalorder %s7, 0
    %p67 = por %p65, %p66
    %p68 = scmp.ne.s32.totalorder %s57, %s60
    %p69 = scmp.eq.s32.totalorder %s12, 1
    %p70 = por %p68, %p69
    %p71 = scmp.ne.s32.totalorder %s60, %s61
    %p72 = scmp.eq.s32.totalorder %s12, 0
    %p73 = por %p71, %p72
    %p74 = scmp.ne.s32.totalorder %s60, %s61
    %p75 = scmp.eq.s32.totalorder %s13, 1
    %p76 = por %p74, %p75
    %p78 = scmp.ne.s32.totalorder %s61, %s77
    %p79 = scmp.eq.s32.totalorder %s13, 0
    %p80 = por %p78, %p79
    %p81 = scmp.le.s32.totalorder 1, %s7
    %p82 = scmp.lt.s32.totalorder %s7, 3
    %p83 = pnand %p81, %p82
    %p84 = pneg %p83
    // Predicated region
    $region9: #{_lambda_.44} parent=5 // pred_check
      _
    $region10: #{_lambda_.44} parent=5 // pred_check_branch
      %86 = sbr.rel (%p83) target = $region12
    $region11: #{_lambda_.44} parent=5 // pred_region
      %s87 = ssub.s32 %s7, 1
    $region12: #{_lambda_.44} parent=5 // pred_fallthru
      _
    %p88 = scmp.lt.s32.totalorder %s7, 2
    // Predicated region
    $region13: #{_lambda_.44} parent=5 // pred_check
      %p89 = pneg %p88
    $region14: #{_lambda_.44} parent=5 // pred_check_branch
      %91 = sbr.rel (%p89) target = $region16
    $region15: #{_lambda_.44} parent=5 // pred_region
      // Predicated region
      $region17: #{_lambda_.44} parent=15 // pred_check
        %p92 = pneg %p41
      $region18: #{_lambda_.44} parent=15 // pred_check_branch
        %94 = sbr.rel (%p92) target = $region20
      $region19: #{_lambda_.44} parent=15 // pred_region
        %s95 = smul.u32 2, %s15
        %p96 = scmp.lt.s32.totalorder %s14, 1
        %s97 = scalar_select %p96, %s14, 1
        %p98 = scmp.lt.s32.totalorder %s95, 1
        %s99 = scalar_select %p98, %s95, 1
        %s100 = smul.addr %s97, 2
        %s101 = sadd.s32 %s99, %s100
        %s102 = smul.addr %s101, 8
        %s103 = scalar_lea.vmem %s0, %s102
        %s104 = smul.u32 2, %s15
      $region20: #{_lambda_.44} parent=15 // pred_fallthru
        _
    $region16: #{_lambda_.44} parent=5 // pred_fallthru
      _
    %p105 = scmp.le.s32.totalorder 1, %s7
    %p106 = scmp.lt.s32.totalorder %s7, 3
    %p107 = pnand %p105, %p106
    %p108 = pneg %p107
    // Predicated region
    $region21: #{_lambda_.44} parent=5 // pred_check
      _
    $region22: #{_lambda_.44} parent=5 // pred_check_branch
      %110 = sbr.rel (%p107) target = $region24
    $region23: #{_lambda_.44} parent=5 // pred_region
      %s111 = ssub.s32 %s7, 1
      %s112 = smul.u32 2, %s17
      %p113 = scmp.lt.s32.totalorder %s16, 1
      %s114 = scalar_select %p113, %s16, 1
      %p115 = scmp.lt.s32.totalorder %s112, 1
      %s116 = scalar_select %p115, %s112, 1
      %s117 = smul.addr %s114, 2
      %s118 = sadd.s32 %s116, %s117
      %s119 = smul.addr %s118, 8
      %s120 = scalar_lea.vmem %s0, %s119
      %p121 = pneg %p47
      %p122 = pneg %p44
      %p123 = pneg %p73
      %p124 = pneg %p70
      %p125 = scmp.lt.s32.totalorder %s16, 1
      %s126 = scalar_select %p125, %s16, 1
      %s127 = smul.addr %s126, 2
      %s128 = scalar_lea.vmem %s1, %s127
      %s129 = smul.u32 2, %s17
      %p130 = scmp.lt.s32.totalorder %s16, 1
      %s131 = scalar_select %p130, %s16, 1
      %p132 = scmp.lt.s32.totalorder %s129, 1
      %s133 = scalar_select %p132, %s129, 1
      %s134 = smul.addr %s131, 2
      %s135 = sadd.s32 %s133, %s134
      %s136 = smul.addr %s135, 8
      %s137 = scalar_lea.vmem %s0, %s136
      %s138 = smul.u32 2, %s17
      %p139 = scmp.lt.s32.totalorder %s16, 1
      %s140 = scalar_select %p139, %s16, 1
      %s141 = smul.addr %s140, 2
      %s142 = scalar_lea.vmem %s1, %s141
      %p143 = scmp.eq.s32.totalorder %s17, 0
      // Predicated region
      $region25: #{_lambda_.44} parent=23 // pred_check
        %p144 = pneg %p143
      $region26: #{_lambda_.44} parent=23 // pred_check_branch
        %146 = sbr.rel (%p144) target = $region28
      $region27: #{_lambda_.44} parent=23 // pred_region
        %vm147 = vcmask 123904
        %148 = vst.msk [vmem:[%s142] sm:$0x3] %vm147, 0.0
      $region28: #{_lambda_.44} parent=23 // pred_fallthru
        _
      %v149 = vld [vmem:[%s137] sm:$0xff]
      %v150 = vld [vmem:[%s137 + $0x8] sm:$0xff]
      %v151 = vld [vmem:[%s142] sm:$0x1]
      %vm152 = vcmask 130048
      %v153 = vsel %vm152, %v149, 0.0
      %v154 = vsel %vm152, %v150, 0.0
      %v155 = vadd.f32 %v153, %v154
      %v156 = vrot.slane %v155, 4
      %v157 = vadd.f32 %v155, %v156
      %v158 = vrot.slane %v157, 2
      %v159 = vadd.f32 %v157, %v158
      %v160 = vrot.slane %v159, 1
      %v161 = vadd.f32 %v159, %v160
      %v162 = vadd.f32 %v151, %v161
      %vm163 = vcmask 122880
      %164 = vst.msk [vmem:[%s142] sm:$0x1] %vm163, %v162
      %v165 = vld [vmem:[%s142 + $0x1] sm:$0x1]
      %v166 = vmul.f32 %v149, %v149
      %v167 = vmul.f32 %v150, %v150
      %v168 = vsel %vm152, %v166, 0.0
      %v169 = vsel %vm152, %v167, 0.0
      %v170 = vadd.f32 %v168, %v169
      %v171 = vrot.slane %v170, 4
      %v172 = vadd.f32 %v170, %v171
      %v173 = vrot.slane %v172, 2
      %v174 = vadd.f32 %v172, %v173
      %v175 = vrot.slane %v174, 1
      %v176 = vadd.f32 %v174, %v175
      %v177 = vadd.f32 %v165, %v176
      %178 = vst.msk [vmem:[%s142 + $0x1] sm:$0x1] %vm163, %v177
      // Predicated region
      $region29: #{_lambda_.44} parent=23 // pred_check
        %p179 = pneg %p143
      $region30: #{_lambda_.44} parent=23 // pred_check_branch
        %181 = sbr.rel (%p179) target = $region32
      $region31: #{_lambda_.44} parent=23 // pred_region
        %v182 = vld [vmem:[%s142] sm:$0x1]
        %v183 = vrcp.pop 16.0
        %v184 = vmul.f32 %v182, %v183
        %v185 = vld [vmem:[%s142 + $0x1] sm:$0x1]
        %v186 = vmul.f32 %v185, %v183
        %v187 = vmul.f32 %v184, %v184
        %v188 = vsub.f32 %v186, %v187
        %189 = vst.msk [vmem:[%s142] sm:$0x1] %vm163, %v184
        %v190 = vmax.f32 %v188, 0.0
        %v191 = vadd.f32 %v190, 1e-05
        %v192 = vrsqrt.pop %v191
        %193 = vst.msk [vmem:[%s142 + $0x1] sm:$0x1] %vm163, %v192
      $region32: #{_lambda_.44} parent=23 // pred_fallthru
        _
      %p194 = scmp.lt.s32.totalorder %s16, 1
      %s195 = scalar_select %p194, %s16, 1
      %s196 = smul.addr %s195, 2
      %s197 = scalar_lea.vmem %s1, %s196
      // Predicated region
      $region33: #{_lambda_.44} parent=23 // pred_check
        %p198 = pneg %p70
      $region34: #{_lambda_.44} parent=23 // pred_check_branch
        %200 = sbr.rel (%p198) target = $region36
      $region35: #{_lambda_.44} parent=23 // pred_region
        _
      $region36: #{_lambda_.44} parent=23 // pred_fallthru
        _
    $region24: #{_lambda_.44} parent=5 // pred_fallthru
      _
    %p201 = scmp.le.s32.totalorder 2, %s7
    // Predicated region
    $region37: #{_lambda_.44} parent=5 // pred_check
      %p202 = pneg %p201
    $region38: #{_lambda_.44} parent=5 // pred_check_branch
      %204 = sbr.rel (%p202) target = $region40
    $region39: #{_lambda_.44} parent=5 // pred_region
      %s205 = ssub.s32 %s7, 2
      // Predicated region
      $region41: #{_lambda_.44} parent=39 // pred_check
        %p206 = pneg %p76
      $region42: #{_lambda_.44} parent=39 // pred_check_branch
        %208 = sbr.rel (%p206) target = $region44
      $region43: #{_lambda_.44} parent=39 // pred_region
        %p209 = scmp.lt.s32.totalorder %s18, 1
        %s210 = scalar_select %p209, %s18, 1
        %s211 = smul.addr %s210, 2
        %s212 = scalar_lea.vmem %s1, %s211
      $region44: #{_lambda_.44} parent=39 // pred_fallthru
        _
    $region40: #{_lambda_.44} parent=5 // pred_fallthru
      _
  $region6: #{_lambda_.44} parent=0 // loop_footer
    %s11 = sadd.s32 1, %s7
  $region7: #{_lambda_.44} parent=0 // loop_footer_branch
    %6 = sbr.rel target = $region3
  $region8: #{_lambda_.44} parent=0 // loop_exit
    _

// kernel: _lambda_.43
$region0: #{_lambda_.43}
  #allocation0 [shape = 'u32[]', space=smem, size = 0x4, offset = 0x4, fixed_abs, tag = 'smem constant byte address 0x4 - core index']
  #allocation1 [shape = 'u32[144,128]{1,0:T(1,128)}', space=vmem, size = 0x12000, scoped, tag = 'internal scratch']
  #allocation2 [shape = 'f32[32,128]{1,0:T(8,128)}', space=vmem, size = 0x4000, scoped, tag = 'scratch operand']
  %s0 = inlined_call_operand.vmem [shape: bf16[32,128], index: 0, kind: input, shape index: {}]
  %s1 = inlined_call_operand.vmem [shape: bf16[128,128], index: 1, kind: input, shape index: {}]
  %s2 = inlined_call_operand.vmem [shape: f32[1,128], index: 2, kind: input, shape index: {}]
  %s3 = inlined_call_operand.vmem [shape: f32[32,128], index: 3, kind: output, shape index: {}]
  %s4 = sld [smem:[#allocation0]]
  $region30: #{_lambda_.43} parent=0
    _
  %s6 = ssub.s32 1, %s4
  %s7 = scalar_select 0, %s6, %s4
  // Predicated region
  $region2: #{_lambda_.43} parent=0 // pred_check
    _
  $region3: #{_lambda_.43} parent=0 // pred_check_branch
    %9 = sbr.rel (0) target = $region5
  $region4: #{_lambda_.43} parent=0 // pred_region
    _
  $region5: #{_lambda_.43} parent=0 // pred_fallthru
    _
  // Predicated region
  $region6: #{_lambda_.43} parent=0 // pred_check
    _
  $region7: #{_lambda_.43} parent=0 // pred_check_branch
    %11 = sbr.rel (0) target = $region9
  $region8: #{_lambda_.43} parent=0 // pred_region
    _
  $region9: #{_lambda_.43} parent=0 // pred_fallthru
    _
  // Predicated region
  $region10: #{_lambda_.43} parent=0 // pred_check
    _
  $region11: #{_lambda_.43} parent=0 // pred_check_branch
    %13 = sbr.rel (0) target = $region13
  $region12: #{_lambda_.43} parent=0 // pred_region
    _
  $region13: #{_lambda_.43} parent=0 // pred_fallthru
    _
  %p16 = scmp.eq.s32.totalorder 0, 0
  // Predicated region
  $region14: #{_lambda_.43} parent=0 // pred_check
    %p17 = pneg %p16
  $region15: #{_lambda_.43} parent=0 // pred_check_branch
    %19 = sbr.rel (%p17) target = $region17
  $region16: #{_lambda_.43} parent=0 // pred_region
    %20 = vst [vmem:[#allocation2] sm:$0xff] 0.0
    %21 = vst [vmem:[#allocation2 + $0x8] sm:$0xff] 0.0
    %22 = vst [vmem:[#allocation2 + $0x10] sm:$0xff] 0.0
    %23 = vst [vmem:[#allocation2 + $0x18] sm:$0xff] 0.0
  $region17: #{_lambda_.43} parent=0 // pred_fallthru
    _
  %v24 = vld [vmem:[%s0] sm:$0xf]
  %v25 = vld [vmem:[%s0 + $0x4] sm:$0xf]
  %v26 = vld [vmem:[%s0 + $0x8] sm:$0xf]
  %v27 = vld [vmem:[%s0 + $0xc] sm:$0xf]
  %vm28 = vcmp.ge.bf16.partialorder %v24, 0
  %vm29 = vcmp.ge.bf16.partialorder %v25, 0
  %vm30 = vcmp.ge.bf16.partialorder %v26, 0
  %vm31 = vcmp.ge.bf16.partialorder %v27, 0
  %v32 = vmul.bf16 %v24, 1045249613
  %v33 = vmul.bf16 %v25, 1045249613
  %v34 = vmul.bf16 %v26, 1045249613
  %v35 = vmul.bf16 %v27, 1045249613
  %v36 = vsel %vm28, %v24, %v32
  %v37 = vsel %vm29, %v25, %v33
  %v38 = vsel %vm30, %v26, %v34
  %v39 = vsel %vm31, %v27, %v35
  %v40 = vld [vmem:[#allocation2] sm:$0xff]
  %v41 = vld [vmem:[#allocation2 + $0x8] sm:$0xff]
  %v42 = vld [vmem:[#allocation2 + $0x10] sm:$0xff]
  %v43 = vld [vmem:[#allocation2 + $0x18] sm:$0xff]
  %v44 = vld [vmem:[%s1] sm:$0xf]
  %v45 = vld [vmem:[%s1 + $0x4] sm:$0xf]
  %v46 = vld [vmem:[%s1 + $0x8] sm:$0xf]
  %v47 = vld [vmem:[%s1 + $0xc] sm:$0xf]
  %v48 = vld [vmem:[%s1 + $0x10] sm:$0xf]
  %v49 = vld [vmem:[%s1 + $0x14] sm:$0xf]
  %v50 = vld [vmem:[%s1 + $0x18] sm:$0xf]
  %v51 = vld [vmem:[%s1 + $0x1c] sm:$0xf]
  %v52 = vld [vmem:[%s1 + $0x20] sm:$0xf]
  %v53 = vld [vmem:[%s1 + $0x24] sm:$0xf]
  %v54 = vld [vmem:[%s1 + $0x28] sm:$0xf]
  %v55 = vld [vmem:[%s1 + $0x2c] sm:$0xf]
  %v56 = vld [vmem:[%s1 + $0x30] sm:$0xf]
  %v57 = vld [vmem:[%s1 + $0x34] sm:$0xf]
  %v58 = vld [vmem:[%s1 + $0x38] sm:$0xf]
  %v59 = vld [vmem:[%s1 + $0x3c] sm:$0xf]
  %v64 = vunpack.c.l.b16 %v36
  %v65 = vunpack.c.l.b16 %v37
  %v66 = vunpack.c.l.b16 %v38
  %v67 = vunpack.c.l.b16 %v39
  %v68 = vpack.c.b16 %v65, %v64
  %v69 = vpack.c.b16 %v67, %v66
  %v88 = vunpack.c.l.b16 %v44
  %v89 = vunpack.c.l.b16 %v45
  %v90 = vunpack.c.l.b16 %v46
  %v91 = vunpack.c.l.b16 %v47
  %v92 = vunpack.c.l.b16 %v48
  %v93 = vunpack.c.l.b16 %v49
  %v94 = vunpack.c.l.b16 %v50
  %v95 = vunpack.c.l.b16 %v51
  %v96 = vunpack.c.l.b16 %v52
  %v97 = vunpack.c.l.b16 %v53
  %v98 = vunpack.c.l.b16 %v54
  %v99 = vunpack.c.l.b16 %v55
  %v100 = vunpack.c.l.b16 %v56
  %v101 = vunpack.c.l.b16 %v57
  %v102 = vunpack.c.l.b16 %v58
  %v103 = vunpack.c.l.b16 %v59
  %v104 = vpack.c.b16 %v89, %v88
  %v105 = vpack.c.b16 %v91, %v90
  %v106 = vpack.c.b16 %v93, %v92
  %v107 = vpack.c.b16 %v95, %v94
  %v108 = vpack.c.b16 %v97, %v96
  %v109 = vpack.c.b16 %v99, %v98
  %v110 = vpack.c.b16 %v101, %v100
  %v111 = vpack.c.b16 %v103, %v102
  %120 = vmatprep.subr.bf16.mxu0 0
  %121 = vmatpush1.bf16.msra.mxu0 %v111
  %122 = vmatprep.subr.bf16.mxu0 0
  %123 = vmatpush1.bf16.msra.mxu0 %v110
  %124 = vmatprep.subr.bf16.mxu0 0
  %125 = vmatpush1.bf16.msra.mxu0 %v109
  %126 = vmatprep.subr.bf16.mxu0 0
  %127 = vmatpush1.bf16.msra.mxu0 %v108
  %128 = vmatprep.subr.bf16.mxu0 0
  %129 = vmatpush1.bf16.msra.mxu0 %v107
  %130 = vmatprep.subr.bf16.mxu0 0
  %131 = vmatpush1.bf16.msra.mxu0 %v106
  %132 = vmatprep.subr.bf16.mxu0 0
  %133 = vmatpush1.bf16.msra.mxu0 %v105
  %134 = vmatprep.subr.bf16.mxu0 0
  %135 = vmatpush1.bf16.msra.mxu0 %v104
  %136 = vmatprep.subr.bf16.mxu0 0
  %137 = vmatpush2.bf16.msra.mxu0 0
  %138 = vmatprep.subr.bf16.mxu0 0
  %139 = vmatpush2.bf16.msra.mxu0 0
  %140 = vmatprep.subr.bf16.mxu0 0
  %141 = vmatpush2.bf16.msra.mxu0 0
  %142 = vmatprep.subr.bf16.mxu0 0
  %143 = vmatpush2.bf16.msra.mxu0 0
  %144 = vmatprep.subr.bf16.mxu0 0
  %145 = vmatpush2.bf16.msra.mxu0 0
  %146 = vmatprep.subr.bf16.mxu0 0
  %147 = vmatpush2.bf16.msra.mxu0 0
  %148 = vmatprep.subr.bf16.mxu0 0
  %149 = vmatpush2.bf16.msra.mxu0 0
  %150 = vmatprep.subr.bf16.mxu0 0
  %151 = vmatpush2.bf16.msra.mxu0 0
  %152 = vmatprep.mubr.bf16.mxu0 0
  %153 = vmatmul.mubr.bf16.gmra.mxu0 %v68
  %v154 = vpop.f32.mrf.mxu0
  %v155 = vadd.f32 0.0, %v154
  %v156 = vpop.f32.mrf.mxu0
  %v157 = vpop.f32.mrf.mxu0
  %v158 = vadd.f32 0.0, %v157
  %v159 = vpop.f32.mrf.mxu0
  %160 = vmatprep.mubr.bf16.mxu0 0
  %161 = vmatmul.mubr.bf16.gmra.mxu0 %v69
  %v162 = vpop.f32.mrf.mxu0
  %v163 = vadd.f32 0.0, %v162
  %v164 = vpop.f32.mrf.mxu0
  %v165 = vpop.f32.mrf.mxu0
  %v166 = vadd.f32 0.0, %v165
  %v167 = vpop.f32.mrf.mxu0
  %168 = vdwg.mxu0
  %v169 = vadd.f32 %v40, %v155
  %v170 = vadd.f32 %v41, %v158
  %v171 = vadd.f32 %v42, %v163
  %v172 = vadd.f32 %v43, %v166
  %173 = vst [vmem:[#allocation2] sm:$0xff] %v169
  %174 = vst [vmem:[#allocation2 + $0x8] sm:$0xff] %v170
  %175 = vst [vmem:[#allocation2 + $0x10] sm:$0xff] %v171
  %176 = vst [vmem:[#allocation2 + $0x18] sm:$0xff] %v172
  // Predicated region
  $region18: #{_lambda_.43} parent=0 // pred_check
    %p177 = pneg %p16
  $region19: #{_lambda_.43} parent=0 // pred_check_branch
    %179 = sbr.rel (%p177) target = $region21
  $region20: #{_lambda_.43} parent=0 // pred_region
    %v180 = vld [vmem:[#allocation2] sm:$0xff]
    %v181 = vld [vmem:[#allocation2 + $0x8] sm:$0xff]
    %v182 = vld [vmem:[#allocation2 + $0x10] sm:$0xff]
    %v183 = vld [vmem:[#allocation2 + $0x18] sm:$0xff]
    %v184 = vld [vmem:[%s2] sm:$0x1]
    %v186 = vlaneseq
    %v187 = vshrl.u32 %v186, 7
    %v188 = vsub.s32 0, %v187
    %v189 = vrot.slane %v184, %v188
    %v191 = vadd.f32 %v180, %v189
    %v192 = vadd.f32 %v181, %v189
    %v193 = vadd.f32 %v182, %v189
    %v194 = vadd.f32 %v183, %v189
    %195 = vst [vmem:[%s3] sm:$0xff] %v191
    %196 = vst [vmem:[%s3 + $0x8] sm:$0xff] %v192
    %197 = vst [vmem:[%s3 + $0x10] sm:$0xff] %v193
    %198 = vst [vmem:[%s3 + $0x18] sm:$0xff] %v194
  $region21: #{_lambda_.43} parent=0 // pred_fallthru
    _
  // Predicated region
  $region22: #{_lambda_.43} parent=0 // pred_check
    _
  $region23: #{_lambda_.43} parent=0 // pred_check_branch
    %200 = sbr.rel (0) target = $region25
  $region24: #{_lambda_.43} parent=0 // pred_region
    _
  $region25: #{_lambda_.43} parent=0 // pred_fallthru
    _
  // Predicated region
  $region26: #{_lambda_.43} parent=0 // pred_check
    _
  $region27: #{_lambda_.43} parent=0 // pred_check_branch
    %202 = sbr.rel (0) target = $region29
  $region28: #{_lambda_.43} parent=0 // pred_region
    _
  $region29: #{_lambda_.43} parent=0 // pred_fallthru
    _

// kernel: _lambda_.45
$region0: #{_lambda_.45}
  #allocation0 [shape = 'u32[]', space=smem, size = 0x4, offset = 0x4, fixed_abs, tag = 'smem constant byte address 0x4 - core index']
  #allocation1 [shape = 'u32[144,128]{1,0:T(1,128)}', space=vmem, size = 0x12000, scoped, tag = 'internal scratch']
  %s0 = inlined_call_operand.vmem [shape: f32[2,16,16], index: 0, kind: input, shape index: {}]
  %s1 = inlined_call_operand.vmem [shape: f32[2,2,16], index: 1, kind: input, shape index: {}]
  %s2 = inlined_call_operand.vmem [shape: f32[2,16,16], index: 2, kind: output, shape index: {}]
  %s3 = sld [smem:[#allocation0]]
  $region41: #{_lambda_.45} parent=0
    _
  %s5 = ssub.s32 1, %s3
  %s6 = scalar_select 0, %s5, %s3
  loop: start=0, step=1, limit=4
  $region2: #{_lambda_.45} parent=0 // loop_pre_header
    _
  $region3: #{_lambda_.45} parent=0 // loop_header
    %s8 = sphi 0, %s12
    %p9 = scmp.ge.s32.totalorder %s8, 4
    %s15 = sphi 0, %s27
    %s16 = sphi 0, %s23
    %s17 = sphi 0, %s15
    %s18 = sphi 0, %s16
    %s19 = sphi 0, %s17
    %s20 = sphi 0, %s18
    %s32 = sphi 0, %s34
    %s35 = sphi 0, %s32
    %s36 = sphi 0, %s35
    %s52 = sphi 0, %s36
    %s58 = sphi 0, %s60
    %s61 = sphi 0, %s58
    %s62 = sphi 0, %s61
    %s78 = sphi 0, %s62
    %s86 = sphi 0, %s88
    %s89 = sphi 0, %s86
    %s90 = sphi 0, %s89
    %s106 = sphi 0, %s90
  $region4: #{_lambda_.45} parent=0 // loop_header_branch
    %11 = sbr.rel (%p9) target = $region8
  $region5: #{_lambda_.45} parent=0 // loop_body
    %s13 = ssub.s32 %s8, 1
    %s14 = ssub.s32 %s8, 2
    %s21 = sadd.s32 1, %s16
    %p22 = scmp.ge.s32.totalorder %s21, 1
    %s23 = scalar_select %p22, 0, %s21
    %s24 = sadd.s32 1, %s15
    %s25 = scalar_select %p22, %s24, %s15
    %p26 = scmp.ge.s32.totalorder %s25, 2
    %s27 = scalar_select %p26, 0, %s25
    %s28 = ssub.s32 %s15, %s27
    %s29 = ssub.s32 %s16, %s23
    %s30 = sor.u32 %s28, %s29
    %p31 = scmp.eq.s32.totalorder %s30, 0
    %s33 = sadd.s32 %s32, 1
    %s34 = scalar_select %p31, %s32, %s33
    %p37 = pneg %p31
    %p38 = scmp.eq.s32.totalorder %s8, 1
    %p39 = por %p37, %p38
    %p40 = scmp.ne.s32.totalorder %s32, %s35
    %p41 = scmp.eq.s32.totalorder %s8, 0
    %p42 = por %p40, %p41
    %p43 = scmp.ne.s32.totalorder %s32, %s35
    %p44 = scmp.eq.s32.totalorder %s13, 1
    %p45 = por %p43, %p44
    %p46 = scmp.ne.s32.totalorder %s35, %s36
    %p47 = scmp.eq.s32.totalorder %s13, 0
    %p48 = por %p46, %p47
    %p49 = scmp.ne.s32.totalorder %s35, %s36
    %p50 = scmp.eq.s32.totalorder %s14, 1
    %p51 = por %p49, %p50
    %p53 = scmp.ne.s32.totalorder %s36, %s52
    %p54 = scmp.eq.s32.totalorder %s14, 0
    %p55 = por %p53, %p54
    %s56 = ssub.s32 %s15, %s27
    %p57 = scmp.eq.s32.totalorder %s56, 0
    %s59 = sadd.s32 %s58, 1
    %s60 = scalar_select %p57, %s58, %s59
    %p63 = pneg %p57
    %p64 = scmp.eq.s32.totalorder %s8, 1
    %p65 = por %p63, %p64
    %p66 = scmp.ne.s32.totalorder %s58, %s61
    %p67 = scmp.eq.s32.totalorder %s8, 0
    %p68 = por %p66, %p67
    %p69 = scmp.ne.s32.totalorder %s58, %s61
    %p70 = scmp.eq.s32.totalorder %s13, 1
    %p71 = por %p69, %p70
    %p72 = scmp.ne.s32.totalorder %s61, %s62
    %p73 = scmp.eq.s32.totalorder %s13, 0
    %p74 = por %p72, %p73
    %p75 = scmp.ne.s32.totalorder %s61, %s62
    %p76 = scmp.eq.s32.totalorder %s14, 1
    %p77 = por %p75, %p76
    %p79 = scmp.ne.s32.totalorder %s62, %s78
    %p80 = scmp.eq.s32.totalorder %s14, 0
    %p81 = por %p79, %p80
    %s82 = ssub.s32 %s15, %s27
    %s83 = ssub.s32 %s16, %s23
    %s84 = sor.u32 %s82, %s83
    %p85 = scmp.eq.s32.totalorder %s84, 0
    %s87 = sadd.s32 %s86, 1
    %s88 = scalar_select %p85, %s86, %s87
    %p91 = pneg %p85
    %p92 = scmp.eq.s32.totalorder %s8, 1
    %p93 = por %p91, %p92
    %p94 = scmp.ne.s32.totalorder %s86, %s89
    %p95 = scmp.eq.s32.totalorder %s8, 0
    %p96 = por %p94, %p95
    %p97 = scmp.ne.s32.totalorder %s86, %s89
    %p98 = scmp.eq.s32.totalorder %s13, 1
    %p99 = por %p97, %p98
    %p100 = scmp.ne.s32.totalorder %s89, %s90
    %p101 = scmp.eq.s32.totalorder %s13, 0
    %p102 = por %p100, %p101
    %p103 = scmp.ne.s32.totalorder %s89, %s90
    %p104 = scmp.eq.s32.totalorder %s14, 1
    %p105 = por %p103, %p104
    %p107 = scmp.ne.s32.totalorder %s90, %s106
    %p108 = scmp.eq.s32.totalorder %s14, 0
    %p109 = por %p107, %p108
    %p110 = scmp.le.s32.totalorder 1, %s8
    %p111 = scmp.lt.s32.totalorder %s8, 3
    %p112 = pnand %p110, %p111
    %p113 = pneg %p112
    // Predicated region
    $region9: #{_lambda_.45} parent=5 // pred_check
      _
    $region10: #{_lambda_.45} parent=5 // pred_check_branch
      %115 = sbr.rel (%p112) target = $region12
    $region11: #{_lambda_.45} parent=5 // pred_region
      %s116 = ssub.s32 %s8, 1
    $region12: #{_lambda_.45} parent=5 // pred_fallthru
      _
    %p117 = scmp.lt.s32.totalorder %s8, 2
    // Predicated region
    $region13: #{_lambda_.45} parent=5 // pred_check
      %p118 = pneg %p117
    $region14: #{_lambda_.45} parent=5 // pred_check_branch
      %120 = sbr.rel (%p118) target = $region16
    $region15: #{_lambda_.45} parent=5 // pred_region
      // Predicated region
      $region17: #{_lambda_.45} parent=15 // pred_check
        %p121 = pneg %p42
      $region18: #{_lambda_.45} parent=15 // pred_check_branch
        %123 = sbr.rel (%p121) target = $region20
      $region19: #{_lambda_.45} parent=15 // pred_region
        %s124 = smul.u32 2, %s16
        %p125 = scmp.lt.s32.totalorder %s15, 1
        %s126 = scalar_select %p125, %s15, 1
        %p127 = scmp.lt.s32.totalorder %s124, 1
        %s128 = scalar_select %p127, %s124, 1
        %s129 = smul.addr %s126, 2
        %s130 = sadd.s32 %s128, %s129
        %s131 = smul.addr %s130, 8
        %s132 = scalar_lea.vmem %s0, %s131
        %s133 = smul.u32 2, %s16
      $region20: #{_lambda_.45} parent=15 // pred_fallthru
        _
      // Predicated region
      $region21: #{_lambda_.45} parent=15 // pred_check
        %p134 = pneg %p68
      $region22: #{_lambda_.45} parent=15 // pred_check_branch
        %136 = sbr.rel (%p134) target = $region24
      $region23: #{_lambda_.45} parent=15 // pred_region
        %p137 = scmp.lt.s32.totalorder %s15, 1
        %s138 = scalar_select %p137, %s15, 1
        %s139 = smul.addr %s138, 2
        %s140 = scalar_lea.vmem %s1, %s139
      $region24: #{_lambda_.45} parent=15 // pred_fallthru
        _
    $region16: #{_lambda_.45} parent=5 // pred_fallthru
      _
    %p141 = scmp.le.s32.totalorder 1, %s8
    %p142 = scmp.lt.s32.totalorder %s8, 3
    %p143 = pnand %p141, %p142
    %p144 = pneg %p143
    // Predicated region
    $region25: #{_lambda_.45} parent=5 // pred_check
      _
    $region26: #{_lambda_.45} parent=5 // pred_check_branch
      %146 = sbr.rel (%p143) target = $region28
    $region27: #{_lambda_.45} parent=5 // pred_region
      %s147 = ssub.s32 %s8, 1
      %s148 = smul.u32 2, %s18
      %p149 = scmp.lt.s32.totalorder %s17, 1
      %s150 = scalar_select %p149, %s17, 1
      %p151 = scmp.lt.s32.totalorder %s148, 1
      %s152 = scalar_select %p151, %s148, 1
      %s153 = smul.addr %s150, 2
      %s154 = sadd.s32 %s152, %s153
      %s155 = smul.addr %s154, 8
      %s156 = scalar_lea.vmem %s0, %s155
      %p157 = pneg %p48
      %p158 = pneg %p45
      %p159 = scmp.lt.s32.totalorder %s17, 1
      %s160 = scalar_select %p159, %s17, 1
      %s161 = smul.addr %s160, 2
      %s162 = scalar_lea.vmem %s1, %s161
      %p163 = pneg %p74
      %p164 = pneg %p71
      %p165 = pneg %p102
      %p166 = pneg %p99
      %s167 = smul.u32 2, %s18
      %p168 = scmp.lt.s32.totalorder %s17, 1
      %s169 = scalar_select %p168, %s17, 1
      %p170 = scmp.lt.s32.totalorder %s167, 1
      %s171 = scalar_select %p170, %s167, 1
      %s172 = smul.addr %s169, 2
      %s173 = sadd.s32 %s171, %s172
      %s174 = smul.addr %s173, 8
      %s175 = scalar_lea.vmem %s2, %s174
      %s176 = smul.u32 2, %s18
      %p177 = scmp.lt.s32.totalorder %s17, 1
      %s178 = scalar_select %p177, %s17, 1
      %p179 = scmp.lt.s32.totalorder %s176, 1
      %s180 = scalar_select %p179, %s176, 1
      %s181 = smul.addr %s178, 2
      %s182 = sadd.s32 %s180, %s181
      %s183 = smul.addr %s182, 8
      %s184 = scalar_lea.vmem %s0, %s183
      %s185 = smul.u32 2, %s18
      %p186 = scmp.lt.s32.totalorder %s17, 1
      %s187 = scalar_select %p186, %s17, 1
      %s188 = smul.addr %s187, 2
      %s189 = scalar_lea.vmem %s1, %s188
      %s190 = smul.u32 2, %s18
      %p191 = scmp.lt.s32.totalorder %s17, 1
      %s192 = scalar_select %p191, %s17, 1
      %p193 = scmp.lt.s32.totalorder %s190, 1
      %s194 = scalar_select %p193, %s190, 1
      %s195 = smul.addr %s192, 2
      %s196 = sadd.s32 %s194, %s195
      %s197 = smul.addr %s196, 8
      %s198 = scalar_lea.vmem %s2, %s197
      %s199 = smul.u32 2, %s18
      %v200 = vld [vmem:[%s184] sm:$0xff]
      %v201 = vld [vmem:[%s184 + $0x8] sm:$0xff]
      %v202 = vld [vmem:[%s189] sm:$0x1]
      %v203 = vlaneseq
      %v204 = vshrl.u32 %v203, 7
      %v205 = vsub.s32 0, %v204
      %v206 = vrot.slane %v202, %v205
      %v207 = vsub.f32 %v200, %v206
      %v208 = vsub.f32 %v201, %v206
      %v209 = vld [vmem:[%s189 + $0x1] sm:$0x1]
      %v210 = vlaneseq
      %v211 = vshrl.u32 %v210, 7
      %v212 = vsub.s32 0, %v211
      %v213 = vrot.slane %v209, %v212
      %v214 = vmul.f32 %v207, %v213
      %v215 = vmul.f32 %v208, %v213
      %vm216 = vcmask 130048
      %217 = vst.msk [vmem:[%s198] sm:$0xff] %vm216, %v214
      %218 = vst.msk [vmem:[%s198 + $0x8] sm:$0xff] %vm216, %v215
      %s219 = smul.u32 2, %s18
      %p220 = scmp.lt.s32.totalorder %s17, 1
      %s221 = scalar_select %p220, %s17, 1
      %p222 = scmp.lt.s32.totalorder %s219, 1
      %s223 = scalar_select %p222, %s219, 1
      %s224 = smul.addr %s221, 2
      %s225 = sadd.s32 %s223, %s224
      %s226 = smul.addr %s225, 8
      %s227 = scalar_lea.vmem %s2, %s226
      // Predicated region
      $region29: #{_lambda_.45} parent=27 // pred_check
        %p228 = pneg %p99
      $region30: #{_lambda_.45} parent=27 // pred_check_branch
        %230 = sbr.rel (%p228) target = $region32
      $region31: #{_lambda_.45} parent=27 // pred_region
        %s231 = smul.u32 2, %s18
      $region32: #{_lambda_.45} parent=27 // pred_fallthru
        _
    $region28: #{_lambda_.45} parent=5 // pred_fallthru
      _
    %p232 = scmp.le.s32.totalorder 2, %s8
    // Predicated region
    $region33: #{_lambda_.45} parent=5 // pred_check
      %p233 = pneg %p232
    $region34: #{_lambda_.45} parent=5 // pred_check_branch
      %235 = sbr.rel (%p233) target = $region36
    $region35: #{_lambda_.45} parent=5 // pred_region
      %s236 = ssub.s32 %s8, 2
      // Predicated region
      $region37: #{_lambda_.45} parent=35 // pred_check
        %p237 = pneg %p105
      $region38: #{_lambda_.45} parent=35 // pred_check_branch
        %239 = sbr.rel (%p237) target = $region40
      $region39: #{_lambda_.45} parent=35 // pred_region
        %s240 = smul.u32 2, %s20
        %p241 = scmp.lt.s32.totalorder %s19, 1
        %s242 = scalar_select %p241, %s19, 1
        %p243 = scmp.lt.s32.totalorder %s240, 1
        %s244 = scalar_select %p243, %s240, 1
        %s245 = smul.addr %s242, 2
        %s246 = sadd.s32 %s244, %s245
        %s247 = smul.addr %s246, 8
        %s248 = scalar_lea.vmem %s2, %s247
      $region40: #{_lambda_.45} parent=35 // pred_fallthru
        _
    $region36: #{_lambda_.45} parent=5 // pred_fallthru
      _
  $region6: #{_lambda_.45} parent=0 // loop_footer
    %s12 = sadd.s32 1, %s8
  $region7: #{_lambda_.45} parent=0 // loop_footer_branch
    %7 = sbr.rel target = $region3
  $region8: #{_lambda_.45} parent=0 // loop_exit
    _

// kernel: _lambda_.46
$region0: #{_lambda_.46}
  #allocation0 [shape = 'u32[]', space=smem, size = 0x4, offset = 0x4, fixed_abs, tag = 'smem constant byte address 0x4 - core index']
  #allocation1 [shape = 'u32[144,128]{1,0:T(1,128)}', space=vmem, size = 0x12000, scoped, tag = 'internal scratch']
  #allocation2 [shape = 'f32[16,128]{1,0:T(8,128)}', space=vmem, size = 0x2000, scoped, tag = 'scratch operand']
  %s0 = inlined_call_operand.vmem [shape: bf16[16,256], index: 0, kind: input, shape index: {}]
  %s1 = inlined_call_operand.vmem [shape: bf16[256,128], index: 1, kind: input, shape index: {}]
  %s2 = inlined_call_operand.vmem [shape: f32[1,128], index: 2, kind: input, shape index: {}]
  %s3 = inlined_call_operand.vmem [shape: f32[16,128], index: 3, kind: output, shape index: {}]
  %s4 = sld [smem:[#allocation0]]
  $region30: #{_lambda_.46} parent=0
    _
  %s6 = ssub.s32 1, %s4
  %s7 = scalar_select 0, %s6, %s4
  // Predicated region
  $region2: #{_lambda_.46} parent=0 // pred_check
    _
  $region3: #{_lambda_.46} parent=0 // pred_check_branch
    %9 = sbr.rel (0) target = $region5
  $region4: #{_lambda_.46} parent=0 // pred_region
    _
  $region5: #{_lambda_.46} parent=0 // pred_fallthru
    _
  // Predicated region
  $region6: #{_lambda_.46} parent=0 // pred_check
    _
  $region7: #{_lambda_.46} parent=0 // pred_check_branch
    %11 = sbr.rel (0) target = $region9
  $region8: #{_lambda_.46} parent=0 // pred_region
    _
  $region9: #{_lambda_.46} parent=0 // pred_fallthru
    _
  // Predicated region
  $region10: #{_lambda_.46} parent=0 // pred_check
    _
  $region11: #{_lambda_.46} parent=0 // pred_check_branch
    %13 = sbr.rel (0) target = $region13
  $region12: #{_lambda_.46} parent=0 // pred_region
    _
  $region13: #{_lambda_.46} parent=0 // pred_fallthru
    _
  %p16 = scmp.eq.s32.totalorder 0, 0
  // Predicated region
  $region14: #{_lambda_.46} parent=0 // pred_check
    %p17 = pneg %p16
  $region15: #{_lambda_.46} parent=0 // pred_check_branch
    %19 = sbr.rel (%p17) target = $region17
  $region16: #{_lambda_.46} parent=0 // pred_region
    %20 = vst [vmem:[#allocation2] sm:$0xff] 0.0
    %21 = vst [vmem:[#allocation2 + $0x8] sm:$0xff] 0.0
  $region17: #{_lambda_.46} parent=0 // pred_fallthru
    _
  %v22 = vld [vmem:[%s0] sm:$0xff]
  %v23 = vld [vmem:[%s0 + $0x8] sm:$0xff]
  %vm24 = vcmp.ge.bf16.partialorder %v22, 0
  %vm25 = vcmp.ge.bf16.partialorder %v23, 0
  %v26 = vmul.bf16 %v22, 1045249613
  %v27 = vmul.bf16 %v23, 1045249613
  %v28 = vsel %vm24, %v22, %v26
  %v29 = vsel %vm25, %v23, %v27
  %v30 = vld [vmem:[#allocation2] sm:$0xff]
  %v31 = vld [vmem:[#allocation2 + $0x8] sm:$0xff]
  %v32 = vld [vmem:[%s1] sm:$0xf]
  %v33 = vld [vmem:[%s1 + $0x4] sm:$0xf]
  %v34 = vld [vmem:[%s1 + $0x8] sm:$0xf]
  %v35 = vld [vmem:[%s1 + $0xc] sm:$0xf]
  %v36 = vld [vmem:[%s1 + $0x10] sm:$0xf]
  %v37 = vld [vmem:[%s1 + $0x14] sm:$0xf]
  %v38 = vld [vmem:[%s1 + $0x18] sm:$0xf]
  %v39 = vld [vmem:[%s1 + $0x1c] sm:$0xf]
  %v40 = vld [vmem:[%s1 + $0x20] sm:$0xf]
  %v41 = vld [vmem:[%s1 + $0x24] sm:$0xf]
  %v42 = vld [vmem:[%s1 + $0x28] sm:$0xf]
  %v43 = vld [vmem:[%s1 + $0x2c] sm:$0xf]
  %v44 = vld [vmem:[%s1 + $0x30] sm:$0xf]
  %v45 = vld [vmem:[%s1 + $0x34] sm:$0xf]
  %v46 = vld [vmem:[%s1 + $0x38] sm:$0xf]
  %v47 = vld [vmem:[%s1 + $0x3c] sm:$0xf]
  %v48 = vld [vmem:[%s1 + $0x40] sm:$0xf]
  %v49 = vld [vmem:[%s1 + $0x44] sm:$0xf]
  %v50 = vld [vmem:[%s1 + $0x48] sm:$0xf]
  %v51 = vld [vmem:[%s1 + $0x4c] sm:$0xf]
  %v52 = vld [vmem:[%s1 + $0x50] sm:$0xf]
  %v53 = vld [vmem:[%s1 + $0x54] sm:$0xf]
  %v54 = vld [vmem:[%s1 + $0x58] sm:$0xf]
  %v55 = vld [vmem:[%s1 + $0x5c] sm:$0xf]
  %v56 = vld [vmem:[%s1 + $0x60] sm:$0xf]
  %v57 = vld [vmem:[%s1 + $0x64] sm:$0xf]
  %v58 = vld [vmem:[%s1 + $0x68] sm:$0xf]
  %v59 = vld [vmem:[%s1 + $0x6c] sm:$0xf]
  %v60 = vld [vmem:[%s1 + $0x70] sm:$0xf]
  %v61 = vld [vmem:[%s1 + $0x74] sm:$0xf]
  %v62 = vld [vmem:[%s1 + $0x78] sm:$0xf]
  %v63 = vld [vmem:[%s1 + $0x7c] sm:$0xf]
  %v66 = vunpack.c.l.b16 %v28
  %v67 = vunpack.c.h.b16 %v28
  %v68 = vunpack.c.l.b16 %v29
  %v69 = vunpack.c.h.b16 %v29
  %v70 = vpack.c.b16 %v68, %v66
  %v71 = vpack.c.b16 %v69, %v67
  %v106 = vunpack.c.l.b16 %v32
  %v107 = vunpack.c.l.b16 %v33
  %v108 = vunpack.c.l.b16 %v34
  %v109 = vunpack.c.l.b16 %v35
  %v110 = vunpack.c.l.b16 %v36
  %v111 = vunpack.c.l.b16 %v37
  %v112 = vunpack.c.l.b16 %v38
  %v113 = vunpack.c.l.b16 %v39
  %v114 = vunpack.c.l.b16 %v40
  %v115 = vunpack.c.l.b16 %v41
  %v116 = vunpack.c.l.b16 %v42
  %v117 = vunpack.c.l.b16 %v43
  %v118 = vunpack.c.l.b16 %v44
  %v119 = vunpack.c.l.b16 %v45
  %v120 = vunpack.c.l.b16 %v46
  %v121 = vunpack.c.l.b16 %v47
  %v122 = vunpack.c.l.b16 %v48
  %v123 = vunpack.c.l.b16 %v49
  %v124 = vunpack.c.l.b16 %v50
  %v125 = vunpack.c.l.b16 %v51
  %v126 = vunpack.c.l.b16 %v52
  %v127 = vunpack.c.l.b16 %v53
  %v128 = vunpack.c.l.b16 %v54
  %v129 = vunpack.c.l.b16 %v55
  %v130 = vunpack.c.l.b16 %v56
  %v131 = vunpack.c.l.b16 %v57
  %v132 = vunpack.c.l.b16 %v58
  %v133 = vunpack.c.l.b16 %v59
  %v134 = vunpack.c.l.b16 %v60
  %v135 = vunpack.c.l.b16 %v61
  %v136 = vunpack.c.l.b16 %v62
  %v137 = vunpack.c.l.b16 %v63
  %v138 = vpack.c.b16 %v107, %v106
  %v139 = vpack.c.b16 %v109, %v108
  %v140 = vpack.c.b16 %v111, %v110
  %v141 = vpack.c.b16 %v113, %v112
  %v142 = vpack.c.b16 %v115, %v114
  %v143 = vpack.c.b16 %v117, %v116
  %v144 = vpack.c.b16 %v119, %v118
  %v145 = vpack.c.b16 %v121, %v120
  %v146 = vpack.c.b16 %v123, %v122
  %v147 = vpack.c.b16 %v125, %v124
  %v148 = vpack.c.b16 %v127, %v126
  %v149 = vpack.c.b16 %v129, %v128
  %v150 = vpack.c.b16 %v131, %v130
  %v151 = vpack.c.b16 %v133, %v132
  %v152 = vpack.c.b16 %v135, %v134
  %v153 = vpack.c.b16 %v137, %v136
  %170 = vmatprep.subr.bf16.mxu0 0
  %171 = vmatpush1.bf16.msra.mxu0 %v145
  %172 = vmatprep.subr.bf16.mxu0 0
  %173 = vmatpush1.bf16.msra.mxu0 %v144
  %174 = vmatprep.subr.bf16.mxu0 0
  %175 = vmatpush1.bf16.msra.mxu0 %v143
  %176 = vmatprep.subr.bf16.mxu0 0
  %177 = vmatpush1.bf16.msra.mxu0 %v142
  %178 = vmatprep.subr.bf16.mxu0 0
  %179 = vmatpush1.bf16.msra.mxu0 %v141
  %180 = vmatprep.subr.bf16.mxu0 0
  %181 = vmatpush1.bf16.msra.mxu0 %v140
  %182 = vmatprep.subr.bf16.mxu0 0
  %183 = vmatpush1.bf16.msra.mxu0 %v139
  %184 = vmatprep.subr.bf16.mxu0 0
  %185 = vmatpush1.bf16.msra.mxu0 %v138
  %186 = vmatprep.subr.bf16.mxu0 0
  %187 = vmatpush2.bf16.msra.mxu0 %v153
  %188 = vmatprep.subr.bf16.mxu0 0
  %189 = vmatpush2.bf16.msra.mxu0 %v152
  %190 = vmatprep.subr.bf16.mxu0 0
  %191 = vmatpush2.bf16.msra.mxu0 %v151
  %192 = vmatprep.subr.bf16.mxu0 0
  %193 = vmatpush2.bf16.msra.mxu0 %v150
  %194 = vmatprep.subr.bf16.mxu0 0
  %195 = vmatpush2.bf16.msra.mxu0 %v149
  %196 = vmatprep.subr.bf16.mxu0 0
  %197 = vmatpush2.bf16.msra.mxu0 %v148
  %198 = vmatprep.subr.bf16.mxu0 0
  %199 = vmatpush2.bf16.msra.mxu0 %v147
  %200 = vmatprep.subr.bf16.mxu0 0
  %201 = vmatpush2.bf16.msra.mxu0 %v146
  %202 = vmatprep.mubr.bf16.mxu0 %v71
  %203 = vmatmul.mubr.bf16.gmra.mxu0 %v70
  %v204 = vpop.f32.mrf.mxu0
  %v205 = vadd.f32 0.0, %v204
  %v206 = vpop.f32.mrf.mxu0
  %v207 = vpop.f32.mrf.mxu0
  %v208 = vadd.f32 0.0, %v207
  %v209 = vpop.f32.mrf.mxu0
  %210 = vdwg.mxu0
  %v211 = vadd.f32 %v30, %v205
  %v212 = vadd.f32 %v31, %v208
  %213 = vst [vmem:[#allocation2] sm:$0xff] %v211
  %214 = vst [vmem:[#allocation2 + $0x8] sm:$0xff] %v212
  // Predicated region
  $region18: #{_lambda_.46} parent=0 // pred_check
    %p215 = pneg %p16
  $region19: #{_lambda_.46} parent=0 // pred_check_branch
    %217 = sbr.rel (%p215) target = $region21
  $region20: #{_lambda_.46} parent=0 // pred_region
    %v218 = vld [vmem:[#allocation2] sm:$0xff]
    %v219 = vld [vmem:[#allocation2 + $0x8] sm:$0xff]
    %v220 = vld [vmem:[%s2] sm:$0x1]
    %v222 = vlaneseq
    %v223 = vshrl.u32 %v222, 7
    %v224 = vsub.s32 0, %v223
    %v225 = vrot.slane %v220, %v224
    %v227 = vadd.f32 %v218, %v225
    %v228 = vadd.f32 %v219, %v225
    %229 = vst [vmem:[%s3] sm:$0xff] %v227
    %230 = vst [vmem:[%s3 + $0x8] sm:$0xff] %v228
  $region21: #{_lambda_.46} parent=0 // pred_fallthru
    _
  // Predicated region
  $region22: #{_lambda_.46} parent=0 // pred_check
    _
  $region23: #{_lambda_.46} parent=0 // pred_check_branch
    %232 = sbr.rel (0) target = $region25
  $region24: #{_lambda_.46} parent=0 // pred_region
    _
  $region25: #{_lambda_.46} parent=0 // pred_fallthru
    _
  // Predicated region
  $region26: #{_lambda_.46} parent=0 // pred_check
    _
  $region27: #{_lambda_.46} parent=0 // pred_check_branch
    %234 = sbr.rel (0) target = $region29
  $region28: #{_lambda_.46} parent=0 // pred_region
    _
  $region29: #{_lambda_.46} parent=0 // pred_fallthru
    _

// kernel: _lambda_.48
$region0: #{_lambda_.48}
  #allocation0 [shape = 'u32[]', space=smem, size = 0x4, offset = 0x4, fixed_abs, tag = 'smem constant byte address 0x4 - core index']
  #allocation1 [shape = 'u32[144,128]{1,0:T(1,128)}', space=vmem, size = 0x12000, scoped, tag = 'internal scratch']
  %s0 = inlined_call_operand.vmem [shape: f32[2,4,32], index: 0, kind: input, shape index: {}]
  %s1 = inlined_call_operand.vmem [shape: f32[2,2,32], index: 1, kind: input, shape index: {}]
  %s2 = inlined_call_operand.vmem [shape: f32[2,4,32], index: 2, kind: output, shape index: {}]
  %s3 = sld [smem:[#allocation0]]
  $region41: #{_lambda_.48} parent=0
    _
  %s5 = ssub.s32 1, %s3
  %s6 = scalar_select 0, %s5, %s3
  loop: start=0, step=1, limit=4
  $region2: #{_lambda_.48} parent=0 // loop_pre_header
    _
  $region3: #{_lambda_.48} parent=0 // loop_header
    %s8 = sphi 0, %s12
    %p9 = scmp.ge.s32.totalorder %s8, 4
    %s15 = sphi 0, %s27
    %s16 = sphi 0, %s23
    %s17 = sphi 0, %s15
    %s18 = sphi 0, %s16
    %s19 = sphi 0, %s17
    %s20 = sphi 0, %s18
    %s32 = sphi 0, %s34
    %s35 = sphi 0, %s32
    %s36 = sphi 0, %s35
    %s52 = sphi 0, %s36
    %s58 = sphi 0, %s60
    %s61 = sphi 0, %s58
    %s62 = sphi 0, %s61
    %s78 = sphi 0, %s62
    %s86 = sphi 0, %s88
    %s89 = sphi 0, %s86
    %s90 = sphi 0, %s89
    %s106 = sphi 0, %s90
  $region4: #{_lambda_.48} parent=0 // loop_header_branch
    %11 = sbr.rel (%p9) target = $region8
  $region5: #{_lambda_.48} parent=0 // loop_body
    %s13 = ssub.s32 %s8, 1
    %s14 = ssub.s32 %s8, 2
    %s21 = sadd.s32 1, %s16
    %p22 = scmp.ge.s32.totalorder %s21, 1
    %s23 = scalar_select %p22, 0, %s21
    %s24 = sadd.s32 1, %s15
    %s25 = scalar_select %p22, %s24, %s15
    %p26 = scmp.ge.s32.totalorder %s25, 2
    %s27 = scalar_select %p26, 0, %s25
    %s28 = ssub.s32 %s15, %s27
    %s29 = ssub.s32 %s16, %s23
    %s30 = sor.u32 %s28, %s29
    %p31 = scmp.eq.s32.totalorder %s30, 0
    %s33 = sadd.s32 %s32, 1
    %s34 = scalar_select %p31, %s32, %s33
    %p37 = pneg %p31
    %p38 = scmp.eq.s32.totalorder %s8, 1
    %p39 = por %p37, %p38
    %p40 = scmp.ne.s32.totalorder %s32, %s35
    %p41 = scmp.eq.s32.totalorder %s8, 0
    %p42 = por %p40, %p41
    %p43 = scmp.ne.s32.totalorder %s32, %s35
    %p44 = scmp.eq.s32.totalorder %s13, 1
    %p45 = por %p43, %p44
    %p46 = scmp.ne.s32.totalorder %s35, %s36
    %p47 = scmp.eq.s32.totalorder %s13, 0
    %p48 = por %p46, %p47
    %p49 = scmp.ne.s32.totalorder %s35, %s36
    %p50 = scmp.eq.s32.totalorder %s14, 1
    %p51 = por %p49, %p50
    %p53 = scmp.ne.s32.totalorder %s36, %s52
    %p54 = scmp.eq.s32.totalorder %s14, 0
    %p55 = por %p53, %p54
    %s56 = ssub.s32 %s15, %s27
    %p57 = scmp.eq.s32.totalorder %s56, 0
    %s59 = sadd.s32 %s58, 1
    %s60 = scalar_select %p57, %s58, %s59
    %p63 = pneg %p57
    %p64 = scmp.eq.s32.totalorder %s8, 1
    %p65 = por %p63, %p64
    %p66 = scmp.ne.s32.totalorder %s58, %s61
    %p67 = scmp.eq.s32.totalorder %s8, 0
    %p68 = por %p66, %p67
    %p69 = scmp.ne.s32.totalorder %s58, %s61
    %p70 = scmp.eq.s32.totalorder %s13, 1
    %p71 = por %p69, %p70
    %p72 = scmp.ne.s32.totalorder %s61, %s62
    %p73 = scmp.eq.s32.totalorder %s13, 0
    %p74 = por %p72, %p73
    %p75 = scmp.ne.s32.totalorder %s61, %s62
    %p76 = scmp.eq.s32.totalorder %s14, 1
    %p77 = por %p75, %p76
    %p79 = scmp.ne.s32.totalorder %s62, %s78
    %p80 = scmp.eq.s32.totalorder %s14, 0
    %p81 = por %p79, %p80
    %s82 = ssub.s32 %s15, %s27
    %s83 = ssub.s32 %s16, %s23
    %s84 = sor.u32 %s82, %s83
    %p85 = scmp.eq.s32.totalorder %s84, 0
    %s87 = sadd.s32 %s86, 1
    %s88 = scalar_select %p85, %s86, %s87
    %p91 = pneg %p85
    %p92 = scmp.eq.s32.totalorder %s8, 1
    %p93 = por %p91, %p92
    %p94 = scmp.ne.s32.totalorder %s86, %s89
    %p95 = scmp.eq.s32.totalorder %s8, 0
    %p96 = por %p94, %p95
    %p97 = scmp.ne.s32.totalorder %s86, %s89
    %p98 = scmp.eq.s32.totalorder %s13, 1
    %p99 = por %p97, %p98
    %p100 = scmp.ne.s32.totalorder %s89, %s90
    %p101 = scmp.eq.s32.totalorder %s13, 0
    %p102 = por %p100, %p101
    %p103 = scmp.ne.s32.totalorder %s89, %s90
    %p104 = scmp.eq.s32.totalorder %s14, 1
    %p105 = por %p103, %p104
    %p107 = scmp.ne.s32.totalorder %s90, %s106
    %p108 = scmp.eq.s32.totalorder %s14, 0
    %p109 = por %p107, %p108
    %p110 = scmp.le.s32.totalorder 1, %s8
    %p111 = scmp.lt.s32.totalorder %s8, 3
    %p112 = pnand %p110, %p111
    %p113 = pneg %p112
    // Predicated region
    $region9: #{_lambda_.48} parent=5 // pred_check
      _
    $region10: #{_lambda_.48} parent=5 // pred_check_branch
      %115 = sbr.rel (%p112) target = $region12
    $region11: #{_lambda_.48} parent=5 // pred_region
      %s116 = ssub.s32 %s8, 1
    $region12: #{_lambda_.48} parent=5 // pred_fallthru
      _
    %p117 = scmp.lt.s32.totalorder %s8, 2
    // Predicated region
    $region13: #{_lambda_.48} parent=5 // pred_check
      %p118 = pneg %p117
    $region14: #{_lambda_.48} parent=5 // pred_check_branch
      %120 = sbr.rel (%p118) target = $region16
    $region15: #{_lambda_.48} parent=5 // pred_region
      // Predicated region
      $region17: #{_lambda_.48} parent=15 // pred_check
        %p121 = pneg %p42
      $region18: #{_lambda_.48} parent=15 // pred_check_branch
        %123 = sbr.rel (%p121) target = $region20
      $region19: #{_lambda_.48} parent=15 // pred_region
        %p124 = scmp.lt.s32.totalorder %s15, 1
        %s125 = scalar_select %p124, %s15, 1
        %p126 = scmp.lt.s32.totalorder %s16, 0
        %s127 = scalar_select %p126, %s16, 0
        %s128 = sadd.s32 %s127, %s125
        %s129 = smul.addr %s128, 4
        %s130 = scalar_lea.vmem %s0, %s129
      $region20: #{_lambda_.48} parent=15 // pred_fallthru
        _
      // Predicated region
      $region21: #{_lambda_.48} parent=15 // pred_check
        %p131 = pneg %p68
      $region22: #{_lambda_.48} parent=15 // pred_check_branch
        %133 = sbr.rel (%p131) target = $region24
      $region23: #{_lambda_.48} parent=15 // pred_region
        %p134 = scmp.lt.s32.totalorder %s15, 1
        %s135 = scalar_select %p134, %s15, 1
        %s136 = smul.addr %s135, 2
        %s137 = scalar_lea.vmem %s1, %s136
      $region24: #{_lambda_.48} parent=15 // pred_fallthru
        _
    $region16: #{_lambda_.48} parent=5 // pred_fallthru
      _
    %p138 = scmp.le.s32.totalorder 1, %s8
    %p139 = scmp.lt.s32.totalorder %s8, 3
    %p140 = pnand %p138, %p139
    %p141 = pneg %p140
    // Predicated region
    $region25: #{_lambda_.48} parent=5 // pred_check
      _
    $region26: #{_lambda_.48} parent=5 // pred_check_branch
      %143 = sbr.rel (%p140) target = $region28
    $region27: #{_lambda_.48} parent=5 // pred_region
      %s144 = ssub.s32 %s8, 1
      %p145 = scmp.lt.s32.totalorder %s17, 1
      %s146 = scalar_select %p145, %s17, 1
      %p147 = scmp.lt.s32.totalorder %s18, 0
      %s148 = scalar_select %p147, %s18, 0
      %s149 = sadd.s32 %s148, %s146
      %s150 = smul.addr %s149, 4
      %s151 = scalar_lea.vmem %s0, %s150
      %p152 = pneg %p48
      %p153 = pneg %p45
      %p154 = scmp.lt.s32.totalorder %s17, 1
      %s155 = scalar_select %p154, %s17, 1
      %s156 = smul.addr %s155, 2
      %s157 = scalar_lea.vmem %s1, %s156
      %p158 = pneg %p74
      %p159 = pneg %p71
      %p160 = pneg %p102
      %p161 = pneg %p99
      %p162 = scmp.lt.s32.totalorder %s17, 1
      %s163 = scalar_select %p162, %s17, 1
      %p164 = scmp.lt.s32.totalorder %s18, 0
      %s165 = scalar_select %p164, %s18, 0
      %s166 = sadd.s32 %s165, %s163
      %s167 = smul.addr %s166, 4
      %s168 = scalar_lea.vmem %s2, %s167
      %p169 = scmp.lt.s32.totalorder %s17, 1
      %s170 = scalar_select %p169, %s17, 1
      %p171 = scmp.lt.s32.totalorder %s18, 0
      %s172 = scalar_select %p171, %s18, 0
      %s173 = sadd.s32 %s172, %s170
      %s174 = smul.addr %s173, 4
      %s175 = scalar_lea.vmem %s0, %s174
      %p176 = scmp.lt.s32.totalorder %s17, 1
      %s177 = scalar_select %p176, %s17, 1
      %s178 = smul.addr %s177, 2
      %s179 = scalar_lea.vmem %s1, %s178
      %p180 = scmp.lt.s32.totalorder %s17, 1
      %s181 = scalar_select %p180, %s17, 1
      %p182 = scmp.lt.s32.totalorder %s18, 0
      %s183 = scalar_select %p182, %s18, 0
      %s184 = sadd.s32 %s183, %s181
      %s185 = smul.addr %s184, 4
      %s186 = scalar_lea.vmem %s2, %s185
      %v187 = vld [vmem:[%s175] sm:$0xf]
      %v188 = vld [vmem:[%s179] sm:$0x1]
      %v189 = vlaneseq
      %v190 = vshrl.u32 %v189, 7
      %v191 = vsub.s32 0, %v190
      %v192 = vrot.slane %v188, %v191
      %v193 = vsub.f32 %v187, %v192
      %v194 = vld [vmem:[%s179 + $0x1] sm:$0x1]
      %v195 = vlaneseq
      %v196 = vshrl.u32 %v195, 7
      %v197 = vsub.s32 0, %v196
      %v198 = vrot.slane %v194, %v197
      %v199 = vmul.f32 %v193, %v198
      %vm200 = vcmask 257024
      %201 = vst.msk [vmem:[%s186] sm:$0xf] %vm200, %v199
      %p202 = scmp.lt.s32.totalorder %s17, 1
      %s203 = scalar_select %p202, %s17, 1
      %p204 = scmp.lt.s32.totalorder %s18, 0
      %s205 = scalar_select %p204, %s18, 0
      %s206 = sadd.s32 %s205, %s203
      %s207 = smul.addr %s206, 4
      %s208 = scalar_lea.vmem %s2, %s207
      // Predicated region
      $region29: #{_lambda_.48} parent=27 // pred_check
        %p209 = pneg %p99
      $region30: #{_lambda_.48} parent=27 // pred_check_branch
        %211 = sbr.rel (%p209) target = $region32
      $region31: #{_lambda_.48} parent=27 // pred_region
        _
      $region32: #{_lambda_.48} parent=27 // pred_fallthru
        _
    $region28: #{_lambda_.48} parent=5 // pred_fallthru
      _
    %p212 = scmp.le.s32.totalorder 2, %s8
    // Predicated region
    $region33: #{_lambda_.48} parent=5 // pred_check
      %p213 = pneg %p212
    $region34: #{_lambda_.48} parent=5 // pred_check_branch
      %215 = sbr.rel (%p213) target = $region36
    $region35: #{_lambda_.48} parent=5 // pred_region
      %s216 = ssub.s32 %s8, 2
      // Predicated region
      $region37: #{_lambda_.48} parent=35 // pred_check
        %p217 = pneg %p105
      $region38: #{_lambda_.48} parent=35 // pred_check_branch
        %219 = sbr.rel (%p217) target = $region40
      $region39: #{_lambda_.48} parent=35 // pred_region
        %p220 = scmp.lt.s32.totalorder %s19, 1
        %s221 = scalar_select %p220, %s19, 1
        %p222 = scmp.lt.s32.totalorder %s20, 0
        %s223 = scalar_select %p222, %s20, 0
        %s224 = sadd.s32 %s223, %s221
        %s225 = smul.addr %s224, 4
        %s226 = scalar_lea.vmem %s2, %s225
      $region40: #{_lambda_.48} parent=35 // pred_fallthru
        _
    $region36: #{_lambda_.48} parent=5 // pred_fallthru
      _
  $region6: #{_lambda_.48} parent=0 // loop_footer
    %s12 = sadd.s32 1, %s8
  $region7: #{_lambda_.48} parent=0 // loop_footer_branch
    %7 = sbr.rel target = $region3
  $region8: #{_lambda_.48} parent=0 // loop_exit
    _

// kernel: _lambda_.47
$region0: #{_lambda_.47}
  #allocation0 [shape = 'u32[]', space=smem, size = 0x4, offset = 0x4, fixed_abs, tag = 'smem constant byte address 0x4 - core index']
  #allocation1 [shape = 'u32[144,128]{1,0:T(1,128)}', space=vmem, size = 0x12000, scoped, tag = 'internal scratch']
  %s0 = inlined_call_operand.vmem [shape: f32[2,4,32], index: 0, kind: input, shape index: {}]
  %s1 = inlined_call_operand.vmem [shape: f32[2,2,32], index: 1, kind: output, shape index: {}]
  %s2 = sld [smem:[#allocation0]]
  $region45: #{_lambda_.47} parent=0
    _
  %s4 = ssub.s32 1, %s2
  %s5 = scalar_select 0, %s4, %s2
  loop: start=0, step=1, limit=4
  $region2: #{_lambda_.47} parent=0 // loop_pre_header
    _
  $region3: #{_lambda_.47} parent=0 // loop_header
    %s7 = sphi 0, %s11
    %p8 = scmp.ge.s32.totalorder %s7, 4
    %s14 = sphi 0, %s26
    %s15 = sphi 0, %s22
    %s16 = sphi 0, %s14
    %s17 = sphi 0, %s15
    %s18 = sphi 0, %s16
    %s19 = sphi 0, %s17
    %s31 = sphi 0, %s33
    %s34 = sphi 0, %s31
    %s35 = sphi 0, %s34
    %s51 = sphi 0, %s35
    %s57 = sphi 0, %s59
    %s60 = sphi 0, %s57
    %s61 = sphi 0, %s60
    %s77 = sphi 0, %s61
  $region4: #{_lambda_.47} parent=0 // loop_header_branch
    %10 = sbr.rel (%p8) target = $region8
  $region5: #{_lambda_.47} parent=0 // loop_body
    %s12 = ssub.s32 %s7, 1
    %s13 = ssub.s32 %s7, 2
    %s20 = sadd.s32 1, %s15
    %p21 = scmp.ge.s32.totalorder %s20, 1
    %s22 = scalar_select %p21, 0, %s20
    %s23 = sadd.s32 1, %s14
    %s24 = scalar_select %p21, %s23, %s14
    %p25 = scmp.ge.s32.totalorder %s24, 2
    %s26 = scalar_select %p25, 0, %s24
    %s27 = ssub.s32 %s14, %s26
    %s28 = ssub.s32 %s15, %s22
    %s29 = sor.u32 %s27, %s28
    %p30 = scmp.eq.s32.totalorder %s29, 0
    %s32 = sadd.s32 %s31, 1
    %s33 = scalar_select %p30, %s31, %s32
    %p36 = pneg %p30
    %p37 = scmp.eq.s32.totalorder %s7, 1
    %p38 = por %p36, %p37
    %p39 = scmp.ne.s32.totalorder %s31, %s34
    %p40 = scmp.eq.s32.totalorder %s7, 0
    %p41 = por %p39, %p40
    %p42 = scmp.ne.s32.totalorder %s31, %s34
    %p43 = scmp.eq.s32.totalorder %s12, 1
    %p44 = por %p42, %p43
    %p45 = scmp.ne.s32.totalorder %s34, %s35
    %p46 = scmp.eq.s32.totalorder %s12, 0
    %p47 = por %p45, %p46
    %p48 = scmp.ne.s32.totalorder %s34, %s35
    %p49 = scmp.eq.s32.totalorder %s13, 1
    %p50 = por %p48, %p49
    %p52 = scmp.ne.s32.totalorder %s35, %s51
    %p53 = scmp.eq.s32.totalorder %s13, 0
    %p54 = por %p52, %p53
    %s55 = ssub.s32 %s14, %s26
    %p56 = scmp.eq.s32.totalorder %s55, 0
    %s58 = sadd.s32 %s57, 1
    %s59 = scalar_select %p56, %s57, %s58
    %p62 = pneg %p56
    %p63 = scmp.eq.s32.totalorder %s7, 1
    %p64 = por %p62, %p63
    %p65 = scmp.ne.s32.totalorder %s57, %s60
    %p66 = scmp.eq.s32.totalorder %s7, 0
    %p67 = por %p65, %p66
    %p68 = scmp.ne.s32.totalorder %s57, %s60
    %p69 = scmp.eq.s32.totalorder %s12, 1
    %p70 = por %p68, %p69
    %p71 = scmp.ne.s32.totalorder %s60, %s61
    %p72 = scmp.eq.s32.totalorder %s12, 0
    %p73 = por %p71, %p72
    %p74 = scmp.ne.s32.totalorder %s60, %s61
    %p75 = scmp.eq.s32.totalorder %s13, 1
    %p76 = por %p74, %p75
    %p78 = scmp.ne.s32.totalorder %s61, %s77
    %p79 = scmp.eq.s32.totalorder %s13, 0
    %p80 = por %p78, %p79
    %p81 = scmp.le.s32.totalorder 1, %s7
    %p82 = scmp.lt.s32.totalorder %s7, 3
    %p83 = pnand %p81, %p82
    %p84 = pneg %p83
    // Predicated region
    $region9: #{_lambda_.47} parent=5 // pred_check
      _
    $region10: #{_lambda_.47} parent=5 // pred_check_branch
      %86 = sbr.rel (%p83) target = $region12
    $region11: #{_lambda_.47} parent=5 // pred_region
      %s87 = ssub.s32 %s7, 1
    $region12: #{_lambda_.47} parent=5 // pred_fallthru
      _
    %p88 = scmp.lt.s32.totalorder %s7, 2
    // Predicated region
    $region13: #{_lambda_.47} parent=5 // pred_check
      %p89 = pneg %p88
    $region14: #{_lambda_.47} parent=5 // pred_check_branch
      %91 = sbr.rel (%p89) target = $region16
    $region15: #{_lambda_.47} parent=5 // pred_region
      // Predicated region
      $region17: #{_lambda_.47} parent=15 // pred_check
        %p92 = pneg %p41
      $region18: #{_lambda_.47} parent=15 // pred_check_branch
        %94 = sbr.rel (%p92) target = $region20
      $region19: #{_lambda_.47} parent=15 // pred_region
        %p95 = scmp.lt.s32.totalorder %s14, 1
        %s96 = scalar_select %p95, %s14, 1
        %p97 = scmp.lt.s32.totalorder %s15, 0
        %s98 = scalar_select %p97, %s15, 0
        %s99 = sadd.s32 %s98, %s96
        %s100 = smul.addr %s99, 4
        %s101 = scalar_lea.vmem %s0, %s100
      $region20: #{_lambda_.47} parent=15 // pred_fallthru
        _
    $region16: #{_lambda_.47} parent=5 // pred_fallthru
      _
    %p102 = scmp.le.s32.totalorder 1, %s7
    %p103 = scmp.lt.s32.totalorder %s7, 3
    %p104 = pnand %p102, %p103
    %p105 = pneg %p104
    // Predicated region
    $region21: #{_lambda_.47} parent=5 // pred_check
      _
    $region22: #{_lambda_.47} parent=5 // pred_check_branch
      %107 = sbr.rel (%p104) target = $region24
    $region23: #{_lambda_.47} parent=5 // pred_region
      %s108 = ssub.s32 %s7, 1
      %p109 = scmp.lt.s32.totalorder %s16, 1
      %s110 = scalar_select %p109, %s16, 1
      %p111 = scmp.lt.s32.totalorder %s17, 0
      %s112 = scalar_select %p111, %s17, 0
      %s113 = sadd.s32 %s112, %s110
      %s114 = smul.addr %s113, 4
      %s115 = scalar_lea.vmem %s0, %s114
      %p116 = pneg %p47
      %p117 = pneg %p44
      %p118 = pneg %p73
      %p119 = pneg %p70
      %p120 = scmp.lt.s32.totalorder %s16, 1
      %s121 = scalar_select %p120, %s16, 1
      %s122 = smul.addr %s121, 2
      %s123 = scalar_lea.vmem %s1, %s122
      %p124 = scmp.lt.s32.totalorder %s16, 1
      %s125 = scalar_select %p124, %s16, 1
      %p126 = scmp.lt.s32.totalorder %s17, 0
      %s127 = scalar_select %p126, %s17, 0
      %s128 = sadd.s32 %s127, %s125
      %s129 = smul.addr %s128, 4
      %s130 = scalar_lea.vmem %s0, %s129
      %p131 = scmp.lt.s32.totalorder %s16, 1
      %s132 = scalar_select %p131, %s16, 1
      %s133 = smul.addr %s132, 2
      %s134 = scalar_lea.vmem %s1, %s133
      %p135 = scmp.eq.s32.totalorder %s17, 0
      // Predicated region
      $region25: #{_lambda_.47} parent=23 // pred_check
        %p136 = pneg %p135
      $region26: #{_lambda_.47} parent=23 // pred_check_branch
        %138 = sbr.rel (%p136) target = $region28
      $region27: #{_lambda_.47} parent=23 // pred_region
        %vm139 = vcmask 254976
        %140 = vst.msk [vmem:[%s134] sm:$0x3] %vm139, 0.0
      $region28: #{_lambda_.47} parent=23 // pred_fallthru
        _
      %v141 = vld [vmem:[%s130] sm:$0xf]
      %v142 = vld [vmem:[%s134] sm:$0x1]
      %vm143 = vcmask 257024
      %v144 = vsel %vm143, %v141, 0.0
      %v145 = vrot.slane %v144, 4
      %v146 = vadd.f32 %v144, %v145
      %v147 = vrot.slane %v146, 2
      %v148 = vadd.f32 %v146, %v147
      %v149 = vrot.slane %v148, 1
      %v150 = vadd.f32 %v148, %v149
      %v151 = vadd.f32 %v142, %v150
      %vm152 = vcmask 253952
      %153 = vst.msk [vmem:[%s134] sm:$0x1] %vm152, %v151
      %v154 = vld [vmem:[%s134 + $0x1] sm:$0x1]
      %v155 = vmul.f32 %v141, %v141
      %v156 = vsel %vm143, %v155, 0.0
      %v157 = vrot.slane %v156, 4
      %v158 = vadd.f32 %v156, %v157
      %v159 = vrot.slane %v158, 2
      %v160 = vadd.f32 %v158, %v159
      %v161 = vrot.slane %v160, 1
      %v162 = vadd.f32 %v160, %v161
      %v163 = vadd.f32 %v154, %v162
      %164 = vst.msk [vmem:[%s134 + $0x1] sm:$0x1] %vm152, %v163
      // Predicated region
      $region29: #{_lambda_.47} parent=23 // pred_check
        %p165 = pneg %p135
      $region30: #{_lambda_.47} parent=23 // pred_check_branch
        %167 = sbr.rel (%p165) target = $region32
      $region31: #{_lambda_.47} parent=23 // pred_region
        %v168 = vld [vmem:[%s134] sm:$0x1]
        %v169 = vrcp.pop 4.0
        %v170 = vmul.f32 %v168, %v169
        %v171 = vld [vmem:[%s134 + $0x1] sm:$0x1]
        %v172 = vmul.f32 %v171, %v169
        %v173 = vmul.f32 %v170, %v170
        %v174 = vsub.f32 %v172, %v173
        %175 = vst.msk [vmem:[%s134] sm:$0x1] %vm152, %v170
        %v176 = vmax.f32 %v174, 0.0
        %v177 = vadd.f32 %v176, 1e-05
        %v178 = vrsqrt.pop %v177
        %179 = vst.msk [vmem:[%s134 + $0x1] sm:$0x1] %vm152, %v178
      $region32: #{_lambda_.47} parent=23 // pred_fallthru
        _
      %p180 = scmp.lt.s32.totalorder %s16, 1
      %s181 = scalar_select %p180, %s16, 1
      %s182 = smul.addr %s181, 2
      %s183 = scalar_lea.vmem %s1, %s182
      // Predicated region
      $region33: #{_lambda_.47} parent=23 // pred_check
        %p184 = pneg %p70
      $region34: #{_lambda_.47} parent=23 // pred_check_branch
        %186 = sbr.rel (%p184) target = $region36
      $region35: #{_lambda_.47} parent=23 // pred_region
        _
      $region36: #{_lambda_.47} parent=23 // pred_fallthru
        _
    $region24: #{_lambda_.47} parent=5 // pred_fallthru
      _
    %p187 = scmp.le.s32.totalorder 2, %s7
    // Predicated region
    $region37: #{_lambda_.47} parent=5 // pred_check
      %p188 = pneg %p187
    $region38: #{_lambda_.47} parent=5 // pred_check_branch
      %190 = sbr.rel (%p188) target = $region40
    $region39: #{_lambda_.47} parent=5 // pred_region
      %s191 = ssub.s32 %s7, 2
      // Predicated region
      $region41: #{_lambda_.47} parent=39 // pred_check
        %p192 = pneg %p76
      $region42: #{_lambda_.47} parent=39 // pred_check_branch
        %194 = sbr.rel (%p192) target = $region44
      $region43: #{_lambda_.47} parent=39 // pred_region
        %p195 = scmp.lt.s32.totalorder %s18, 1
        %s196 = scalar_select %p195, %s18, 1
        %s197 = smul.addr %s196, 2
        %s198 = scalar_lea.vmem %s1, %s197
      $region44: #{_lambda_.47} parent=39 // pred_fallthru
        _
    $region40: #{_lambda_.47} parent=5 // pred_fallthru
      _
  $region6: #{_lambda_.47} parent=0 // loop_footer
    %s11 = sadd.s32 1, %s7
  $region7: #{_lambda_.47} parent=0 // loop_footer_branch
    %6 = sbr.rel target = $region3
  $region8: #{_lambda_.47} parent=0 // loop_exit
    _

// kernel: _lambda_.49
$region0: #{_lambda_.49}
  #allocation0 [shape = 'u32[]', space=smem, size = 0x4, offset = 0x4, fixed_abs, tag = 'smem constant byte address 0x4 - core index']
  #allocation1 [shape = 'u32[144,128]{1,0:T(1,128)}', space=vmem, size = 0x12000, scoped, tag = 'internal scratch']
  #allocation2 [shape = 'f32[16,128]{1,0:T(8,128)}', space=vmem, size = 0x2000, scoped, tag = 'scratch operand']
  %s0 = inlined_call_operand.vmem [shape: bf16[16,512], index: 0, kind: input, shape index: {}]
  %s1 = inlined_call_operand.vmem [shape: bf16[512,128], index: 1, kind: input, shape index: {}]
  %s2 = inlined_call_operand.vmem [shape: f32[1,128], index: 2, kind: input, shape index: {}]
  %s3 = inlined_call_operand.vmem [shape: f32[16,128], index: 3, kind: output, shape index: {}]
  %s4 = sld [smem:[#allocation0]]
  $region30: #{_lambda_.49} parent=0
    _
  %s6 = ssub.s32 1, %s4
  %s7 = scalar_select 0, %s6, %s4
  // Predicated region
  $region2: #{_lambda_.49} parent=0 // pred_check
    _
  $region3: #{_lambda_.49} parent=0 // pred_check_branch
    %9 = sbr.rel (0) target = $region5
  $region4: #{_lambda_.49} parent=0 // pred_region
    _
  $region5: #{_lambda_.49} parent=0 // pred_fallthru
    _
  // Predicated region
  $region6: #{_lambda_.49} parent=0 // pred_check
    _
  $region7: #{_lambda_.49} parent=0 // pred_check_branch
    %11 = sbr.rel (0) target = $region9
  $region8: #{_lambda_.49} parent=0 // pred_region
    _
  $region9: #{_lambda_.49} parent=0 // pred_fallthru
    _
  // Predicated region
  $region10: #{_lambda_.49} parent=0 // pred_check
    _
  $region11: #{_lambda_.49} parent=0 // pred_check_branch
    %13 = sbr.rel (0) target = $region13
  $region12: #{_lambda_.49} parent=0 // pred_region
    _
  $region13: #{_lambda_.49} parent=0 // pred_fallthru
    _
  %p16 = scmp.eq.s32.totalorder 0, 0
  // Predicated region
  $region14: #{_lambda_.49} parent=0 // pred_check
    %p17 = pneg %p16
  $region15: #{_lambda_.49} parent=0 // pred_check_branch
    %19 = sbr.rel (%p17) target = $region17
  $region16: #{_lambda_.49} parent=0 // pred_region
    %20 = vst [vmem:[#allocation2] sm:$0xff] 0.0
    %21 = vst [vmem:[#allocation2 + $0x8] sm:$0xff] 0.0
  $region17: #{_lambda_.49} parent=0 // pred_fallthru
    _
  %v22 = vld [vmem:[%s0] sm:$0xff]
  %v23 = vld [vmem:[%s0 + $0x8] sm:$0xff]
  %v24 = vld [vmem:[%s0 + $0x10] sm:$0xff]
  %v25 = vld [vmem:[%s0 + $0x18] sm:$0xff]
  %vm26 = vcmp.ge.bf16.partialorder %v22, 0
  %vm27 = vcmp.ge.bf16.partialorder %v23, 0
  %vm28 = vcmp.ge.bf16.partialorder %v24, 0
  %vm29 = vcmp.ge.bf16.partialorder %v25, 0
  %v30 = vmul.bf16 %v22, 1045249613
  %v31 = vmul.bf16 %v23, 1045249613
  %v32 = vmul.bf16 %v24, 1045249613
  %v33 = vmul.bf16 %v25, 1045249613
  %v34 = vsel %vm26, %v22, %v30
  %v35 = vsel %vm27, %v23, %v31
  %v36 = vsel %vm28, %v24, %v32
  %v37 = vsel %vm29, %v25, %v33
  %v38 = vld [vmem:[#allocation2] sm:$0xff]
  %v39 = vld [vmem:[#allocation2 + $0x8] sm:$0xff]
  %v40 = vld [vmem:[%s1] sm:$0xf]
  %v41 = vld [vmem:[%s1 + $0x4] sm:$0xf]
  %v42 = vld [vmem:[%s1 + $0x8] sm:$0xf]
  %v43 = vld [vmem:[%s1 + $0xc] sm:$0xf]
  %v44 = vld [vmem:[%s1 + $0x10] sm:$0xf]
  %v45 = vld [vmem:[%s1 + $0x14] sm:$0xf]
  %v46 = vld [vmem:[%s1 + $0x18] sm:$0xf]
  %v47 = vld [vmem:[%s1 + $0x1c] sm:$0xf]
  %v48 = vld [vmem:[%s1 + $0x20] sm:$0xf]
  %v49 = vld [vmem:[%s1 + $0x24] sm:$0xf]
  %v50 = vld [vmem:[%s1 + $0x28] sm:$0xf]
  %v51 = vld [vmem:[%s1 + $0x2c] sm:$0xf]
  %v52 = vld [vmem:[%s1 + $0x30] sm:$0xf]
  %v53 = vld [vmem:[%s1 + $0x34] sm:$0xf]
  %v54 = vld [vmem:[%s1 + $0x38] sm:$0xf]
  %v55 = vld [vmem:[%s1 + $0x3c] sm:$0xf]
  %v56 = vld [vmem:[%s1 + $0x40] sm:$0xf]
  %v57 = vld [vmem:[%s1 + $0x44] sm:$0xf]
  %v58 = vld [vmem:[%s1 + $0x48] sm:$0xf]
  %v59 = vld [vmem:[%s1 + $0x4c] sm:$0xf]
  %v60 = vld [vmem:[%s1 + $0x50] sm:$0xf]
  %v61 = vld [vmem:[%s1 + $0x54] sm:$0xf]
  %v62 = vld [vmem:[%s1 + $0x58] sm:$0xf]
  %v63 = vld [vmem:[%s1 + $0x5c] sm:$0xf]
  %v64 = vld [vmem:[%s1 + $0x60] sm:$0xf]
  %v65 = vld [vmem:[%s1 + $0x64] sm:$0xf]
  %v66 = vld [vmem:[%s1 + $0x68] sm:$0xf]
  %v67 = vld [vmem:[%s1 + $0x6c] sm:$0xf]
  %v68 = vld [vmem:[%s1 + $0x70] sm:$0xf]
  %v69 = vld [vmem:[%s1 + $0x74] sm:$0xf]
  %v70 = vld [vmem:[%s1 + $0x78] sm:$0xf]
  %v71 = vld [vmem:[%s1 + $0x7c] sm:$0xf]
  %v72 = vld [vmem:[%s1 + $0x80] sm:$0xf]
  %v73 = vld [vmem:[%s1 + $0x84] sm:$0xf]
  %v74 = vld [vmem:[%s1 + $0x88] sm:$0xf]
  %v75 = vld [vmem:[%s1 + $0x8c] sm:$0xf]
  %v76 = vld [vmem:[%s1 + $0x90] sm:$0xf]
  %v77 = vld [vmem:[%s1 + $0x94] sm:$0xf]
  %v78 = vld [vmem:[%s1 + $0x98] sm:$0xf]
  %v79 = vld [vmem:[%s1 + $0x9c] sm:$0xf]
  %v80 = vld [vmem:[%s1 + $0xa0] sm:$0xf]
  %v81 = vld [vmem:[%s1 + $0xa4] sm:$0xf]
  %v82 = vld [vmem:[%s1 + $0xa8] sm:$0xf]
  %v83 = vld [vmem:[%s1 + $0xac] sm:$0xf]
  %v84 = vld [vmem:[%s1 + $0xb0] sm:$0xf]
  %v85 = vld [vmem:[%s1 + $0xb4] sm:$0xf]
  %v86 = vld [vmem:[%s1 + $0xb8] sm:$0xf]
  %v87 = vld [vmem:[%s1 + $0xbc] sm:$0xf]
  %v88 = vld [vmem:[%s1 + $0xc0] sm:$0xf]
  %v89 = vld [vmem:[%s1 + $0xc4] sm:$0xf]
  %v90 = vld [vmem:[%s1 + $0xc8] sm:$0xf]
  %v91 = vld [vmem:[%s1 + $0xcc] sm:$0xf]
  %v92 = vld [vmem:[%s1 + $0xd0] sm:$0xf]
  %v93 = vld [vmem:[%s1 + $0xd4] sm:$0xf]
  %v94 = vld [vmem:[%s1 + $0xd8] sm:$0xf]
  %v95 = vld [vmem:[%s1 + $0xdc] sm:$0xf]
  %v96 = vld [vmem:[%s1 + $0xe0] sm:$0xf]
  %v97 = vld [vmem:[%s1 + $0xe4] sm:$0xf]
  %v98 = vld [vmem:[%s1 + $0xe8] sm:$0xf]
  %v99 = vld [vmem:[%s1 + $0xec] sm:$0xf]
  %v100 = vld [vmem:[%s1 + $0xf0] sm:$0xf]
  %v101 = vld [vmem:[%s1 + $0xf4] sm:$0xf]
  %v102 = vld [vmem:[%s1 + $0xf8] sm:$0xf]
  %v103 = vld [vmem:[%s1 + $0xfc] sm:$0xf]
  %v108 = vunpack.c.l.b16 %v34
  %v109 = vunpack.c.h.b16 %v34
  %v110 = vunpack.c.l.b16 %v35
  %v111 = vunpack.c.h.b16 %v35
  %v112 = vunpack.c.l.b16 %v36
  %v113 = vunpack.c.h.b16 %v36
  %v114 = vunpack.c.l.b16 %v37
  %v115 = vunpack.c.h.b16 %v37
  %v116 = vpack.c.b16 %v112, %v108
  %v117 = vpack.c.b16 %v113, %v109
  %v118 = vpack.c.b16 %v114, %v110
  %v119 = vpack.c.b16 %v115, %v111
  %v188 = vunpack.c.l.b16 %v40
  %v189 = vunpack.c.l.b16 %v41
  %v190 = vunpack.c.l.b16 %v42
  %v191 = vunpack.c.l.b16 %v43
  %v192 = vunpack.c.l.b16 %v44
  %v193 = vunpack.c.l.b16 %v45
  %v194 = vunpack.c.l.b16 %v46
  %v195 = vunpack.c.l.b16 %v47
  %v196 = vunpack.c.l.b16 %v48
  %v197 = vunpack.c.l.b16 %v49
  %v198 = vunpack.c.l.b16 %v50
  %v199 = vunpack.c.l.b16 %v51
  %v200 = vunpack.c.l.b16 %v52
  %v201 = vunpack.c.l.b16 %v53
  %v202 = vunpack.c.l.b16 %v54
  %v203 = vunpack.c.l.b16 %v55
  %v204 = vunpack.c.l.b16 %v56
  %v205 = vunpack.c.l.b16 %v57
  %v206 = vunpack.c.l.b16 %v58
  %v207 = vunpack.c.l.b16 %v59
  %v208 = vunpack.c.l.b16 %v60
  %v209 = vunpack.c.l.b16 %v61
  %v210 = vunpack.c.l.b16 %v62
  %v211 = vunpack.c.l.b16 %v63
  %v212 = vunpack.c.l.b16 %v64
  %v213 = vunpack.c.l.b16 %v65
  %v214 = vunpack.c.l.b16 %v66
  %v215 = vunpack.c.l.b16 %v67
  %v216 = vunpack.c.l.b16 %v68
  %v217 = vunpack.c.l.b16 %v69
  %v218 = vunpack.c.l.b16 %v70
  %v219 = vunpack.c.l.b16 %v71
  %v220 = vunpack.c.l.b16 %v72
  %v221 = vunpack.c.l.b16 %v73
  %v222 = vunpack.c.l.b16 %v74
  %v223 = vunpack.c.l.b16 %v75
  %v224 = vunpack.c.l.b16 %v76
  %v225 = vunpack.c.l.b16 %v77
  %v226 = vunpack.c.l.b16 %v78
  %v227 = vunpack.c.l.b16 %v79
  %v228 = vunpack.c.l.b16 %v80
  %v229 = vunpack.c.l.b16 %v81
  %v230 = vunpack.c.l.b16 %v82
  %v231 = vunpack.c.l.b16 %v83
  %v232 = vunpack.c.l.b16 %v84
  %v233 = vunpack.c.l.b16 %v85
  %v234 = vunpack.c.l.b16 %v86
  %v235 = vunpack.c.l.b16 %v87
  %v236 = vunpack.c.l.b16 %v88
  %v237 = vunpack.c.l.b16 %v89
  %v238 = vunpack.c.l.b16 %v90
  %v239 = vunpack.c.l.b16 %v91
  %v240 = vunpack.c.l.b16 %v92
  %v241 = vunpack.c.l.b16 %v93
  %v242 = vunpack.c.l.b16 %v94
  %v243 = vunpack.c.l.b16 %v95
  %v244 = vunpack.c.l.b16 %v96
  %v245 = vunpack.c.l.b16 %v97
  %v246 = vunpack.c.l.b16 %v98
  %v247 = vunpack.c.l.b16 %v99
  %v248 = vunpack.c.l.b16 %v100
  %v249 = vunpack.c.l.b16 %v101
  %v250 = vunpack.c.l.b16 %v102
  %v251 = vunpack.c.l.b16 %v103
  %v252 = vpack.c.b16 %v189, %v188
  %v253 = vpack.c.b16 %v191, %v190
  %v254 = vpack.c.b16 %v193, %v192
  %v255 = vpack.c.b16 %v195, %v194
  %v256 = vpack.c.b16 %v197, %v196
  %v257 = vpack.c.b16 %v199, %v198
  %v258 = vpack.c.b16 %v201, %v200
  %v259 = vpack.c.b16 %v203, %v202
  %v260 = vpack.c.b16 %v205, %v204
  %v261 = vpack.c.b16 %v207, %v206
  %v262 = vpack.c.b16 %v209, %v208
  %v263 = vpack.c.b16 %v211, %v210
  %v264 = vpack.c.b16 %v213, %v212
  %v265 = vpack.c.b16 %v215, %v214
  %v266 = vpack.c.b16 %v217, %v216
  %v267 = vpack.c.b16 %v219, %v218
  %v268 = vpack.c.b16 %v221, %v220
  %v269 = vpack.c.b16 %v223, %v222
  %v270 = vpack.c.b16 %v225, %v224
  %v271 = vpack.c.b16 %v227, %v226
  %v272 = vpack.c.b16 %v229, %v228
  %v273 = vpack.c.b16 %v231, %v230
  %v274 = vpack.c.b16 %v233, %v232
  %v275 = vpack.c.b16 %v235, %v234
  %v276 = vpack.c.b16 %v237, %v236
  %v277 = vpack.c.b16 %v239, %v238
  %v278 = vpack.c.b16 %v241, %v240
  %v279 = vpack.c.b16 %v243, %v242
  %v280 = vpack.c.b16 %v245, %v244
  %v281 = vpack.c.b16 %v247, %v246
  %v282 = vpack.c.b16 %v249, %v248
  %v283 = vpack.c.b16 %v251, %v250
  %316 = vmatprep.subr.bf16.mxu0 0
  %317 = vmatpush1.bf16.msra.mxu0 %v259
  %318 = vmatprep.subr.bf16.mxu0 0
  %319 = vmatpush1.bf16.msra.mxu0 %v258
  %320 = vmatprep.subr.bf16.mxu0 0
  %321 = vmatpush1.bf16.msra.mxu0 %v257
  %322 = vmatprep.subr.bf16.mxu0 0
  %323 = vmatpush1.bf16.msra.mxu0 %v256
  %324 = vmatprep.subr.bf16.mxu0 0
  %325 = vmatpush1.bf16.msra.mxu0 %v255
  %326 = vmatprep.subr.bf16.mxu0 0
  %327 = vmatpush1.bf16.msra.mxu0 %v254
  %328 = vmatprep.subr.bf16.mxu0 0
  %329 = vmatpush1.bf16.msra.mxu0 %v253
  %330 = vmatprep.subr.bf16.mxu0 0
  %331 = vmatpush1.bf16.msra.mxu0 %v252
  %332 = vmatprep.subr.bf16.mxu0 0
  %333 = vmatpush2.bf16.msra.mxu0 %v267
  %334 = vmatprep.subr.bf16.mxu0 0
  %335 = vmatpush2.bf16.msra.mxu0 %v266
  %336 = vmatprep.subr.bf16.mxu0 0
  %337 = vmatpush2.bf16.msra.mxu0 %v265
  %338 = vmatprep.subr.bf16.mxu0 0
  %339 = vmatpush2.bf16.msra.mxu0 %v264
  %340 = vmatprep.subr.bf16.mxu0 0
  %341 = vmatpush2.bf16.msra.mxu0 %v263
  %342 = vmatprep.subr.bf16.mxu0 0
  %343 = vmatpush2.bf16.msra.mxu0 %v262
  %344 = vmatprep.subr.bf16.mxu0 0
  %345 = vmatpush2.bf16.msra.mxu0 %v261
  %346 = vmatprep.subr.bf16.mxu0 0
  %347 = vmatpush2.bf16.msra.mxu0 %v260
  %348 = vmatprep.mubr.bf16.mxu0 %v117
  %349 = vmatmul.mubr.bf16.gmra.mxu0 %v116
  %v350 = vpop.f32.mrf.mxu0
  %v351 = vadd.f32 0.0, %v350
  %v352 = vpop.f32.mrf.mxu0
  %v353 = vpop.f32.mrf.mxu0
  %v354 = vadd.f32 0.0, %v353
  %v355 = vpop.f32.mrf.mxu0
  %356 = vdwg.mxu0
  %357 = vmatprep.subr.bf16.mxu0 0
  %358 = vmatpush1.bf16.msra.mxu0 %v275
  %359 = vmatprep.subr.bf16.mxu0 0
  %360 = vmatpush1.bf16.msra.mxu0 %v274
  %361 = vmatprep.subr.bf16.mxu0 0
  %362 = vmatpush1.bf16.msra.mxu0 %v273
  %363 = vmatprep.subr.bf16.mxu0 0
  %364 = vmatpush1.bf16.msra.mxu0 %v272
  %365 = vmatprep.subr.bf16.mxu0 0
  %366 = vmatpush1.bf16.msra.mxu0 %v271
  %367 = vmatprep.subr.bf16.mxu0 0
  %368 = vmatpush1.bf16.msra.mxu0 %v270
  %369 = vmatprep.subr.bf16.mxu0 0
  %370 = vmatpush1.bf16.msra.mxu0 %v269
  %371 = vmatprep.subr.bf16.mxu0 0
  %372 = vmatpush1.bf16.msra.mxu0 %v268
  %373 = vmatprep.subr.bf16.mxu0 0
  %374 = vmatpush2.bf16.msra.mxu0 %v283
  %375 = vmatprep.subr.bf16.mxu0 0
  %376 = vmatpush2.bf16.msra.mxu0 %v282
  %377 = vmatprep.subr.bf16.mxu0 0
  %378 = vmatpush2.bf16.msra.mxu0 %v281
  %379 = vmatprep.subr.bf16.mxu0 0
  %380 = vmatpush2.bf16.msra.mxu0 %v280
  %381 = vmatprep.subr.bf16.mxu0 0
  %382 = vmatpush2.bf16.msra.mxu0 %v279
  %383 = vmatprep.subr.bf16.mxu0 0
  %384 = vmatpush2.bf16.msra.mxu0 %v278
  %385 = vmatprep.subr.bf16.mxu0 0
  %386 = vmatpush2.bf16.msra.mxu0 %v277
  %387 = vmatprep.subr.bf16.mxu0 0
  %388 = vmatpush2.bf16.msra.mxu0 %v276
  %389 = vmatprep.mubr.bf16.mxu0 %v119
  %390 = vmatmul.mubr.bf16.gmra.mxu0 %v118
  %v391 = vpop.f32.mrf.mxu0
  %v392 = vadd.f32 %v351, %v391
  %v393 = vpop.f32.mrf.mxu0
  %v394 = vpop.f32.mrf.mxu0
  %v395 = vadd.f32 %v354, %v394
  %v396 = vpop.f32.mrf.mxu0
  %397 = vdwg.mxu0
  %v398 = vadd.f32 %v38, %v392
  %v399 = vadd.f32 %v39, %v395
  %400 = vst [vmem:[#allocation2] sm:$0xff] %v398
  %401 = vst [vmem:[#allocation2 + $0x8] sm:$0xff] %v399
  // Predicated region
  $region18: #{_lambda_.49} parent=0 // pred_check
    %p402 = pneg %p16
  $region19: #{_lambda_.49} parent=0 // pred_check_branch
    %404 = sbr.rel (%p402) target = $region21
  $region20: #{_lambda_.49} parent=0 // pred_region
    %v405 = vld [vmem:[#allocation2] sm:$0xff]
    %v406 = vld [vmem:[#allocation2 + $0x8] sm:$0xff]
    %v407 = vld [vmem:[%s2] sm:$0x1]
    %v409 = vlaneseq
    %v410 = vshrl.u32 %v409, 7
    %v411 = vsub.s32 0, %v410
    %v412 = vrot.slane %v407, %v411
    %v414 = vadd.f32 %v405, %v412
    %v415 = vadd.f32 %v406, %v412
    %416 = vst [vmem:[%s3] sm:$0xff] %v414
    %417 = vst [vmem:[%s3 + $0x8] sm:$0xff] %v415
  $region21: #{_lambda_.49} parent=0 // pred_fallthru
    _
  // Predicated region
  $region22: #{_lambda_.49} parent=0 // pred_check
    _
  $region23: #{_lambda_.49} parent=0 // pred_check_branch
    %419 = sbr.rel (0) target = $region25
  $region24: #{_lambda_.49} parent=0 // pred_region
    _
  $region25: #{_lambda_.49} parent=0 // pred_fallthru
    _
  // Predicated region
  $region26: #{_lambda_.49} parent=0 // pred_check
    _
  $region27: #{_lambda_.49} parent=0 // pred_check_branch
    %421 = sbr.rel (0) target = $region29
  $region28: #{_lambda_.49} parent=0 // pred_region
    _
  $region29: #{_lambda_.49} parent=0 // pred_fallthru
    _

// kernel: _lambda_.50
$region0: #{_lambda_.50}
  #allocation0 [shape = 'u32[]', space=smem, size = 0x4, offset = 0x4, fixed_abs, tag = 'smem constant byte address 0x4 - core index']
  #allocation1 [shape = 'u32[144,128]{1,0:T(1,128)}', space=vmem, size = 0x12000, scoped, tag = 'internal scratch']
  #allocation2 [shape = 'f32[16,128]{1,0:T(8,128)}', space=vmem, size = 0x2000, scoped, tag = 'scratch operand']
  %s0 = inlined_call_operand.vmem [shape: bf16[16,128], index: 0, kind: input, shape index: {}]
  %s1 = inlined_call_operand.vmem [shape: bf16[128,128], index: 1, kind: input, shape index: {}]
  %s2 = inlined_call_operand.vmem [shape: f32[1,128], index: 2, kind: input, shape index: {}]
  %s3 = inlined_call_operand.vmem [shape: f32[16,128], index: 3, kind: output, shape index: {}]
  %s4 = sld [smem:[#allocation0]]
  $region30: #{_lambda_.50} parent=0
    _
  %s6 = ssub.s32 1, %s4
  %s7 = scalar_select 0, %s6, %s4
  // Predicated region
  $region2: #{_lambda_.50} parent=0 // pred_check
    _
  $region3: #{_lambda_.50} parent=0 // pred_check_branch
    %9 = sbr.rel (0) target = $region5
  $region4: #{_lambda_.50} parent=0 // pred_region
    _
  $region5: #{_lambda_.50} parent=0 // pred_fallthru
    _
  // Predicated region
  $region6: #{_lambda_.50} parent=0 // pred_check
    _
  $region7: #{_lambda_.50} parent=0 // pred_check_branch
    %11 = sbr.rel (0) target = $region9
  $region8: #{_lambda_.50} parent=0 // pred_region
    _
  $region9: #{_lambda_.50} parent=0 // pred_fallthru
    _
  // Predicated region
  $region10: #{_lambda_.50} parent=0 // pred_check
    _
  $region11: #{_lambda_.50} parent=0 // pred_check_branch
    %13 = sbr.rel (0) target = $region13
  $region12: #{_lambda_.50} parent=0 // pred_region
    _
  $region13: #{_lambda_.50} parent=0 // pred_fallthru
    _
  %p15 = scmp.eq.s32.totalorder 0, 0
  // Predicated region
  $region14: #{_lambda_.50} parent=0 // pred_check
    %p16 = pneg %p15
  $region15: #{_lambda_.50} parent=0 // pred_check_branch
    %18 = sbr.rel (%p16) target = $region17
  $region16: #{_lambda_.50} parent=0 // pred_region
    %19 = vst [vmem:[#allocation2] sm:$0xff] 0.0
    %20 = vst [vmem:[#allocation2 + $0x8] sm:$0xff] 0.0
  $region17: #{_lambda_.50} parent=0 // pred_fallthru
    _
  %v21 = vld [vmem:[%s0] sm:$0xf]
  %v22 = vld [vmem:[%s0 + $0x4] sm:$0xf]
  %v23 = vmax.bf16 %v21, 0
  %v24 = vmax.bf16 %v22, 0
  %v25 = vld [vmem:[#allocation2] sm:$0xff]
  %v26 = vld [vmem:[#allocation2 + $0x8] sm:$0xff]
  %v27 = vld [vmem:[%s1] sm:$0xf]
  %v28 = vld [vmem:[%s1 + $0x4] sm:$0xf]
  %v29 = vld [vmem:[%s1 + $0x8] sm:$0xf]
  %v30 = vld [vmem:[%s1 + $0xc] sm:$0xf]
  %v31 = vld [vmem:[%s1 + $0x10] sm:$0xf]
  %v32 = vld [vmem:[%s1 + $0x14] sm:$0xf]
  %v33 = vld [vmem:[%s1 + $0x18] sm:$0xf]
  %v34 = vld [vmem:[%s1 + $0x1c] sm:$0xf]
  %v35 = vld [vmem:[%s1 + $0x20] sm:$0xf]
  %v36 = vld [vmem:[%s1 + $0x24] sm:$0xf]
  %v37 = vld [vmem:[%s1 + $0x28] sm:$0xf]
  %v38 = vld [vmem:[%s1 + $0x2c] sm:$0xf]
  %v39 = vld [vmem:[%s1 + $0x30] sm:$0xf]
  %v40 = vld [vmem:[%s1 + $0x34] sm:$0xf]
  %v41 = vld [vmem:[%s1 + $0x38] sm:$0xf]
  %v42 = vld [vmem:[%s1 + $0x3c] sm:$0xf]
  %v45 = vunpack.c.l.b16 %v23
  %v46 = vunpack.c.l.b16 %v24
  %v47 = vpack.c.b16 %v46, %v45
  %v65 = vunpack.c.l.b16 %v27
  %v66 = vunpack.c.l.b16 %v28
  %v67 = vunpack.c.l.b16 %v29
  %v68 = vunpack.c.l.b16 %v30
  %v69 = vunpack.c.l.b16 %v31
  %v70 = vunpack.c.l.b16 %v32
  %v71 = vunpack.c.l.b16 %v33
  %v72 = vunpack.c.l.b16 %v34
  %v73 = vunpack.c.l.b16 %v35
  %v74 = vunpack.c.l.b16 %v36
  %v75 = vunpack.c.l.b16 %v37
  %v76 = vunpack.c.l.b16 %v38
  %v77 = vunpack.c.l.b16 %v39
  %v78 = vunpack.c.l.b16 %v40
  %v79 = vunpack.c.l.b16 %v41
  %v80 = vunpack.c.l.b16 %v42
  %v81 = vpack.c.b16 %v66, %v65
  %v82 = vpack.c.b16 %v68, %v67
  %v83 = vpack.c.b16 %v70, %v69
  %v84 = vpack.c.b16 %v72, %v71
  %v85 = vpack.c.b16 %v74, %v73
  %v86 = vpack.c.b16 %v76, %v75
  %v87 = vpack.c.b16 %v78, %v77
  %v88 = vpack.c.b16 %v80, %v79
  %97 = vmatprep.subr.bf16.mxu0 0
  %98 = vmatpush1.bf16.msra.mxu0 %v88
  %99 = vmatprep.subr.bf16.mxu0 0
  %100 = vmatpush1.bf16.msra.mxu0 %v87
  %101 = vmatprep.subr.bf16.mxu0 0
  %102 = vmatpush1.bf16.msra.mxu0 %v86
  %103 = vmatprep.subr.bf16.mxu0 0
  %104 = vmatpush1.bf16.msra.mxu0 %v85
  %105 = vmatprep.subr.bf16.mxu0 0
  %106 = vmatpush1.bf16.msra.mxu0 %v84
  %107 = vmatprep.subr.bf16.mxu0 0
  %108 = vmatpush1.bf16.msra.mxu0 %v83
  %109 = vmatprep.subr.bf16.mxu0 0
  %110 = vmatpush1.bf16.msra.mxu0 %v82
  %111 = vmatprep.subr.bf16.mxu0 0
  %112 = vmatpush1.bf16.msra.mxu0 %v81
  %113 = vmatprep.subr.bf16.mxu0 0
  %114 = vmatpush2.bf16.msra.mxu0 0
  %115 = vmatprep.subr.bf16.mxu0 0
  %116 = vmatpush2.bf16.msra.mxu0 0
  %117 = vmatprep.subr.bf16.mxu0 0
  %118 = vmatpush2.bf16.msra.mxu0 0
  %119 = vmatprep.subr.bf16.mxu0 0
  %120 = vmatpush2.bf16.msra.mxu0 0
  %121 = vmatprep.subr.bf16.mxu0 0
  %122 = vmatpush2.bf16.msra.mxu0 0
  %123 = vmatprep.subr.bf16.mxu0 0
  %124 = vmatpush2.bf16.msra.mxu0 0
  %125 = vmatprep.subr.bf16.mxu0 0
  %126 = vmatpush2.bf16.msra.mxu0 0
  %127 = vmatprep.subr.bf16.mxu0 0
  %128 = vmatpush2.bf16.msra.mxu0 0
  %129 = vmatprep.mubr.bf16.mxu0 0
  %130 = vmatmul.mubr.bf16.gmra.mxu0 %v47
  %v131 = vpop.f32.mrf.mxu0
  %v132 = vadd.f32 0.0, %v131
  %v133 = vpop.f32.mrf.mxu0
  %v134 = vpop.f32.mrf.mxu0
  %v135 = vadd.f32 0.0, %v134
  %v136 = vpop.f32.mrf.mxu0
  %137 = vdwg.mxu0
  %v138 = vadd.f32 %v25, %v132
  %v139 = vadd.f32 %v26, %v135
  %140 = vst [vmem:[#allocation2] sm:$0xff] %v138
  %141 = vst [vmem:[#allocation2 + $0x8] sm:$0xff] %v139
  // Predicated region
  $region18: #{_lambda_.50} parent=0 // pred_check
    %p142 = pneg %p15
  $region19: #{_lambda_.50} parent=0 // pred_check_branch
    %144 = sbr.rel (%p142) target = $region21
  $region20: #{_lambda_.50} parent=0 // pred_region
    %v145 = vld [vmem:[#allocation2] sm:$0xff]
    %v146 = vld [vmem:[#allocation2 + $0x8] sm:$0xff]
    %v147 = vld [vmem:[%s2] sm:$0x1]
    %v149 = vlaneseq
    %v150 = vshrl.u32 %v149, 7
    %v151 = vsub.s32 0, %v150
    %v152 = vrot.slane %v147, %v151
    %v154 = vadd.f32 %v145, %v152
    %v155 = vadd.f32 %v146, %v152
    %156 = vst [vmem:[%s3] sm:$0xff] %v154
    %157 = vst [vmem:[%s3 + $0x8] sm:$0xff] %v155
  $region21: #{_lambda_.50} parent=0 // pred_fallthru
    _
  // Predicated region
  $region22: #{_lambda_.50} parent=0 // pred_check
    _
  $region23: #{_lambda_.50} parent=0 // pred_check_branch
    %159 = sbr.rel (0) target = $region25
  $region24: #{_lambda_.50} parent=0 // pred_region
    _
  $region25: #{_lambda_.50} parent=0 // pred_fallthru
    _
  // Predicated region
  $region26: #{_lambda_.50} parent=0 // pred_check
    _
  $region27: #{_lambda_.50} parent=0 // pred_check_branch
    %161 = sbr.rel (0) target = $region29
  $region28: #{_lambda_.50} parent=0 // pred_region
    _
  $region29: #{_lambda_.50} parent=0 // pred_fallthru
    _

// kernel: _lambda_.56
$region0: #{_lambda_.56}
  #allocation0 [shape = 'u32[]', space=smem, size = 0x4, offset = 0x4, fixed_abs, tag = 'smem constant byte address 0x4 - core index']
  #allocation1 [shape = 'u32[144,128]{1,0:T(1,128)}', space=vmem, size = 0x12000, scoped, tag = 'internal scratch']
  #allocation2 [shape = 'f32[16,128]{1,0:T(8,128)}', space=vmem, size = 0x2000, scoped, tag = 'scratch operand']
  %s0 = inlined_call_operand.vmem [shape: bf16[16,256], index: 0, kind: input, shape index: {}]
  %s1 = inlined_call_operand.vmem [shape: bf16[256,128], index: 1, kind: input, shape index: {}]
  %s2 = inlined_call_operand.vmem [shape: f32[1,128], index: 2, kind: input, shape index: {}]
  %s3 = inlined_call_operand.vmem [shape: f32[16,128], index: 3, kind: output, shape index: {}]
  %s4 = sld [smem:[#allocation0]]
  $region30: #{_lambda_.56} parent=0
    _
  %s6 = ssub.s32 1, %s4
  %s7 = scalar_select 0, %s6, %s4
  // Predicated region
  $region2: #{_lambda_.56} parent=0 // pred_check
    _
  $region3: #{_lambda_.56} parent=0 // pred_check_branch
    %9 = sbr.rel (0) target = $region5
  $region4: #{_lambda_.56} parent=0 // pred_region
    _
  $region5: #{_lambda_.56} parent=0 // pred_fallthru
    _
  // Predicated region
  $region6: #{_lambda_.56} parent=0 // pred_check
    _
  $region7: #{_lambda_.56} parent=0 // pred_check_branch
    %11 = sbr.rel (0) target = $region9
  $region8: #{_lambda_.56} parent=0 // pred_region
    _
  $region9: #{_lambda_.56} parent=0 // pred_fallthru
    _
  // Predicated region
  $region10: #{_lambda_.56} parent=0 // pred_check
    _
  $region11: #{_lambda_.56} parent=0 // pred_check_branch
    %13 = sbr.rel (0) target = $region13
  $region12: #{_lambda_.56} parent=0 // pred_region
    _
  $region13: #{_lambda_.56} parent=0 // pred_fallthru
    _
  %p15 = scmp.eq.s32.totalorder 0, 0
  // Predicated region
  $region14: #{_lambda_.56} parent=0 // pred_check
    %p16 = pneg %p15
  $region15: #{_lambda_.56} parent=0 // pred_check_branch
    %18 = sbr.rel (%p16) target = $region17
  $region16: #{_lambda_.56} parent=0 // pred_region
    %19 = vst [vmem:[#allocation2] sm:$0xff] 0.0
    %20 = vst [vmem:[#allocation2 + $0x8] sm:$0xff] 0.0
  $region17: #{_lambda_.56} parent=0 // pred_fallthru
    _
  %v21 = vld [vmem:[%s0] sm:$0xff]
  %v22 = vld [vmem:[%s0 + $0x8] sm:$0xff]
  %v23 = vmax.bf16 %v21, 0
  %v24 = vmax.bf16 %v22, 0
  %v25 = vld [vmem:[#allocation2] sm:$0xff]
  %v26 = vld [vmem:[#allocation2 + $0x8] sm:$0xff]
  %v27 = vld [vmem:[%s1] sm:$0xf]
  %v28 = vld [vmem:[%s1 + $0x4] sm:$0xf]
  %v29 = vld [vmem:[%s1 + $0x8] sm:$0xf]
  %v30 = vld [vmem:[%s1 + $0xc] sm:$0xf]
  %v31 = vld [vmem:[%s1 + $0x10] sm:$0xf]
  %v32 = vld [vmem:[%s1 + $0x14] sm:$0xf]
  %v33 = vld [vmem:[%s1 + $0x18] sm:$0xf]
  %v34 = vld [vmem:[%s1 + $0x1c] sm:$0xf]
  %v35 = vld [vmem:[%s1 + $0x20] sm:$0xf]
  %v36 = vld [vmem:[%s1 + $0x24] sm:$0xf]
  %v37 = vld [vmem:[%s1 + $0x28] sm:$0xf]
  %v38 = vld [vmem:[%s1 + $0x2c] sm:$0xf]
  %v39 = vld [vmem:[%s1 + $0x30] sm:$0xf]
  %v40 = vld [vmem:[%s1 + $0x34] sm:$0xf]
  %v41 = vld [vmem:[%s1 + $0x38] sm:$0xf]
  %v42 = vld [vmem:[%s1 + $0x3c] sm:$0xf]
  %v43 = vld [vmem:[%s1 + $0x40] sm:$0xf]
  %v44 = vld [vmem:[%s1 + $0x44] sm:$0xf]
  %v45 = vld [vmem:[%s1 + $0x48] sm:$0xf]
  %v46 = vld [vmem:[%s1 + $0x4c] sm:$0xf]
  %v47 = vld [vmem:[%s1 + $0x50] sm:$0xf]
  %v48 = vld [vmem:[%s1 + $0x54] sm:$0xf]
  %v49 = vld [vmem:[%s1 + $0x58] sm:$0xf]
  %v50 = vld [vmem:[%s1 + $0x5c] sm:$0xf]
  %v51 = vld [vmem:[%s1 + $0x60] sm:$0xf]
  %v52 = vld [vmem:[%s1 + $0x64] sm:$0xf]
  %v53 = vld [vmem:[%s1 + $0x68] sm:$0xf]
  %v54 = vld [vmem:[%s1 + $0x6c] sm:$0xf]
  %v55 = vld [vmem:[%s1 + $0x70] sm:$0xf]
  %v56 = vld [vmem:[%s1 + $0x74] sm:$0xf]
  %v57 = vld [vmem:[%s1 + $0x78] sm:$0xf]
  %v58 = vld [vmem:[%s1 + $0x7c] sm:$0xf]
  %v61 = vunpack.c.l.b16 %v23
  %v62 = vunpack.c.h.b16 %v23
  %v63 = vunpack.c.l.b16 %v24
  %v64 = vunpack.c.h.b16 %v24
  %v65 = vpack.c.b16 %v63, %v61
  %v66 = vpack.c.b16 %v64, %v62
  %v101 = vunpack.c.l.b16 %v27
  %v102 = vunpack.c.l.b16 %v28
  %v103 = vunpack.c.l.b16 %v29
  %v104 = vunpack.c.l.b16 %v30
  %v105 = vunpack.c.l.b16 %v31
  %v106 = vunpack.c.l.b16 %v32
  %v107 = vunpack.c.l.b16 %v33
  %v108 = vunpack.c.l.b16 %v34
  %v109 = vunpack.c.l.b16 %v35
  %v110 = vunpack.c.l.b16 %v36
  %v111 = vunpack.c.l.b16 %v37
  %v112 = vunpack.c.l.b16 %v38
  %v113 = vunpack.c.l.b16 %v39
  %v114 = vunpack.c.l.b16 %v40
  %v115 = vunpack.c.l.b16 %v41
  %v116 = vunpack.c.l.b16 %v42
  %v117 = vunpack.c.l.b16 %v43
  %v118 = vunpack.c.l.b16 %v44
  %v119 = vunpack.c.l.b16 %v45
  %v120 = vunpack.c.l.b16 %v46
  %v121 = vunpack.c.l.b16 %v47
  %v122 = vunpack.c.l.b16 %v48
  %v123 = vunpack.c.l.b16 %v49
  %v124 = vunpack.c.l.b16 %v50
  %v125 = vunpack.c.l.b16 %v51
  %v126 = vunpack.c.l.b16 %v52
  %v127 = vunpack.c.l.b16 %v53
  %v128 = vunpack.c.l.b16 %v54
  %v129 = vunpack.c.l.b16 %v55
  %v130 = vunpack.c.l.b16 %v56
  %v131 = vunpack.c.l.b16 %v57
  %v132 = vunpack.c.l.b16 %v58
  %v133 = vpack.c.b16 %v102, %v101
  %v134 = vpack.c.b16 %v104, %v103
  %v135 = vpack.c.b16 %v106, %v105
  %v136 = vpack.c.b16 %v108, %v107
  %v137 = vpack.c.b16 %v110, %v109
  %v138 = vpack.c.b16 %v112, %v111
  %v139 = vpack.c.b16 %v114, %v113
  %v140 = vpack.c.b16 %v116, %v115
  %v141 = vpack.c.b16 %v118, %v117
  %v142 = vpack.c.b16 %v120, %v119
  %v143 = vpack.c.b16 %v122, %v121
  %v144 = vpack.c.b16 %v124, %v123
  %v145 = vpack.c.b16 %v126, %v125
  %v146 = vpack.c.b16 %v128, %v127
  %v147 = vpack.c.b16 %v130, %v129
  %v148 = vpack.c.b16 %v132, %v131
  %165 = vmatprep.subr.bf16.mxu0 0
  %166 = vmatpush1.bf16.msra.mxu0 %v140
  %167 = vmatprep.subr.bf16.mxu0 0
  %168 = vmatpush1.bf16.msra.mxu0 %v139
  %169 = vmatprep.subr.bf16.mxu0 0
  %170 = vmatpush1.bf16.msra.mxu0 %v138
  %171 = vmatprep.subr.bf16.mxu0 0
  %172 = vmatpush1.bf16.msra.mxu0 %v137
  %173 = vmatprep.subr.bf16.mxu0 0
  %174 = vmatpush1.bf16.msra.mxu0 %v136
  %175 = vmatprep.subr.bf16.mxu0 0
  %176 = vmatpush1.bf16.msra.mxu0 %v135
  %177 = vmatprep.subr.bf16.mxu0 0
  %178 = vmatpush1.bf16.msra.mxu0 %v134
  %179 = vmatprep.subr.bf16.mxu0 0
  %180 = vmatpush1.bf16.msra.mxu0 %v133
  %181 = vmatprep.subr.bf16.mxu0 0
  %182 = vmatpush2.bf16.msra.mxu0 %v148
  %183 = vmatprep.subr.bf16.mxu0 0
  %184 = vmatpush2.bf16.msra.mxu0 %v147
  %185 = vmatprep.subr.bf16.mxu0 0
  %186 = vmatpush2.bf16.msra.mxu0 %v146
  %187 = vmatprep.subr.bf16.mxu0 0
  %188 = vmatpush2.bf16.msra.mxu0 %v145
  %189 = vmatprep.subr.bf16.mxu0 0
  %190 = vmatpush2.bf16.msra.mxu0 %v144
  %191 = vmatprep.subr.bf16.mxu0 0
  %192 = vmatpush2.bf16.msra.mxu0 %v143
  %193 = vmatprep.subr.bf16.mxu0 0
  %194 = vmatpush2.bf16.msra.mxu0 %v142
  %195 = vmatprep.subr.bf16.mxu0 0
  %196 = vmatpush2.bf16.msra.mxu0 %v141
  %197 = vmatprep.mubr.bf16.mxu0 %v66
  %198 = vmatmul.mubr.bf16.gmra.mxu0 %v65
  %v199 = vpop.f32.mrf.mxu0
  %v200 = vadd.f32 0.0, %v199
  %v201 = vpop.f32.mrf.mxu0
  %v202 = vpop.f32.mrf.mxu0
  %v203 = vadd.f32 0.0, %v202
  %v204 = vpop.f32.mrf.mxu0
  %205 = vdwg.mxu0
  %v206 = vadd.f32 %v25, %v200
  %v207 = vadd.f32 %v26, %v203
  %208 = vst [vmem:[#allocation2] sm:$0xff] %v206
  %209 = vst [vmem:[#allocation2 + $0x8] sm:$0xff] %v207
  // Predicated region
  $region18: #{_lambda_.56} parent=0 // pred_check
    %p210 = pneg %p15
  $region19: #{_lambda_.56} parent=0 // pred_check_branch
    %212 = sbr.rel (%p210) target = $region21
  $region20: #{_lambda_.56} parent=0 // pred_region
    %v213 = vld [vmem:[#allocation2] sm:$0xff]
    %v214 = vld [vmem:[#allocation2 + $0x8] sm:$0xff]
    %v215 = vld [vmem:[%s2] sm:$0x1]
    %v217 = vlaneseq
    %v218 = vshrl.u32 %v217, 7
    %v219 = vsub.s32 0, %v218
    %v220 = vrot.slane %v215, %v219
    %v222 = vadd.f32 %v213, %v220
    %v223 = vadd.f32 %v214, %v220
    %224 = vst [vmem:[%s3] sm:$0xff] %v222
    %225 = vst [vmem:[%s3 + $0x8] sm:$0xff] %v223
  $region21: #{_lambda_.56} parent=0 // pred_fallthru
    _
  // Predicated region
  $region22: #{_lambda_.56} parent=0 // pred_check
    _
  $region23: #{_lambda_.56} parent=0 // pred_check_branch
    %227 = sbr.rel (0) target = $region25
  $region24: #{_lambda_.56} parent=0 // pred_region
    _
  $region25: #{_lambda_.56} parent=0 // pred_fallthru
    _
  // Predicated region
  $region26: #{_lambda_.56} parent=0 // pred_check
    _
  $region27: #{_lambda_.56} parent=0 // pred_check_branch
    %229 = sbr.rel (0) target = $region29
  $region28: #{_lambda_.56} parent=0 // pred_region
    _
  $region29: #{_lambda_.56} parent=0 // pred_fallthru
    _

// kernel: _lambda_.62
$region0: #{_lambda_.62}
  #allocation0 [shape = 'u32[]', space=smem, size = 0x4, offset = 0x4, fixed_abs, tag = 'smem constant byte address 0x4 - core index']
  #allocation1 [shape = 'u32[144,128]{1,0:T(1,128)}', space=vmem, size = 0x12000, scoped, tag = 'internal scratch']
  #allocation2 [shape = 'f32[32,128]{1,0:T(8,128)}', space=vmem, size = 0x4000, scoped, tag = 'scratch operand']
  %s0 = inlined_call_operand.vmem [shape: bf16[32,128], index: 0, kind: input, shape index: {}]
  %s1 = inlined_call_operand.vmem [shape: bf16[128,128], index: 1, kind: input, shape index: {}]
  %s2 = inlined_call_operand.vmem [shape: f32[1,128], index: 2, kind: input, shape index: {}]
  %s3 = inlined_call_operand.vmem [shape: f32[32,128], index: 3, kind: output, shape index: {}]
  %s4 = sld [smem:[#allocation0]]
  $region30: #{_lambda_.62} parent=0
    _
  %s6 = ssub.s32 1, %s4
  %s7 = scalar_select 0, %s6, %s4
  // Predicated region
  $region2: #{_lambda_.62} parent=0 // pred_check
    _
  $region3: #{_lambda_.62} parent=0 // pred_check_branch
    %9 = sbr.rel (0) target = $region5
  $region4: #{_lambda_.62} parent=0 // pred_region
    _
  $region5: #{_lambda_.62} parent=0 // pred_fallthru
    _
  // Predicated region
  $region6: #{_lambda_.62} parent=0 // pred_check
    _
  $region7: #{_lambda_.62} parent=0 // pred_check_branch
    %11 = sbr.rel (0) target = $region9
  $region8: #{_lambda_.62} parent=0 // pred_region
    _
  $region9: #{_lambda_.62} parent=0 // pred_fallthru
    _
  // Predicated region
  $region10: #{_lambda_.62} parent=0 // pred_check
    _
  $region11: #{_lambda_.62} parent=0 // pred_check_branch
    %13 = sbr.rel (0) target = $region13
  $region12: #{_lambda_.62} parent=0 // pred_region
    _
  $region13: #{_lambda_.62} parent=0 // pred_fallthru
    _
  %p15 = scmp.eq.s32.totalorder 0, 0
  // Predicated region
  $region14: #{_lambda_.62} parent=0 // pred_check
    %p16 = pneg %p15
  $region15: #{_lambda_.62} parent=0 // pred_check_branch
    %18 = sbr.rel (%p16) target = $region17
  $region16: #{_lambda_.62} parent=0 // pred_region
    %19 = vst [vmem:[#allocation2] sm:$0xff] 0.0
    %20 = vst [vmem:[#allocation2 + $0x8] sm:$0xff] 0.0
    %21 = vst [vmem:[#allocation2 + $0x10] sm:$0xff] 0.0
    %22 = vst [vmem:[#allocation2 + $0x18] sm:$0xff] 0.0
  $region17: #{_lambda_.62} parent=0 // pred_fallthru
    _
  %v23 = vld [vmem:[%s0] sm:$0xf]
  %v24 = vld [vmem:[%s0 + $0x4] sm:$0xf]
  %v25 = vld [vmem:[%s0 + $0x8] sm:$0xf]
  %v26 = vld [vmem:[%s0 + $0xc] sm:$0xf]
  %v27 = vmax.bf16 %v23, 0
  %v28 = vmax.bf16 %v24, 0
  %v29 = vmax.bf16 %v25, 0
  %v30 = vmax.bf16 %v26, 0
  %v31 = vld [vmem:[#allocation2] sm:$0xff]
  %v32 = vld [vmem:[#allocation2 + $0x8] sm:$0xff]
  %v33 = vld [vmem:[#allocation2 + $0x10] sm:$0xff]
  %v34 = vld [vmem:[#allocation2 + $0x18] sm:$0xff]
  %v35 = vld [vmem:[%s1] sm:$0xf]
  %v36 = vld [vmem:[%s1 + $0x4] sm:$0xf]
  %v37 = vld [vmem:[%s1 + $0x8] sm:$0xf]
  %v38 = vld [vmem:[%s1 + $0xc] sm:$0xf]
  %v39 = vld [vmem:[%s1 + $0x10] sm:$0xf]
  %v40 = vld [vmem:[%s1 + $0x14] sm:$0xf]
  %v41 = vld [vmem:[%s1 + $0x18] sm:$0xf]
  %v42 = vld [vmem:[%s1 + $0x1c] sm:$0xf]
  %v43 = vld [vmem:[%s1 + $0x20] sm:$0xf]
  %v44 = vld [vmem:[%s1 + $0x24] sm:$0xf]
  %v45 = vld [vmem:[%s1 + $0x28] sm:$0xf]
  %v46 = vld [vmem:[%s1 + $0x2c] sm:$0xf]
  %v47 = vld [vmem:[%s1 + $0x30] sm:$0xf]
  %v48 = vld [vmem:[%s1 + $0x34] sm:$0xf]
  %v49 = vld [vmem:[%s1 + $0x38] sm:$0xf]
  %v50 = vld [vmem:[%s1 + $0x3c] sm:$0xf]
  %v55 = vunpack.c.l.b16 %v27
  %v56 = vunpack.c.l.b16 %v28
  %v57 = vunpack.c.l.b16 %v29
  %v58 = vunpack.c.l.b16 %v30
  %v59 = vpack.c.b16 %v56, %v55
  %v60 = vpack.c.b16 %v58, %v57
  %v79 = vunpack.c.l.b16 %v35
  %v80 = vunpack.c.l.b16 %v36
  %v81 = vunpack.c.l.b16 %v37
  %v82 = vunpack.c.l.b16 %v38
  %v83 = vunpack.c.l.b16 %v39
  %v84 = vunpack.c.l.b16 %v40
  %v85 = vunpack.c.l.b16 %v41
  %v86 = vunpack.c.l.b16 %v42
  %v87 = vunpack.c.l.b16 %v43
  %v88 = vunpack.c.l.b16 %v44
  %v89 = vunpack.c.l.b16 %v45
  %v90 = vunpack.c.l.b16 %v46
  %v91 = vunpack.c.l.b16 %v47
  %v92 = vunpack.c.l.b16 %v48
  %v93 = vunpack.c.l.b16 %v49
  %v94 = vunpack.c.l.b16 %v50
  %v95 = vpack.c.b16 %v80, %v79
  %v96 = vpack.c.b16 %v82, %v81
  %v97 = vpack.c.b16 %v84, %v83
  %v98 = vpack.c.b16 %v86, %v85
  %v99 = vpack.c.b16 %v88, %v87
  %v100 = vpack.c.b16 %v90, %v89
  %v101 = vpack.c.b16 %v92, %v91
  %v102 = vpack.c.b16 %v94, %v93
  %111 = vmatprep.subr.bf16.mxu0 0
  %112 = vmatpush1.bf16.msra.mxu0 %v102
  %113 = vmatprep.subr.bf16.mxu0 0
  %114 = vmatpush1.bf16.msra.mxu0 %v101
  %115 = vmatprep.subr.bf16.mxu0 0
  %116 = vmatpush1.bf16.msra.mxu0 %v100
  %117 = vmatprep.subr.bf16.mxu0 0
  %118 = vmatpush1.bf16.msra.mxu0 %v99
  %119 = vmatprep.subr.bf16.mxu0 0
  %120 = vmatpush1.bf16.msra.mxu0 %v98
  %121 = vmatprep.subr.bf16.mxu0 0
  %122 = vmatpush1.bf16.msra.mxu0 %v97
  %123 = vmatprep.subr.bf16.mxu0 0
  %124 = vmatpush1.bf16.msra.mxu0 %v96
  %125 = vmatprep.subr.bf16.mxu0 0
  %126 = vmatpush1.bf16.msra.mxu0 %v95
  %127 = vmatprep.subr.bf16.mxu0 0
  %128 = vmatpush2.bf16.msra.mxu0 0
  %129 = vmatprep.subr.bf16.mxu0 0
  %130 = vmatpush2.bf16.msra.mxu0 0
  %131 = vmatprep.subr.bf16.mxu0 0
  %132 = vmatpush2.bf16.msra.mxu0 0
  %133 = vmatprep.subr.bf16.mxu0 0
  %134 = vmatpush2.bf16.msra.mxu0 0
  %135 = vmatprep.subr.bf16.mxu0 0
  %136 = vmatpush2.bf16.msra.mxu0 0
  %137 = vmatprep.subr.bf16.mxu0 0
  %138 = vmatpush2.bf16.msra.mxu0 0
  %139 = vmatprep.subr.bf16.mxu0 0
  %140 = vmatpush2.bf16.msra.mxu0 0
  %141 = vmatprep.subr.bf16.mxu0 0
  %142 = vmatpush2.bf16.msra.mxu0 0
  %143 = vmatprep.mubr.bf16.mxu0 0
  %144 = vmatmul.mubr.bf16.gmra.mxu0 %v59
  %v145 = vpop.f32.mrf.mxu0
  %v146 = vadd.f32 0.0, %v145
  %v147 = vpop.f32.mrf.mxu0
  %v148 = vpop.f32.mrf.mxu0
  %v149 = vadd.f32 0.0, %v148
  %v150 = vpop.f32.mrf.mxu0
  %151 = vmatprep.mubr.bf16.mxu0 0
  %152 = vmatmul.mubr.bf16.gmra.mxu0 %v60
  %v153 = vpop.f32.mrf.mxu0
  %v154 = vadd.f32 0.0, %v153
  %v155 = vpop.f32.mrf.mxu0
  %v156 = vpop.f32.mrf.mxu0
  %v157 = vadd.f32 0.0, %v156
  %v158 = vpop.f32.mrf.mxu0
  %159 = vdwg.mxu0
  %v160 = vadd.f32 %v31, %v146
  %v161 = vadd.f32 %v32, %v149
  %v162 = vadd.f32 %v33, %v154
  %v163 = vadd.f32 %v34, %v157
  %164 = vst [vmem:[#allocation2] sm:$0xff] %v160
  %165 = vst [vmem:[#allocation2 + $0x8] sm:$0xff] %v161
  %166 = vst [vmem:[#allocation2 + $0x10] sm:$0xff] %v162
  %167 = vst [vmem:[#allocation2 + $0x18] sm:$0xff] %v163
  // Predicated region
  $region18: #{_lambda_.62} parent=0 // pred_check
    %p168 = pneg %p15
  $region19: #{_lambda_.62} parent=0 // pred_check_branch
    %170 = sbr.rel (%p168) target = $region21
  $region20: #{_lambda_.62} parent=0 // pred_region
    %v171 = vld [vmem:[#allocation2] sm:$0xff]
    %v172 = vld [vmem:[#allocation2 + $0x8] sm:$0xff]
    %v173 = vld [vmem:[#allocation2 + $0x10] sm:$0xff]
    %v174 = vld [vmem:[#allocation2 + $0x18] sm:$0xff]
    %v175 = vld [vmem:[%s2] sm:$0x1]
    %v177 = vlaneseq
    %v178 = vshrl.u32 %v177, 7
    %v179 = vsub.s32 0, %v178
    %v180 = vrot.slane %v175, %v179
    %v182 = vadd.f32 %v171, %v180
    %v183 = vadd.f32 %v172, %v180
    %v184 = vadd.f32 %v173, %v180
    %v185 = vadd.f32 %v174, %v180
    %186 = vst [vmem:[%s3] sm:$0xff] %v182
    %187 = vst [vmem:[%s3 + $0x8] sm:$0xff] %v183
    %188 = vst [vmem:[%s3 + $0x10] sm:$0xff] %v184
    %189 = vst [vmem:[%s3 + $0x18] sm:$0xff] %v185
  $region21: #{_lambda_.62} parent=0 // pred_fallthru
    _
  // Predicated region
  $region22: #{_lambda_.62} parent=0 // pred_check
    _
  $region23: #{_lambda_.62} parent=0 // pred_check_branch
    %191 = sbr.rel (0) target = $region25
  $region24: #{_lambda_.62} parent=0 // pred_region
    _
  $region25: #{_lambda_.62} parent=0 // pred_fallthru
    _
  // Predicated region
  $region26: #{_lambda_.62} parent=0 // pred_check
    _
  $region27: #{_lambda_.62} parent=0 // pred_check_branch
    %193 = sbr.rel (0) target = $region29
  $region28: #{_lambda_.62} parent=0 // pred_region
    _
  $region29: #{_lambda_.62} parent=0 // pred_fallthru
    _

// kernel: _lambda_.68
$region0: #{_lambda_.68}
  #allocation0 [shape = 'u32[]', space=smem, size = 0x4, offset = 0x4, fixed_abs, tag = 'smem constant byte address 0x4 - core index']
  #allocation1 [shape = 'u32[144,128]{1,0:T(1,128)}', space=vmem, size = 0x12000, scoped, tag = 'internal scratch']
  #allocation2 [shape = 'f32[128,128]{1,0:T(8,128)}', space=vmem, size = 0x10000, scoped, tag = 'scratch operand']
  %s0 = inlined_call_operand.vmem [shape: bf16[128,128], index: 0, kind: input, shape index: {}]
  %s1 = inlined_call_operand.vmem [shape: bf16[128,128], index: 1, kind: input, shape index: {}]
  %s2 = inlined_call_operand.vmem [shape: f32[1,128], index: 2, kind: input, shape index: {}]
  %s3 = inlined_call_operand.vmem [shape: f32[128,128], index: 3, kind: output, shape index: {}]
  %s4 = sld [smem:[#allocation0]]
  $region30: #{_lambda_.68} parent=0
    _
  %s6 = ssub.s32 1, %s4
  %s7 = scalar_select 0, %s6, %s4
  // Predicated region
  $region2: #{_lambda_.68} parent=0 // pred_check
    _
  $region3: #{_lambda_.68} parent=0 // pred_check_branch
    %9 = sbr.rel (0) target = $region5
  $region4: #{_lambda_.68} parent=0 // pred_region
    _
  $region5: #{_lambda_.68} parent=0 // pred_fallthru
    _
  // Predicated region
  $region6: #{_lambda_.68} parent=0 // pred_check
    _
  $region7: #{_lambda_.68} parent=0 // pred_check_branch
    %11 = sbr.rel (0) target = $region9
  $region8: #{_lambda_.68} parent=0 // pred_region
    _
  $region9: #{_lambda_.68} parent=0 // pred_fallthru
    _
  // Predicated region
  $region10: #{_lambda_.68} parent=0 // pred_check
    _
  $region11: #{_lambda_.68} parent=0 // pred_check_branch
    %13 = sbr.rel (0) target = $region13
  $region12: #{_lambda_.68} parent=0 // pred_region
    _
  $region13: #{_lambda_.68} parent=0 // pred_fallthru
    _
  %p15 = scmp.eq.s32.totalorder 0, 0
  // Predicated region
  $region14: #{_lambda_.68} parent=0 // pred_check
    %p16 = pneg %p15
  $region15: #{_lambda_.68} parent=0 // pred_check_branch
    %18 = sbr.rel (%p16) target = $region17
  $region16: #{_lambda_.68} parent=0 // pred_region
    %19 = vst [vmem:[#allocation2] sm:$0xff] 0.0
    %20 = vst [vmem:[#allocation2 + $0x8] sm:$0xff] 0.0
    %21 = vst [vmem:[#allocation2 + $0x10] sm:$0xff] 0.0
    %22 = vst [vmem:[#allocation2 + $0x18] sm:$0xff] 0.0
    %23 = vst [vmem:[#allocation2 + $0x20] sm:$0xff] 0.0
    %24 = vst [vmem:[#allocation2 + $0x28] sm:$0xff] 0.0
    %25 = vst [vmem:[#allocation2 + $0x30] sm:$0xff] 0.0
    %26 = vst [vmem:[#allocation2 + $0x38] sm:$0xff] 0.0
    %27 = vst [vmem:[#allocation2 + $0x40] sm:$0xff] 0.0
    %28 = vst [vmem:[#allocation2 + $0x48] sm:$0xff] 0.0
    %29 = vst [vmem:[#allocation2 + $0x50] sm:$0xff] 0.0
    %30 = vst [vmem:[#allocation2 + $0x58] sm:$0xff] 0.0
    %31 = vst [vmem:[#allocation2 + $0x60] sm:$0xff] 0.0
    %32 = vst [vmem:[#allocation2 + $0x68] sm:$0xff] 0.0
    %33 = vst [vmem:[#allocation2 + $0x70] sm:$0xff] 0.0
    %34 = vst [vmem:[#allocation2 + $0x78] sm:$0xff] 0.0
  $region17: #{_lambda_.68} parent=0 // pred_fallthru
    _
  %v35 = vld [vmem:[%s0] sm:$0xf]
  %v36 = vld [vmem:[%s0 + $0x4] sm:$0xf]
  %v37 = vld [vmem:[%s0 + $0x8] sm:$0xf]
  %v38 = vld [vmem:[%s0 + $0xc] sm:$0xf]
  %v39 = vld [vmem:[%s0 + $0x10] sm:$0xf]
  %v40 = vld [vmem:[%s0 + $0x14] sm:$0xf]
  %v41 = vld [vmem:[%s0 + $0x18] sm:$0xf]
  %v42 = vld [vmem:[%s0 + $0x1c] sm:$0xf]
  %v43 = vld [vmem:[%s0 + $0x20] sm:$0xf]
  %v44 = vld [vmem:[%s0 + $0x24] sm:$0xf]
  %v45 = vld [vmem:[%s0 + $0x28] sm:$0xf]
  %v46 = vld [vmem:[%s0 + $0x2c] sm:$0xf]
  %v47 = vld [vmem:[%s0 + $0x30] sm:$0xf]
  %v48 = vld [vmem:[%s0 + $0x34] sm:$0xf]
  %v49 = vld [vmem:[%s0 + $0x38] sm:$0xf]
  %v50 = vld [vmem:[%s0 + $0x3c] sm:$0xf]
  %v51 = vmax.bf16 %v35, 0
  %v52 = vmax.bf16 %v36, 0
  %v53 = vmax.bf16 %v37, 0
  %v54 = vmax.bf16 %v38, 0
  %v55 = vmax.bf16 %v39, 0
  %v56 = vmax.bf16 %v40, 0
  %v57 = vmax.bf16 %v41, 0
  %v58 = vmax.bf16 %v42, 0
  %v59 = vmax.bf16 %v43, 0
  %v60 = vmax.bf16 %v44, 0
  %v61 = vmax.bf16 %v45, 0
  %v62 = vmax.bf16 %v46, 0
  %v63 = vmax.bf16 %v47, 0
  %v64 = vmax.bf16 %v48, 0
  %v65 = vmax.bf16 %v49, 0
  %v66 = vmax.bf16 %v50, 0
  %v67 = vld [vmem:[#allocation2] sm:$0xff]
  %v68 = vld [vmem:[#allocation2 + $0x8] sm:$0xff]
  %v69 = vld [vmem:[#allocation2 + $0x10] sm:$0xff]
  %v70 = vld [vmem:[#allocation2 + $0x18] sm:$0xff]
  %v71 = vld [vmem:[#allocation2 + $0x20] sm:$0xff]
  %v72 = vld [vmem:[#allocation2 + $0x28] sm:$0xff]
  %v73 = vld [vmem:[#allocation2 + $0x30] sm:$0xff]
  %v74 = vld [vmem:[#allocation2 + $0x38] sm:$0xff]
  %v75 = vld [vmem:[#allocation2 + $0x40] sm:$0xff]
  %v76 = vld [vmem:[#allocation2 + $0x48] sm:$0xff]
  %v77 = vld [vmem:[#allocation2 + $0x50] sm:$0xff]
  %v78 = vld [vmem:[#allocation2 + $0x58] sm:$0xff]
  %v79 = vld [vmem:[#allocation2 + $0x60] sm:$0xff]
  %v80 = vld [vmem:[#allocation2 + $0x68] sm:$0xff]
  %v81 = vld [vmem:[#allocation2 + $0x70] sm:$0xff]
  %v82 = vld [vmem:[#allocation2 + $0x78] sm:$0xff]
  %v83 = vld [vmem:[%s1] sm:$0xf]
  %v84 = vld [vmem:[%s1 + $0x4] sm:$0xf]
  %v85 = vld [vmem:[%s1 + $0x8] sm:$0xf]
  %v86 = vld [vmem:[%s1 + $0xc] sm:$0xf]
  %v87 = vld [vmem:[%s1 + $0x10] sm:$0xf]
  %v88 = vld [vmem:[%s1 + $0x14] sm:$0xf]
  %v89 = vld [vmem:[%s1 + $0x18] sm:$0xf]
  %v90 = vld [vmem:[%s1 + $0x1c] sm:$0xf]
  %v91 = vld [vmem:[%s1 + $0x20] sm:$0xf]
  %v92 = vld [vmem:[%s1 + $0x24] sm:$0xf]
  %v93 = vld [vmem:[%s1 + $0x28] sm:$0xf]
  %v94 = vld [vmem:[%s1 + $0x2c] sm:$0xf]
  %v95 = vld [vmem:[%s1 + $0x30] sm:$0xf]
  %v96 = vld [vmem:[%s1 + $0x34] sm:$0xf]
  %v97 = vld [vmem:[%s1 + $0x38] sm:$0xf]
  %v98 = vld [vmem:[%s1 + $0x3c] sm:$0xf]
  %v115 = vunpack.c.l.b16 %v51
  %v116 = vunpack.c.l.b16 %v52
  %v117 = vunpack.c.l.b16 %v53
  %v118 = vunpack.c.l.b16 %v54
  %v119 = vunpack.c.l.b16 %v55
  %v120 = vunpack.c.l.b16 %v56
  %v121 = vunpack.c.l.b16 %v57
  %v122 = vunpack.c.l.b16 %v58
  %v123 = vunpack.c.l.b16 %v59
  %v124 = vunpack.c.l.b16 %v60
  %v125 = vunpack.c.l.b16 %v61
  %v126 = vunpack.c.l.b16 %v62
  %v127 = vunpack.c.l.b16 %v63
  %v128 = vunpack.c.l.b16 %v64
  %v129 = vunpack.c.l.b16 %v65
  %v130 = vunpack.c.l.b16 %v66
  %v131 = vpack.c.b16 %v116, %v115
  %v132 = vpack.c.b16 %v118, %v117
  %v133 = vpack.c.b16 %v120, %v119
  %v134 = vpack.c.b16 %v122, %v121
  %v135 = vpack.c.b16 %v124, %v123
  %v136 = vpack.c.b16 %v126, %v125
  %v137 = vpack.c.b16 %v128, %v127
  %v138 = vpack.c.b16 %v130, %v129
  %v163 = vunpack.c.l.b16 %v83
  %v164 = vunpack.c.l.b16 %v84
  %v165 = vunpack.c.l.b16 %v85
  %v166 = vunpack.c.l.b16 %v86
  %v167 = vunpack.c.l.b16 %v87
  %v168 = vunpack.c.l.b16 %v88
  %v169 = vunpack.c.l.b16 %v89
  %v170 = vunpack.c.l.b16 %v90
  %v171 = vunpack.c.l.b16 %v91
  %v172 = vunpack.c.l.b16 %v92
  %v173 = vunpack.c.l.b16 %v93
  %v174 = vunpack.c.l.b16 %v94
  %v175 = vunpack.c.l.b16 %v95
  %v176 = vunpack.c.l.b16 %v96
  %v177 = vunpack.c.l.b16 %v97
  %v178 = vunpack.c.l.b16 %v98
  %v179 = vpack.c.b16 %v164, %v163
  %v180 = vpack.c.b16 %v166, %v165
  %v181 = vpack.c.b16 %v168, %v167
  %v182 = vpack.c.b16 %v170, %v169
  %v183 = vpack.c.b16 %v172, %v171
  %v184 = vpack.c.b16 %v174, %v173
  %v185 = vpack.c.b16 %v176, %v175
  %v186 = vpack.c.b16 %v178, %v177
  %195 = vmatprep.subr.bf16.mxu0 0
  %196 = vmatpush1.bf16.msra.mxu0 %v186
  %197 = vmatprep.subr.bf16.mxu0 0
  %198 = vmatpush1.bf16.msra.mxu0 %v185
  %199 = vmatprep.subr.bf16.mxu0 0
  %200 = vmatpush1.bf16.msra.mxu0 %v184
  %201 = vmatprep.subr.bf16.mxu0 0
  %202 = vmatpush1.bf16.msra.mxu0 %v183
  %203 = vmatprep.subr.bf16.mxu0 0
  %204 = vmatpush1.bf16.msra.mxu0 %v182
  %205 = vmatprep.subr.bf16.mxu0 0
  %206 = vmatpush1.bf16.msra.mxu0 %v181
  %207 = vmatprep.subr.bf16.mxu0 0
  %208 = vmatpush1.bf16.msra.mxu0 %v180
  %209 = vmatprep.subr.bf16.mxu0 0
  %210 = vmatpush1.bf16.msra.mxu0 %v179
  %211 = vmatprep.subr.bf16.mxu0 0
  %212 = vmatpush2.bf16.msra.mxu0 0
  %213 = vmatprep.subr.bf16.mxu0 0
  %214 = vmatpush2.bf16.msra.mxu0 0
  %215 = vmatprep.subr.bf16.mxu0 0
  %216 = vmatpush2.bf16.msra.mxu0 0
  %217 = vmatprep.subr.bf16.mxu0 0
  %218 = vmatpush2.bf16.msra.mxu0 0
  %219 = vmatprep.subr.bf16.mxu0 0
  %220 = vmatpush2.bf16.msra.mxu0 0
  %221 = vmatprep.subr.bf16.mxu0 0
  %222 = vmatpush2.bf16.msra.mxu0 0
  %223 = vmatprep.subr.bf16.mxu0 0
  %224 = vmatpush2.bf16.msra.mxu0 0
  %225 = vmatprep.subr.bf16.mxu0 0
  %226 = vmatpush2.bf16.msra.mxu0 0
  %227 = vmatprep.mubr.bf16.mxu0 0
  %228 = vmatmul.mubr.bf16.gmra.mxu0 %v131
  %v229 = vpop.f32.mrf.mxu0
  %v230 = vadd.f32 0.0, %v229
  %v231 = vpop.f32.mrf.mxu0
  %v232 = vpop.f32.mrf.mxu0
  %v233 = vadd.f32 0.0, %v232
  %v234 = vpop.f32.mrf.mxu0
  %235 = vmatprep.mubr.bf16.mxu0 0
  %236 = vmatmul.mubr.bf16.gmra.mxu0 %v132
  %v237 = vpop.f32.mrf.mxu0
  %v238 = vadd.f32 0.0, %v237
  %v239 = vpop.f32.mrf.mxu0
  %v240 = vpop.f32.mrf.mxu0
  %v241 = vadd.f32 0.0, %v240
  %v242 = vpop.f32.mrf.mxu0
  %243 = vmatprep.mubr.bf16.mxu0 0
  %244 = vmatmul.mubr.bf16.gmra.mxu0 %v133
  %v245 = vpop.f32.mrf.mxu0
  %v246 = vadd.f32 0.0, %v245
  %v247 = vpop.f32.mrf.mxu0
  %v248 = vpop.f32.mrf.mxu0
  %v249 = vadd.f32 0.0, %v248
  %v250 = vpop.f32.mrf.mxu0
  %251 = vmatprep.mubr.bf16.mxu0 0
  %252 = vmatmul.mubr.bf16.gmra.mxu0 %v134
  %v253 = vpop.f32.mrf.mxu0
  %v254 = vadd.f32 0.0, %v253
  %v255 = vpop.f32.mrf.mxu0
  %v256 = vpop.f32.mrf.mxu0
  %v257 = vadd.f32 0.0, %v256
  %v258 = vpop.f32.mrf.mxu0
  %259 = vmatprep.mubr.bf16.mxu0 0
  %260 = vmatmul.mubr.bf16.gmra.mxu0 %v135
  %v261 = vpop.f32.mrf.mxu0
  %v262 = vadd.f32 0.0, %v261
  %v263 = vpop.f32.mrf.mxu0
  %v264 = vpop.f32.mrf.mxu0
  %v265 = vadd.f32 0.0, %v264
  %v266 = vpop.f32.mrf.mxu0
  %267 = vmatprep.mubr.bf16.mxu0 0
  %268 = vmatmul.mubr.bf16.gmra.mxu0 %v136
  %v269 = vpop.f32.mrf.mxu0
  %v270 = vadd.f32 0.0, %v269
  %v271 = vpop.f32.mrf.mxu0
  %v272 = vpop.f32.mrf.mxu0
  %v273 = vadd.f32 0.0, %v272
  %v274 = vpop.f32.mrf.mxu0
  %275 = vmatprep.mubr.bf16.mxu0 0
  %276 = vmatmul.mubr.bf16.gmra.mxu0 %v137
  %v277 = vpop.f32.mrf.mxu0
  %v278 = vadd.f32 0.0, %v277
  %v279 = vpop.f32.mrf.mxu0
  %v280 = vpop.f32.mrf.mxu0
  %v281 = vadd.f32 0.0, %v280
  %v282 = vpop.f32.mrf.mxu0
  %283 = vmatprep.mubr.bf16.mxu0 0
  %284 = vmatmul.mubr.bf16.gmra.mxu0 %v138
  %v285 = vpop.f32.mrf.mxu0
  %v286 = vadd.f32 0.0, %v285
  %v287 = vpop.f32.mrf.mxu0
  %v288 = vpop.f32.mrf.mxu0
  %v289 = vadd.f32 0.0, %v288
  %v290 = vpop.f32.mrf.mxu0
  %291 = vdwg.mxu0
  %v292 = vadd.f32 %v67, %v230
  %v293 = vadd.f32 %v68, %v233
  %v294 = vadd.f32 %v69, %v238
  %v295 = vadd.f32 %v70, %v241
  %v296 = vadd.f32 %v71, %v246
  %v297 = vadd.f32 %v72, %v249
  %v298 = vadd.f32 %v73, %v254
  %v299 = vadd.f32 %v74, %v257
  %v300 = vadd.f32 %v75, %v262
  %v301 = vadd.f32 %v76, %v265
  %v302 = vadd.f32 %v77, %v270
  %v303 = vadd.f32 %v78, %v273
  %v304 = vadd.f32 %v79, %v278
  %v305 = vadd.f32 %v80, %v281
  %v306 = vadd.f32 %v81, %v286
  %v307 = vadd.f32 %v82, %v289
  %308 = vst [vmem:[#allocation2] sm:$0xff] %v292
  %309 = vst [vmem:[#allocation2 + $0x8] sm:$0xff] %v293
  %310 = vst [vmem:[#allocation2 + $0x10] sm:$0xff] %v294
  %311 = vst [vmem:[#allocation2 + $0x18] sm:$0xff] %v295
  %312 = vst [vmem:[#allocation2 + $0x20] sm:$0xff] %v296
  %313 = vst [vmem:[#allocation2 + $0x28] sm:$0xff] %v297
  %314 = vst [vmem:[#allocation2 + $0x30] sm:$0xff] %v298
  %315 = vst [vmem:[#allocation2 + $0x38] sm:$0xff] %v299
  %316 = vst [vmem:[#allocation2 + $0x40] sm:$0xff] %v300
  %317 = vst [vmem:[#allocation2 + $0x48] sm:$0xff] %v301
  %318 = vst [vmem:[#allocation2 + $0x50] sm:$0xff] %v302
  %319 = vst [vmem:[#allocation2 + $0x58] sm:$0xff] %v303
  %320 = vst [vmem:[#allocation2 + $0x60] sm:$0xff] %v304
  %321 = vst [vmem:[#allocation2 + $0x68] sm:$0xff] %v305
  %322 = vst [vmem:[#allocation2 + $0x70] sm:$0xff] %v306
  %323 = vst [vmem:[#allocation2 + $0x78] sm:$0xff] %v307
  // Predicated region
  $region18: #{_lambda_.68} parent=0 // pred_check
    %p324 = pneg %p15
  $region19: #{_lambda_.68} parent=0 // pred_check_branch
    %326 = sbr.rel (%p324) target = $region21
  $region20: #{_lambda_.68} parent=0 // pred_region
    %v327 = vld [vmem:[#allocation2] sm:$0xff]
    %v328 = vld [vmem:[#allocation2 + $0x8] sm:$0xff]
    %v329 = vld [vmem:[#allocation2 + $0x10] sm:$0xff]
    %v330 = vld [vmem:[#allocation2 + $0x18] sm:$0xff]
    %v331 = vld [vmem:[#allocation2 + $0x20] sm:$0xff]
    %v332 = vld [vmem:[#allocation2 + $0x28] sm:$0xff]
    %v333 = vld [vmem:[#allocation2 + $0x30] sm:$0xff]
    %v334 = vld [vmem:[#allocation2 + $0x38] sm:$0xff]
    %v335 = vld [vmem:[#allocation2 + $0x40] sm:$0xff]
    %v336 = vld [vmem:[#allocation2 + $0x48] sm:$0xff]
    %v337 = vld [vmem:[#allocation2 + $0x50] sm:$0xff]
    %v338 = vld [vmem:[#allocation2 + $0x58] sm:$0xff]
    %v339 = vld [vmem:[#allocation2 + $0x60] sm:$0xff]
    %v340 = vld [vmem:[#allocation2 + $0x68] sm:$0xff]
    %v341 = vld [vmem:[#allocation2 + $0x70] sm:$0xff]
    %v342 = vld [vmem:[#allocation2 + $0x78] sm:$0xff]
    %v343 = vld [vmem:[%s2] sm:$0x1]
    %v345 = vlaneseq
    %v346 = vshrl.u32 %v345, 7
    %v347 = vsub.s32 0, %v346
    %v348 = vrot.slane %v343, %v347
    %v350 = vadd.f32 %v327, %v348
    %v351 = vadd.f32 %v328, %v348
    %v352 = vadd.f32 %v329, %v348
    %v353 = vadd.f32 %v330, %v348
    %v354 = vadd.f32 %v331, %v348
    %v355 = vadd.f32 %v332, %v348
    %v356 = vadd.f32 %v333, %v348
    %v357 = vadd.f32 %v334, %v348
    %v358 = vadd.f32 %v335, %v348
    %v359 = vadd.f32 %v336, %v348
    %v360 = vadd.f32 %v337, %v348
    %v361 = vadd.f32 %v338, %v348
    %v362 = vadd.f32 %v339, %v348
    %v363 = vadd.f32 %v340, %v348
    %v364 = vadd.f32 %v341, %v348
    %v365 = vadd.f32 %v342, %v348
    %366 = vst [vmem:[%s3] sm:$0xff] %v350
    %367 = vst [vmem:[%s3 + $0x8] sm:$0xff] %v351
    %368 = vst [vmem:[%s3 + $0x10] sm:$0xff] %v352
    %369 = vst [vmem:[%s3 + $0x18] sm:$0xff] %v353
    %370 = vst [vmem:[%s3 + $0x20] sm:$0xff] %v354
    %371 = vst [vmem:[%s3 + $0x28] sm:$0xff] %v355
    %372 = vst [vmem:[%s3 + $0x30] sm:$0xff] %v356
    %373 = vst [vmem:[%s3 + $0x38] sm:$0xff] %v357
    %374 = vst [vmem:[%s3 + $0x40] sm:$0xff] %v358
    %375 = vst [vmem:[%s3 + $0x48] sm:$0xff] %v359
    %376 = vst [vmem:[%s3 + $0x50] sm:$0xff] %v360
    %377 = vst [vmem:[%s3 + $0x58] sm:$0xff] %v361
    %378 = vst [vmem:[%s3 + $0x60] sm:$0xff] %v362
    %379 = vst [vmem:[%s3 + $0x68] sm:$0xff] %v363
    %380 = vst [vmem:[%s3 + $0x70] sm:$0xff] %v364
    %381 = vst [vmem:[%s3 + $0x78] sm:$0xff] %v365
  $region21: #{_lambda_.68} parent=0 // pred_fallthru
    _
  // Predicated region
  $region22: #{_lambda_.68} parent=0 // pred_check
    _
  $region23: #{_lambda_.68} parent=0 // pred_check_branch
    %383 = sbr.rel (0) target = $region25
  $region24: #{_lambda_.68} parent=0 // pred_region
    _
  $region25: #{_lambda_.68} parent=0 // pred_fallthru
    _
  // Predicated region
  $region26: #{_lambda_.68} parent=0 // pred_check
    _
  $region27: #{_lambda_.68} parent=0 // pred_check_branch
    %385 = sbr.rel (0) target = $region29
  $region28: #{_lambda_.68} parent=0 // pred_region
    _
  $region29: #{_lambda_.68} parent=0 // pred_fallthru
    _

// kernel: _lambda_.72
$region0: #{_lambda_.72}
  #allocation0 [shape = 'u32[]', space=smem, size = 0x4, offset = 0x4, fixed_abs, tag = 'smem constant byte address 0x4 - core index']
  #allocation1 [shape = 'u32[144,128]{1,0:T(1,128)}', space=vmem, size = 0x12000, scoped, tag = 'internal scratch']
  %s0 = inlined_call_operand.vmem [shape: f32[2,256,4], index: 0, kind: input, shape index: {}]
  %s1 = inlined_call_operand.vmem [shape: f32[2,2,4], index: 1, kind: output, shape index: {}]
  %s2 = sld [smem:[#allocation0]]
  $region45: #{_lambda_.72} parent=0
    _
  %s4 = ssub.s32 1, %s2
  %s5 = scalar_select 0, %s4, %s2
  loop: start=0, step=1, limit=4
  $region2: #{_lambda_.72} parent=0 // loop_pre_header
    _
  $region3: #{_lambda_.72} parent=0 // loop_header
    %s7 = sphi 0, %s11
    %p8 = scmp.ge.s32.totalorder %s7, 4
    %s14 = sphi 0, %s26
    %s15 = sphi 0, %s22
    %s16 = sphi 0, %s14
    %s17 = sphi 0, %s15
    %s18 = sphi 0, %s16
    %s19 = sphi 0, %s17
    %s31 = sphi 0, %s33
    %s34 = sphi 0, %s31
    %s35 = sphi 0, %s34
    %s51 = sphi 0, %s35
    %s57 = sphi 0, %s59
    %s60 = sphi 0, %s57
    %s61 = sphi 0, %s60
    %s77 = sphi 0, %s61
  $region4: #{_lambda_.72} parent=0 // loop_header_branch
    %10 = sbr.rel (%p8) target = $region8
  $region5: #{_lambda_.72} parent=0 // loop_body
    %s12 = ssub.s32 %s7, 1
    %s13 = ssub.s32 %s7, 2
    %s20 = sadd.s32 1, %s15
    %p21 = scmp.ge.s32.totalorder %s20, 1
    %s22 = scalar_select %p21, 0, %s20
    %s23 = sadd.s32 1, %s14
    %s24 = scalar_select %p21, %s23, %s14
    %p25 = scmp.ge.s32.totalorder %s24, 2
    %s26 = scalar_select %p25, 0, %s24
    %s27 = ssub.s32 %s14, %s26
    %s28 = ssub.s32 %s15, %s22
    %s29 = sor.u32 %s27, %s28
    %p30 = scmp.eq.s32.totalorder %s29, 0
    %s32 = sadd.s32 %s31, 1
    %s33 = scalar_select %p30, %s31, %s32
    %p36 = pneg %p30
    %p37 = scmp.eq.s32.totalorder %s7, 1
    %p38 = por %p36, %p37
    %p39 = scmp.ne.s32.totalorder %s31, %s34
    %p40 = scmp.eq.s32.totalorder %s7, 0
    %p41 = por %p39, %p40
    %p42 = scmp.ne.s32.totalorder %s31, %s34
    %p43 = scmp.eq.s32.totalorder %s12, 1
    %p44 = por %p42, %p43
    %p45 = scmp.ne.s32.totalorder %s34, %s35
    %p46 = scmp.eq.s32.totalorder %s12, 0
    %p47 = por %p45, %p46
    %p48 = scmp.ne.s32.totalorder %s34, %s35
    %p49 = scmp.eq.s32.totalorder %s13, 1
    %p50 = por %p48, %p49
    %p52 = scmp.ne.s32.totalorder %s35, %s51
    %p53 = scmp.eq.s32.totalorder %s13, 0
    %p54 = por %p52, %p53
    %s55 = ssub.s32 %s14, %s26
    %p56 = scmp.eq.s32.totalorder %s55, 0
    %s58 = sadd.s32 %s57, 1
    %s59 = scalar_select %p56, %s57, %s58
    %p62 = pneg %p56
    %p63 = scmp.eq.s32.totalorder %s7, 1
    %p64 = por %p62, %p63
    %p65 = scmp.ne.s32.totalorder %s57, %s60
    %p66 = scmp.eq.s32.totalorder %s7, 0
    %p67 = por %p65, %p66
    %p68 = scmp.ne.s32.totalorder %s57, %s60
    %p69 = scmp.eq.s32.totalorder %s12, 1
    %p70 = por %p68, %p69
    %p71 = scmp.ne.s32.totalorder %s60, %s61
    %p72 = scmp.eq.s32.totalorder %s12, 0
    %p73 = por %p71, %p72
    %p74 = scmp.ne.s32.totalorder %s60, %s61
    %p75 = scmp.eq.s32.totalorder %s13, 1
    %p76 = por %p74, %p75
    %p78 = scmp.ne.s32.totalorder %s61, %s77
    %p79 = scmp.eq.s32.totalorder %s13, 0
    %p80 = por %p78, %p79
    %p81 = scmp.le.s32.totalorder 1, %s7
    %p82 = scmp.lt.s32.totalorder %s7, 3
    %p83 = pnand %p81, %p82
    %p84 = pneg %p83
    // Predicated region
    $region9: #{_lambda_.72} parent=5 // pred_check
      _
    $region10: #{_lambda_.72} parent=5 // pred_check_branch
      %86 = sbr.rel (%p83) target = $region12
    $region11: #{_lambda_.72} parent=5 // pred_region
      %s87 = ssub.s32 %s7, 1
    $region12: #{_lambda_.72} parent=5 // pred_fallthru
      _
    %p88 = scmp.lt.s32.totalorder %s7, 2
    // Predicated region
    $region13: #{_lambda_.72} parent=5 // pred_check
      %p89 = pneg %p88
    $region14: #{_lambda_.72} parent=5 // pred_check_branch
      %91 = sbr.rel (%p89) target = $region16
    $region15: #{_lambda_.72} parent=5 // pred_region
      // Predicated region
      $region17: #{_lambda_.72} parent=15 // pred_check
        %p92 = pneg %p41
      $region18: #{_lambda_.72} parent=15 // pred_check_branch
        %94 = sbr.rel (%p92) target = $region20
      $region19: #{_lambda_.72} parent=15 // pred_region
        %s95 = smul.u32 32, %s15
        %p96 = scmp.lt.s32.totalorder %s14, 1
        %s97 = scalar_select %p96, %s14, 1
        %p98 = scmp.lt.s32.totalorder %s95, 31
        %s99 = scalar_select %p98, %s95, 31
        %s100 = smul.addr %s97, 32
        %s101 = sadd.s32 %s99, %s100
        %s102 = smul.addr %s101, 8
        %s103 = scalar_lea.vmem %s0, %s102
        %s104 = smul.u32 32, %s15
      $region20: #{_lambda_.72} parent=15 // pred_fallthru
        _
    $region16: #{_lambda_.72} parent=5 // pred_fallthru
      _
    %p105 = scmp.le.s32.totalorder 1, %s7
    %p106 = scmp.lt.s32.totalorder %s7, 3
    %p107 = pnand %p105, %p106
    %p108 = pneg %p107
    // Predicated region
    $region21: #{_lambda_.72} parent=5 // pred_check
      _
    $region22: #{_lambda_.72} parent=5 // pred_check_branch
      %110 = sbr.rel (%p107) target = $region24
    $region23: #{_lambda_.72} parent=5 // pred_region
      %s111 = ssub.s32 %s7, 1
      %s112 = smul.u32 32, %s17
      %p113 = scmp.lt.s32.totalorder %s16, 1
      %s114 = scalar_select %p113, %s16, 1
      %p115 = scmp.lt.s32.totalorder %s112, 31
      %s116 = scalar_select %p115, %s112, 31
      %s117 = smul.addr %s114, 32
      %s118 = sadd.s32 %s116, %s117
      %s119 = smul.addr %s118, 8
      %s120 = scalar_lea.vmem %s0, %s119
      %p121 = pneg %p47
      %p122 = pneg %p44
      %p123 = pneg %p73
      %p124 = pneg %p70
      %p125 = scmp.lt.s32.totalorder %s16, 1
      %s126 = scalar_select %p125, %s16, 1
      %s127 = smul.addr %s126, 2
      %s128 = scalar_lea.vmem %s1, %s127
      %s129 = smul.u32 32, %s17
      %p130 = scmp.lt.s32.totalorder %s16, 1
      %s131 = scalar_select %p130, %s16, 1
      %p132 = scmp.lt.s32.totalorder %s129, 31
      %s133 = scalar_select %p132, %s129, 31
      %s134 = smul.addr %s131, 32
      %s135 = sadd.s32 %s133, %s134
      %s136 = smul.addr %s135, 8
      %s137 = scalar_lea.vmem %s0, %s136
      %s138 = smul.u32 32, %s17
      %p139 = scmp.lt.s32.totalorder %s16, 1
      %s140 = scalar_select %p139, %s16, 1
      %s141 = smul.addr %s140, 2
      %s142 = scalar_lea.vmem %s1, %s141
      %p143 = scmp.eq.s32.totalorder %s17, 0
      // Predicated region
      $region25: #{_lambda_.72} parent=23 // pred_check
        %p144 = pneg %p143
      $region26: #{_lambda_.72} parent=23 // pred_check_branch
        %146 = sbr.rel (%p144) target = $region28
      $region27: #{_lambda_.72} parent=23 // pred_region
        %vm147 = vcmask 25600
        %148 = vst.msk [vmem:[%s142] sm:$0x3] %vm147, 0.0
      $region28: #{_lambda_.72} parent=23 // pred_fallthru
        _
      %v149 = vld [vmem:[%s137] sm:$0xff]
      %v150 = vld [vmem:[%s137 + $0x8] sm:$0xff]
      %v151 = vld [vmem:[%s137 + $0x10] sm:$0xff]
      %v152 = vld [vmem:[%s137 + $0x18] sm:$0xff]
      %v153 = vld [vmem:[%s137 + $0x20] sm:$0xff]
      %v154 = vld [vmem:[%s137 + $0x28] sm:$0xff]
      %v155 = vld [vmem:[%s137 + $0x30] sm:$0xff]
      %v156 = vld [vmem:[%s137 + $0x38] sm:$0xff]
      %v157 = vld [vmem:[%s137 + $0x40] sm:$0xff]
      %v158 = vld [vmem:[%s137 + $0x48] sm:$0xff]
      %v159 = vld [vmem:[%s137 + $0x50] sm:$0xff]
      %v160 = vld [vmem:[%s137 + $0x58] sm:$0xff]
      %v161 = vld [vmem:[%s137 + $0x60] sm:$0xff]
      %v162 = vld [vmem:[%s137 + $0x68] sm:$0xff]
      %v163 = vld [vmem:[%s137 + $0x70] sm:$0xff]
      %v164 = vld [vmem:[%s137 + $0x78] sm:$0xff]
      %v165 = vld [vmem:[%s137 + $0x80] sm:$0xff]
      %v166 = vld [vmem:[%s137 + $0x88] sm:$0xff]
      %v167 = vld [vmem:[%s137 + $0x90] sm:$0xff]
      %v168 = vld [vmem:[%s137 + $0x98] sm:$0xff]
      %v169 = vld [vmem:[%s137 + $0xa0] sm:$0xff]
      %v170 = vld [vmem:[%s137 + $0xa8] sm:$0xff]
      %v171 = vld [vmem:[%s137 + $0xb0] sm:$0xff]
      %v172 = vld [vmem:[%s137 + $0xb8] sm:$0xff]
      %v173 = vld [vmem:[%s137 + $0xc0] sm:$0xff]
      %v174 = vld [vmem:[%s137 + $0xc8] sm:$0xff]
      %v175 = vld [vmem:[%s137 + $0xd0] sm:$0xff]
      %v176 = vld [vmem:[%s137 + $0xd8] sm:$0xff]
      %v177 = vld [vmem:[%s137 + $0xe0] sm:$0xff]
      %v178 = vld [vmem:[%s137 + $0xe8] sm:$0xff]
      %v179 = vld [vmem:[%s137 + $0xf0] sm:$0xff]
      %v180 = vld [vmem:[%s137 + $0xf8] sm:$0xff]
      %v181 = vld [vmem:[%s142] sm:$0x1]
      %vm182 = vcmask 31744
      %v183 = vsel %vm182, %v149, 0.0
      %v184 = vsel %vm182, %v150, 0.0
      %v185 = vadd.f32 %v183, %v184
      %v186 = vsel %vm182, %v151, 0.0
      %v187 = vadd.f32 %v185, %v186
      %v188 = vsel %vm182, %v152, 0.0
      %v189 = vadd.f32 %v187, %v188
      %v190 = vsel %vm182, %v153, 0.0
      %v191 = vadd.f32 %v189, %v190
      %v192 = vsel %vm182, %v154, 0.0
      %v193 = vadd.f32 %v191, %v192
      %v194 = vsel %vm182, %v155, 0.0
      %v195 = vadd.f32 %v193, %v194
      %v196 = vsel %vm182, %v156, 0.0
      %v197 = vadd.f32 %v195, %v196
      %v198 = vsel %vm182, %v157, 0.0
      %v199 = vadd.f32 %v197, %v198
      %v200 = vsel %vm182, %v158, 0.0
      %v201 = vadd.f32 %v199, %v200
      %v202 = vsel %vm182, %v159, 0.0
      %v203 = vadd.f32 %v201, %v202
      %v204 = vsel %vm182, %v160, 0.0
      %v205 = vadd.f32 %v203, %v204
      %v206 = vsel %vm182, %v161, 0.0
      %v207 = vadd.f32 %v205, %v206
      %v208 = vsel %vm182, %v162, 0.0
      %v209 = vadd.f32 %v207, %v208
      %v210 = vsel %vm182, %v163, 0.0
      %v211 = vadd.f32 %v209, %v210
      %v212 = vsel %vm182, %v164, 0.0
      %v213 = vadd.f32 %v211, %v212
      %v214 = vsel %vm182, %v165, 0.0
      %v215 = vadd.f32 %v213, %v214
      %v216 = vsel %vm182, %v166, 0.0
      %v217 = vadd.f32 %v215, %v216
      %v218 = vsel %vm182, %v167, 0.0
      %v219 = vadd.f32 %v217, %v218
      %v220 = vsel %vm182, %v168, 0.0
      %v221 = vadd.f32 %v219, %v220
      %v222 = vsel %vm182, %v169, 0.0
      %v223 = vadd.f32 %v221, %v222
      %v224 = vsel %vm182, %v170, 0.0
      %v225 = vadd.f32 %v223, %v224
      %v226 = vsel %vm182, %v171, 0.0
      %v227 = vadd.f32 %v225, %v226
      %v228 = vsel %vm182, %v172, 0.0
      %v229 = vadd.f32 %v227, %v228
      %v230 = vsel %vm182, %v173, 0.0
      %v231 = vadd.f32 %v229, %v230
      %v232 = vsel %vm182, %v174, 0.0
      %v233 = vadd.f32 %v231, %v232
      %v234 = vsel %vm182, %v175, 0.0
      %v235 = vadd.f32 %v233, %v234
      %v236 = vsel %vm182, %v176, 0.0
      %v237 = vadd.f32 %v235, %v236
      %v238 = vsel %vm182, %v177, 0.0
      %v239 = vadd.f32 %v237, %v238
      %v240 = vsel %vm182, %v178, 0.0
      %v241 = vadd.f32 %v239, %v240
      %v242 = vsel %vm182, %v179, 0.0
      %v243 = vadd.f32 %v241, %v242
      %v244 = vsel %vm182, %v180, 0.0
      %v245 = vadd.f32 %v243, %v244
      %v246 = vrot.slane %v245, 4
      %v247 = vadd.f32 %v245, %v246
      %v248 = vrot.slane %v247, 2
      %v249 = vadd.f32 %v247, %v248
      %v250 = vrot.slane %v249, 1
      %v251 = vadd.f32 %v249, %v250
      %v252 = vadd.f32 %v181, %v251
      %vm253 = vcmask 24576
      %254 = vst.msk [vmem:[%s142] sm:$0x1] %vm253, %v252
      %v255 = vld [vmem:[%s142 + $0x1] sm:$0x1]
      %v256 = vmul.f32 %v149, %v149
      %v257 = vmul.f32 %v150, %v150
      %v258 = vmul.f32 %v151, %v151
      %v259 = vmul.f32 %v152, %v152
      %v260 = vmul.f32 %v153, %v153
      %v261 = vmul.f32 %v154, %v154
      %v262 = vmul.f32 %v155, %v155
      %v263 = vmul.f32 %v156, %v156
      %v264 = vmul.f32 %v157, %v157
      %v265 = vmul.f32 %v158, %v158
      %v266 = vmul.f32 %v159, %v159
      %v267 = vmul.f32 %v160, %v160
      %v268 = vmul.f32 %v161, %v161
      %v269 = vmul.f32 %v162, %v162
      %v270 = vmul.f32 %v163, %v163
      %v271 = vmul.f32 %v164, %v164
      %v272 = vmul.f32 %v165, %v165
      %v273 = vmul.f32 %v166, %v166
      %v274 = vmul.f32 %v167, %v167
      %v275 = vmul.f32 %v168, %v168
      %v276 = vmul.f32 %v169, %v169
      %v277 = vmul.f32 %v170, %v170
      %v278 = vmul.f32 %v171, %v171
      %v279 = vmul.f32 %v172, %v172
      %v280 = vmul.f32 %v173, %v173
      %v281 = vmul.f32 %v174, %v174
      %v282 = vmul.f32 %v175, %v175
      %v283 = vmul.f32 %v176, %v176
      %v284 = vmul.f32 %v177, %v177
      %v285 = vmul.f32 %v178, %v178
      %v286 = vmul.f32 %v179, %v179
      %v287 = vmul.f32 %v180, %v180
      %v288 = vsel %vm182, %v256, 0.0
      %v289 = vsel %vm182, %v257, 0.0
      %v290 = vadd.f32 %v288, %v289
      %v291 = vsel %vm182, %v258, 0.0
      %v292 = vadd.f32 %v290, %v291
      %v293 = vsel %vm182, %v259, 0.0
      %v294 = vadd.f32 %v292, %v293
      %v295 = vsel %vm182, %v260, 0.0
      %v296 = vadd.f32 %v294, %v295
      %v297 = vsel %vm182, %v261, 0.0
      %v298 = vadd.f32 %v296, %v297
      %v299 = vsel %vm182, %v262, 0.0
      %v300 = vadd.f32 %v298, %v299
      %v301 = vsel %vm182, %v263, 0.0
      %v302 = vadd.f32 %v300, %v301
      %v303 = vsel %vm182, %v264, 0.0
      %v304 = vadd.f32 %v302, %v303
      %v305 = vsel %vm182, %v265, 0.0
      %v306 = vadd.f32 %v304, %v305
      %v307 = vsel %vm182, %v266, 0.0
      %v308 = vadd.f32 %v306, %v307
      %v309 = vsel %vm182, %v267, 0.0
      %v310 = vadd.f32 %v308, %v309
      %v311 = vsel %vm182, %v268, 0.0
      %v312 = vadd.f32 %v310, %v311
      %v313 = vsel %vm182, %v269, 0.0
      %v314 = vadd.f32 %v312, %v313
      %v315 = vsel %vm182, %v270, 0.0
      %v316 = vadd.f32 %v314, %v315
      %v317 = vsel %vm182, %v271, 0.0
      %v318 = vadd.f32 %v316, %v317
      %v319 = vsel %vm182, %v272, 0.0
      %v320 = vadd.f32 %v318, %v319
      %v321 = vsel %vm182, %v273, 0.0
      %v322 = vadd.f32 %v320, %v321
      %v323 = vsel %vm182, %v274, 0.0
      %v324 = vadd.f32 %v322, %v323
      %v325 = vsel %vm182, %v275, 0.0
      %v326 = vadd.f32 %v324, %v325
      %v327 = vsel %vm182, %v276, 0.0
      %v328 = vadd.f32 %v326, %v327
      %v329 = vsel %vm182, %v277, 0.0
      %v330 = vadd.f32 %v328, %v329
      %v331 = vsel %vm182, %v278, 0.0
      %v332 = vadd.f32 %v330, %v331
      %v333 = vsel %vm182, %v279, 0.0
      %v334 = vadd.f32 %v332, %v333
      %v335 = vsel %vm182, %v280, 0.0
      %v336 = vadd.f32 %v334, %v335
      %v337 = vsel %vm182, %v281, 0.0
      %v338 = vadd.f32 %v336, %v337
      %v339 = vsel %vm182, %v282, 0.0
      %v340 = vadd.f32 %v338, %v339
      %v341 = vsel %vm182, %v283, 0.0
      %v342 = vadd.f32 %v340, %v341
      %v343 = vsel %vm182, %v284, 0.0
      %v344 = vadd.f32 %v342, %v343
      %v345 = vsel %vm182, %v285, 0.0
      %v346 = vadd.f32 %v344, %v345
      %v347 = vsel %vm182, %v286, 0.0
      %v348 = vadd.f32 %v346, %v347
      %v349 = vsel %vm182, %v287, 0.0
      %v350 = vadd.f32 %v348, %v349
      %v351 = vrot.slane %v350, 4
      %v352 = vadd.f32 %v350, %v351
      %v353 = vrot.slane %v352, 2
      %v354 = vadd.f32 %v352, %v353
      %v355 = vrot.slane %v354, 1
      %v356 = vadd.f32 %v354, %v355
      %v357 = vadd.f32 %v255, %v356
      %358 = vst.msk [vmem:[%s142 + $0x1] sm:$0x1] %vm253, %v357
      // Predicated region
      $region29: #{_lambda_.72} parent=23 // pred_check
        %p359 = pneg %p143
      $region30: #{_lambda_.72} parent=23 // pred_check_branch
        %361 = sbr.rel (%p359) target = $region32
      $region31: #{_lambda_.72} parent=23 // pred_region
        %v362 = vld [vmem:[%s142] sm:$0x1]
        %v363 = vrcp.pop 256.0
        %v364 = vmul.f32 %v362, %v363
        %v365 = vld [vmem:[%s142 + $0x1] sm:$0x1]
        %v366 = vmul.f32 %v365, %v363
        %v367 = vmul.f32 %v364, %v364
        %v368 = vsub.f32 %v366, %v367
        %369 = vst.msk [vmem:[%s142] sm:$0x1] %vm253, %v364
        %v370 = vmax.f32 %v368, 0.0
        %v371 = vadd.f32 %v370, 1e-05
        %v372 = vrsqrt.pop %v371
        %373 = vst.msk [vmem:[%s142 + $0x1] sm:$0x1] %vm253, %v372
      $region32: #{_lambda_.72} parent=23 // pred_fallthru
        _
      %p374 = scmp.lt.s32.totalorder %s16, 1
      %s375 = scalar_select %p374, %s16, 1
      %s376 = smul.addr %s375, 2
      %s377 = scalar_lea.vmem %s1, %s376
      // Predicated region
      $region33: #{_lambda_.72} parent=23 // pred_check
        %p378 = pneg %p70
      $region34: #{_lambda_.72} parent=23 // pred_check_branch
        %380 = sbr.rel (%p378) target = $region36
      $region35: #{_lambda_.72} parent=23 // pred_region
        _
      $region36: #{_lambda_.72} parent=23 // pred_fallthru
        _
    $region24: #{_lambda_.72} parent=5 // pred_fallthru
      _
    %p381 = scmp.le.s32.totalorder 2, %s7
    // Predicated region
    $region37: #{_lambda_.72} parent=5 // pred_check
      %p382 = pneg %p381
    $region38: #{_lambda_.72} parent=5 // pred_check_branch
      %384 = sbr.rel (%p382) target = $region40
    $region39: #{_lambda_.72} parent=5 // pred_region
      %s385 = ssub.s32 %s7, 2
      // Predicated region
      $region41: #{_lambda_.72} parent=39 // pred_check
        %p386 = pneg %p76
      $region42: #{_lambda_.72} parent=39 // pred_check_branch
        %388 = sbr.rel (%p386) target = $region44
      $region43: #{_lambda_.72} parent=39 // pred_region
        %p389 = scmp.lt.s32.totalorder %s18, 1
        %s390 = scalar_select %p389, %s18, 1
        %s391 = smul.addr %s390, 2
        %s392 = scalar_lea.vmem %s1, %s391
      $region44: #{_lambda_.72} parent=39 // pred_fallthru
        _
    $region40: #{_lambda_.72} parent=5 // pred_fallthru
      _
  $region6: #{_lambda_.72} parent=0 // loop_footer
    %s11 = sadd.s32 1, %s7
  $region7: #{_lambda_.72} parent=0 // loop_footer_branch
    %6 = sbr.rel target = $region3
  $region8: #{_lambda_.72} parent=0 // loop_exit
    _

// kernel: _lambda_.73
$region0: #{_lambda_.73}
  #allocation0 [shape = 'u32[]', space=smem, size = 0x4, offset = 0x4, fixed_abs, tag = 'smem constant byte address 0x4 - core index']
  #allocation1 [shape = 'u32[144,128]{1,0:T(1,128)}', space=vmem, size = 0x12000, scoped, tag = 'internal scratch']
  %s0 = inlined_call_operand.vmem [shape: f32[2,256,4], index: 0, kind: input, shape index: {}]
  %s1 = inlined_call_operand.vmem [shape: f32[2,2,4], index: 1, kind: input, shape index: {}]
  %s2 = inlined_call_operand.vmem [shape: f32[2,256,4], index: 2, kind: output, shape index: {}]
  %s3 = sld [smem:[#allocation0]]
  $region41: #{_lambda_.73} parent=0
    _
  %s5 = ssub.s32 1, %s3
  %s6 = scalar_select 0, %s5, %s3
  loop: start=0, step=1, limit=4
  $region2: #{_lambda_.73} parent=0 // loop_pre_header
    _
  $region3: #{_lambda_.73} parent=0 // loop_header
    %s8 = sphi 0, %s12
    %p9 = scmp.ge.s32.totalorder %s8, 4
    %s15 = sphi 0, %s27
    %s16 = sphi 0, %s23
    %s17 = sphi 0, %s15
    %s18 = sphi 0, %s16
    %s19 = sphi 0, %s17
    %s20 = sphi 0, %s18
    %s32 = sphi 0, %s34
    %s35 = sphi 0, %s32
    %s36 = sphi 0, %s35
    %s52 = sphi 0, %s36
    %s58 = sphi 0, %s60
    %s61 = sphi 0, %s58
    %s62 = sphi 0, %s61
    %s78 = sphi 0, %s62
    %s86 = sphi 0, %s88
    %s89 = sphi 0, %s86
    %s90 = sphi 0, %s89
    %s106 = sphi 0, %s90
  $region4: #{_lambda_.73} parent=0 // loop_header_branch
    %11 = sbr.rel (%p9) target = $region8
  $region5: #{_lambda_.73} parent=0 // loop_body
    %s13 = ssub.s32 %s8, 1
    %s14 = ssub.s32 %s8, 2
    %s21 = sadd.s32 1, %s16
    %p22 = scmp.ge.s32.totalorder %s21, 1
    %s23 = scalar_select %p22, 0, %s21
    %s24 = sadd.s32 1, %s15
    %s25 = scalar_select %p22, %s24, %s15
    %p26 = scmp.ge.s32.totalorder %s25, 2
    %s27 = scalar_select %p26, 0, %s25
    %s28 = ssub.s32 %s15, %s27
    %s29 = ssub.s32 %s16, %s23
    %s30 = sor.u32 %s28, %s29
    %p31 = scmp.eq.s32.totalorder %s30, 0
    %s33 = sadd.s32 %s32, 1
    %s34 = scalar_select %p31, %s32, %s33
    %p37 = pneg %p31
    %p38 = scmp.eq.s32.totalorder %s8, 1
    %p39 = por %p37, %p38
    %p40 = scmp.ne.s32.totalorder %s32, %s35
    %p41 = scmp.eq.s32.totalorder %s8, 0
    %p42 = por %p40, %p41
    %p43 = scmp.ne.s32.totalorder %s32, %s35
    %p44 = scmp.eq.s32.totalorder %s13, 1
    %p45 = por %p43, %p44
    %p46 = scmp.ne.s32.totalorder %s35, %s36
    %p47 = scmp.eq.s32.totalorder %s13, 0
    %p48 = por %p46, %p47
    %p49 = scmp.ne.s32.totalorder %s35, %s36
    %p50 = scmp.eq.s32.totalorder %s14, 1
    %p51 = por %p49, %p50
    %p53 = scmp.ne.s32.totalorder %s36, %s52
    %p54 = scmp.eq.s32.totalorder %s14, 0
    %p55 = por %p53, %p54
    %s56 = ssub.s32 %s15, %s27
    %p57 = scmp.eq.s32.totalorder %s56, 0
    %s59 = sadd.s32 %s58, 1
    %s60 = scalar_select %p57, %s58, %s59
    %p63 = pneg %p57
    %p64 = scmp.eq.s32.totalorder %s8, 1
    %p65 = por %p63, %p64
    %p66 = scmp.ne.s32.totalorder %s58, %s61
    %p67 = scmp.eq.s32.totalorder %s8, 0
    %p68 = por %p66, %p67
    %p69 = scmp.ne.s32.totalorder %s58, %s61
    %p70 = scmp.eq.s32.totalorder %s13, 1
    %p71 = por %p69, %p70
    %p72 = scmp.ne.s32.totalorder %s61, %s62
    %p73 = scmp.eq.s32.totalorder %s13, 0
    %p74 = por %p72, %p73
    %p75 = scmp.ne.s32.totalorder %s61, %s62
    %p76 = scmp.eq.s32.totalorder %s14, 1
    %p77 = por %p75, %p76
    %p79 = scmp.ne.s32.totalorder %s62, %s78
    %p80 = scmp.eq.s32.totalorder %s14, 0
    %p81 = por %p79, %p80
    %s82 = ssub.s32 %s15, %s27
    %s83 = ssub.s32 %s16, %s23
    %s84 = sor.u32 %s82, %s83
    %p85 = scmp.eq.s32.totalorder %s84, 0
    %s87 = sadd.s32 %s86, 1
    %s88 = scalar_select %p85, %s86, %s87
    %p91 = pneg %p85
    %p92 = scmp.eq.s32.totalorder %s8, 1
    %p93 = por %p91, %p92
    %p94 = scmp.ne.s32.totalorder %s86, %s89
    %p95 = scmp.eq.s32.totalorder %s8, 0
    %p96 = por %p94, %p95
    %p97 = scmp.ne.s32.totalorder %s86, %s89
    %p98 = scmp.eq.s32.totalorder %s13, 1
    %p99 = por %p97, %p98
    %p100 = scmp.ne.s32.totalorder %s89, %s90
    %p101 = scmp.eq.s32.totalorder %s13, 0
    %p102 = por %p100, %p101
    %p103 = scmp.ne.s32.totalorder %s89, %s90
    %p104 = scmp.eq.s32.totalorder %s14, 1
    %p105 = por %p103, %p104
    %p107 = scmp.ne.s32.totalorder %s90, %s106
    %p108 = scmp.eq.s32.totalorder %s14, 0
    %p109 = por %p107, %p108
    %p110 = scmp.le.s32.totalorder 1, %s8
    %p111 = scmp.lt.s32.totalorder %s8, 3
    %p112 = pnand %p110, %p111
    %p113 = pneg %p112
    // Predicated region
    $region9: #{_lambda_.73} parent=5 // pred_check
      _
    $region10: #{_lambda_.73} parent=5 // pred_check_branch
      %115 = sbr.rel (%p112) target = $region12
    $region11: #{_lambda_.73} parent=5 // pred_region
      %s116 = ssub.s32 %s8, 1
    $region12: #{_lambda_.73} parent=5 // pred_fallthru
      _
    %p117 = scmp.lt.s32.totalorder %s8, 2
    // Predicated region
    $region13: #{_lambda_.73} parent=5 // pred_check
      %p118 = pneg %p117
    $region14: #{_lambda_.73} parent=5 // pred_check_branch
      %120 = sbr.rel (%p118) target = $region16
    $region15: #{_lambda_.73} parent=5 // pred_region
      // Predicated region
      $region17: #{_lambda_.73} parent=15 // pred_check
        %p121 = pneg %p42
      $region18: #{_lambda_.73} parent=15 // pred_check_branch
        %123 = sbr.rel (%p121) target = $region20
      $region19: #{_lambda_.73} parent=15 // pred_region
        %s124 = smul.u32 32, %s16
        %p125 = scmp.lt.s32.totalorder %s15, 1
        %s126 = scalar_select %p125, %s15, 1
        %p127 = scmp.lt.s32.totalorder %s124, 31
        %s128 = scalar_select %p127, %s124, 31
        %s129 = smul.addr %s126, 32
        %s130 = sadd.s32 %s128, %s129
        %s131 = smul.addr %s130, 8
        %s132 = scalar_lea.vmem %s0, %s131
        %s133 = smul.u32 32, %s16
      $region20: #{_lambda_.73} parent=15 // pred_fallthru
        _
      // Predicated region
      $region21: #{_lambda_.73} parent=15 // pred_check
        %p134 = pneg %p68
      $region22: #{_lambda_.73} parent=15 // pred_check_branch
        %136 = sbr.rel (%p134) target = $region24
      $region23: #{_lambda_.73} parent=15 // pred_region
        %p137 = scmp.lt.s32.totalorder %s15, 1
        %s138 = scalar_select %p137, %s15, 1
        %s139 = smul.addr %s138, 2
        %s140 = scalar_lea.vmem %s1, %s139
      $region24: #{_lambda_.73} parent=15 // pred_fallthru
        _
    $region16: #{_lambda_.73} parent=5 // pred_fallthru
      _
    %p141 = scmp.le.s32.totalorder 1, %s8
    %p142 = scmp.lt.s32.totalorder %s8, 3
    %p143 = pnand %p141, %p142
    %p144 = pneg %p143
    // Predicated region
    $region25: #{_lambda_.73} parent=5 // pred_check
      _
    $region26: #{_lambda_.73} parent=5 // pred_check_branch
      %146 = sbr.rel (%p143) target = $region28
    $region27: #{_lambda_.73} parent=5 // pred_region
      %s147 = ssub.s32 %s8, 1
      %s148 = smul.u32 32, %s18
      %p149 = scmp.lt.s32.totalorder %s17, 1
      %s150 = scalar_select %p149, %s17, 1
      %p151 = scmp.lt.s32.totalorder %s148, 31
      %s152 = scalar_select %p151, %s148, 31
      %s153 = smul.addr %s150, 32
      %s154 = sadd.s32 %s152, %s153
      %s155 = smul.addr %s154, 8
      %s156 = scalar_lea.vmem %s0, %s155
      %p157 = pneg %p48
      %p158 = pneg %p45
      %p159 = scmp.lt.s32.totalorder %s17, 1
      %s160 = scalar_select %p159, %s17, 1
      %s161 = smul.addr %s160, 2
      %s162 = scalar_lea.vmem %s1, %s161
      %p163 = pneg %p74
      %p164 = pneg %p71
      %p165 = pneg %p102
      %p166 = pneg %p99
      %s167 = smul.u32 32, %s18
      %p168 = scmp.lt.s32.totalorder %s17, 1
      %s169 = scalar_select %p168, %s17, 1
      %p170 = scmp.lt.s32.totalorder %s167, 31
      %s171 = scalar_select %p170, %s167, 31
      %s172 = smul.addr %s169, 32
      %s173 = sadd.s32 %s171, %s172
      %s174 = smul.addr %s173, 8
      %s175 = scalar_lea.vmem %s2, %s174
      %s176 = smul.u32 32, %s18
      %p177 = scmp.lt.s32.totalorder %s17, 1
      %s178 = scalar_select %p177, %s17, 1
      %p179 = scmp.lt.s32.totalorder %s176, 31
      %s180 = scalar_select %p179, %s176, 31
      %s181 = smul.addr %s178, 32
      %s182 = sadd.s32 %s180, %s181
      %s183 = smul.addr %s182, 8
      %s184 = scalar_lea.vmem %s0, %s183
      %s185 = smul.u32 32, %s18
      %p186 = scmp.lt.s32.totalorder %s17, 1
      %s187 = scalar_select %p186, %s17, 1
      %s188 = smul.addr %s187, 2
      %s189 = scalar_lea.vmem %s1, %s188
      %s190 = smul.u32 32, %s18
      %p191 = scmp.lt.s32.totalorder %s17, 1
      %s192 = scalar_select %p191, %s17, 1
      %p193 = scmp.lt.s32.totalorder %s190, 31
      %s194 = scalar_select %p193, %s190, 31
      %s195 = smul.addr %s192, 32
      %s196 = sadd.s32 %s194, %s195
      %s197 = smul.addr %s196, 8
      %s198 = scalar_lea.vmem %s2, %s197
      %s199 = smul.u32 32, %s18
      %v200 = vld [vmem:[%s184] sm:$0xff]
      %v201 = vld [vmem:[%s184 + $0x8] sm:$0xff]
      %v202 = vld [vmem:[%s184 + $0x10] sm:$0xff]
      %v203 = vld [vmem:[%s184 + $0x18] sm:$0xff]
      %v204 = vld [vmem:[%s184 + $0x20] sm:$0xff]
      %v205 = vld [vmem:[%s184 + $0x28] sm:$0xff]
      %v206 = vld [vmem:[%s184 + $0x30] sm:$0xff]
      %v207 = vld [vmem:[%s184 + $0x38] sm:$0xff]
      %v208 = vld [vmem:[%s184 + $0x40] sm:$0xff]
      %v209 = vld [vmem:[%s184 + $0x48] sm:$0xff]
      %v210 = vld [vmem:[%s184 + $0x50] sm:$0xff]
      %v211 = vld [vmem:[%s184 + $0x58] sm:$0xff]
      %v212 = vld [vmem:[%s184 + $0x60] sm:$0xff]
      %v213 = vld [vmem:[%s184 + $0x68] sm:$0xff]
      %v214 = vld [vmem:[%s184 + $0x70] sm:$0xff]
      %v215 = vld [vmem:[%s184 + $0x78] sm:$0xff]
      %v216 = vld [vmem:[%s184 + $0x80] sm:$0xff]
      %v217 = vld [vmem:[%s184 + $0x88] sm:$0xff]
      %v218 = vld [vmem:[%s184 + $0x90] sm:$0xff]
      %v219 = vld [vmem:[%s184 + $0x98] sm:$0xff]
      %v220 = vld [vmem:[%s184 + $0xa0] sm:$0xff]
      %v221 = vld [vmem:[%s184 + $0xa8] sm:$0xff]
      %v222 = vld [vmem:[%s184 + $0xb0] sm:$0xff]
      %v223 = vld [vmem:[%s184 + $0xb8] sm:$0xff]
      %v224 = vld [vmem:[%s184 + $0xc0] sm:$0xff]
      %v225 = vld [vmem:[%s184 + $0xc8] sm:$0xff]
      %v226 = vld [vmem:[%s184 + $0xd0] sm:$0xff]
      %v227 = vld [vmem:[%s184 + $0xd8] sm:$0xff]
      %v228 = vld [vmem:[%s184 + $0xe0] sm:$0xff]
      %v229 = vld [vmem:[%s184 + $0xe8] sm:$0xff]
      %v230 = vld [vmem:[%s184 + $0xf0] sm:$0xff]
      %v231 = vld [vmem:[%s184 + $0xf8] sm:$0xff]
      %v232 = vld [vmem:[%s189] sm:$0x1]
      %v233 = vlaneseq
      %v234 = vshrl.u32 %v233, 7
      %v235 = vsub.s32 0, %v234
      %v236 = vrot.slane %v232, %v235
      %v237 = vsub.f32 %v200, %v236
      %v238 = vsub.f32 %v201, %v236
      %v239 = vsub.f32 %v202, %v236
      %v240 = vsub.f32 %v203, %v236
      %v241 = vsub.f32 %v204, %v236
      %v242 = vsub.f32 %v205, %v236
      %v243 = vsub.f32 %v206, %v236
      %v244 = vsub.f32 %v207, %v236
      %v245 = vsub.f32 %v208, %v236
      %v246 = vsub.f32 %v209, %v236
      %v247 = vsub.f32 %v210, %v236
      %v248 = vsub.f32 %v211, %v236
      %v249 = vsub.f32 %v212, %v236
      %v250 = vsub.f32 %v213, %v236
      %v251 = vsub.f32 %v214, %v236
      %v252 = vsub.f32 %v215, %v236
      %v253 = vsub.f32 %v216, %v236
      %v254 = vsub.f32 %v217, %v236
      %v255 = vsub.f32 %v218, %v236
      %v256 = vsub.f32 %v219, %v236
      %v257 = vsub.f32 %v220, %v236
      %v258 = vsub.f32 %v221, %v236
      %v259 = vsub.f32 %v222, %v236
      %v260 = vsub.f32 %v223, %v236
      %v261 = vsub.f32 %v224, %v236
      %v262 = vsub.f32 %v225, %v236
      %v263 = vsub.f32 %v226, %v236
      %v264 = vsub.f32 %v227, %v236
      %v265 = vsub.f32 %v228, %v236
      %v266 = vsub.f32 %v229, %v236
      %v267 = vsub.f32 %v230, %v236
      %v268 = vsub.f32 %v231, %v236
      %v269 = vld [vmem:[%s189 + $0x1] sm:$0x1]
      %v270 = vlaneseq
      %v271 = vshrl.u32 %v270, 7
      %v272 = vsub.s32 0, %v271
      %v273 = vrot.slane %v269, %v272
      %v274 = vmul.f32 %v237, %v273
      %v275 = vmul.f32 %v238, %v273
      %v276 = vmul.f32 %v239, %v273
      %v277 = vmul.f32 %v240, %v273
      %v278 = vmul.f32 %v241, %v273
      %v279 = vmul.f32 %v242, %v273
      %v280 = vmul.f32 %v243, %v273
      %v281 = vmul.f32 %v244, %v273
      %v282 = vmul.f32 %v245, %v273
      %v283 = vmul.f32 %v246, %v273
      %v284 = vmul.f32 %v247, %v273
      %v285 = vmul.f32 %v248, %v273
      %v286 = vmul.f32 %v249, %v273
      %v287 = vmul.f32 %v250, %v273
      %v288 = vmul.f32 %v251, %v273
      %v289 = vmul.f32 %v252, %v273
      %v290 = vmul.f32 %v253, %v273
      %v291 = vmul.f32 %v254, %v273
      %v292 = vmul.f32 %v255, %v273
      %v293 = vmul.f32 %v256, %v273
      %v294 = vmul.f32 %v257, %v273
      %v295 = vmul.f32 %v258, %v273
      %v296 = vmul.f32 %v259, %v273
      %v297 = vmul.f32 %v260, %v273
      %v298 = vmul.f32 %v261, %v273
      %v299 = vmul.f32 %v262, %v273
      %v300 = vmul.f32 %v263, %v273
      %v301 = vmul.f32 %v264, %v273
      %v302 = vmul.f32 %v265, %v273
      %v303 = vmul.f32 %v266, %v273
      %v304 = vmul.f32 %v267, %v273
      %v305 = vmul.f32 %v268, %v273
      %vm306 = vcmask 31744
      %307 = vst.msk [vmem:[%s198] sm:$0xff] %vm306, %v274
      %308 = vst.msk [vmem:[%s198 + $0x8] sm:$0xff] %vm306, %v275
      %309 = vst.msk [vmem:[%s198 + $0x10] sm:$0xff] %vm306, %v276
      %310 = vst.msk [vmem:[%s198 + $0x18] sm:$0xff] %vm306, %v277
      %311 = vst.msk [vmem:[%s198 + $0x20] sm:$0xff] %vm306, %v278
      %312 = vst.msk [vmem:[%s198 + $0x28] sm:$0xff] %vm306, %v279
      %313 = vst.msk [vmem:[%s198 + $0x30] sm:$0xff] %vm306, %v280
      %314 = vst.msk [vmem:[%s198 + $0x38] sm:$0xff] %vm306, %v281
      %315 = vst.msk [vmem:[%s198 + $0x40] sm:$0xff] %vm306, %v282
      %316 = vst.msk [vmem:[%s198 + $0x48] sm:$0xff] %vm306, %v283
      %317 = vst.msk [vmem:[%s198 + $0x50] sm:$0xff] %vm306, %v284
      %318 = vst.msk [vmem:[%s198 + $0x58] sm:$0xff] %vm306, %v285
      %319 = vst.msk [vmem:[%s198 + $0x60] sm:$0xff] %vm306, %v286
      %320 = vst.msk [vmem:[%s198 + $0x68] sm:$0xff] %vm306, %v287
      %321 = vst.msk [vmem:[%s198 + $0x70] sm:$0xff] %vm306, %v288
      %322 = vst.msk [vmem:[%s198 + $0x78] sm:$0xff] %vm306, %v289
      %323 = vst.msk [vmem:[%s198 + $0x80] sm:$0xff] %vm306, %v290
      %324 = vst.msk [vmem:[%s198 + $0x88] sm:$0xff] %vm306, %v291
      %325 = vst.msk [vmem:[%s198 + $0x90] sm:$0xff] %vm306, %v292
      %326 = vst.msk [vmem:[%s198 + $0x98] sm:$0xff] %vm306, %v293
      %327 = vst.msk [vmem:[%s198 + $0xa0] sm:$0xff] %vm306, %v294
      %328 = vst.msk [vmem:[%s198 + $0xa8] sm:$0xff] %vm306, %v295
      %329 = vst.msk [vmem:[%s198 + $0xb0] sm:$0xff] %vm306, %v296
      %330 = vst.msk [vmem:[%s198 + $0xb8] sm:$0xff] %vm306, %v297
      %331 = vst.msk [vmem:[%s198 + $0xc0] sm:$0xff] %vm306, %v298
      %332 = vst.msk [vmem:[%s198 + $0xc8] sm:$0xff] %vm306, %v299
      %333 = vst.msk [vmem:[%s198 + $0xd0] sm:$0xff] %vm306, %v300
      %334 = vst.msk [vmem:[%s198 + $0xd8] sm:$0xff] %vm306, %v301
      %335 = vst.msk [vmem:[%s198 + $0xe0] sm:$0xff] %vm306, %v302
      %336 = vst.msk [vmem:[%s198 + $0xe8] sm:$0xff] %vm306, %v303
      %337 = vst.msk [vmem:[%s198 + $0xf0] sm:$0xff] %vm306, %v304
      %338 = vst.msk [vmem:[%s198 + $0xf8] sm:$0xff] %vm306, %v305
      %s339 = smul.u32 32, %s18
      %p340 = scmp.lt.s32.totalorder %s17, 1
      %s341 = scalar_select %p340, %s17, 1
      %p342 = scmp.lt.s32.totalorder %s339, 31
      %s343 = scalar_select %p342, %s339, 31
      %s344 = smul.addr %s341, 32
      %s345 = sadd.s32 %s343, %s344
      %s346 = smul.addr %s345, 8
      %s347 = scalar_lea.vmem %s2, %s346
      // Predicated region
      $region29: #{_lambda_.73} parent=27 // pred_check
        %p348 = pneg %p99
      $region30: #{_lambda_.73} parent=27 // pred_check_branch
        %350 = sbr.rel (%p348) target = $region32
      $region31: #{_lambda_.73} parent=27 // pred_region
        %s351 = smul.u32 32, %s18
      $region32: #{_lambda_.73} parent=27 // pred_fallthru
        _
    $region28: #{_lambda_.73} parent=5 // pred_fallthru
      _
    %p352 = scmp.le.s32.totalorder 2, %s8
    // Predicated region
    $region33: #{_lambda_.73} parent=5 // pred_check
      %p353 = pneg %p352
    $region34: #{_lambda_.73} parent=5 // pred_check_branch
      %355 = sbr.rel (%p353) target = $region36
    $region35: #{_lambda_.73} parent=5 // pred_region
      %s356 = ssub.s32 %s8, 2
      // Predicated region
      $region37: #{_lambda_.73} parent=35 // pred_check
        %p357 = pneg %p105
      $region38: #{_lambda_.73} parent=35 // pred_check_branch
        %359 = sbr.rel (%p357) target = $region40
      $region39: #{_lambda_.73} parent=35 // pred_region
        %s360 = smul.u32 32, %s20
        %p361 = scmp.lt.s32.totalorder %s19, 1
        %s362 = scalar_select %p361, %s19, 1
        %p363 = scmp.lt.s32.totalorder %s360, 31
        %s364 = scalar_select %p363, %s360, 31
        %s365 = smul.addr %s362, 32
        %s366 = sadd.s32 %s364, %s365
        %s367 = smul.addr %s366, 8
        %s368 = scalar_lea.vmem %s2, %s367
      $region40: #{_lambda_.73} parent=35 // pred_fallthru
        _
    $region36: #{_lambda_.73} parent=5 // pred_fallthru
      _
  $region6: #{_lambda_.73} parent=0 // loop_footer
    %s12 = sadd.s32 1, %s8
  $region7: #{_lambda_.73} parent=0 // loop_footer_branch
    %7 = sbr.rel target = $region3
  $region8: #{_lambda_.73} parent=0 // loop_exit
    _

// kernel: _lambda_.74
$region0: #{_lambda_.74}
  #allocation0 [shape = 'u32[]', space=smem, size = 0x4, offset = 0x4, fixed_abs, tag = 'smem constant byte address 0x4 - core index']
  #allocation1 [shape = 'u32[144,128]{1,0:T(1,128)}', space=vmem, size = 0x12000, scoped, tag = 'internal scratch']
  #allocation2 [shape = 'f32[256,128]{1,0:T(8,128)}', space=vmem, size = 0x20000, scoped, tag = 'scratch operand']
  %s0 = inlined_call_operand.vmem [shape: bf16[512,128], index: 0, kind: input, shape index: {}]
  %s1 = inlined_call_operand.vmem [shape: bf16[128,128], index: 1, kind: input, shape index: {}]
  %s2 = inlined_call_operand.vmem [shape: f32[1,128], index: 2, kind: input, shape index: {}]
  %s3 = inlined_call_operand.vmem [shape: f32[512,128], index: 3, kind: output, shape index: {}]
  %s4 = sld [smem:[#allocation0]]
  $region53: #{_lambda_.74} parent=0
    _
  %s6 = ssub.s32 1, %s4
  %s7 = scalar_select 0, %s6, %s4
  loop: start=0, step=1, limit=4
  $region2: #{_lambda_.74} parent=0 // loop_pre_header
    _
  $region3: #{_lambda_.74} parent=0 // loop_header
    %s9 = sphi 0, %s13
    %p10 = scmp.ge.s32.totalorder %s9, 4
    %s16 = sphi 0, %s35
    %s17 = sphi 0, %s31
    %s18 = sphi 0, %s27
    %s19 = sphi 0, %s16
    %s20 = sphi 0, %s17
    %s21 = sphi 0, %s18
    %s22 = sphi 0, %s19
    %s23 = sphi 0, %s20
    %s24 = sphi 0, %s21
    %s40 = sphi 0, %s42
    %s43 = sphi 0, %s40
    %s44 = sphi 0, %s43
    %s60 = sphi 0, %s44
    %s68 = sphi 0, %s70
    %s71 = sphi 0, %s68
    %s72 = sphi 0, %s71
    %s88 = sphi 0, %s72
    %s94 = sphi 0, %s96
    %s97 = sphi 0, %s94
    %s98 = sphi 0, %s97
    %s114 = sphi 0, %s98
    %s122 = sphi 0, %s124
    %s125 = sphi 0, %s122
    %s126 = sphi 0, %s125
    %s142 = sphi 0, %s126
  $region4: #{_lambda_.74} parent=0 // loop_header_branch
    %12 = sbr.rel (%p10) target = $region8
  $region5: #{_lambda_.74} parent=0 // loop_body
    %s14 = ssub.s32 %s9, 1
    %s15 = ssub.s32 %s9, 2
    %s25 = sadd.s32 1, %s18
    %p26 = scmp.ge.s32.totalorder %s25, 1
    %s27 = scalar_select %p26, 0, %s25
    %s28 = sadd.s32 1, %s17
    %s29 = scalar_select %p26, %s28, %s17
    %p30 = scmp.ge.s32.totalorder %s29, 1
    %s31 = scalar_select %p30, 0, %s29
    %s32 = sadd.s32 1, %s16
    %s33 = scalar_select %p30, %s32, %s16
    %p34 = scmp.ge.s32.totalorder %s33, 2
    %s35 = scalar_select %p34, 0, %s33
    %s36 = ssub.s32 %s16, %s35
    %s37 = ssub.s32 %s18, %s27
    %s38 = sor.u32 %s36, %s37
    %p39 = scmp.eq.s32.totalorder %s38, 0
    %s41 = sadd.s32 %s40, 1
    %s42 = scalar_select %p39, %s40, %s41
    %p45 = pneg %p39
    %p46 = scmp.eq.s32.totalorder %s9, 1
    %p47 = por %p45, %p46
    %p48 = scmp.ne.s32.totalorder %s40, %s43
    %p49 = scmp.eq.s32.totalorder %s9, 0
    %p50 = por %p48, %p49
    %p51 = scmp.ne.s32.totalorder %s40, %s43
    %p52 = scmp.eq.s32.totalorder %s14, 1
    %p53 = por %p51, %p52
    %p54 = scmp.ne.s32.totalorder %s43, %s44
    %p55 = scmp.eq.s32.totalorder %s14, 0
    %p56 = por %p54, %p55
    %p57 = scmp.ne.s32.totalorder %s43, %s44
    %p58 = scmp.eq.s32.totalorder %s15, 1
    %p59 = por %p57, %p58
    %p61 = scmp.ne.s32.totalorder %s44, %s60
    %p62 = scmp.eq.s32.totalorder %s15, 0
    %p63 = por %p61, %p62
    %s64 = ssub.s32 %s18, %s27
    %s65 = ssub.s32 %s17, %s31
    %s66 = sor.u32 %s64, %s65
    %p67 = scmp.eq.s32.totalorder %s66, 0
    %s69 = sadd.s32 %s68, 1
    %s70 = scalar_select %p67, %s68, %s69
    %p73 = pneg %p67
    %p74 = scmp.eq.s32.totalorder %s9, 1
    %p75 = por %p73, %p74
    %p76 = scmp.ne.s32.totalorder %s68, %s71
    %p77 = scmp.eq.s32.totalorder %s9, 0
    %p78 = por %p76, %p77
    %p79 = scmp.ne.s32.totalorder %s68, %s71
    %p80 = scmp.eq.s32.totalorder %s14, 1
    %p81 = por %p79, %p80
    %p82 = scmp.ne.s32.totalorder %s71, %s72
    %p83 = scmp.eq.s32.totalorder %s14, 0
    %p84 = por %p82, %p83
    %p85 = scmp.ne.s32.totalorder %s71, %s72
    %p86 = scmp.eq.s32.totalorder %s15, 1
    %p87 = por %p85, %p86
    %p89 = scmp.ne.s32.totalorder %s72, %s88
    %p90 = scmp.eq.s32.totalorder %s15, 0
    %p91 = por %p89, %p90
    %s92 = ssub.s32 %s17, %s31
    %p93 = scmp.eq.s32.totalorder %s92, 0
    %s95 = sadd.s32 %s94, 1
    %s96 = scalar_select %p93, %s94, %s95
    %p99 = pneg %p93
    %p100 = scmp.eq.s32.totalorder %s9, 1
    %p101 = por %p99, %p100
    %p102 = scmp.ne.s32.totalorder %s94, %s97
    %p103 = scmp.eq.s32.totalorder %s9, 0
    %p104 = por %p102, %p103
    %p105 = scmp.ne.s32.totalorder %s94, %s97
    %p106 = scmp.eq.s32.totalorder %s14, 1
    %p107 = por %p105, %p106
    %p108 = scmp.ne.s32.totalorder %s97, %s98
    %p109 = scmp.eq.s32.totalorder %s14, 0
    %p110 = por %p108, %p109
    %p111 = scmp.ne.s32.totalorder %s97, %s98
    %p112 = scmp.eq.s32.totalorder %s15, 1
    %p113 = por %p111, %p112
    %p115 = scmp.ne.s32.totalorder %s98, %s114
    %p116 = scmp.eq.s32.totalorder %s15, 0
    %p117 = por %p115, %p116
    %s118 = ssub.s32 %s16, %s35
    %s119 = ssub.s32 %s17, %s31
    %s120 = sor.u32 %s118, %s119
    %p121 = scmp.eq.s32.totalorder %s120, 0
    %s123 = sadd.s32 %s122, 1
    %s124 = scalar_select %p121, %s122, %s123
    %p127 = pneg %p121
    %p128 = scmp.eq.s32.totalorder %s9, 1
    %p129 = por %p127, %p128
    %p130 = scmp.ne.s32.totalorder %s122, %s125
    %p131 = scmp.eq.s32.totalorder %s9, 0
    %p132 = por %p130, %p131
    %p133 = scmp.ne.s32.totalorder %s122, %s125
    %p134 = scmp.eq.s32.totalorder %s14, 1
    %p135 = por %p133, %p134
    %p136 = scmp.ne.s32.totalorder %s125, %s126
    %p137 = scmp.eq.s32.totalorder %s14, 0
    %p138 = por %p136, %p137
    %p139 = scmp.ne.s32.totalorder %s125, %s126
    %p140 = scmp.eq.s32.totalorder %s15, 1
    %p141 = por %p139, %p140
    %p143 = scmp.ne.s32.totalorder %s126, %s142
    %p144 = scmp.eq.s32.totalorder %s15, 0
    %p145 = por %p143, %p144
    %p146 = scmp.le.s32.totalorder 1, %s9
    %p147 = scmp.lt.s32.totalorder %s9, 3
    %p148 = pnand %p146, %p147
    %p149 = pneg %p148
    // Predicated region
    $region9: #{_lambda_.74} parent=5 // pred_check
      _
    $region10: #{_lambda_.74} parent=5 // pred_check_branch
      %151 = sbr.rel (%p148) target = $region12
    $region11: #{_lambda_.74} parent=5 // pred_region
      %s152 = ssub.s32 %s9, 1
      // Predicated region
      $region13: #{_lambda_.74} parent=11 // pred_check
        %p153 = pneg %p84
      $region14: #{_lambda_.74} parent=11 // pred_check_branch
        %155 = sbr.rel (%p153) target = $region16
      $region15: #{_lambda_.74} parent=11 // pred_region
        %s156 = smul.u32 16, %s21
        %p157 = scmp.lt.s32.totalorder %s156, 15
        %s158 = scalar_select %p157, %s156, 15
        %p159 = scmp.lt.s32.totalorder %s20, 0
        %s160 = scalar_select %p159, %s20, 0
        %s161 = sadd.s32 %s160, %s158
        %s162 = smul.addr %s161, 4
        %s163 = scalar_lea.vmem %s1, %s162
        %s164 = smul.u32 16, %s21
      $region16: #{_lambda_.74} parent=11 // pred_fallthru
        _
      // Predicated region
      $region17: #{_lambda_.74} parent=11 // pred_check
        %p165 = pneg %p110
      $region18: #{_lambda_.74} parent=11 // pred_check_branch
        %167 = sbr.rel (%p165) target = $region20
      $region19: #{_lambda_.74} parent=11 // pred_region
        %p168 = scmp.lt.s32.totalorder %s20, 0
        %s169 = scalar_select %p168, %s20, 0
        %s170 = scalar_lea.vmem %s2, %s169
      $region20: #{_lambda_.74} parent=11 // pred_fallthru
        _
    $region12: #{_lambda_.74} parent=5 // pred_fallthru
      _
    %p171 = scmp.lt.s32.totalorder %s9, 2
    // Predicated region
    $region21: #{_lambda_.74} parent=5 // pred_check
      %p172 = pneg %p171
    $region22: #{_lambda_.74} parent=5 // pred_check_branch
      %174 = sbr.rel (%p172) target = $region24
    $region23: #{_lambda_.74} parent=5 // pred_region
      // Predicated region
      $region25: #{_lambda_.74} parent=23 // pred_check
        %p175 = pneg %p50
      $region26: #{_lambda_.74} parent=23 // pred_check_branch
        %177 = sbr.rel (%p175) target = $region28
      $region27: #{_lambda_.74} parent=23 // pred_region
        %s178 = smul.u32 32, %s16
        %p179 = scmp.lt.s32.totalorder %s178, 63
        %s180 = scalar_select %p179, %s178, 63
        %p181 = scmp.lt.s32.totalorder %s18, 0
        %s182 = scalar_select %p181, %s18, 0
        %s183 = sadd.s32 %s182, %s180
        %s184 = smul.addr %s183, 4
        %s185 = scalar_lea.vmem %s0, %s184
        %s186 = smul.u32 32, %s16
      $region28: #{_lambda_.74} parent=23 // pred_fallthru
        _
    $region24: #{_lambda_.74} parent=5 // pred_fallthru
      _
    %p187 = scmp.le.s32.totalorder 1, %s9
    %p188 = scmp.lt.s32.totalorder %s9, 3
    %p189 = pnand %p187, %p188
    %p190 = pneg %p189
    // Predicated region
    $region29: #{_lambda_.74} parent=5 // pred_check
      _
    $region30: #{_lambda_.74} parent=5 // pred_check_branch
      %192 = sbr.rel (%p189) target = $region32
    $region31: #{_lambda_.74} parent=5 // pred_region
      %s193 = ssub.s32 %s9, 1
      %s194 = smul.u32 32, %s19
      %p195 = scmp.lt.s32.totalorder %s194, 63
      %s196 = scalar_select %p195, %s194, 63
      %p197 = scmp.lt.s32.totalorder %s21, 0
      %s198 = scalar_select %p197, %s21, 0
      %s199 = sadd.s32 %s198, %s196
      %s200 = smul.addr %s199, 4
      %s201 = scalar_lea.vmem %s0, %s200
      %p202 = pneg %p56
      %p203 = pneg %p53
      %s204 = smul.u32 16, %s21
      %p205 = scmp.lt.s32.totalorder %s204, 15
      %s206 = scalar_select %p205, %s204, 15
      %p207 = scmp.lt.s32.totalorder %s20, 0
      %s208 = scalar_select %p207, %s20, 0
      %s209 = sadd.s32 %s208, %s206
      %s210 = smul.addr %s209, 4
      %s211 = scalar_lea.vmem %s1, %s210
      %p212 = pneg %p84
      %p213 = pneg %p81
      %p214 = scmp.lt.s32.totalorder %s20, 0
      %s215 = scalar_select %p214, %s20, 0
      %s216 = scalar_lea.vmem %s2, %s215
      %p217 = pneg %p110
      %p218 = pneg %p107
      %p219 = pneg %p138
      %p220 = pneg %p135
      %s221 = smul.u32 32, %s19
      %p222 = scmp.lt.s32.totalorder %s221, 63
      %s223 = scalar_select %p222, %s221, 63
      %p224 = scmp.lt.s32.totalorder %s20, 0
      %s225 = scalar_select %p224, %s20, 0
      %s226 = sadd.s32 %s225, %s223
      %s227 = smul.addr %s226, 8
      %s228 = scalar_lea.vmem %s3, %s227
      %s229 = smul.u32 32, %s19
      %p230 = scmp.lt.s32.totalorder %s229, 63
      %s231 = scalar_select %p230, %s229, 63
      %p232 = scmp.lt.s32.totalorder %s21, 0
      %s233 = scalar_select %p232, %s21, 0
      %s234 = sadd.s32 %s233, %s231
      %s235 = smul.addr %s234, 4
      %s236 = scalar_lea.vmem %s0, %s235
      %s237 = smul.u32 32, %s19
      %s238 = smul.u32 16, %s21
      %p239 = scmp.lt.s32.totalorder %s238, 15
      %s240 = scalar_select %p239, %s238, 15
      %p241 = scmp.lt.s32.totalorder %s20, 0
      %s242 = scalar_select %p241, %s20, 0
      %s243 = sadd.s32 %s242, %s240
      %s244 = smul.addr %s243, 4
      %s245 = scalar_lea.vmem %s1, %s244
      %s246 = smul.u32 16, %s21
      %p247 = scmp.lt.s32.totalorder %s20, 0
      %s248 = scalar_select %p247, %s20, 0
      %s249 = scalar_lea.vmem %s2, %s248
      %s250 = smul.u32 32, %s19
      %p251 = scmp.lt.s32.totalorder %s250, 63
      %s252 = scalar_select %p251, %s250, 63
      %p253 = scmp.lt.s32.totalorder %s20, 0
      %s254 = scalar_select %p253, %s20, 0
      %s255 = sadd.s32 %s254, %s252
      %s256 = smul.addr %s255, 8
      %s257 = scalar_lea.vmem %s3, %s256
      %s258 = smul.u32 32, %s19
      %p260 = scmp.eq.s32.totalorder %s21, 0
      // Predicated region
      $region33: #{_lambda_.74} parent=31 // pred_check
        %p261 = pneg %p260
      $region34: #{_lambda_.74} parent=31 // pred_check_branch
        %263 = sbr.rel (%p261) target = $region36
      $region35: #{_lambda_.74} parent=31 // pred_region
        %264 = vst [vmem:[#allocation2] sm:$0xff] 0.0
        %265 = vst [vmem:[#allocation2 + $0x8] sm:$0xff] 0.0
        %266 = vst [vmem:[#allocation2 + $0x10] sm:$0xff] 0.0
        %267 = vst [vmem:[#allocation2 + $0x18] sm:$0xff] 0.0
        %268 = vst [vmem:[#allocation2 + $0x20] sm:$0xff] 0.0
        %269 = vst [vmem:[#allocation2 + $0x28] sm:$0xff] 0.0
        %270 = vst [vmem:[#allocation2 + $0x30] sm:$0xff] 0.0
        %271 = vst [vmem:[#allocation2 + $0x38] sm:$0xff] 0.0
        %272 = vst [vmem:[#allocation2 + $0x40] sm:$0xff] 0.0
        %273 = vst [vmem:[#allocation2 + $0x48] sm:$0xff] 0.0
        %274 = vst [vmem:[#allocation2 + $0x50] sm:$0xff] 0.0
        %275 = vst [vmem:[#allocation2 + $0x58] sm:$0xff] 0.0
        %276 = vst [vmem:[#allocation2 + $0x60] sm:$0xff] 0.0
        %277 = vst [vmem:[#allocation2 + $0x68] sm:$0xff] 0.0
        %278 = vst [vmem:[#allocation2 + $0x70] sm:$0xff] 0.0
        %279 = vst [vmem:[#allocation2 + $0x78] sm:$0xff] 0.0
        %280 = vst [vmem:[#allocation2 + $0x80] sm:$0xff] 0.0
        %281 = vst [vmem:[#allocation2 + $0x88] sm:$0xff] 0.0
        %282 = vst [vmem:[#allocation2 + $0x90] sm:$0xff] 0.0
        %283 = vst [vmem:[#allocation2 + $0x98] sm:$0xff] 0.0
        %284 = vst [vmem:[#allocation2 + $0xa0] sm:$0xff] 0.0
        %285 = vst [vmem:[#allocation2 + $0xa8] sm:$0xff] 0.0
        %286 = vst [vmem:[#allocation2 + $0xb0] sm:$0xff] 0.0
        %287 = vst [vmem:[#allocation2 + $0xb8] sm:$0xff] 0.0
        %288 = vst [vmem:[#allocation2 + $0xc0] sm:$0xff] 0.0
        %289 = vst [vmem:[#allocation2 + $0xc8] sm:$0xff] 0.0
        %290 = vst [vmem:[#allocation2 + $0xd0] sm:$0xff] 0.0
        %291 = vst [vmem:[#allocation2 + $0xd8] sm:$0xff] 0.0
        %292 = vst [vmem:[#allocation2 + $0xe0] sm:$0xff] 0.0
        %293 = vst [vmem:[#allocation2 + $0xe8] sm:$0xff] 0.0
        %294 = vst [vmem:[#allocation2 + $0xf0] sm:$0xff] 0.0
        %295 = vst [vmem:[#allocation2 + $0xf8] sm:$0xff] 0.0
      $region36: #{_lambda_.74} parent=31 // pred_fallthru
        _
      %v296 = vld [vmem:[%s236] sm:$0xf]
      %v297 = vld [vmem:[%s236 + $0x4] sm:$0xf]
      %v298 = vld [vmem:[%s236 + $0x8] sm:$0xf]
      %v299 = vld [vmem:[%s236 + $0xc] sm:$0xf]
      %v300 = vld [vmem:[%s236 + $0x10] sm:$0xf]
      %v301 = vld [vmem:[%s236 + $0x14] sm:$0xf]
      %v302 = vld [vmem:[%s236 + $0x18] sm:$0xf]
      %v303 = vld [vmem:[%s236 + $0x1c] sm:$0xf]
      %v304 = vld [vmem:[%s236 + $0x20] sm:$0xf]
      %v305 = vld [vmem:[%s236 + $0x24] sm:$0xf]
      %v306 = vld [vmem:[%s236 + $0x28] sm:$0xf]
      %v307 = vld [vmem:[%s236 + $0x2c] sm:$0xf]
      %v308 = vld [vmem:[%s236 + $0x30] sm:$0xf]
      %v309 = vld [vmem:[%s236 + $0x34] sm:$0xf]
      %v310 = vld [vmem:[%s236 + $0x38] sm:$0xf]
      %v311 = vld [vmem:[%s236 + $0x3c] sm:$0xf]
      %v312 = vld [vmem:[%s236 + $0x40] sm:$0xf]
      %v313 = vld [vmem:[%s236 + $0x44] sm:$0xf]
      %v314 = vld [vmem:[%s236 + $0x48] sm:$0xf]
      %v315 = vld [vmem:[%s236 + $0x4c] sm:$0xf]
      %v316 = vld [vmem:[%s236 + $0x50] sm:$0xf]
      %v317 = vld [vmem:[%s236 + $0x54] sm:$0xf]
      %v318 = vld [vmem:[%s236 + $0x58] sm:$0xf]
      %v319 = vld [vmem:[%s236 + $0x5c] sm:$0xf]
      %v320 = vld [vmem:[%s236 + $0x60] sm:$0xf]
      %v321 = vld [vmem:[%s236 + $0x64] sm:$0xf]
      %v322 = vld [vmem:[%s236 + $0x68] sm:$0xf]
      %v323 = vld [vmem:[%s236 + $0x6c] sm:$0xf]
      %v324 = vld [vmem:[%s236 + $0x70] sm:$0xf]
      %v325 = vld [vmem:[%s236 + $0x74] sm:$0xf]
      %v326 = vld [vmem:[%s236 + $0x78] sm:$0xf]
      %v327 = vld [vmem:[%s236 + $0x7c] sm:$0xf]
      %v328 = vmax.bf16 %v296, 0
      %v329 = vmax.bf16 %v297, 0
      %v330 = vmax.bf16 %v298, 0
      %v331 = vmax.bf16 %v299, 0
      %v332 = vmax.bf16 %v300, 0
      %v333 = vmax.bf16 %v301, 0
      %v334 = vmax.bf16 %v302, 0
      %v335 = vmax.bf16 %v303, 0
      %v336 = vmax.bf16 %v304, 0
      %v337 = vmax.bf16 %v305, 0
      %v338 = vmax.bf16 %v306, 0
      %v339 = vmax.bf16 %v307, 0
      %v340 = vmax.bf16 %v308, 0
      %v341 = vmax.bf16 %v309, 0
      %v342 = vmax.bf16 %v310, 0
      %v343 = vmax.bf16 %v311, 0
      %v344 = vmax.bf16 %v312, 0
      %v345 = vmax.bf16 %v313, 0
      %v346 = vmax.bf16 %v314, 0
      %v347 = vmax.bf16 %v315, 0
      %v348 = vmax.bf16 %v316, 0
      %v349 = vmax.bf16 %v317, 0
      %v350 = vmax.bf16 %v318, 0
      %v351 = vmax.bf16 %v319, 0
      %v352 = vmax.bf16 %v320, 0
      %v353 = vmax.bf16 %v321, 0
      %v354 = vmax.bf16 %v322, 0
      %v355 = vmax.bf16 %v323, 0
      %v356 = vmax.bf16 %v324, 0
      %v357 = vmax.bf16 %v325, 0
      %v358 = vmax.bf16 %v326, 0
      %v359 = vmax.bf16 %v327, 0
      %v360 = vld [vmem:[#allocation2] sm:$0xff]
      %v361 = vld [vmem:[#allocation2 + $0x8] sm:$0xff]
      %v362 = vld [vmem:[#allocation2 + $0x10] sm:$0xff]
      %v363 = vld [vmem:[#allocation2 + $0x18] sm:$0xff]
      %v364 = vld [vmem:[#allocation2 + $0x20] sm:$0xff]
      %v365 = vld [vmem:[#allocation2 + $0x28] sm:$0xff]
      %v366 = vld [vmem:[#allocation2 + $0x30] sm:$0xff]
      %v367 = vld [vmem:[#allocation2 + $0x38] sm:$0xff]
      %v368 = vld [vmem:[#allocation2 + $0x40] sm:$0xff]
      %v369 = vld [vmem:[#allocation2 + $0x48] sm:$0xff]
      %v370 = vld [vmem:[#allocation2 + $0x50] sm:$0xff]
      %v371 = vld [vmem:[#allocation2 + $0x58] sm:$0xff]
      %v372 = vld [vmem:[#allocation2 + $0x60] sm:$0xff]
      %v373 = vld [vmem:[#allocation2 + $0x68] sm:$0xff]
      %v374 = vld [vmem:[#allocation2 + $0x70] sm:$0xff]
      %v375 = vld [vmem:[#allocation2 + $0x78] sm:$0xff]
      %v376 = vld [vmem:[#allocation2 + $0x80] sm:$0xff]
      %v377 = vld [vmem:[#allocation2 + $0x88] sm:$0xff]
      %v378 = vld [vmem:[#allocation2 + $0x90] sm:$0xff]
      %v379 = vld [vmem:[#allocation2 + $0x98] sm:$0xff]
      %v380 = vld [vmem:[#allocation2 + $0xa0] sm:$0xff]
      %v381 = vld [vmem:[#allocation2 + $0xa8] sm:$0xff]
      %v382 = vld [vmem:[#allocation2 + $0xb0] sm:$0xff]
      %v383 = vld [vmem:[#allocation2 + $0xb8] sm:$0xff]
      %v384 = vld [vmem:[#allocation2 + $0xc0] sm:$0xff]
      %v385 = vld [vmem:[#allocation2 + $0xc8] sm:$0xff]
      %v386 = vld [vmem:[#allocation2 + $0xd0] sm:$0xff]
      %v387 = vld [vmem:[#allocation2 + $0xd8] sm:$0xff]
      %v388 = vld [vmem:[#allocation2 + $0xe0] sm:$0xff]
      %v389 = vld [vmem:[#allocation2 + $0xe8] sm:$0xff]
      %v390 = vld [vmem:[#allocation2 + $0xf0] sm:$0xff]
      %v391 = vld [vmem:[#allocation2 + $0xf8] sm:$0xff]
      %v392 = vld [vmem:[%s245] sm:$0xf]
      %v393 = vld [vmem:[%s245 + $0x4] sm:$0xf]
      %v394 = vld [vmem:[%s245 + $0x8] sm:$0xf]
      %v395 = vld [vmem:[%s245 + $0xc] sm:$0xf]
      %v396 = vld [vmem:[%s245 + $0x10] sm:$0xf]
      %v397 = vld [vmem:[%s245 + $0x14] sm:$0xf]
      %v398 = vld [vmem:[%s245 + $0x18] sm:$0xf]
      %v399 = vld [vmem:[%s245 + $0x1c] sm:$0xf]
      %v400 = vld [vmem:[%s245 + $0x20] sm:$0xf]
      %v401 = vld [vmem:[%s245 + $0x24] sm:$0xf]
      %v402 = vld [vmem:[%s245 + $0x28] sm:$0xf]
      %v403 = vld [vmem:[%s245 + $0x2c] sm:$0xf]
      %v404 = vld [vmem:[%s245 + $0x30] sm:$0xf]
      %v405 = vld [vmem:[%s245 + $0x34] sm:$0xf]
      %v406 = vld [vmem:[%s245 + $0x38] sm:$0xf]
      %v407 = vld [vmem:[%s245 + $0x3c] sm:$0xf]
      %v440 = vunpack.c.l.b16 %v328
      %v441 = vunpack.c.l.b16 %v329
      %v442 = vunpack.c.l.b16 %v330
      %v443 = vunpack.c.l.b16 %v331
      %v444 = vunpack.c.l.b16 %v332
      %v445 = vunpack.c.l.b16 %v333
      %v446 = vunpack.c.l.b16 %v334
      %v447 = vunpack.c.l.b16 %v335
      %v448 = vunpack.c.l.b16 %v336
      %v449 = vunpack.c.l.b16 %v337
      %v450 = vunpack.c.l.b16 %v338
      %v451 = vunpack.c.l.b16 %v339
      %v452 = vunpack.c.l.b16 %v340
      %v453 = vunpack.c.l.b16 %v341
      %v454 = vunpack.c.l.b16 %v342
      %v455 = vunpack.c.l.b16 %v343
      %v456 = vunpack.c.l.b16 %v344
      %v457 = vunpack.c.l.b16 %v345
      %v458 = vunpack.c.l.b16 %v346
      %v459 = vunpack.c.l.b16 %v347
      %v460 = vunpack.c.l.b16 %v348
      %v461 = vunpack.c.l.b16 %v349
      %v462 = vunpack.c.l.b16 %v350
      %v463 = vunpack.c.l.b16 %v351
      %v464 = vunpack.c.l.b16 %v352
      %v465 = vunpack.c.l.b16 %v353
      %v466 = vunpack.c.l.b16 %v354
      %v467 = vunpack.c.l.b16 %v355
      %v468 = vunpack.c.l.b16 %v356
      %v469 = vunpack.c.l.b16 %v357
      %v470 = vunpack.c.l.b16 %v358
      %v471 = vunpack.c.l.b16 %v359
      %v472 = vpack.c.b16 %v441, %v440
      %v473 = vpack.c.b16 %v443, %v442
      %v474 = vpack.c.b16 %v445, %v444
      %v475 = vpack.c.b16 %v447, %v446
      %v476 = vpack.c.b16 %v449, %v448
      %v477 = vpack.c.b16 %v451, %v450
      %v478 = vpack.c.b16 %v453, %v452
      %v479 = vpack.c.b16 %v455, %v454
      %v480 = vpack.c.b16 %v457, %v456
      %v481 = vpack.c.b16 %v459, %v458
      %v482 = vpack.c.b16 %v461, %v460
      %v483 = vpack.c.b16 %v463, %v462
      %v484 = vpack.c.b16 %v465, %v464
      %v485 = vpack.c.b16 %v467, %v466
      %v486 = vpack.c.b16 %v469, %v468
      %v487 = vpack.c.b16 %v471, %v470
      %v520 = vunpack.c.l.b16 %v392
      %v521 = vunpack.c.l.b16 %v393
      %v522 = vunpack.c.l.b16 %v394
      %v523 = vunpack.c.l.b16 %v395
      %v524 = vunpack.c.l.b16 %v396
      %v525 = vunpack.c.l.b16 %v397
      %v526 = vunpack.c.l.b16 %v398
      %v527 = vunpack.c.l.b16 %v399
      %v528 = vunpack.c.l.b16 %v400
      %v529 = vunpack.c.l.b16 %v401
      %v530 = vunpack.c.l.b16 %v402
      %v531 = vunpack.c.l.b16 %v403
      %v532 = vunpack.c.l.b16 %v404
      %v533 = vunpack.c.l.b16 %v405
      %v534 = vunpack.c.l.b16 %v406
      %v535 = vunpack.c.l.b16 %v407
      %v536 = vpack.c.b16 %v521, %v520
      %v537 = vpack.c.b16 %v523, %v522
      %v538 = vpack.c.b16 %v525, %v524
      %v539 = vpack.c.b16 %v527, %v526
      %v540 = vpack.c.b16 %v529, %v528
      %v541 = vpack.c.b16 %v531, %v530
      %v542 = vpack.c.b16 %v533, %v532
      %v543 = vpack.c.b16 %v535, %v534
      %552 = vmatprep.subr.bf16.mxu0 0
      %553 = vmatpush1.bf16.msra.mxu0 %v543
      %554 = vmatprep.subr.bf16.mxu0 0
      %555 = vmatpush1.bf16.msra.mxu0 %v542
      %556 = vmatprep.subr.bf16.mxu0 0
      %557 = vmatpush1.bf16.msra.mxu0 %v541
      %558 = vmatprep.subr.bf16.mxu0 0
      %559 = vmatpush1.bf16.msra.mxu0 %v540
      %560 = vmatprep.subr.bf16.mxu0 0
      %561 = vmatpush1.bf16.msra.mxu0 %v539
      %562 = vmatprep.subr.bf16.mxu0 0
      %563 = vmatpush1.bf16.msra.mxu0 %v538
      %564 = vmatprep.subr.bf16.mxu0 0
      %565 = vmatpush1.bf16.msra.mxu0 %v537
      %566 = vmatprep.subr.bf16.mxu0 0
      %567 = vmatpush1.bf16.msra.mxu0 %v536
      %568 = vmatprep.subr.bf16.mxu0 0
      %569 = vmatpush2.bf16.msra.mxu0 0
      %570 = vmatprep.subr.bf16.mxu0 0
      %571 = vmatpush2.bf16.msra.mxu0 0
      %572 = vmatprep.subr.bf16.mxu0 0
      %573 = vmatpush2.bf16.msra.mxu0 0
      %574 = vmatprep.subr.bf16.mxu0 0
      %575 = vmatpush2.bf16.msra.mxu0 0
      %576 = vmatprep.subr.bf16.mxu0 0
      %577 = vmatpush2.bf16.msra.mxu0 0
      %578 = vmatprep.subr.bf16.mxu0 0
      %579 = vmatpush2.bf16.msra.mxu0 0
      %580 = vmatprep.subr.bf16.mxu0 0
      %581 = vmatpush2.bf16.msra.mxu0 0
      %582 = vmatprep.subr.bf16.mxu0 0
      %583 = vmatpush2.bf16.msra.mxu0 0
      %584 = vmatprep.mubr.bf16.mxu0 0
      %585 = vmatmul.mubr.bf16.gmra.mxu0 %v472
      %v586 = vpop.f32.mrf.mxu0
      %v587 = vadd.f32 0.0, %v586
      %v588 = vpop.f32.mrf.mxu0
      %v589 = vpop.f32.mrf.mxu0
      %v590 = vadd.f32 0.0, %v589
      %v591 = vpop.f32.mrf.mxu0
      %592 = vmatprep.mubr.bf16.mxu0 0
      %593 = vmatmul.mubr.bf16.gmra.mxu0 %v473
      %v594 = vpop.f32.mrf.mxu0
      %v595 = vadd.f32 0.0, %v594
      %v596 = vpop.f32.mrf.mxu0
      %v597 = vpop.f32.mrf.mxu0
      %v598 = vadd.f32 0.0, %v597
      %v599 = vpop.f32.mrf.mxu0
      %600 = vmatprep.mubr.bf16.mxu0 0
      %601 = vmatmul.mubr.bf16.gmra.mxu0 %v474
      %v602 = vpop.f32.mrf.mxu0
      %v603 = vadd.f32 0.0, %v602
      %v604 = vpop.f32.mrf.mxu0
      %v605 = vpop.f32.mrf.mxu0
      %v606 = vadd.f32 0.0, %v605
      %v607 = vpop.f32.mrf.mxu0
      %608 = vmatprep.mubr.bf16.mxu0 0
      %609 = vmatmul.mubr.bf16.gmra.mxu0 %v475
      %v610 = vpop.f32.mrf.mxu0
      %v611 = vadd.f32 0.0, %v610
      %v612 = vpop.f32.mrf.mxu0
      %v613 = vpop.f32.mrf.mxu0
      %v614 = vadd.f32 0.0, %v613
      %v615 = vpop.f32.mrf.mxu0
      %616 = vmatprep.mubr.bf16.mxu0 0
      %617 = vmatmul.mubr.bf16.gmra.mxu0 %v476
      %v618 = vpop.f32.mrf.mxu0
      %v619 = vadd.f32 0.0, %v618
      %v620 = vpop.f32.mrf.mxu0
      %v621 = vpop.f32.mrf.mxu0
      %v622 = vadd.f32 0.0, %v621
      %v623 = vpop.f32.mrf.mxu0
      %624 = vmatprep.mubr.bf16.mxu0 0
      %625 = vmatmul.mubr.bf16.gmra.mxu0 %v477
      %v626 = vpop.f32.mrf.mxu0
      %v627 = vadd.f32 0.0, %v626
      %v628 = vpop.f32.mrf.mxu0
      %v629 = vpop.f32.mrf.mxu0
      %v630 = vadd.f32 0.0, %v629
      %v631 = vpop.f32.mrf.mxu0
      %632 = vmatprep.mubr.bf16.mxu0 0
      %633 = vmatmul.mubr.bf16.gmra.mxu0 %v478
      %v634 = vpop.f32.mrf.mxu0
      %v635 = vadd.f32 0.0, %v634
      %v636 = vpop.f32.mrf.mxu0
      %v637 = vpop.f32.mrf.mxu0
      %v638 = vadd.f32 0.0, %v637
      %v639 = vpop.f32.mrf.mxu0
      %640 = vmatprep.mubr.bf16.mxu0 0
      %641 = vmatmul.mubr.bf16.gmra.mxu0 %v479
      %v642 = vpop.f32.mrf.mxu0
      %v643 = vadd.f32 0.0, %v642
      %v644 = vpop.f32.mrf.mxu0
      %v645 = vpop.f32.mrf.mxu0
      %v646 = vadd.f32 0.0, %v645
      %v647 = vpop.f32.mrf.mxu0
      %648 = vmatprep.mubr.bf16.mxu0 0
      %649 = vmatmul.mubr.bf16.gmra.mxu0 %v480
      %v650 = vpop.f32.mrf.mxu0
      %v651 = vadd.f32 0.0, %v650
      %v652 = vpop.f32.mrf.mxu0
      %v653 = vpop.f32.mrf.mxu0
      %v654 = vadd.f32 0.0, %v653
      %v655 = vpop.f32.mrf.mxu0
      %656 = vmatprep.mubr.bf16.mxu0 0
      %657 = vmatmul.mubr.bf16.gmra.mxu0 %v481
      %v658 = vpop.f32.mrf.mxu0
      %v659 = vadd.f32 0.0, %v658
      %v660 = vpop.f32.mrf.mxu0
      %v661 = vpop.f32.mrf.mxu0
      %v662 = vadd.f32 0.0, %v661
      %v663 = vpop.f32.mrf.mxu0
      %664 = vmatprep.mubr.bf16.mxu0 0
      %665 = vmatmul.mubr.bf16.gmra.mxu0 %v482
      %v666 = vpop.f32.mrf.mxu0
      %v667 = vadd.f32 0.0, %v666
      %v668 = vpop.f32.mrf.mxu0
      %v669 = vpop.f32.mrf.mxu0
      %v670 = vadd.f32 0.0, %v669
      %v671 = vpop.f32.mrf.mxu0
      %672 = vmatprep.mubr.bf16.mxu0 0
      %673 = vmatmul.mubr.bf16.gmra.mxu0 %v483
      %v674 = vpop.f32.mrf.mxu0
      %v675 = vadd.f32 0.0, %v674
      %v676 = vpop.f32.mrf.mxu0
      %v677 = vpop.f32.mrf.mxu0
      %v678 = vadd.f32 0.0, %v677
      %v679 = vpop.f32.mrf.mxu0
      %680 = vmatprep.mubr.bf16.mxu0 0
      %681 = vmatmul.mubr.bf16.gmra.mxu0 %v484
      %v682 = vpop.f32.mrf.mxu0
      %v683 = vadd.f32 0.0, %v682
      %v684 = vpop.f32.mrf.mxu0
      %v685 = vpop.f32.mrf.mxu0
      %v686 = vadd.f32 0.0, %v685
      %v687 = vpop.f32.mrf.mxu0
      %688 = vmatprep.mubr.bf16.mxu0 0
      %689 = vmatmul.mubr.bf16.gmra.mxu0 %v485
      %v690 = vpop.f32.mrf.mxu0
      %v691 = vadd.f32 0.0, %v690
      %v692 = vpop.f32.mrf.mxu0
      %v693 = vpop.f32.mrf.mxu0
      %v694 = vadd.f32 0.0, %v693
      %v695 = vpop.f32.mrf.mxu0
      %696 = vmatprep.mubr.bf16.mxu0 0
      %697 = vmatmul.mubr.bf16.gmra.mxu0 %v486
      %v698 = vpop.f32.mrf.mxu0
      %v699 = vadd.f32 0.0, %v698
      %v700 = vpop.f32.mrf.mxu0
      %v701 = vpop.f32.mrf.mxu0
      %v702 = vadd.f32 0.0, %v701
      %v703 = vpop.f32.mrf.mxu0
      %704 = vmatprep.mubr.bf16.mxu0 0
      %705 = vmatmul.mubr.bf16.gmra.mxu0 %v487
      %v706 = vpop.f32.mrf.mxu0
      %v707 = vadd.f32 0.0, %v706
      %v708 = vpop.f32.mrf.mxu0
      %v709 = vpop.f32.mrf.mxu0
      %v710 = vadd.f32 0.0, %v709
      %v711 = vpop.f32.mrf.mxu0
      %712 = vdwg.mxu0
      %v713 = vadd.f32 %v360, %v587
      %v714 = vadd.f32 %v361, %v590
      %v715 = vadd.f32 %v362, %v595
      %v716 = vadd.f32 %v363, %v598
      %v717 = vadd.f32 %v364, %v603
      %v718 = vadd.f32 %v365, %v606
      %v719 = vadd.f32 %v366, %v611
      %v720 = vadd.f32 %v367, %v614
      %v721 = vadd.f32 %v368, %v619
      %v722 = vadd.f32 %v369, %v622
      %v723 = vadd.f32 %v370, %v627
      %v724 = vadd.f32 %v371, %v630
      %v725 = vadd.f32 %v372, %v635
      %v726 = vadd.f32 %v373, %v638
      %v727 = vadd.f32 %v374, %v643
      %v728 = vadd.f32 %v375, %v646
      %v729 = vadd.f32 %v376, %v651
      %v730 = vadd.f32 %v377, %v654
      %v731 = vadd.f32 %v378, %v659
      %v732 = vadd.f32 %v379, %v662
      %v733 = vadd.f32 %v380, %v667
      %v734 = vadd.f32 %v381, %v670
      %v735 = vadd.f32 %v382, %v675
      %v736 = vadd.f32 %v383, %v678
      %v737 = vadd.f32 %v384, %v683
      %v738 = vadd.f32 %v385, %v686
      %v739 = vadd.f32 %v386, %v691
      %v740 = vadd.f32 %v387, %v694
      %v741 = vadd.f32 %v388, %v699
      %v742 = vadd.f32 %v389, %v702
      %v743 = vadd.f32 %v390, %v707
      %v744 = vadd.f32 %v391, %v710
      %745 = vst [vmem:[#allocation2] sm:$0xff] %v713
      %746 = vst [vmem:[#allocation2 + $0x8] sm:$0xff] %v714
      %747 = vst [vmem:[#allocation2 + $0x10] sm:$0xff] %v715
      %748 = vst [vmem:[#allocation2 + $0x18] sm:$0xff] %v716
      %749 = vst [vmem:[#allocation2 + $0x20] sm:$0xff] %v717
      %750 = vst [vmem:[#allocation2 + $0x28] sm:$0xff] %v718
      %751 = vst [vmem:[#allocation2 + $0x30] sm:$0xff] %v719
      %752 = vst [vmem:[#allocation2 + $0x38] sm:$0xff] %v720
      %753 = vst [vmem:[#allocation2 + $0x40] sm:$0xff] %v721
      %754 = vst [vmem:[#allocation2 + $0x48] sm:$0xff] %v722
      %755 = vst [vmem:[#allocation2 + $0x50] sm:$0xff] %v723
      %756 = vst [vmem:[#allocation2 + $0x58] sm:$0xff] %v724
      %757 = vst [vmem:[#allocation2 + $0x60] sm:$0xff] %v725
      %758 = vst [vmem:[#allocation2 + $0x68] sm:$0xff] %v726
      %759 = vst [vmem:[#allocation2 + $0x70] sm:$0xff] %v727
      %760 = vst [vmem:[#allocation2 + $0x78] sm:$0xff] %v728
      %761 = vst [vmem:[#allocation2 + $0x80] sm:$0xff] %v729
      %762 = vst [vmem:[#allocation2 + $0x88] sm:$0xff] %v730
      %763 = vst [vmem:[#allocation2 + $0x90] sm:$0xff] %v731
      %764 = vst [vmem:[#allocation2 + $0x98] sm:$0xff] %v732
      %765 = vst [vmem:[#allocation2 + $0xa0] sm:$0xff] %v733
      %766 = vst [vmem:[#allocation2 + $0xa8] sm:$0xff] %v734
      %767 = vst [vmem:[#allocation2 + $0xb0] sm:$0xff] %v735
      %768 = vst [vmem:[#allocation2 + $0xb8] sm:$0xff] %v736
      %769 = vst [vmem:[#allocation2 + $0xc0] sm:$0xff] %v737
      %770 = vst [vmem:[#allocation2 + $0xc8] sm:$0xff] %v738
      %771 = vst [vmem:[#allocation2 + $0xd0] sm:$0xff] %v739
      %772 = vst [vmem:[#allocation2 + $0xd8] sm:$0xff] %v740
      %773 = vst [vmem:[#allocation2 + $0xe0] sm:$0xff] %v741
      %774 = vst [vmem:[#allocation2 + $0xe8] sm:$0xff] %v742
      %775 = vst [vmem:[#allocation2 + $0xf0] sm:$0xff] %v743
      %776 = vst [vmem:[#allocation2 + $0xf8] sm:$0xff] %v744
      // Predicated region
      $region37: #{_lambda_.74} parent=31 // pred_check
        %p777 = pneg %p260
      $region38: #{_lambda_.74} parent=31 // pred_check_branch
        %779 = sbr.rel (%p777) target = $region40
      $region39: #{_lambda_.74} parent=31 // pred_region
        %v780 = vld [vmem:[#allocation2] sm:$0xff]
        %v781 = vld [vmem:[#allocation2 + $0x8] sm:$0xff]
        %v782 = vld [vmem:[#allocation2 + $0x10] sm:$0xff]
        %v783 = vld [vmem:[#allocation2 + $0x18] sm:$0xff]
        %v784 = vld [vmem:[#allocation2 + $0x20] sm:$0xff]
        %v785 = vld [vmem:[#allocation2 + $0x28] sm:$0xff]
        %v786 = vld [vmem:[#allocation2 + $0x30] sm:$0xff]
        %v787 = vld [vmem:[#allocation2 + $0x38] sm:$0xff]
        %v788 = vld [vmem:[#allocation2 + $0x40] sm:$0xff]
        %v789 = vld [vmem:[#allocation2 + $0x48] sm:$0xff]
        %v790 = vld [vmem:[#allocation2 + $0x50] sm:$0xff]
        %v791 = vld [vmem:[#allocation2 + $0x58] sm:$0xff]
        %v792 = vld [vmem:[#allocation2 + $0x60] sm:$0xff]
        %v793 = vld [vmem:[#allocation2 + $0x68] sm:$0xff]
        %v794 = vld [vmem:[#allocation2 + $0x70] sm:$0xff]
        %v795 = vld [vmem:[#allocation2 + $0x78] sm:$0xff]
        %v796 = vld [vmem:[#allocation2 + $0x80] sm:$0xff]
        %v797 = vld [vmem:[#allocation2 + $0x88] sm:$0xff]
        %v798 = vld [vmem:[#allocation2 + $0x90] sm:$0xff]
        %v799 = vld [vmem:[#allocation2 + $0x98] sm:$0xff]
        %v800 = vld [vmem:[#allocation2 + $0xa0] sm:$0xff]
        %v801 = vld [vmem:[#allocation2 + $0xa8] sm:$0xff]
        %v802 = vld [vmem:[#allocation2 + $0xb0] sm:$0xff]
        %v803 = vld [vmem:[#allocation2 + $0xb8] sm:$0xff]
        %v804 = vld [vmem:[#allocation2 + $0xc0] sm:$0xff]
        %v805 = vld [vmem:[#allocation2 + $0xc8] sm:$0xff]
        %v806 = vld [vmem:[#allocation2 + $0xd0] sm:$0xff]
        %v807 = vld [vmem:[#allocation2 + $0xd8] sm:$0xff]
        %v808 = vld [vmem:[#allocation2 + $0xe0] sm:$0xff]
        %v809 = vld [vmem:[#allocation2 + $0xe8] sm:$0xff]
        %v810 = vld [vmem:[#allocation2 + $0xf0] sm:$0xff]
        %v811 = vld [vmem:[#allocation2 + $0xf8] sm:$0xff]
        %v812 = vld [vmem:[%s249] sm:$0x1]
        %v814 = vlaneseq
        %v815 = vshrl.u32 %v814, 7
        %v816 = vsub.s32 0, %v815
        %v817 = vrot.slane %v812, %v816
        %v819 = vadd.f32 %v780, %v817
        %v820 = vadd.f32 %v781, %v817
        %v821 = vadd.f32 %v782, %v817
        %v822 = vadd.f32 %v783, %v817
        %v823 = vadd.f32 %v784, %v817
        %v824 = vadd.f32 %v785, %v817
        %v825 = vadd.f32 %v786, %v817
        %v826 = vadd.f32 %v787, %v817
        %v827 = vadd.f32 %v788, %v817
        %v828 = vadd.f32 %v789, %v817
        %v829 = vadd.f32 %v790, %v817
        %v830 = vadd.f32 %v791, %v817
        %v831 = vadd.f32 %v792, %v817
        %v832 = vadd.f32 %v793, %v817
        %v833 = vadd.f32 %v794, %v817
        %v834 = vadd.f32 %v795, %v817
        %v835 = vadd.f32 %v796, %v817
        %v836 = vadd.f32 %v797, %v817
        %v837 = vadd.f32 %v798, %v817
        %v838 = vadd.f32 %v799, %v817
        %v839 = vadd.f32 %v800, %v817
        %v840 = vadd.f32 %v801, %v817
        %v841 = vadd.f32 %v802, %v817
        %v842 = vadd.f32 %v803, %v817
        %v843 = vadd.f32 %v804, %v817
        %v844 = vadd.f32 %v805, %v817
        %v845 = vadd.f32 %v806, %v817
        %v846 = vadd.f32 %v807, %v817
        %v847 = vadd.f32 %v808, %v817
        %v848 = vadd.f32 %v809, %v817
        %v849 = vadd.f32 %v810, %v817
        %v850 = vadd.f32 %v811, %v817
        %v851 = vtanh.pop %v819
        %v852 = vtanh.pop %v820
        %v853 = vtanh.pop %v821
        %v854 = vtanh.pop %v822
        %v855 = vtanh.pop %v823
        %v856 = vtanh.pop %v824
        %v857 = vtanh.pop %v825
        %v858 = vtanh.pop %v826
        %v859 = vtanh.pop %v827
        %v860 = vtanh.pop %v828
        %v861 = vtanh.pop %v829
        %v862 = vtanh.pop %v830
        %v863 = vtanh.pop %v831
        %v864 = vtanh.pop %v832
        %v865 = vtanh.pop %v833
        %v866 = vtanh.pop %v834
        %v867 = vtanh.pop %v835
        %v868 = vtanh.pop %v836
        %v869 = vtanh.pop %v837
        %v870 = vtanh.pop %v838
        %v871 = vtanh.pop %v839
        %v872 = vtanh.pop %v840
        %v873 = vtanh.pop %v841
        %v874 = vtanh.pop %v842
        %v875 = vtanh.pop %v843
        %v876 = vtanh.pop %v844
        %v877 = vtanh.pop %v845
        %v878 = vtanh.pop %v846
        %v879 = vtanh.pop %v847
        %v880 = vtanh.pop %v848
        %v881 = vtanh.pop %v849
        %v882 = vtanh.pop %v850
        %883 = vst [vmem:[%s257] sm:$0xff] %v851
        %884 = vst [vmem:[%s257 + $0x8] sm:$0xff] %v852
        %885 = vst [vmem:[%s257 + $0x10] sm:$0xff] %v853
        %886 = vst [vmem:[%s257 + $0x18] sm:$0xff] %v854
        %887 = vst [vmem:[%s257 + $0x20] sm:$0xff] %v855
        %888 = vst [vmem:[%s257 + $0x28] sm:$0xff] %v856
        %889 = vst [vmem:[%s257 + $0x30] sm:$0xff] %v857
        %890 = vst [vmem:[%s257 + $0x38] sm:$0xff] %v858
        %891 = vst [vmem:[%s257 + $0x40] sm:$0xff] %v859
        %892 = vst [vmem:[%s257 + $0x48] sm:$0xff] %v860
        %893 = vst [vmem:[%s257 + $0x50] sm:$0xff] %v861
        %894 = vst [vmem:[%s257 + $0x58] sm:$0xff] %v862
        %895 = vst [vmem:[%s257 + $0x60] sm:$0xff] %v863
        %896 = vst [vmem:[%s257 + $0x68] sm:$0xff] %v864
        %897 = vst [vmem:[%s257 + $0x70] sm:$0xff] %v865
        %898 = vst [vmem:[%s257 + $0x78] sm:$0xff] %v866
        %899 = vst [vmem:[%s257 + $0x80] sm:$0xff] %v867
        %900 = vst [vmem:[%s257 + $0x88] sm:$0xff] %v868
        %901 = vst [vmem:[%s257 + $0x90] sm:$0xff] %v869
        %902 = vst [vmem:[%s257 + $0x98] sm:$0xff] %v870
        %903 = vst [vmem:[%s257 + $0xa0] sm:$0xff] %v871
        %904 = vst [vmem:[%s257 + $0xa8] sm:$0xff] %v872
        %905 = vst [vmem:[%s257 + $0xb0] sm:$0xff] %v873
        %906 = vst [vmem:[%s257 + $0xb8] sm:$0xff] %v874
        %907 = vst [vmem:[%s257 + $0xc0] sm:$0xff] %v875
        %908 = vst [vmem:[%s257 + $0xc8] sm:$0xff] %v876
        %909 = vst [vmem:[%s257 + $0xd0] sm:$0xff] %v877
        %910 = vst [vmem:[%s257 + $0xd8] sm:$0xff] %v878
        %911 = vst [vmem:[%s257 + $0xe0] sm:$0xff] %v879
        %912 = vst [vmem:[%s257 + $0xe8] sm:$0xff] %v880
        %913 = vst [vmem:[%s257 + $0xf0] sm:$0xff] %v881
        %914 = vst [vmem:[%s257 + $0xf8] sm:$0xff] %v882
      $region40: #{_lambda_.74} parent=31 // pred_fallthru
        _
      %s915 = smul.u32 32, %s19
      %p916 = scmp.lt.s32.totalorder %s915, 63
      %s917 = scalar_select %p916, %s915, 63
      %p918 = scmp.lt.s32.totalorder %s20, 0
      %s919 = scalar_select %p918, %s20, 0
      %s920 = sadd.s32 %s919, %s917
      %s921 = smul.addr %s920, 8
      %s922 = scalar_lea.vmem %s3, %s921
      // Predicated region
      $region41: #{_lambda_.74} parent=31 // pred_check
        %p923 = pneg %p135
      $region42: #{_lambda_.74} parent=31 // pred_check_branch
        %925 = sbr.rel (%p923) target = $region44
      $region43: #{_lambda_.74} parent=31 // pred_region
        %s926 = smul.u32 32, %s19
      $region44: #{_lambda_.74} parent=31 // pred_fallthru
        _
    $region32: #{_lambda_.74} parent=5 // pred_fallthru
      _
    %p927 = scmp.le.s32.totalorder 2, %s9
    // Predicated region
    $region45: #{_lambda_.74} parent=5 // pred_check
      %p928 = pneg %p927
    $region46: #{_lambda_.74} parent=5 // pred_check_branch
      %930 = sbr.rel (%p928) target = $region48
    $region47: #{_lambda_.74} parent=5 // pred_region
      %s931 = ssub.s32 %s9, 2
      // Predicated region
      $region49: #{_lambda_.74} parent=47 // pred_check
        %p932 = pneg %p141
      $region50: #{_lambda_.74} parent=47 // pred_check_branch
        %934 = sbr.rel (%p932) target = $region52
      $region51: #{_lambda_.74} parent=47 // pred_region
        %s935 = smul.u32 32, %s22
        %p936 = scmp.lt.s32.totalorder %s935, 63
        %s937 = scalar_select %p936, %s935, 63
        %p938 = scmp.lt.s32.totalorder %s23, 0
        %s939 = scalar_select %p938, %s23, 0
        %s940 = sadd.s32 %s939, %s937
        %s941 = smul.addr %s940, 8
        %s942 = scalar_lea.vmem %s3, %s941
      $region52: #{_lambda_.74} parent=47 // pred_fallthru
        _
    $region48: #{_lambda_.74} parent=5 // pred_fallthru
      _
  $region6: #{_lambda_.74} parent=0 // loop_footer
    %s13 = sadd.s32 1, %s9
  $region7: #{_lambda_.74} parent=0 // loop_footer_branch
    %8 = sbr.rel target = $region3
  $region8: #{_lambda_.74} parent=0 // loop_exit
    _

</llo_original>
